<compile_context>
chip_gen: v6e
topology: v6e:2x2x1
jax: 0.10.0
libtpu: 0.0.40
codegen_flags: <defaults>
</compile_context>

<pallas_src>
import math

import numpy as np
import jax
import jax.numpy as jnp
from jax import lax
from jax.experimental import pallas as pl
from jax.experimental.pallas import tpu as pltpu

# --------------------------- member-model sizes -----------------------------
B = 8          # batch rows (== sequence axis of the 2-D MultiheadAttention input)
D_IN = 16      # input_size
E = 32         # embed_size
NUM_HEADS = 4  # attention heads
DH = E // NUM_HEADS
HID = 64       # hidden_layers[-1]
N_PD, N_ND, N_MOD, N_DLT = 3, 3, 4, 6        # synthetic Const.* sizes
N_OUT = N_PD + N_ND + N_MOD + N_DLT          # 16 : fused member output width
EPS = 0.01     # SimulatorBase.eps
LN_EPS = 1e-5  # torch LayerNorm default

# ------------------------------ ensemble sizes ------------------------------
N_BASE = 4     # len(base_models)
N_ERROR = 2    # len(error_models)
N_TOTAL = N_BASE + N_ERROR
CI = 0.1       # EndpointEnsemble ci buffer

# ------------------------- packed parameter-slab layout ---------------------
WP_W = 2 * E + NUM_HEADS * E                  # 192 : fused [Wq | Wk | Wv_h@Wo_h ...]
SLAB_LANES = WP_W                             # lane width of both slabs
# matrix slab row offsets (sublane offsets, all multiples of 8)
R_WR = 0
R_WP = R_WR + D_IN                            # 16
R_WL = R_WP + E                               # 48
R_WH = R_WL + E                               # 80
MAT_ROWS = R_WH + HID                         # 144
# bias slab: one bias vector per sublane row
V_BR, V_BP, V_BVO, V_GAMMA, V_BETA, V_BL, V_BH = range(7)
VEC_ROWS = 8
# const-mask layout: rows 0..2 = segment indicators (rows 3..7 zero so rows 0..7
# can be used directly as an aligned (8, N_OUT) matmul operand), row 8 = softmax
# lane mask, row 9 = decision-gate mask, rest zero pad.
SOFT_ROW, GATE_ROW, CONST_ROWS = 8, 9, 16


# ============================== fused kernel ================================
def ensemble_kernel(x_ref, mat_ref, vec_ref, const_ref, out_ref):
    f32 = jnp.float32
    nt = (((1,), (1,)), ((), ()))            # A @ B.T without an XLU transpose
    inv_sqrt_dh = 1.0 / math.sqrt(DH)
    neg_big = -1e30

    x_in = x_ref[...]                                        # (B, D_IN)
    scale = (x_in[:, D_IN - 1:D_IN] > 0.5).astype(f32)       # decision = x[:, -1] > .5
    xn = (x_in + EPS) / (1.0 + EPS)                          # normalize (mean=0, std=1)

    seg_pad = const_ref[0:8, :]                              # (8, N_OUT), rows 3..7 zero
    seg0 = const_ref[0:1, :]
    seg1 = const_ref[1:2, :]
    seg2 = const_ref[2:3, :]
    soft = const_ref[SOFT_ROW:SOFT_ROW + 1, :]               # (1, N_OUT) softmax lanes
    gate = const_ref[GATE_ROW:GATE_ROW + 1, :]               # (1, N_OUT) gated lanes
    one_m_soft = 1.0 - soft
    gate_scale = 1.0 + gate * (scale - 1.0)                  # (B, N_OUT), hoisted

    member_outs = []
    for m in range(N_TOTAL):                                 # statically unrolled
        # static slices of the packed parameter slabs (lane offset always 0,
        # sublane offsets multiples of 8)
        wr = mat_ref[m, R_WR:R_WR + D_IN, 0:E]
        wp = mat_ref[m, R_WP:R_WP + E, 0:WP_W]
        wl = mat_ref[m, R_WL:R_WL + E, 0:HID]
        wh = mat_ref[m, R_WH:R_WH + HID, 0:N_OUT]
        br = vec_ref[m, V_BR:V_BR + 1, 0:E]
        bp = vec_ref[m, V_BP:V_BP + 1, 0:WP_W]
        bvo = vec_ref[m, V_BVO:V_BVO + 1, 0:E]
        gamma = vec_ref[m, V_GAMMA:V_GAMMA + 1, 0:E]
        beta = vec_ref[m, V_BETA:V_BETA + 1, 0:E]
        bl = vec_ref[m, V_BL:V_BL + 1, 0:HID]
        bh = vec_ref[m, V_BH:V_BH + 1, 0:N_OUT]

        # resize + ReLU
        h1 = jnp.maximum(jnp.dot(xn, wr, preferred_element_type=f32) + br, 0.0)  # (B, E)

        # ---- multi-head self-attention (QKV fused, V/out-proj folded per head) ----
        proj = jnp.dot(h1, wp, preferred_element_type=f32) + bp     # (B, 2E + H*E)
        q = proj[:, 0:E]
        k = proj[:, E:2 * E]

        ps, vos = [], []
        for h in range(NUM_HEADS):
            qh = q[:, h * DH:(h + 1) * DH]                           # (B, DH)
            kh = k[:, h * DH:(h + 1) * DH]                           # (B, DH)
            s = lax.dot_general(qh, kh, nt, preferred_element_type=f32) * inv_sqrt_dh
            s = s - jnp.max(s, axis=-1, keepdims=True)
            p = jnp.exp(s)
            p = p * pl.reciprocal(jnp.sum(p, axis=-1, keepdims=True), approx=True)
            ps.append(p)
            vos.append(proj[:, 2 * E + h * E:2 * E + (h + 1) * E])   # x @ (Wv_h @ Wo_h)
        p_cat = jnp.concatenate(ps, axis=1)                          # (B, H*B)
        vo_cat = jnp.concatenate(vos, axis=0)                        # (H*B, E)
        attn = jnp.dot(p_cat, vo_cat, preferred_element_type=f32)    # (B, E), 1 matmul

        # residual + folded out-proj bias, LayerNorm, ReLU
        x2 = attn + bvo + h1
        mu = jnp.mean(x2, axis=-1, keepdims=True)
        var = jnp.mean((x2 - mu) * (x2 - mu), axis=-1, keepdims=True)
        x2 = jnp.maximum((x2 - mu) * lax.rsqrt(var + LN_EPS) * gamma + beta, 0.0)

        # hidden layer + ReLU, fused output heads [pd(3) | nd(3) | mod(4) | dlt(6)]
        hdd = jnp.maximum(jnp.dot(x2, wl, preferred_element_type=f32) + bl, 0.0)
        z = jnp.dot(hdd, wh, preferred_element_type=f32) + bh        # (B, N_OUT)

        # decision gating (pd, nd, mod[:,1:] scaled; mod[:,0] / dlt untouched)
        z = z * gate_scale

        # segmented softmax (masked full-width maxes, MXU segment sums) + sigmoid tail
        m0 = jnp.max(jnp.where(seg0 > 0.0, z, neg_big), axis=-1, keepdims=True)
        m1 = jnp.max(jnp.where(seg1 > 0.0, z, neg_big), axis=-1, keepdims=True)
        m2 = jnp.max(jnp.where(seg2 > 0.0, z, neg_big), axis=-1, keepdims=True)
        m_full = m0 * seg0 + m1 * seg1 + m2 * seg2
        e = jnp.exp((z - m_full) * soft) * soft                      # zeros on dlt lanes
        d_seg = lax.dot_general(e, seg_pad, nt, preferred_element_type=f32)   # (B, 8)
        denom = jnp.dot(d_seg, seg_pad, preferred_element_type=f32) + one_m_soft
        soft_vals = e * pl.reciprocal(denom, approx=True)
        sig_vals = pl.reciprocal(1.0 + jnp.exp(-(z * one_m_soft)), approx=True)
        member_outs.append(soft_vals + sig_vals * one_m_soft)        # (B, N_OUT)

    # ------------- fused ensemble reduce (average + cf quantiles) -------------
    if N_BASE >= 2:
        acc = member_outs[0]
        for m in range(1, N_BASE):
            acc = acc + member_outs[m]
        pred = acc * (1.0 / N_BASE)
    else:
        pred = member_outs[0]

    # static compare-exchange sort network along the member axis
    v = list(member_outs)
    for i in range(N_TOTAL - 1):
        for j in range(N_TOTAL - 1 - i):
            a, b = v[j], v[j + 1]
            v[j] = jnp.minimum(a, b)
            v[j + 1] = jnp.maximum(a, b)

    def _quantile(q):
        pos = q * (N_TOTAL - 1)
        i0 = int(math.floor(pos))
        i1 = min(i0 + 1, N_TOTAL - 1)
        return v[i0] + (v[i1] - v[i0]) * (pos - i0)    # torch 'linear' interpolation

    # single lane-concatenated store: [predictions | 5% | 95%]
    out_ref[...] = jnp.concatenate([pred, _quantile(CI), _quantile(1.0 - CI)], axis=-1)


# ============================== host wrapper =================================
def _vmem():
    return pl.BlockSpec(memory_space=pltpu.MemorySpace.VMEM)


@jax.jit
def endpoint_ensemble_forward(x, mat_slab, vec_slab, consts):
    bsz = x.shape[0]
    fused = pl.pallas_call(
        ensemble_kernel,
        out_shape=jax.ShapeDtypeStruct((bsz, 3 * N_OUT), jnp.float32),
        in_specs=[_vmem(), _vmem(), _vmem(), _vmem()],
        out_specs=_vmem(),
    )(x, mat_slab, vec_slab, consts)
    return {"predictions": fused[:, 0:N_OUT],
            "5%": fused[:, N_OUT:2 * N_OUT],
            "95%": fused[:, 2 * N_OUT:3 * N_OUT]}


# ------------------------- parameters & constants ---------------------------
def make_member_raw_params(key):
    """One member simulator's parameters; linear weights stored (in, out)."""
    ks = jax.random.split(key, 24)
    it = iter(ks)

    def w(shape, s=0.1):
        return (s * jax.random.normal(next(it), shape)).astype(jnp.float32)

    def bvec(n, s=0.05):
        return (s * jax.random.normal(next(it), (1, n))).astype(jnp.float32)

    return dict(
        wr=w((D_IN, E)), br=bvec(E),
        wq=w((E, E)), bq=bvec(E),
        wk=w((E, E)), bk=bvec(E),
        wv=w((E, E)), bv=bvec(E),
        wo=w((E, E)), bo=bvec(E),
        gamma=jnp.ones((1, E), jnp.float32), beta=jnp.zeros((1, E), jnp.float32),
        wl=w((E, HID)), bl=bvec(HID),
        wpd=w((HID, N_PD)), bpd=bvec(N_PD),
        wnd=w((HID, N_ND)), bnd=bvec(N_ND),
        wmod=w((HID, N_MOD)), bmod=bvec(N_MOD),
        wdlt=w((HID, N_DLT)), bdlt=bvec(N_DLT),
    )


def _pad_lanes(a, width=SLAB_LANES):
    return jnp.pad(a, ((0, 0), (0, width - a.shape[1])))


def pack_member_params(r):
    """Fuse one member's weights (QKV fusion + V/out-proj folding) and pack them
    into one matrix slab (MAT_ROWS, 192) and one bias slab (8, 192)."""
    wq, wk, wv, wo = r["wq"], r["wk"], r["wv"], r["wo"]
    wvo = [wv[:, h * DH:(h + 1) * DH] @ wo[h * DH:(h + 1) * DH, :] for h in range(NUM_HEADS)]
    wp = jnp.concatenate([wq, wk] + wvo, axis=1)                            # (E, WP_W)
    bp = jnp.concatenate(
        [r["bq"], r["bk"], jnp.zeros((1, NUM_HEADS * E), jnp.float32)], axis=1)
    bvo = r["bo"] + r["bv"] @ wo                                            # (1, E)
    wh = jnp.concatenate([r["wpd"], r["wnd"], r["wmod"], r["wdlt"]], axis=1)  # (HID, 16)
    bh = jnp.concatenate([r["bpd"], r["bnd"], r["bmod"], r["bdlt"]], axis=1)  # (1, 16)

    mat = jnp.concatenate([_pad_lanes(r["wr"]), _pad_lanes(wp),
                           _pad_lanes(r["wl"]), _pad_lanes(wh)], axis=0)    # (144, 192)
    vec_rows = [r["br"], bp, bvo, r["gamma"], r["beta"], r["bl"], bh]
    vec = jnp.concatenate(
        [_pad_lanes(b) for b in vec_rows]
        + [jnp.zeros((VEC_ROWS - len(vec_rows), SLAB_LANES), jnp.float32)], axis=0)
    return mat, vec


def stack_members(raw_list):
    packed = [pack_member_params(r) for r in raw_list]
    mat_slab = jnp.stack([p[0] for p in packed], axis=0)     # (N_TOTAL, 144, 192)
    vec_slab = jnp.stack([p[1] for p in packed], axis=0)     # (N_TOTAL, 8, 192)
    return mat_slab, vec_slab


def make_output_consts():
    c = np.zeros((CONST_ROWS, N_OUT), np.float32)
    c[0, 0:N_PD] = 1.0
    c[1, N_PD:N_PD + N_ND] = 1.0
    c[2, N_PD + N_ND:N_PD + N_ND + N_MOD] = 1.0
    soft = c[0:3].sum(axis=0)
    c[SOFT_ROW] = soft
    c[GATE_ROW] = soft
    c[GATE_ROW, N_PD + N_ND] = 0.0        # mod[:, 0] is not decision-gated
    return jnp.asarray(c)


# ----------------------------- pure-JAX reference ---------------------------
def member_forward_ref(x, r):
    scale = (x[:, D_IN - 1:D_IN] > 0.5).astype(jnp.float32)
    h = (x + EPS) / (1.0 + EPS)
    h = jax.nn.relu(h @ r["wr"] + r["br"])
    q = h @ r["wq"] + r["bq"]
    k = h @ r["wk"] + r["bk"]
    v = h @ r["wv"] + r["bv"]
    outs = []
    for hd in range(NUM_HEADS):
        qh, kh, vh = (q[:, hd * DH:(hd + 1) * DH], k[:, hd * DH:(hd + 1) * DH],
                      v[:, hd * DH:(hd + 1) * DH])
        p = jax.nn.softmax((qh @ kh.T) / math.sqrt(DH), axis=-1)
        outs.append(p @ vh)
    attn = jnp.concatenate(outs, axis=-1) @ r["wo"] + r["bo"]
    x2 = attn + h
    mu = x2.mean(-1, keepdims=True)
    var = ((x2 - mu) ** 2).mean(-1, keepdims=True)
    x2 = jax.nn.relu((x2 - mu) / jnp.sqrt(var + LN_EPS) * r["gamma"] + r["beta"])
    hid = jax.nn.relu(x2 @ r["wl"] + r["bl"])
    x_pd = (hid @ r["wpd"] + r["bpd"]) * scale
    x_nd = (hid @ r["wnd"] + r["bnd"]) * scale
    x_mod = hid @ r["wmod"] + r["bmod"]
    x_mod = jnp.concatenate([x_mod[:, :1], x_mod[:, 1:] * scale], axis=-1)
    x_dlt = hid @ r["wdlt"] + r["bdlt"]
    return jnp.concatenate([jax.nn.softmax(x_pd, -1), jax.nn.softmax(x_nd, -1),
                            jax.nn.softmax(x_mod, -1), jax.nn.sigmoid(x_dlt)], axis=-1)


def ensemble_ref(x, base_raw, error_raw):
    base_outs = jnp.stack([member_forward_ref(x, r) for r in base_raw])
    all_outs = jnp.concatenate(
        [base_outs, jnp.stack([member_forward_ref(x, r) for r in error_raw])], axis=0
    ) if error_raw else base_outs
    pred = base_outs.mean(axis=0) if len(base_raw) > 1 else base_outs[0]
    lo = jnp.quantile(all_outs, CI, axis=0)
    hi = jnp.quantile(all_outs, 1.0 - CI, axis=0)
    return pred, lo, hi


# =================================== main ====================================
if __name__ == "__main__":
    key = jax.random.PRNGKey(0)
    kx, *mkeys = jax.random.split(key, 1 + N_TOTAL)
    x = jax.random.normal(kx, (B, D_IN), dtype=jnp.float32)

    raw = [make_member_raw_params(mk) for mk in mkeys]       # base models first, then error
    base_raw, error_raw = raw[:N_BASE], raw[N_BASE:]

    mat_slab, vec_slab = stack_members(raw)
    consts = make_output_consts()

    out = endpoint_ensemble_forward(x, mat_slab, vec_slab, consts)
    jax.block_until_ready(out)

    pred, lo, hi = out["predictions"], out["5%"], out["95%"]
    assert pred.shape == (B, N_OUT) and lo.shape == (B, N_OUT) and hi.shape == (B, N_OUT)

    # averaged softmax segments still sum to 1; quantile bounds are ordered.
    # (tolerances slightly relaxed vs. exact math because softmax / sigmoid
    #  denominators use the approximate EUP reciprocal, per the perf review)
    assert bool(jnp.allclose(pred[:, 0:N_PD].sum(-1), 1.0, atol=2e-3))
    assert bool(jnp.allclose(pred[:, N_PD:N_PD + N_ND].sum(-1), 1.0, atol=2e-3))
    assert bool(jnp.allclose(pred[:, N_PD + N_ND:N_PD + N_ND + N_MOD].sum(-1), 1.0, atol=2e-3))
    assert bool(jnp.all(lo <= hi + 1e-6))

    # cross-check against the plain-JAX (unfused) reference of the same module
    pred_r, lo_r, hi_r = ensemble_ref(x, base_raw, error_raw)
    assert bool(jnp.allclose(pred, pred_r, atol=2e-3))
    assert bool(jnp.allclose(lo, lo_r, atol=2e-3))
    assert bool(jnp.allclose(hi, hi_r, atol=2e-3))

    print("KERNEL_OK")
</pallas_src>

<mosaic_0001>
module attributes {stable_mosaic.version = 11 : i64} {
  func.func @ensemble_kernel(%arg0: memref<8x16xf32, #tpu.memory_space<vmem>>, %arg1: memref<6x144x192xf32, #tpu.memory_space<vmem>>, %arg2: memref<6x8x192xf32, #tpu.memory_space<vmem>>, %arg3: memref<16x16xf32, #tpu.memory_space<vmem>>, %arg4: memref<8x48xf32, #tpu.memory_space<vmem>>) attributes {dimension_semantics = [], scalar_prefetch = 0 : i64, scratch_operands = 0 : i64, tpu.core_type = #tpu.core_type<tc>} {
    %c0 = arith.constant 0 : index
    %c0_0 = arith.constant 0 : index
    %0 = vector.load %arg0[%c0, %c0_0] : memref<8x16xf32, #tpu.memory_space<vmem>>, vector<8x16xf32>
    %1 = vector.extract_strided_slice %0 {offsets = [0, 15], sizes = [8, 1], strides = [1, 1]} : vector<8x16xf32> to vector<8x1xf32>
    %cst = arith.constant 5.000000e-01 : f32
    %2 = vector.broadcast %cst : f32 to vector<8x1xf32>
    %3 = arith.cmpf ogt, %1, %2 : vector<8x1xf32>
    %4 = arith.extui %3 : vector<8x1xi1> to vector<8x1xi32>
    %5 = arith.sitofp %4 : vector<8x1xi32> to vector<8x1xf32>
    %cst_1 = arith.constant 0.00999999977 : f32
    %6 = vector.broadcast %cst_1 : f32 to vector<8x16xf32>
    %7 = arith.addf %0, %6 : vector<8x16xf32>
    %cst_2 = arith.constant 1.010000e+00 : f32
    %8 = vector.broadcast %cst_2 : f32 to vector<8x16xf32>
    %9 = arith.divf %7, %8 : vector<8x16xf32>
    %c0_3 = arith.constant 0 : index
    %c0_4 = arith.constant 0 : index
    %10 = vector.load %arg3[%c0_3, %c0_4] : memref<16x16xf32, #tpu.memory_space<vmem>>, vector<8x16xf32>
    %c0_5 = arith.constant 0 : index
    %c0_6 = arith.constant 0 : index
    %11 = vector.load %arg3[%c0_5, %c0_6] : memref<16x16xf32, #tpu.memory_space<vmem>>, vector<1x16xf32>
    %c1 = arith.constant 1 : index
    %c0_7 = arith.constant 0 : index
    %12 = vector.load %arg3[%c1, %c0_7] : memref<16x16xf32, #tpu.memory_space<vmem>>, vector<1x16xf32>
    %c2 = arith.constant 2 : index
    %c0_8 = arith.constant 0 : index
    %13 = vector.load %arg3[%c2, %c0_8] : memref<16x16xf32, #tpu.memory_space<vmem>>, vector<1x16xf32>
    %c8 = arith.constant 8 : index
    %c0_9 = arith.constant 0 : index
    %14 = vector.load %arg3[%c8, %c0_9] : memref<16x16xf32, #tpu.memory_space<vmem>>, vector<1x16xf32>
    %c9 = arith.constant 9 : index
    %c0_10 = arith.constant 0 : index
    %15 = vector.load %arg3[%c9, %c0_10] : memref<16x16xf32, #tpu.memory_space<vmem>>, vector<1x16xf32>
    %cst_11 = arith.constant 1.000000e+00 : f32
    %16 = vector.broadcast %cst_11 : f32 to vector<1x16xf32>
    %17 = arith.subf %16, %14 : vector<1x16xf32>
    %cst_12 = arith.constant 1.000000e+00 : f32
    %18 = vector.broadcast %cst_12 : f32 to vector<8x1xf32>
    %19 = arith.subf %5, %18 : vector<8x1xf32>
    %20 = vector.broadcast %15 : vector<1x16xf32> to vector<8x16xf32>
    %21 = vector.broadcast %19 : vector<8x1xf32> to vector<8x16xf32>
    %22 = arith.mulf %20, %21 : vector<8x16xf32>
    %cst_13 = arith.constant 1.000000e+00 : f32
    %23 = vector.broadcast %cst_13 : f32 to vector<8x16xf32>
    %24 = arith.addf %23, %22 : vector<8x16xf32>
    %c0_14 = arith.constant 0 : index
    %c0_15 = arith.constant 0 : index
    %c0_16 = arith.constant 0 : index
    %25 = vector.load %arg1[%c0_14, %c0_15, %c0_16] : memref<6x144x192xf32, #tpu.memory_space<vmem>>, vector<1x16x32xf32>
    %26 = vector.shape_cast %25 : vector<1x16x32xf32> to vector<16x32xf32>
    %c0_17 = arith.constant 0 : index
    %c16 = arith.constant 16 : index
    %c0_18 = arith.constant 0 : index
    %27 = vector.load %arg1[%c0_17, %c16, %c0_18] : memref<6x144x192xf32, #tpu.memory_space<vmem>>, vector<1x32x192xf32>
    %28 = vector.shape_cast %27 : vector<1x32x192xf32> to vector<32x192xf32>
    %c0_19 = arith.constant 0 : index
    %c48 = arith.constant 48 : index
    %c0_20 = arith.constant 0 : index
    %29 = vector.load %arg1[%c0_19, %c48, %c0_20] : memref<6x144x192xf32, #tpu.memory_space<vmem>>, vector<1x32x64xf32>
    %30 = vector.shape_cast %29 : vector<1x32x64xf32> to vector<32x64xf32>
    %c0_21 = arith.constant 0 : index
    %c80 = arith.constant 80 : index
    %c0_22 = arith.constant 0 : index
    %31 = vector.load %arg1[%c0_21, %c80, %c0_22] : memref<6x144x192xf32, #tpu.memory_space<vmem>>, vector<1x64x16xf32>
    %32 = vector.shape_cast %31 : vector<1x64x16xf32> to vector<64x16xf32>
    %c0_23 = arith.constant 0 : index
    %c0_24 = arith.constant 0 : index
    %c0_25 = arith.constant 0 : index
    %33 = vector.load %arg2[%c0_23, %c0_24, %c0_25] : memref<6x8x192xf32, #tpu.memory_space<vmem>>, vector<1x1x32xf32>
    %34 = vector.shape_cast %33 : vector<1x1x32xf32> to vector<1x32xf32>
    %c0_26 = arith.constant 0 : index
    %c1_27 = arith.constant 1 : index
    %c0_28 = arith.constant 0 : index
    %35 = vector.load %arg2[%c0_26, %c1_27, %c0_28] : memref<6x8x192xf32, #tpu.memory_space<vmem>>, vector<1x1x192xf32>
    %36 = vector.shape_cast %35 : vector<1x1x192xf32> to vector<1x192xf32>
    %c0_29 = arith.constant 0 : index
    %c2_30 = arith.constant 2 : index
    %c0_31 = arith.constant 0 : index
    %37 = vector.load %arg2[%c0_29, %c2_30, %c0_31] : memref<6x8x192xf32, #tpu.memory_space<vmem>>, vector<1x1x32xf32>
    %38 = vector.shape_cast %37 : vector<1x1x32xf32> to vector<1x32xf32>
    %c0_32 = arith.constant 0 : index
    %c3 = arith.constant 3 : index
    %c0_33 = arith.constant 0 : index
    %39 = vector.load %arg2[%c0_32, %c3, %c0_33] : memref<6x8x192xf32, #tpu.memory_space<vmem>>, vector<1x1x32xf32>
    %40 = vector.shape_cast %39 : vector<1x1x32xf32> to vector<1x32xf32>
    %c0_34 = arith.constant 0 : index
    %c4 = arith.constant 4 : index
    %c0_35 = arith.constant 0 : index
    %41 = vector.load %arg2[%c0_34, %c4, %c0_35] : memref<6x8x192xf32, #tpu.memory_space<vmem>>, vector<1x1x32xf32>
    %42 = vector.shape_cast %41 : vector<1x1x32xf32> to vector<1x32xf32>
    %c0_36 = arith.constant 0 : index
    %c5 = arith.constant 5 : index
    %c0_37 = arith.constant 0 : index
    %43 = vector.load %arg2[%c0_36, %c5, %c0_37] : memref<6x8x192xf32, #tpu.memory_space<vmem>>, vector<1x1x64xf32>
    %44 = vector.shape_cast %43 : vector<1x1x64xf32> to vector<1x64xf32>
    %c0_38 = arith.constant 0 : index
    %c6 = arith.constant 6 : index
    %c0_39 = arith.constant 0 : index
    %45 = vector.load %arg2[%c0_38, %c6, %c0_39] : memref<6x8x192xf32, #tpu.memory_space<vmem>>, vector<1x1x16xf32>
    %46 = vector.shape_cast %45 : vector<1x1x16xf32> to vector<1x16xf32>
    %cst_40 = arith.constant dense<0.000000e+00> : vector<8x32xf32>
    %47 = tpu.matmul %9, %26, %cst_40 {dimension_numbers = #tpu.dot_dimension_numbers<[1], [0], [0], [1], [0, 0, 1, 1], [], []>} : vector<8x16xf32>, vector<16x32xf32>, vector<8x32xf32> -> vector<8x32xf32>
    %48 = vector.broadcast %34 : vector<1x32xf32> to vector<8x32xf32>
    %49 = arith.addf %47, %48 : vector<8x32xf32>
    %cst_41 = arith.constant 0.000000e+00 : f32
    %50 = vector.broadcast %cst_41 : f32 to vector<8x32xf32>
    %51 = arith.maximumf %49, %50 : vector<8x32xf32>
    %cst_42 = arith.constant dense<0.000000e+00> : vector<8x192xf32>
    %52 = tpu.matmul %51, %28, %cst_42 {dimension_numbers = #tpu.dot_dimension_numbers<[1], [0], [0], [1], [0, 0, 1, 1], [], []>} : vector<8x32xf32>, vector<32x192xf32>, vector<8x192xf32> -> vector<8x192xf32>
    %53 = vector.broadcast %36 : vector<1x192xf32> to vector<8x192xf32>
    %54 = arith.addf %52, %53 : vector<8x192xf32>
    %55 = vector.extract_strided_slice %54 {offsets = [0, 0], sizes = [8, 32], strides = [1, 1]} : vector<8x192xf32> to vector<8x32xf32>
    %56 = vector.extract_strided_slice %54 {offsets = [0, 32], sizes = [8, 32], strides = [1, 1]} : vector<8x192xf32> to vector<8x32xf32>
    %57 = vector.extract_strided_slice %55 {offsets = [0, 0], sizes = [8, 8], strides = [1, 1]} : vector<8x32xf32> to vector<8x8xf32>
    %58 = vector.extract_strided_slice %56 {offsets = [0, 0], sizes = [8, 8], strides = [1, 1]} : vector<8x32xf32> to vector<8x8xf32>
    %cst_43 = arith.constant dense<0.000000e+00> : vector<8x8xf32>
    %59 = tpu.matmul %57, %58, %cst_43 {dimension_numbers = #tpu.dot_dimension_numbers<[1], [1], [0], [0], [0, 0, 1, 0], [], []>} : vector<8x8xf32>, vector<8x8xf32>, vector<8x8xf32> -> vector<8x8xf32>
    %cst_44 = arith.constant 0.353553385 : f32
    %60 = vector.broadcast %cst_44 : f32 to vector<8x8xf32>
    %61 = arith.mulf %59, %60 : vector<8x8xf32>
    %cst_45 = arith.constant dense<0xFF800000> : vector<8xf32>
    %62 = vector.multi_reduction <maximumf>, %61, %cst_45 [1] : vector<8x8xf32> to vector<8xf32>
    %63 = vector.shape_cast %62 : vector<8xf32> to vector<8x1xf32>
    %64 = vector.broadcast %63 : vector<8x1xf32> to vector<8x8xf32>
    %65 = arith.subf %61, %64 : vector<8x8xf32>
    %66 = math.exp %65 : vector<8x8xf32>
    %cst_46 = arith.constant dense<0.000000e+00> : vector<8xf32>
    %67 = vector.multi_reduction <add>, %66, %cst_46 [1] : vector<8x8xf32> to vector<8xf32>
    %68 = vector.shape_cast %67 : vector<8xf32> to vector<8x1xf32>
    %69 = tpu.reciprocal %68 {approx = true} : vector<8x1xf32> -> vector<8x1xf32>
    %70 = vector.broadcast %69 : vector<8x1xf32> to vector<8x8xf32>
    %71 = arith.mulf %66, %70 : vector<8x8xf32>
    %72 = vector.extract_strided_slice %54 {offsets = [0, 64], sizes = [8, 32], strides = [1, 1]} : vector<8x192xf32> to vector<8x32xf32>
    %73 = vector.extract_strided_slice %55 {offsets = [0, 8], sizes = [8, 8], strides = [1, 1]} : vector<8x32xf32> to vector<8x8xf32>
    %74 = vector.extract_strided_slice %56 {offsets = [0, 8], sizes = [8, 8], strides = [1, 1]} : vector<8x32xf32> to vector<8x8xf32>
    %cst_47 = arith.constant dense<0.000000e+00> : vector<8x8xf32>
    %75 = tpu.matmul %73, %74, %cst_47 {dimension_numbers = #tpu.dot_dimension_numbers<[1], [1], [0], [0], [0, 0, 1, 0], [], []>} : vector<8x8xf32>, vector<8x8xf32>, vector<8x8xf32> -> vector<8x8xf32>
    %cst_48 = arith.constant 0.353553385 : f32
    %76 = vector.broadcast %cst_48 : f32 to vector<8x8xf32>
    %77 = arith.mulf %75, %76 : vector<8x8xf32>
    %cst_49 = arith.constant dense<0xFF800000> : vector<8xf32>
    %78 = vector.multi_reduction <maximumf>, %77, %cst_49 [1] : vector<8x8xf32> to vector<8xf32>
    %79 = vector.shape_cast %78 : vector<8xf32> to vector<8x1xf32>
    %80 = vector.broadcast %79 : vector<8x1xf32> to vector<8x8xf32>
    %81 = arith.subf %77, %80 : vector<8x8xf32>
    %82 = math.exp %81 : vector<8x8xf32>
    %cst_50 = arith.constant dense<0.000000e+00> : vector<8xf32>
    %83 = vector.multi_reduction <add>, %82, %cst_50 [1] : vector<8x8xf32> to vector<8xf32>
    %84 = vector.shape_cast %83 : vector<8xf32> to vector<8x1xf32>
    %85 = tpu.reciprocal %84 {approx = true} : vector<8x1xf32> -> vector<8x1xf32>
    %86 = vector.broadcast %85 : vector<8x1xf32> to vector<8x8xf32>
    %87 = arith.mulf %82, %86 : vector<8x8xf32>
    %88 = vector.extract_strided_slice %54 {offsets = [0, 96], sizes = [8, 32], strides = [1, 1]} : vector<8x192xf32> to vector<8x32xf32>
    %89 = vector.extract_strided_slice %55 {offsets = [0, 16], sizes = [8, 8], strides = [1, 1]} : vector<8x32xf32> to vector<8x8xf32>
    %90 = vector.extract_strided_slice %56 {offsets = [0, 16], sizes = [8, 8], strides = [1, 1]} : vector<8x32xf32> to vector<8x8xf32>
    %cst_51 = arith.constant dense<0.000000e+00> : vector<8x8xf32>
    %91 = tpu.matmul %89, %90, %cst_51 {dimension_numbers = #tpu.dot_dimension_numbers<[1], [1], [0], [0], [0, 0, 1, 0], [], []>} : vector<8x8xf32>, vector<8x8xf32>, vector<8x8xf32> -> vector<8x8xf32>
    %cst_52 = arith.constant 0.353553385 : f32
    %92 = vector.broadcast %cst_52 : f32 to vector<8x8xf32>
    %93 = arith.mulf %91, %92 : vector<8x8xf32>
    %cst_53 = arith.constant dense<0xFF800000> : vector<8xf32>
    %94 = vector.multi_reduction <maximumf>, %93, %cst_53 [1] : vector<8x8xf32> to vector<8xf32>
    %95 = vector.shape_cast %94 : vector<8xf32> to vector<8x1xf32>
    %96 = vector.broadcast %95 : vector<8x1xf32> to vector<8x8xf32>
    %97 = arith.subf %93, %96 : vector<8x8xf32>
    %98 = math.exp %97 : vector<8x8xf32>
    %cst_54 = arith.constant dense<0.000000e+00> : vector<8xf32>
    %99 = vector.multi_reduction <add>, %98, %cst_54 [1] : vector<8x8xf32> to vector<8xf32>
    %100 = vector.shape_cast %99 : vector<8xf32> to vector<8x1xf32>
    %101 = tpu.reciprocal %100 {approx = true} : vector<8x1xf32> -> vector<8x1xf32>
    %102 = vector.broadcast %101 : vector<8x1xf32> to vector<8x8xf32>
    %103 = arith.mulf %98, %102 : vector<8x8xf32>
    %104 = vector.extract_strided_slice %54 {offsets = [0, 128], sizes = [8, 32], strides = [1, 1]} : vector<8x192xf32> to vector<8x32xf32>
    %105 = vector.extract_strided_slice %55 {offsets = [0, 24], sizes = [8, 8], strides = [1, 1]} : vector<8x32xf32> to vector<8x8xf32>
    %106 = vector.extract_strided_slice %56 {offsets = [0, 24], sizes = [8, 8], strides = [1, 1]} : vector<8x32xf32> to vector<8x8xf32>
    %cst_55 = arith.constant dense<0.000000e+00> : vector<8x8xf32>
    %107 = tpu.matmul %105, %106, %cst_55 {dimension_numbers = #tpu.dot_dimension_numbers<[1], [1], [0], [0], [0, 0, 1, 0], [], []>} : vector<8x8xf32>, vector<8x8xf32>, vector<8x8xf32> -> vector<8x8xf32>
    %cst_56 = arith.constant 0.353553385 : f32
    %108 = vector.broadcast %cst_56 : f32 to vector<8x8xf32>
    %109 = arith.mulf %107, %108 : vector<8x8xf32>
    %cst_57 = arith.constant dense<0xFF800000> : vector<8xf32>
    %110 = vector.multi_reduction <maximumf>, %109, %cst_57 [1] : vector<8x8xf32> to vector<8xf32>
    %111 = vector.shape_cast %110 : vector<8xf32> to vector<8x1xf32>
    %112 = vector.broadcast %111 : vector<8x1xf32> to vector<8x8xf32>
    %113 = arith.subf %109, %112 : vector<8x8xf32>
    %114 = math.exp %113 : vector<8x8xf32>
    %cst_58 = arith.constant dense<0.000000e+00> : vector<8xf32>
    %115 = vector.multi_reduction <add>, %114, %cst_58 [1] : vector<8x8xf32> to vector<8xf32>
    %116 = vector.shape_cast %115 : vector<8xf32> to vector<8x1xf32>
    %117 = tpu.reciprocal %116 {approx = true} : vector<8x1xf32> -> vector<8x1xf32>
    %118 = vector.broadcast %117 : vector<8x1xf32> to vector<8x8xf32>
    %119 = arith.mulf %114, %118 : vector<8x8xf32>
    %120 = vector.extract_strided_slice %54 {offsets = [0, 160], sizes = [8, 32], strides = [1, 1]} : vector<8x192xf32> to vector<8x32xf32>
    %121 = tpu.concatenate %71, %87, %103, %119 in 1 : vector<8x8xf32>, vector<8x8xf32>, vector<8x8xf32>, vector<8x8xf32> -> vector<8x32xf32>
    %122 = tpu.concatenate %72, %88, %104, %120 in 0 : vector<8x32xf32>, vector<8x32xf32>, vector<8x32xf32>, vector<8x32xf32> -> vector<32x32xf32>
    %cst_59 = arith.constant dense<0.000000e+00> : vector<8x32xf32>
    %123 = tpu.matmul %121, %122, %cst_59 {dimension_numbers = #tpu.dot_dimension_numbers<[1], [0], [0], [1], [0, 0, 1, 1], [], []>} : vector<8x32xf32>, vector<32x32xf32>, vector<8x32xf32> -> vector<8x32xf32>
    %124 = vector.broadcast %38 : vector<1x32xf32> to vector<8x32xf32>
    %125 = arith.addf %123, %124 : vector<8x32xf32>
    %126 = arith.addf %125, %51 : vector<8x32xf32>
    %cst_60 = arith.constant dense<0.000000e+00> : vector<8xf32>
    %127 = vector.multi_reduction <add>, %126, %cst_60 [1] : vector<8x32xf32> to vector<8xf32>
    %128 = vector.shape_cast %127 : vector<8xf32> to vector<8x1xf32>
    %cst_61 = arith.constant 3.200000e+01 : f32
    %129 = vector.broadcast %cst_61 : f32 to vector<8x1xf32>
    %130 = arith.divf %128, %129 : vector<8x1xf32>
    %131 = vector.broadcast %130 : vector<8x1xf32> to vector<8x32xf32>
    %132 = arith.subf %126, %131 : vector<8x32xf32>
    %133 = vector.broadcast %130 : vector<8x1xf32> to vector<8x32xf32>
    %134 = arith.subf %126, %133 : vector<8x32xf32>
    %135 = arith.mulf %132, %134 : vector<8x32xf32>
    %cst_62 = arith.constant dense<0.000000e+00> : vector<8xf32>
    %136 = vector.multi_reduction <add>, %135, %cst_62 [1] : vector<8x32xf32> to vector<8xf32>
    %137 = vector.shape_cast %136 : vector<8xf32> to vector<8x1xf32>
    %cst_63 = arith.constant 3.200000e+01 : f32
    %138 = vector.broadcast %cst_63 : f32 to vector<8x1xf32>
    %139 = arith.divf %137, %138 : vector<8x1xf32>
    %140 = vector.broadcast %130 : vector<8x1xf32> to vector<8x32xf32>
    %141 = arith.subf %126, %140 : vector<8x32xf32>
    %cst_64 = arith.constant 9.99999974E-6 : f32
    %142 = vector.broadcast %cst_64 : f32 to vector<8x1xf32>
    %143 = arith.addf %139, %142 : vector<8x1xf32>
    %144 = math.rsqrt %143 : vector<8x1xf32>
    %145 = vector.broadcast %144 : vector<8x1xf32> to vector<8x32xf32>
    %146 = arith.mulf %141, %145 : vector<8x32xf32>
    %147 = vector.broadcast %40 : vector<1x32xf32> to vector<8x32xf32>
    %148 = arith.mulf %146, %147 : vector<8x32xf32>
    %149 = vector.broadcast %42 : vector<1x32xf32> to vector<8x32xf32>
    %150 = arith.addf %148, %149 : vector<8x32xf32>
    %cst_65 = arith.constant 0.000000e+00 : f32
    %151 = vector.broadcast %cst_65 : f32 to vector<8x32xf32>
    %152 = arith.maximumf %150, %151 : vector<8x32xf32>
    %cst_66 = arith.constant dense<0.000000e+00> : vector<8x64xf32>
    %153 = tpu.matmul %152, %30, %cst_66 {dimension_numbers = #tpu.dot_dimension_numbers<[1], [0], [0], [1], [0, 0, 1, 1], [], []>} : vector<8x32xf32>, vector<32x64xf32>, vector<8x64xf32> -> vector<8x64xf32>
    %154 = vector.broadcast %44 : vector<1x64xf32> to vector<8x64xf32>
    %155 = arith.addf %153, %154 : vector<8x64xf32>
    %cst_67 = arith.constant 0.000000e+00 : f32
    %156 = vector.broadcast %cst_67 : f32 to vector<8x64xf32>
    %157 = arith.maximumf %155, %156 : vector<8x64xf32>
    %cst_68 = arith.constant dense<0.000000e+00> : vector<8x16xf32>
    %158 = tpu.matmul %157, %32, %cst_68 {dimension_numbers = #tpu.dot_dimension_numbers<[1], [0], [0], [1], [0, 0, 1, 1], [], []>} : vector<8x64xf32>, vector<64x16xf32>, vector<8x16xf32> -> vector<8x16xf32>
    %159 = vector.broadcast %46 : vector<1x16xf32> to vector<8x16xf32>
    %160 = arith.addf %158, %159 : vector<8x16xf32>
    %161 = arith.mulf %160, %24 : vector<8x16xf32>
    %cst_69 = arith.constant 0.000000e+00 : f32
    %162 = vector.broadcast %cst_69 : f32 to vector<1x16xf32>
    %163 = arith.cmpf ogt, %11, %162 : vector<1x16xf32>
    %cst_70 = arith.constant -1.000000e+30 : f32
    %164 = vector.shape_cast %163 : vector<1x16xi1> to vector<1x16xi1>
    %165 = vector.broadcast %164 : vector<1x16xi1> to vector<8x16xi1>
    %166 = vector.broadcast %cst_70 : f32 to vector<8x16xf32>
    %167 = arith.select %165, %161, %166 : vector<8x16xi1>, vector<8x16xf32>
    %cst_71 = arith.constant dense<0xFF800000> : vector<8xf32>
    %168 = vector.multi_reduction <maximumf>, %167, %cst_71 [1] : vector<8x16xf32> to vector<8xf32>
    %169 = vector.shape_cast %168 : vector<8xf32> to vector<8x1xf32>
    %cst_72 = arith.constant 0.000000e+00 : f32
    %170 = vector.broadcast %cst_72 : f32 to vector<1x16xf32>
    %171 = arith.cmpf ogt, %12, %170 : vector<1x16xf32>
    %cst_73 = arith.constant -1.000000e+30 : f32
    %172 = vector.shape_cast %171 : vector<1x16xi1> to vector<1x16xi1>
    %173 = vector.broadcast %172 : vector<1x16xi1> to vector<8x16xi1>
    %174 = vector.broadcast %cst_73 : f32 to vector<8x16xf32>
    %175 = arith.select %173, %161, %174 : vector<8x16xi1>, vector<8x16xf32>
    %cst_74 = arith.constant dense<0xFF800000> : vector<8xf32>
    %176 = vector.multi_reduction <maximumf>, %175, %cst_74 [1] : vector<8x16xf32> to vector<8xf32>
    %177 = vector.shape_cast %176 : vector<8xf32> to vector<8x1xf32>
    %cst_75 = arith.constant 0.000000e+00 : f32
    %178 = vector.broadcast %cst_75 : f32 to vector<1x16xf32>
    %179 = arith.cmpf ogt, %13, %178 : vector<1x16xf32>
    %cst_76 = arith.constant -1.000000e+30 : f32
    %180 = vector.shape_cast %179 : vector<1x16xi1> to vector<1x16xi1>
    %181 = vector.broadcast %180 : vector<1x16xi1> to vector<8x16xi1>
    %182 = vector.broadcast %cst_76 : f32 to vector<8x16xf32>
    %183 = arith.select %181, %161, %182 : vector<8x16xi1>, vector<8x16xf32>
    %cst_77 = arith.constant dense<0xFF800000> : vector<8xf32>
    %184 = vector.multi_reduction <maximumf>, %183, %cst_77 [1] : vector<8x16xf32> to vector<8xf32>
    %185 = vector.shape_cast %184 : vector<8xf32> to vector<8x1xf32>
    %186 = vector.broadcast %169 : vector<8x1xf32> to vector<8x16xf32>
    %187 = vector.broadcast %11 : vector<1x16xf32> to vector<8x16xf32>
    %188 = arith.mulf %186, %187 : vector<8x16xf32>
    %189 = vector.broadcast %177 : vector<8x1xf32> to vector<8x16xf32>
    %190 = vector.broadcast %12 : vector<1x16xf32> to vector<8x16xf32>
    %191 = arith.mulf %189, %190 : vector<8x16xf32>
    %192 = arith.addf %188, %191 : vector<8x16xf32>
    %193 = vector.broadcast %185 : vector<8x1xf32> to vector<8x16xf32>
    %194 = vector.broadcast %13 : vector<1x16xf32> to vector<8x16xf32>
    %195 = arith.mulf %193, %194 : vector<8x16xf32>
    %196 = arith.addf %192, %195 : vector<8x16xf32>
    %197 = arith.subf %161, %196 : vector<8x16xf32>
    %198 = vector.broadcast %14 : vector<1x16xf32> to vector<8x16xf32>
    %199 = arith.mulf %197, %198 : vector<8x16xf32>
    %200 = math.exp %199 : vector<8x16xf32>
    %201 = vector.broadcast %14 : vector<1x16xf32> to vector<8x16xf32>
    %202 = arith.mulf %200, %201 : vector<8x16xf32>
    %cst_78 = arith.constant dense<0.000000e+00> : vector<8x8xf32>
    %203 = tpu.matmul %202, %10, %cst_78 {dimension_numbers = #tpu.dot_dimension_numbers<[1], [1], [0], [0], [0, 0, 1, 0], [], []>} : vector<8x16xf32>, vector<8x16xf32>, vector<8x8xf32> -> vector<8x8xf32>
    %cst_79 = arith.constant dense<0.000000e+00> : vector<8x16xf32>
    %204 = tpu.matmul %203, %10, %cst_79 {dimension_numbers = #tpu.dot_dimension_numbers<[1], [0], [0], [1], [0, 0, 1, 1], [], []>} : vector<8x8xf32>, vector<8x16xf32>, vector<8x16xf32> -> vector<8x16xf32>
    %205 = vector.broadcast %17 : vector<1x16xf32> to vector<8x16xf32>
    %206 = arith.addf %204, %205 : vector<8x16xf32>
    %207 = tpu.reciprocal %206 {approx = true} : vector<8x16xf32> -> vector<8x16xf32>
    %208 = arith.mulf %202, %207 : vector<8x16xf32>
    %209 = vector.broadcast %17 : vector<1x16xf32> to vector<8x16xf32>
    %210 = arith.mulf %161, %209 : vector<8x16xf32>
    %cst_80 = arith.constant 0.000000e+00 : f32
    %211 = vector.broadcast %cst_80 : f32 to vector<8x16xf32>
    %212 = arith.subf %211, %210 : vector<8x16xf32>
    %213 = math.exp %212 : vector<8x16xf32>
    %cst_81 = arith.constant 1.000000e+00 : f32
    %214 = vector.broadcast %cst_81 : f32 to vector<8x16xf32>
    %215 = arith.addf %214, %213 : vector<8x16xf32>
    %216 = tpu.reciprocal %215 {approx = true} : vector<8x16xf32> -> vector<8x16xf32>
    %217 = vector.broadcast %17 : vector<1x16xf32> to vector<8x16xf32>
    %218 = arith.mulf %216, %217 : vector<8x16xf32>
    %219 = arith.addf %208, %218 : vector<8x16xf32>
    %c1_82 = arith.constant 1 : index
    %c0_83 = arith.constant 0 : index
    %c0_84 = arith.constant 0 : index
    %220 = vector.load %arg1[%c1_82, %c0_83, %c0_84] : memref<6x144x192xf32, #tpu.memory_space<vmem>>, vector<1x16x32xf32>
    %221 = vector.shape_cast %220 : vector<1x16x32xf32> to vector<16x32xf32>
    %c1_85 = arith.constant 1 : index
    %c16_86 = arith.constant 16 : index
    %c0_87 = arith.constant 0 : index
    %222 = vector.load %arg1[%c1_85, %c16_86, %c0_87] : memref<6x144x192xf32, #tpu.memory_space<vmem>>, vector<1x32x192xf32>
    %223 = vector.shape_cast %222 : vector<1x32x192xf32> to vector<32x192xf32>
    %c1_88 = arith.constant 1 : index
    %c48_89 = arith.constant 48 : index
    %c0_90 = arith.constant 0 : index
    %224 = vector.load %arg1[%c1_88, %c48_89, %c0_90] : memref<6x144x192xf32, #tpu.memory_space<vmem>>, vector<1x32x64xf32>
    %225 = vector.shape_cast %224 : vector<1x32x64xf32> to vector<32x64xf32>
    %c1_91 = arith.constant 1 : index
    %c80_92 = arith.constant 80 : index
    %c0_93 = arith.constant 0 : index
    %226 = vector.load %arg1[%c1_91, %c80_92, %c0_93] : memref<6x144x192xf32, #tpu.memory_space<vmem>>, vector<1x64x16xf32>
    %227 = vector.shape_cast %226 : vector<1x64x16xf32> to vector<64x16xf32>
    %c1_94 = arith.constant 1 : index
    %c0_95 = arith.constant 0 : index
    %c0_96 = arith.constant 0 : index
    %228 = vector.load %arg2[%c1_94, %c0_95, %c0_96] : memref<6x8x192xf32, #tpu.memory_space<vmem>>, vector<1x1x32xf32>
    %229 = vector.shape_cast %228 : vector<1x1x32xf32> to vector<1x32xf32>
    %c1_97 = arith.constant 1 : index
    %c1_98 = arith.constant 1 : index
    %c0_99 = arith.constant 0 : index
    %230 = vector.load %arg2[%c1_97, %c1_98, %c0_99] : memref<6x8x192xf32, #tpu.memory_space<vmem>>, vector<1x1x192xf32>
    %231 = vector.shape_cast %230 : vector<1x1x192xf32> to vector<1x192xf32>
    %c1_100 = arith.constant 1 : index
    %c2_101 = arith.constant 2 : index
    %c0_102 = arith.constant 0 : index
    %232 = vector.load %arg2[%c1_100, %c2_101, %c0_102] : memref<6x8x192xf32, #tpu.memory_space<vmem>>, vector<1x1x32xf32>
    %233 = vector.shape_cast %232 : vector<1x1x32xf32> to vector<1x32xf32>
    %c1_103 = arith.constant 1 : index
    %c3_104 = arith.constant 3 : index
    %c0_105 = arith.constant 0 : index
    %234 = vector.load %arg2[%c1_103, %c3_104, %c0_105] : memref<6x8x192xf32, #tpu.memory_space<vmem>>, vector<1x1x32xf32>
    %235 = vector.shape_cast %234 : vector<1x1x32xf32> to vector<1x32xf32>
    %c1_106 = arith.constant 1 : index
    %c4_107 = arith.constant 4 : index
    %c0_108 = arith.constant 0 : index
    %236 = vector.load %arg2[%c1_106, %c4_107, %c0_108] : memref<6x8x192xf32, #tpu.memory_space<vmem>>, vector<1x1x32xf32>
    %237 = vector.shape_cast %236 : vector<1x1x32xf32> to vector<1x32xf32>
    %c1_109 = arith.constant 1 : index
    %c5_110 = arith.constant 5 : index
    %c0_111 = arith.constant 0 : index
    %238 = vector.load %arg2[%c1_109, %c5_110, %c0_111] : memref<6x8x192xf32, #tpu.memory_space<vmem>>, vector<1x1x64xf32>
    %239 = vector.shape_cast %238 : vector<1x1x64xf32> to vector<1x64xf32>
    %c1_112 = arith.constant 1 : index
    %c6_113 = arith.constant 6 : index
    %c0_114 = arith.constant 0 : index
    %240 = vector.load %arg2[%c1_112, %c6_113, %c0_114] : memref<6x8x192xf32, #tpu.memory_space<vmem>>, vector<1x1x16xf32>
    %241 = vector.shape_cast %240 : vector<1x1x16xf32> to vector<1x16xf32>
    %cst_115 = arith.constant dense<0.000000e+00> : vector<8x32xf32>
    %242 = tpu.matmul %9, %221, %cst_115 {dimension_numbers = #tpu.dot_dimension_numbers<[1], [0], [0], [1], [0, 0, 1, 1], [], []>} : vector<8x16xf32>, vector<16x32xf32>, vector<8x32xf32> -> vector<8x32xf32>
    %243 = vector.broadcast %229 : vector<1x32xf32> to vector<8x32xf32>
    %244 = arith.addf %242, %243 : vector<8x32xf32>
    %cst_116 = arith.constant 0.000000e+00 : f32
    %245 = vector.broadcast %cst_116 : f32 to vector<8x32xf32>
    %246 = arith.maximumf %244, %245 : vector<8x32xf32>
    %cst_117 = arith.constant dense<0.000000e+00> : vector<8x192xf32>
    %247 = tpu.matmul %246, %223, %cst_117 {dimension_numbers = #tpu.dot_dimension_numbers<[1], [0], [0], [1], [0, 0, 1, 1], [], []>} : vector<8x32xf32>, vector<32x192xf32>, vector<8x192xf32> -> vector<8x192xf32>
    %248 = vector.broadcast %231 : vector<1x192xf32> to vector<8x192xf32>
    %249 = arith.addf %247, %248 : vector<8x192xf32>
    %250 = vector.extract_strided_slice %249 {offsets = [0, 0], sizes = [8, 32], strides = [1, 1]} : vector<8x192xf32> to vector<8x32xf32>
    %251 = vector.extract_strided_slice %249 {offsets = [0, 32], sizes = [8, 32], strides = [1, 1]} : vector<8x192xf32> to vector<8x32xf32>
    %252 = vector.extract_strided_slice %250 {offsets = [0, 0], sizes = [8, 8], strides = [1, 1]} : vector<8x32xf32> to vector<8x8xf32>
    %253 = vector.extract_strided_slice %251 {offsets = [0, 0], sizes = [8, 8], strides = [1, 1]} : vector<8x32xf32> to vector<8x8xf32>
    %cst_118 = arith.constant dense<0.000000e+00> : vector<8x8xf32>
    %254 = tpu.matmul %252, %253, %cst_118 {dimension_numbers = #tpu.dot_dimension_numbers<[1], [1], [0], [0], [0, 0, 1, 0], [], []>} : vector<8x8xf32>, vector<8x8xf32>, vector<8x8xf32> -> vector<8x8xf32>
    %cst_119 = arith.constant 0.353553385 : f32
    %255 = vector.broadcast %cst_119 : f32 to vector<8x8xf32>
    %256 = arith.mulf %254, %255 : vector<8x8xf32>
    %cst_120 = arith.constant dense<0xFF800000> : vector<8xf32>
    %257 = vector.multi_reduction <maximumf>, %256, %cst_120 [1] : vector<8x8xf32> to vector<8xf32>
    %258 = vector.shape_cast %257 : vector<8xf32> to vector<8x1xf32>
    %259 = vector.broadcast %258 : vector<8x1xf32> to vector<8x8xf32>
    %260 = arith.subf %256, %259 : vector<8x8xf32>
    %261 = math.exp %260 : vector<8x8xf32>
    %cst_121 = arith.constant dense<0.000000e+00> : vector<8xf32>
    %262 = vector.multi_reduction <add>, %261, %cst_121 [1] : vector<8x8xf32> to vector<8xf32>
    %263 = vector.shape_cast %262 : vector<8xf32> to vector<8x1xf32>
    %264 = tpu.reciprocal %263 {approx = true} : vector<8x1xf32> -> vector<8x1xf32>
    %265 = vector.broadcast %264 : vector<8x1xf32> to vector<8x8xf32>
    %266 = arith.mulf %261, %265 : vector<8x8xf32>
    %267 = vector.extract_strided_slice %249 {offsets = [0, 64], sizes = [8, 32], strides = [1, 1]} : vector<8x192xf32> to vector<8x32xf32>
    %268 = vector.extract_strided_slice %250 {offsets = [0, 8], sizes = [8, 8], strides = [1, 1]} : vector<8x32xf32> to vector<8x8xf32>
    %269 = vector.extract_strided_slice %251 {offsets = [0, 8], sizes = [8, 8], strides = [1, 1]} : vector<8x32xf32> to vector<8x8xf32>
    %cst_122 = arith.constant dense<0.000000e+00> : vector<8x8xf32>
    %270 = tpu.matmul %268, %269, %cst_122 {dimension_numbers = #tpu.dot_dimension_numbers<[1], [1], [0], [0], [0, 0, 1, 0], [], []>} : vector<8x8xf32>, vector<8x8xf32>, vector<8x8xf32> -> vector<8x8xf32>
    %cst_123 = arith.constant 0.353553385 : f32
    %271 = vector.broadcast %cst_123 : f32 to vector<8x8xf32>
    %272 = arith.mulf %270, %271 : vector<8x8xf32>
    %cst_124 = arith.constant dense<0xFF800000> : vector<8xf32>
    %273 = vector.multi_reduction <maximumf>, %272, %cst_124 [1] : vector<8x8xf32> to vector<8xf32>
    %274 = vector.shape_cast %273 : vector<8xf32> to vector<8x1xf32>
    %275 = vector.broadcast %274 : vector<8x1xf32> to vector<8x8xf32>
    %276 = arith.subf %272, %275 : vector<8x8xf32>
    %277 = math.exp %276 : vector<8x8xf32>
    %cst_125 = arith.constant dense<0.000000e+00> : vector<8xf32>
    %278 = vector.multi_reduction <add>, %277, %cst_125 [1] : vector<8x8xf32> to vector<8xf32>
    %279 = vector.shape_cast %278 : vector<8xf32> to vector<8x1xf32>
    %280 = tpu.reciprocal %279 {approx = true} : vector<8x1xf32> -> vector<8x1xf32>
    %281 = vector.broadcast %280 : vector<8x1xf32> to vector<8x8xf32>
    %282 = arith.mulf %277, %281 : vector<8x8xf32>
    %283 = vector.extract_strided_slice %249 {offsets = [0, 96], sizes = [8, 32], strides = [1, 1]} : vector<8x192xf32> to vector<8x32xf32>
    %284 = vector.extract_strided_slice %250 {offsets = [0, 16], sizes = [8, 8], strides = [1, 1]} : vector<8x32xf32> to vector<8x8xf32>
    %285 = vector.extract_strided_slice %251 {offsets = [0, 16], sizes = [8, 8], strides = [1, 1]} : vector<8x32xf32> to vector<8x8xf32>
    %cst_126 = arith.constant dense<0.000000e+00> : vector<8x8xf32>
    %286 = tpu.matmul %284, %285, %cst_126 {dimension_numbers = #tpu.dot_dimension_numbers<[1], [1], [0], [0], [0, 0, 1, 0], [], []>} : vector<8x8xf32>, vector<8x8xf32>, vector<8x8xf32> -> vector<8x8xf32>
    %cst_127 = arith.constant 0.353553385 : f32
    %287 = vector.broadcast %cst_127 : f32 to vector<8x8xf32>
    %288 = arith.mulf %286, %287 : vector<8x8xf32>
    %cst_128 = arith.constant dense<0xFF800000> : vector<8xf32>
    %289 = vector.multi_reduction <maximumf>, %288, %cst_128 [1] : vector<8x8xf32> to vector<8xf32>
    %290 = vector.shape_cast %289 : vector<8xf32> to vector<8x1xf32>
    %291 = vector.broadcast %290 : vector<8x1xf32> to vector<8x8xf32>
    %292 = arith.subf %288, %291 : vector<8x8xf32>
    %293 = math.exp %292 : vector<8x8xf32>
    %cst_129 = arith.constant dense<0.000000e+00> : vector<8xf32>
    %294 = vector.multi_reduction <add>, %293, %cst_129 [1] : vector<8x8xf32> to vector<8xf32>
    %295 = vector.shape_cast %294 : vector<8xf32> to vector<8x1xf32>
    %296 = tpu.reciprocal %295 {approx = true} : vector<8x1xf32> -> vector<8x1xf32>
    %297 = vector.broadcast %296 : vector<8x1xf32> to vector<8x8xf32>
    %298 = arith.mulf %293, %297 : vector<8x8xf32>
    %299 = vector.extract_strided_slice %249 {offsets = [0, 128], sizes = [8, 32], strides = [1, 1]} : vector<8x192xf32> to vector<8x32xf32>
    %300 = vector.extract_strided_slice %250 {offsets = [0, 24], sizes = [8, 8], strides = [1, 1]} : vector<8x32xf32> to vector<8x8xf32>
    %301 = vector.extract_strided_slice %251 {offsets = [0, 24], sizes = [8, 8], strides = [1, 1]} : vector<8x32xf32> to vector<8x8xf32>
    %cst_130 = arith.constant dense<0.000000e+00> : vector<8x8xf32>
    %302 = tpu.matmul %300, %301, %cst_130 {dimension_numbers = #tpu.dot_dimension_numbers<[1], [1], [0], [0], [0, 0, 1, 0], [], []>} : vector<8x8xf32>, vector<8x8xf32>, vector<8x8xf32> -> vector<8x8xf32>
    %cst_131 = arith.constant 0.353553385 : f32
    %303 = vector.broadcast %cst_131 : f32 to vector<8x8xf32>
    %304 = arith.mulf %302, %303 : vector<8x8xf32>
    %cst_132 = arith.constant dense<0xFF800000> : vector<8xf32>
    %305 = vector.multi_reduction <maximumf>, %304, %cst_132 [1] : vector<8x8xf32> to vector<8xf32>
    %306 = vector.shape_cast %305 : vector<8xf32> to vector<8x1xf32>
    %307 = vector.broadcast %306 : vector<8x1xf32> to vector<8x8xf32>
    %308 = arith.subf %304, %307 : vector<8x8xf32>
    %309 = math.exp %308 : vector<8x8xf32>
    %cst_133 = arith.constant dense<0.000000e+00> : vector<8xf32>
    %310 = vector.multi_reduction <add>, %309, %cst_133 [1] : vector<8x8xf32> to vector<8xf32>
    %311 = vector.shape_cast %310 : vector<8xf32> to vector<8x1xf32>
    %312 = tpu.reciprocal %311 {approx = true} : vector<8x1xf32> -> vector<8x1xf32>
    %313 = vector.broadcast %312 : vector<8x1xf32> to vector<8x8xf32>
    %314 = arith.mulf %309, %313 : vector<8x8xf32>
    %315 = vector.extract_strided_slice %249 {offsets = [0, 160], sizes = [8, 32], strides = [1, 1]} : vector<8x192xf32> to vector<8x32xf32>
    %316 = tpu.concatenate %266, %282, %298, %314 in 1 : vector<8x8xf32>, vector<8x8xf32>, vector<8x8xf32>, vector<8x8xf32> -> vector<8x32xf32>
    %317 = tpu.concatenate %267, %283, %299, %315 in 0 : vector<8x32xf32>, vector<8x32xf32>, vector<8x32xf32>, vector<8x32xf32> -> vector<32x32xf32>
    %cst_134 = arith.constant dense<0.000000e+00> : vector<8x32xf32>
    %318 = tpu.matmul %316, %317, %cst_134 {dimension_numbers = #tpu.dot_dimension_numbers<[1], [0], [0], [1], [0, 0, 1, 1], [], []>} : vector<8x32xf32>, vector<32x32xf32>, vector<8x32xf32> -> vector<8x32xf32>
    %319 = vector.broadcast %233 : vector<1x32xf32> to vector<8x32xf32>
    %320 = arith.addf %318, %319 : vector<8x32xf32>
    %321 = arith.addf %320, %246 : vector<8x32xf32>
    %cst_135 = arith.constant dense<0.000000e+00> : vector<8xf32>
    %322 = vector.multi_reduction <add>, %321, %cst_135 [1] : vector<8x32xf32> to vector<8xf32>
    %323 = vector.shape_cast %322 : vector<8xf32> to vector<8x1xf32>
    %cst_136 = arith.constant 3.200000e+01 : f32
    %324 = vector.broadcast %cst_136 : f32 to vector<8x1xf32>
    %325 = arith.divf %323, %324 : vector<8x1xf32>
    %326 = vector.broadcast %325 : vector<8x1xf32> to vector<8x32xf32>
    %327 = arith.subf %321, %326 : vector<8x32xf32>
    %328 = vector.broadcast %325 : vector<8x1xf32> to vector<8x32xf32>
    %329 = arith.subf %321, %328 : vector<8x32xf32>
    %330 = arith.mulf %327, %329 : vector<8x32xf32>
    %cst_137 = arith.constant dense<0.000000e+00> : vector<8xf32>
    %331 = vector.multi_reduction <add>, %330, %cst_137 [1] : vector<8x32xf32> to vector<8xf32>
    %332 = vector.shape_cast %331 : vector<8xf32> to vector<8x1xf32>
    %cst_138 = arith.constant 3.200000e+01 : f32
    %333 = vector.broadcast %cst_138 : f32 to vector<8x1xf32>
    %334 = arith.divf %332, %333 : vector<8x1xf32>
    %335 = vector.broadcast %325 : vector<8x1xf32> to vector<8x32xf32>
    %336 = arith.subf %321, %335 : vector<8x32xf32>
    %cst_139 = arith.constant 9.99999974E-6 : f32
    %337 = vector.broadcast %cst_139 : f32 to vector<8x1xf32>
    %338 = arith.addf %334, %337 : vector<8x1xf32>
    %339 = math.rsqrt %338 : vector<8x1xf32>
    %340 = vector.broadcast %339 : vector<8x1xf32> to vector<8x32xf32>
    %341 = arith.mulf %336, %340 : vector<8x32xf32>
    %342 = vector.broadcast %235 : vector<1x32xf32> to vector<8x32xf32>
    %343 = arith.mulf %341, %342 : vector<8x32xf32>
    %344 = vector.broadcast %237 : vector<1x32xf32> to vector<8x32xf32>
    %345 = arith.addf %343, %344 : vector<8x32xf32>
    %cst_140 = arith.constant 0.000000e+00 : f32
    %346 = vector.broadcast %cst_140 : f32 to vector<8x32xf32>
    %347 = arith.maximumf %345, %346 : vector<8x32xf32>
    %cst_141 = arith.constant dense<0.000000e+00> : vector<8x64xf32>
    %348 = tpu.matmul %347, %225, %cst_141 {dimension_numbers = #tpu.dot_dimension_numbers<[1], [0], [0], [1], [0, 0, 1, 1], [], []>} : vector<8x32xf32>, vector<32x64xf32>, vector<8x64xf32> -> vector<8x64xf32>
    %349 = vector.broadcast %239 : vector<1x64xf32> to vector<8x64xf32>
    %350 = arith.addf %348, %349 : vector<8x64xf32>
    %cst_142 = arith.constant 0.000000e+00 : f32
    %351 = vector.broadcast %cst_142 : f32 to vector<8x64xf32>
    %352 = arith.maximumf %350, %351 : vector<8x64xf32>
    %cst_143 = arith.constant dense<0.000000e+00> : vector<8x16xf32>
    %353 = tpu.matmul %352, %227, %cst_143 {dimension_numbers = #tpu.dot_dimension_numbers<[1], [0], [0], [1], [0, 0, 1, 1], [], []>} : vector<8x64xf32>, vector<64x16xf32>, vector<8x16xf32> -> vector<8x16xf32>
    %354 = vector.broadcast %241 : vector<1x16xf32> to vector<8x16xf32>
    %355 = arith.addf %353, %354 : vector<8x16xf32>
    %356 = arith.mulf %355, %24 : vector<8x16xf32>
    %cst_144 = arith.constant 0.000000e+00 : f32
    %357 = vector.broadcast %cst_144 : f32 to vector<1x16xf32>
    %358 = arith.cmpf ogt, %11, %357 : vector<1x16xf32>
    %cst_145 = arith.constant -1.000000e+30 : f32
    %359 = vector.shape_cast %358 : vector<1x16xi1> to vector<1x16xi1>
    %360 = vector.broadcast %359 : vector<1x16xi1> to vector<8x16xi1>
    %361 = vector.broadcast %cst_145 : f32 to vector<8x16xf32>
    %362 = arith.select %360, %356, %361 : vector<8x16xi1>, vector<8x16xf32>
    %cst_146 = arith.constant dense<0xFF800000> : vector<8xf32>
    %363 = vector.multi_reduction <maximumf>, %362, %cst_146 [1] : vector<8x16xf32> to vector<8xf32>
    %364 = vector.shape_cast %363 : vector<8xf32> to vector<8x1xf32>
    %cst_147 = arith.constant 0.000000e+00 : f32
    %365 = vector.broadcast %cst_147 : f32 to vector<1x16xf32>
    %366 = arith.cmpf ogt, %12, %365 : vector<1x16xf32>
    %cst_148 = arith.constant -1.000000e+30 : f32
    %367 = vector.shape_cast %366 : vector<1x16xi1> to vector<1x16xi1>
    %368 = vector.broadcast %367 : vector<1x16xi1> to vector<8x16xi1>
    %369 = vector.broadcast %cst_148 : f32 to vector<8x16xf32>
    %370 = arith.select %368, %356, %369 : vector<8x16xi1>, vector<8x16xf32>
    %cst_149 = arith.constant dense<0xFF800000> : vector<8xf32>
    %371 = vector.multi_reduction <maximumf>, %370, %cst_149 [1] : vector<8x16xf32> to vector<8xf32>
    %372 = vector.shape_cast %371 : vector<8xf32> to vector<8x1xf32>
    %cst_150 = arith.constant 0.000000e+00 : f32
    %373 = vector.broadcast %cst_150 : f32 to vector<1x16xf32>
    %374 = arith.cmpf ogt, %13, %373 : vector<1x16xf32>
    %cst_151 = arith.constant -1.000000e+30 : f32
    %375 = vector.shape_cast %374 : vector<1x16xi1> to vector<1x16xi1>
    %376 = vector.broadcast %375 : vector<1x16xi1> to vector<8x16xi1>
    %377 = vector.broadcast %cst_151 : f32 to vector<8x16xf32>
    %378 = arith.select %376, %356, %377 : vector<8x16xi1>, vector<8x16xf32>
    %cst_152 = arith.constant dense<0xFF800000> : vector<8xf32>
    %379 = vector.multi_reduction <maximumf>, %378, %cst_152 [1] : vector<8x16xf32> to vector<8xf32>
    %380 = vector.shape_cast %379 : vector<8xf32> to vector<8x1xf32>
    %381 = vector.broadcast %364 : vector<8x1xf32> to vector<8x16xf32>
    %382 = vector.broadcast %11 : vector<1x16xf32> to vector<8x16xf32>
    %383 = arith.mulf %381, %382 : vector<8x16xf32>
    %384 = vector.broadcast %372 : vector<8x1xf32> to vector<8x16xf32>
    %385 = vector.broadcast %12 : vector<1x16xf32> to vector<8x16xf32>
    %386 = arith.mulf %384, %385 : vector<8x16xf32>
    %387 = arith.addf %383, %386 : vector<8x16xf32>
    %388 = vector.broadcast %380 : vector<8x1xf32> to vector<8x16xf32>
    %389 = vector.broadcast %13 : vector<1x16xf32> to vector<8x16xf32>
    %390 = arith.mulf %388, %389 : vector<8x16xf32>
    %391 = arith.addf %387, %390 : vector<8x16xf32>
    %392 = arith.subf %356, %391 : vector<8x16xf32>
    %393 = vector.broadcast %14 : vector<1x16xf32> to vector<8x16xf32>
    %394 = arith.mulf %392, %393 : vector<8x16xf32>
    %395 = math.exp %394 : vector<8x16xf32>
    %396 = vector.broadcast %14 : vector<1x16xf32> to vector<8x16xf32>
    %397 = arith.mulf %395, %396 : vector<8x16xf32>
    %cst_153 = arith.constant dense<0.000000e+00> : vector<8x8xf32>
    %398 = tpu.matmul %397, %10, %cst_153 {dimension_numbers = #tpu.dot_dimension_numbers<[1], [1], [0], [0], [0, 0, 1, 0], [], []>} : vector<8x16xf32>, vector<8x16xf32>, vector<8x8xf32> -> vector<8x8xf32>
    %cst_154 = arith.constant dense<0.000000e+00> : vector<8x16xf32>
    %399 = tpu.matmul %398, %10, %cst_154 {dimension_numbers = #tpu.dot_dimension_numbers<[1], [0], [0], [1], [0, 0, 1, 1], [], []>} : vector<8x8xf32>, vector<8x16xf32>, vector<8x16xf32> -> vector<8x16xf32>
    %400 = vector.broadcast %17 : vector<1x16xf32> to vector<8x16xf32>
    %401 = arith.addf %399, %400 : vector<8x16xf32>
    %402 = tpu.reciprocal %401 {approx = true} : vector<8x16xf32> -> vector<8x16xf32>
    %403 = arith.mulf %397, %402 : vector<8x16xf32>
    %404 = vector.broadcast %17 : vector<1x16xf32> to vector<8x16xf32>
    %405 = arith.mulf %356, %404 : vector<8x16xf32>
    %cst_155 = arith.constant 0.000000e+00 : f32
    %406 = vector.broadcast %cst_155 : f32 to vector<8x16xf32>
    %407 = arith.subf %406, %405 : vector<8x16xf32>
    %408 = math.exp %407 : vector<8x16xf32>
    %cst_156 = arith.constant 1.000000e+00 : f32
    %409 = vector.broadcast %cst_156 : f32 to vector<8x16xf32>
    %410 = arith.addf %409, %408 : vector<8x16xf32>
    %411 = tpu.reciprocal %410 {approx = true} : vector<8x16xf32> -> vector<8x16xf32>
    %412 = vector.broadcast %17 : vector<1x16xf32> to vector<8x16xf32>
    %413 = arith.mulf %411, %412 : vector<8x16xf32>
    %414 = arith.addf %403, %413 : vector<8x16xf32>
    %c2_157 = arith.constant 2 : index
    %c0_158 = arith.constant 0 : index
    %c0_159 = arith.constant 0 : index
    %415 = vector.load %arg1[%c2_157, %c0_158, %c0_159] : memref<6x144x192xf32, #tpu.memory_space<vmem>>, vector<1x16x32xf32>
    %416 = vector.shape_cast %415 : vector<1x16x32xf32> to vector<16x32xf32>
    %c2_160 = arith.constant 2 : index
    %c16_161 = arith.constant 16 : index
    %c0_162 = arith.constant 0 : index
    %417 = vector.load %arg1[%c2_160, %c16_161, %c0_162] : memref<6x144x192xf32, #tpu.memory_space<vmem>>, vector<1x32x192xf32>
    %418 = vector.shape_cast %417 : vector<1x32x192xf32> to vector<32x192xf32>
    %c2_163 = arith.constant 2 : index
    %c48_164 = arith.constant 48 : index
    %c0_165 = arith.constant 0 : index
    %419 = vector.load %arg1[%c2_163, %c48_164, %c0_165] : memref<6x144x192xf32, #tpu.memory_space<vmem>>, vector<1x32x64xf32>
    %420 = vector.shape_cast %419 : vector<1x32x64xf32> to vector<32x64xf32>
    %c2_166 = arith.constant 2 : index
    %c80_167 = arith.constant 80 : index
    %c0_168 = arith.constant 0 : index
    %421 = vector.load %arg1[%c2_166, %c80_167, %c0_168] : memref<6x144x192xf32, #tpu.memory_space<vmem>>, vector<1x64x16xf32>
    %422 = vector.shape_cast %421 : vector<1x64x16xf32> to vector<64x16xf32>
    %c2_169 = arith.constant 2 : index
    %c0_170 = arith.constant 0 : index
    %c0_171 = arith.constant 0 : index
    %423 = vector.load %arg2[%c2_169, %c0_170, %c0_171] : memref<6x8x192xf32, #tpu.memory_space<vmem>>, vector<1x1x32xf32>
    %424 = vector.shape_cast %423 : vector<1x1x32xf32> to vector<1x32xf32>
    %c2_172 = arith.constant 2 : index
    %c1_173 = arith.constant 1 : index
    %c0_174 = arith.constant 0 : index
    %425 = vector.load %arg2[%c2_172, %c1_173, %c0_174] : memref<6x8x192xf32, #tpu.memory_space<vmem>>, vector<1x1x192xf32>
    %426 = vector.shape_cast %425 : vector<1x1x192xf32> to vector<1x192xf32>
    %c2_175 = arith.constant 2 : index
    %c2_176 = arith.constant 2 : index
    %c0_177 = arith.constant 0 : index
    %427 = vector.load %arg2[%c2_175, %c2_176, %c0_177] : memref<6x8x192xf32, #tpu.memory_space<vmem>>, vector<1x1x32xf32>
    %428 = vector.shape_cast %427 : vector<1x1x32xf32> to vector<1x32xf32>
    %c2_178 = arith.constant 2 : index
    %c3_179 = arith.constant 3 : index
    %c0_180 = arith.constant 0 : index
    %429 = vector.load %arg2[%c2_178, %c3_179, %c0_180] : memref<6x8x192xf32, #tpu.memory_space<vmem>>, vector<1x1x32xf32>
    %430 = vector.shape_cast %429 : vector<1x1x32xf32> to vector<1x32xf32>
    %c2_181 = arith.constant 2 : index
    %c4_182 = arith.constant 4 : index
    %c0_183 = arith.constant 0 : index
    %431 = vector.load %arg2[%c2_181, %c4_182, %c0_183] : memref<6x8x192xf32, #tpu.memory_space<vmem>>, vector<1x1x32xf32>
    %432 = vector.shape_cast %431 : vector<1x1x32xf32> to vector<1x32xf32>
    %c2_184 = arith.constant 2 : index
    %c5_185 = arith.constant 5 : index
    %c0_186 = arith.constant 0 : index
    %433 = vector.load %arg2[%c2_184, %c5_185, %c0_186] : memref<6x8x192xf32, #tpu.memory_space<vmem>>, vector<1x1x64xf32>
    %434 = vector.shape_cast %433 : vector<1x1x64xf32> to vector<1x64xf32>
    %c2_187 = arith.constant 2 : index
    %c6_188 = arith.constant 6 : index
    %c0_189 = arith.constant 0 : index
    %435 = vector.load %arg2[%c2_187, %c6_188, %c0_189] : memref<6x8x192xf32, #tpu.memory_space<vmem>>, vector<1x1x16xf32>
    %436 = vector.shape_cast %435 : vector<1x1x16xf32> to vector<1x16xf32>
    %cst_190 = arith.constant dense<0.000000e+00> : vector<8x32xf32>
    %437 = tpu.matmul %9, %416, %cst_190 {dimension_numbers = #tpu.dot_dimension_numbers<[1], [0], [0], [1], [0, 0, 1, 1], [], []>} : vector<8x16xf32>, vector<16x32xf32>, vector<8x32xf32> -> vector<8x32xf32>
    %438 = vector.broadcast %424 : vector<1x32xf32> to vector<8x32xf32>
    %439 = arith.addf %437, %438 : vector<8x32xf32>
    %cst_191 = arith.constant 0.000000e+00 : f32
    %440 = vector.broadcast %cst_191 : f32 to vector<8x32xf32>
    %441 = arith.maximumf %439, %440 : vector<8x32xf32>
    %cst_192 = arith.constant dense<0.000000e+00> : vector<8x192xf32>
    %442 = tpu.matmul %441, %418, %cst_192 {dimension_numbers = #tpu.dot_dimension_numbers<[1], [0], [0], [1], [0, 0, 1, 1], [], []>} : vector<8x32xf32>, vector<32x192xf32>, vector<8x192xf32> -> vector<8x192xf32>
    %443 = vector.broadcast %426 : vector<1x192xf32> to vector<8x192xf32>
    %444 = arith.addf %442, %443 : vector<8x192xf32>
    %445 = vector.extract_strided_slice %444 {offsets = [0, 0], sizes = [8, 32], strides = [1, 1]} : vector<8x192xf32> to vector<8x32xf32>
    %446 = vector.extract_strided_slice %444 {offsets = [0, 32], sizes = [8, 32], strides = [1, 1]} : vector<8x192xf32> to vector<8x32xf32>
    %447 = vector.extract_strided_slice %445 {offsets = [0, 0], sizes = [8, 8], strides = [1, 1]} : vector<8x32xf32> to vector<8x8xf32>
    %448 = vector.extract_strided_slice %446 {offsets = [0, 0], sizes = [8, 8], strides = [1, 1]} : vector<8x32xf32> to vector<8x8xf32>
    %cst_193 = arith.constant dense<0.000000e+00> : vector<8x8xf32>
    %449 = tpu.matmul %447, %448, %cst_193 {dimension_numbers = #tpu.dot_dimension_numbers<[1], [1], [0], [0], [0, 0, 1, 0], [], []>} : vector<8x8xf32>, vector<8x8xf32>, vector<8x8xf32> -> vector<8x8xf32>
    %cst_194 = arith.constant 0.353553385 : f32
    %450 = vector.broadcast %cst_194 : f32 to vector<8x8xf32>
    %451 = arith.mulf %449, %450 : vector<8x8xf32>
    %cst_195 = arith.constant dense<0xFF800000> : vector<8xf32>
    %452 = vector.multi_reduction <maximumf>, %451, %cst_195 [1] : vector<8x8xf32> to vector<8xf32>
    %453 = vector.shape_cast %452 : vector<8xf32> to vector<8x1xf32>
    %454 = vector.broadcast %453 : vector<8x1xf32> to vector<8x8xf32>
    %455 = arith.subf %451, %454 : vector<8x8xf32>
    %456 = math.exp %455 : vector<8x8xf32>
    %cst_196 = arith.constant dense<0.000000e+00> : vector<8xf32>
    %457 = vector.multi_reduction <add>, %456, %cst_196 [1] : vector<8x8xf32> to vector<8xf32>
    %458 = vector.shape_cast %457 : vector<8xf32> to vector<8x1xf32>
    %459 = tpu.reciprocal %458 {approx = true} : vector<8x1xf32> -> vector<8x1xf32>
    %460 = vector.broadcast %459 : vector<8x1xf32> to vector<8x8xf32>
    %461 = arith.mulf %456, %460 : vector<8x8xf32>
    %462 = vector.extract_strided_slice %444 {offsets = [0, 64], sizes = [8, 32], strides = [1, 1]} : vector<8x192xf32> to vector<8x32xf32>
    %463 = vector.extract_strided_slice %445 {offsets = [0, 8], sizes = [8, 8], strides = [1, 1]} : vector<8x32xf32> to vector<8x8xf32>
    %464 = vector.extract_strided_slice %446 {offsets = [0, 8], sizes = [8, 8], strides = [1, 1]} : vector<8x32xf32> to vector<8x8xf32>
    %cst_197 = arith.constant dense<0.000000e+00> : vector<8x8xf32>
    %465 = tpu.matmul %463, %464, %cst_197 {dimension_numbers = #tpu.dot_dimension_numbers<[1], [1], [0], [0], [0, 0, 1, 0], [], []>} : vector<8x8xf32>, vector<8x8xf32>, vector<8x8xf32> -> vector<8x8xf32>
    %cst_198 = arith.constant 0.353553385 : f32
    %466 = vector.broadcast %cst_198 : f32 to vector<8x8xf32>
    %467 = arith.mulf %465, %466 : vector<8x8xf32>
    %cst_199 = arith.constant dense<0xFF800000> : vector<8xf32>
    %468 = vector.multi_reduction <maximumf>, %467, %cst_199 [1] : vector<8x8xf32> to vector<8xf32>
    %469 = vector.shape_cast %468 : vector<8xf32> to vector<8x1xf32>
    %470 = vector.broadcast %469 : vector<8x1xf32> to vector<8x8xf32>
    %471 = arith.subf %467, %470 : vector<8x8xf32>
    %472 = math.exp %471 : vector<8x8xf32>
    %cst_200 = arith.constant dense<0.000000e+00> : vector<8xf32>
    %473 = vector.multi_reduction <add>, %472, %cst_200 [1] : vector<8x8xf32> to vector<8xf32>
    %474 = vector.shape_cast %473 : vector<8xf32> to vector<8x1xf32>
    %475 = tpu.reciprocal %474 {approx = true} : vector<8x1xf32> -> vector<8x1xf32>
    %476 = vector.broadcast %475 : vector<8x1xf32> to vector<8x8xf32>
    %477 = arith.mulf %472, %476 : vector<8x8xf32>
    %478 = vector.extract_strided_slice %444 {offsets = [0, 96], sizes = [8, 32], strides = [1, 1]} : vector<8x192xf32> to vector<8x32xf32>
    %479 = vector.extract_strided_slice %445 {offsets = [0, 16], sizes = [8, 8], strides = [1, 1]} : vector<8x32xf32> to vector<8x8xf32>
    %480 = vector.extract_strided_slice %446 {offsets = [0, 16], sizes = [8, 8], strides = [1, 1]} : vector<8x32xf32> to vector<8x8xf32>
    %cst_201 = arith.constant dense<0.000000e+00> : vector<8x8xf32>
    %481 = tpu.matmul %479, %480, %cst_201 {dimension_numbers = #tpu.dot_dimension_numbers<[1], [1], [0], [0], [0, 0, 1, 0], [], []>} : vector<8x8xf32>, vector<8x8xf32>, vector<8x8xf32> -> vector<8x8xf32>
    %cst_202 = arith.constant 0.353553385 : f32
    %482 = vector.broadcast %cst_202 : f32 to vector<8x8xf32>
    %483 = arith.mulf %481, %482 : vector<8x8xf32>
    %cst_203 = arith.constant dense<0xFF800000> : vector<8xf32>
    %484 = vector.multi_reduction <maximumf>, %483, %cst_203 [1] : vector<8x8xf32> to vector<8xf32>
    %485 = vector.shape_cast %484 : vector<8xf32> to vector<8x1xf32>
    %486 = vector.broadcast %485 : vector<8x1xf32> to vector<8x8xf32>
    %487 = arith.subf %483, %486 : vector<8x8xf32>
    %488 = math.exp %487 : vector<8x8xf32>
    %cst_204 = arith.constant dense<0.000000e+00> : vector<8xf32>
    %489 = vector.multi_reduction <add>, %488, %cst_204 [1] : vector<8x8xf32> to vector<8xf32>
    %490 = vector.shape_cast %489 : vector<8xf32> to vector<8x1xf32>
    %491 = tpu.reciprocal %490 {approx = true} : vector<8x1xf32> -> vector<8x1xf32>
    %492 = vector.broadcast %491 : vector<8x1xf32> to vector<8x8xf32>
    %493 = arith.mulf %488, %492 : vector<8x8xf32>
    %494 = vector.extract_strided_slice %444 {offsets = [0, 128], sizes = [8, 32], strides = [1, 1]} : vector<8x192xf32> to vector<8x32xf32>
    %495 = vector.extract_strided_slice %445 {offsets = [0, 24], sizes = [8, 8], strides = [1, 1]} : vector<8x32xf32> to vector<8x8xf32>
    %496 = vector.extract_strided_slice %446 {offsets = [0, 24], sizes = [8, 8], strides = [1, 1]} : vector<8x32xf32> to vector<8x8xf32>
    %cst_205 = arith.constant dense<0.000000e+00> : vector<8x8xf32>
    %497 = tpu.matmul %495, %496, %cst_205 {dimension_numbers = #tpu.dot_dimension_numbers<[1], [1], [0], [0], [0, 0, 1, 0], [], []>} : vector<8x8xf32>, vector<8x8xf32>, vector<8x8xf32> -> vector<8x8xf32>
    %cst_206 = arith.constant 0.353553385 : f32
    %498 = vector.broadcast %cst_206 : f32 to vector<8x8xf32>
    %499 = arith.mulf %497, %498 : vector<8x8xf32>
    %cst_207 = arith.constant dense<0xFF800000> : vector<8xf32>
    %500 = vector.multi_reduction <maximumf>, %499, %cst_207 [1] : vector<8x8xf32> to vector<8xf32>
    %501 = vector.shape_cast %500 : vector<8xf32> to vector<8x1xf32>
    %502 = vector.broadcast %501 : vector<8x1xf32> to vector<8x8xf32>
    %503 = arith.subf %499, %502 : vector<8x8xf32>
    %504 = math.exp %503 : vector<8x8xf32>
    %cst_208 = arith.constant dense<0.000000e+00> : vector<8xf32>
    %505 = vector.multi_reduction <add>, %504, %cst_208 [1] : vector<8x8xf32> to vector<8xf32>
    %506 = vector.shape_cast %505 : vector<8xf32> to vector<8x1xf32>
    %507 = tpu.reciprocal %506 {approx = true} : vector<8x1xf32> -> vector<8x1xf32>
    %508 = vector.broadcast %507 : vector<8x1xf32> to vector<8x8xf32>
    %509 = arith.mulf %504, %508 : vector<8x8xf32>
    %510 = vector.extract_strided_slice %444 {offsets = [0, 160], sizes = [8, 32], strides = [1, 1]} : vector<8x192xf32> to vector<8x32xf32>
    %511 = tpu.concatenate %461, %477, %493, %509 in 1 : vector<8x8xf32>, vector<8x8xf32>, vector<8x8xf32>, vector<8x8xf32> -> vector<8x32xf32>
    %512 = tpu.concatenate %462, %478, %494, %510 in 0 : vector<8x32xf32>, vector<8x32xf32>, vector<8x32xf32>, vector<8x32xf32> -> vector<32x32xf32>
    %cst_209 = arith.constant dense<0.000000e+00> : vector<8x32xf32>
    %513 = tpu.matmul %511, %512, %cst_209 {dimension_numbers = #tpu.dot_dimension_numbers<[1], [0], [0], [1], [0, 0, 1, 1], [], []>} : vector<8x32xf32>, vector<32x32xf32>, vector<8x32xf32> -> vector<8x32xf32>
    %514 = vector.broadcast %428 : vector<1x32xf32> to vector<8x32xf32>
    %515 = arith.addf %513, %514 : vector<8x32xf32>
    %516 = arith.addf %515, %441 : vector<8x32xf32>
    %cst_210 = arith.constant dense<0.000000e+00> : vector<8xf32>
    %517 = vector.multi_reduction <add>, %516, %cst_210 [1] : vector<8x32xf32> to vector<8xf32>
    %518 = vector.shape_cast %517 : vector<8xf32> to vector<8x1xf32>
    %cst_211 = arith.constant 3.200000e+01 : f32
    %519 = vector.broadcast %cst_211 : f32 to vector<8x1xf32>
    %520 = arith.divf %518, %519 : vector<8x1xf32>
    %521 = vector.broadcast %520 : vector<8x1xf32> to vector<8x32xf32>
    %522 = arith.subf %516, %521 : vector<8x32xf32>
    %523 = vector.broadcast %520 : vector<8x1xf32> to vector<8x32xf32>
    %524 = arith.subf %516, %523 : vector<8x32xf32>
    %525 = arith.mulf %522, %524 : vector<8x32xf32>
    %cst_212 = arith.constant dense<0.000000e+00> : vector<8xf32>
    %526 = vector.multi_reduction <add>, %525, %cst_212 [1] : vector<8x32xf32> to vector<8xf32>
    %527 = vector.shape_cast %526 : vector<8xf32> to vector<8x1xf32>
    %cst_213 = arith.constant 3.200000e+01 : f32
    %528 = vector.broadcast %cst_213 : f32 to vector<8x1xf32>
    %529 = arith.divf %527, %528 : vector<8x1xf32>
    %530 = vector.broadcast %520 : vector<8x1xf32> to vector<8x32xf32>
    %531 = arith.subf %516, %530 : vector<8x32xf32>
    %cst_214 = arith.constant 9.99999974E-6 : f32
    %532 = vector.broadcast %cst_214 : f32 to vector<8x1xf32>
    %533 = arith.addf %529, %532 : vector<8x1xf32>
    %534 = math.rsqrt %533 : vector<8x1xf32>
    %535 = vector.broadcast %534 : vector<8x1xf32> to vector<8x32xf32>
    %536 = arith.mulf %531, %535 : vector<8x32xf32>
    %537 = vector.broadcast %430 : vector<1x32xf32> to vector<8x32xf32>
    %538 = arith.mulf %536, %537 : vector<8x32xf32>
    %539 = vector.broadcast %432 : vector<1x32xf32> to vector<8x32xf32>
    %540 = arith.addf %538, %539 : vector<8x32xf32>
    %cst_215 = arith.constant 0.000000e+00 : f32
    %541 = vector.broadcast %cst_215 : f32 to vector<8x32xf32>
    %542 = arith.maximumf %540, %541 : vector<8x32xf32>
    %cst_216 = arith.constant dense<0.000000e+00> : vector<8x64xf32>
    %543 = tpu.matmul %542, %420, %cst_216 {dimension_numbers = #tpu.dot_dimension_numbers<[1], [0], [0], [1], [0, 0, 1, 1], [], []>} : vector<8x32xf32>, vector<32x64xf32>, vector<8x64xf32> -> vector<8x64xf32>
    %544 = vector.broadcast %434 : vector<1x64xf32> to vector<8x64xf32>
    %545 = arith.addf %543, %544 : vector<8x64xf32>
    %cst_217 = arith.constant 0.000000e+00 : f32
    %546 = vector.broadcast %cst_217 : f32 to vector<8x64xf32>
    %547 = arith.maximumf %545, %546 : vector<8x64xf32>
    %cst_218 = arith.constant dense<0.000000e+00> : vector<8x16xf32>
    %548 = tpu.matmul %547, %422, %cst_218 {dimension_numbers = #tpu.dot_dimension_numbers<[1], [0], [0], [1], [0, 0, 1, 1], [], []>} : vector<8x64xf32>, vector<64x16xf32>, vector<8x16xf32> -> vector<8x16xf32>
    %549 = vector.broadcast %436 : vector<1x16xf32> to vector<8x16xf32>
    %550 = arith.addf %548, %549 : vector<8x16xf32>
    %551 = arith.mulf %550, %24 : vector<8x16xf32>
    %cst_219 = arith.constant 0.000000e+00 : f32
    %552 = vector.broadcast %cst_219 : f32 to vector<1x16xf32>
    %553 = arith.cmpf ogt, %11, %552 : vector<1x16xf32>
    %cst_220 = arith.constant -1.000000e+30 : f32
    %554 = vector.shape_cast %553 : vector<1x16xi1> to vector<1x16xi1>
    %555 = vector.broadcast %554 : vector<1x16xi1> to vector<8x16xi1>
    %556 = vector.broadcast %cst_220 : f32 to vector<8x16xf32>
    %557 = arith.select %555, %551, %556 : vector<8x16xi1>, vector<8x16xf32>
    %cst_221 = arith.constant dense<0xFF800000> : vector<8xf32>
    %558 = vector.multi_reduction <maximumf>, %557, %cst_221 [1] : vector<8x16xf32> to vector<8xf32>
    %559 = vector.shape_cast %558 : vector<8xf32> to vector<8x1xf32>
    %cst_222 = arith.constant 0.000000e+00 : f32
    %560 = vector.broadcast %cst_222 : f32 to vector<1x16xf32>
    %561 = arith.cmpf ogt, %12, %560 : vector<1x16xf32>
    %cst_223 = arith.constant -1.000000e+30 : f32
    %562 = vector.shape_cast %561 : vector<1x16xi1> to vector<1x16xi1>
    %563 = vector.broadcast %562 : vector<1x16xi1> to vector<8x16xi1>
    %564 = vector.broadcast %cst_223 : f32 to vector<8x16xf32>
    %565 = arith.select %563, %551, %564 : vector<8x16xi1>, vector<8x16xf32>
    %cst_224 = arith.constant dense<0xFF800000> : vector<8xf32>
    %566 = vector.multi_reduction <maximumf>, %565, %cst_224 [1] : vector<8x16xf32> to vector<8xf32>
    %567 = vector.shape_cast %566 : vector<8xf32> to vector<8x1xf32>
    %cst_225 = arith.constant 0.000000e+00 : f32
    %568 = vector.broadcast %cst_225 : f32 to vector<1x16xf32>
    %569 = arith.cmpf ogt, %13, %568 : vector<1x16xf32>
    %cst_226 = arith.constant -1.000000e+30 : f32
    %570 = vector.shape_cast %569 : vector<1x16xi1> to vector<1x16xi1>
    %571 = vector.broadcast %570 : vector<1x16xi1> to vector<8x16xi1>
    %572 = vector.broadcast %cst_226 : f32 to vector<8x16xf32>
    %573 = arith.select %571, %551, %572 : vector<8x16xi1>, vector<8x16xf32>
    %cst_227 = arith.constant dense<0xFF800000> : vector<8xf32>
    %574 = vector.multi_reduction <maximumf>, %573, %cst_227 [1] : vector<8x16xf32> to vector<8xf32>
    %575 = vector.shape_cast %574 : vector<8xf32> to vector<8x1xf32>
    %576 = vector.broadcast %559 : vector<8x1xf32> to vector<8x16xf32>
    %577 = vector.broadcast %11 : vector<1x16xf32> to vector<8x16xf32>
    %578 = arith.mulf %576, %577 : vector<8x16xf32>
    %579 = vector.broadcast %567 : vector<8x1xf32> to vector<8x16xf32>
    %580 = vector.broadcast %12 : vector<1x16xf32> to vector<8x16xf32>
    %581 = arith.mulf %579, %580 : vector<8x16xf32>
    %582 = arith.addf %578, %581 : vector<8x16xf32>
    %583 = vector.broadcast %575 : vector<8x1xf32> to vector<8x16xf32>
    %584 = vector.broadcast %13 : vector<1x16xf32> to vector<8x16xf32>
    %585 = arith.mulf %583, %584 : vector<8x16xf32>
    %586 = arith.addf %582, %585 : vector<8x16xf32>
    %587 = arith.subf %551, %586 : vector<8x16xf32>
    %588 = vector.broadcast %14 : vector<1x16xf32> to vector<8x16xf32>
    %589 = arith.mulf %587, %588 : vector<8x16xf32>
    %590 = math.exp %589 : vector<8x16xf32>
    %591 = vector.broadcast %14 : vector<1x16xf32> to vector<8x16xf32>
    %592 = arith.mulf %590, %591 : vector<8x16xf32>
    %cst_228 = arith.constant dense<0.000000e+00> : vector<8x8xf32>
    %593 = tpu.matmul %592, %10, %cst_228 {dimension_numbers = #tpu.dot_dimension_numbers<[1], [1], [0], [0], [0, 0, 1, 0], [], []>} : vector<8x16xf32>, vector<8x16xf32>, vector<8x8xf32> -> vector<8x8xf32>
    %cst_229 = arith.constant dense<0.000000e+00> : vector<8x16xf32>
    %594 = tpu.matmul %593, %10, %cst_229 {dimension_numbers = #tpu.dot_dimension_numbers<[1], [0], [0], [1], [0, 0, 1, 1], [], []>} : vector<8x8xf32>, vector<8x16xf32>, vector<8x16xf32> -> vector<8x16xf32>
    %595 = vector.broadcast %17 : vector<1x16xf32> to vector<8x16xf32>
    %596 = arith.addf %594, %595 : vector<8x16xf32>
    %597 = tpu.reciprocal %596 {approx = true} : vector<8x16xf32> -> vector<8x16xf32>
    %598 = arith.mulf %592, %597 : vector<8x16xf32>
    %599 = vector.broadcast %17 : vector<1x16xf32> to vector<8x16xf32>
    %600 = arith.mulf %551, %599 : vector<8x16xf32>
    %cst_230 = arith.constant 0.000000e+00 : f32
    %601 = vector.broadcast %cst_230 : f32 to vector<8x16xf32>
    %602 = arith.subf %601, %600 : vector<8x16xf32>
    %603 = math.exp %602 : vector<8x16xf32>
    %cst_231 = arith.constant 1.000000e+00 : f32
    %604 = vector.broadcast %cst_231 : f32 to vector<8x16xf32>
    %605 = arith.addf %604, %603 : vector<8x16xf32>
    %606 = tpu.reciprocal %605 {approx = true} : vector<8x16xf32> -> vector<8x16xf32>
    %607 = vector.broadcast %17 : vector<1x16xf32> to vector<8x16xf32>
    %608 = arith.mulf %606, %607 : vector<8x16xf32>
    %609 = arith.addf %598, %608 : vector<8x16xf32>
    %c3_232 = arith.constant 3 : index
    %c0_233 = arith.constant 0 : index
    %c0_234 = arith.constant 0 : index
    %610 = vector.load %arg1[%c3_232, %c0_233, %c0_234] : memref<6x144x192xf32, #tpu.memory_space<vmem>>, vector<1x16x32xf32>
    %611 = vector.shape_cast %610 : vector<1x16x32xf32> to vector<16x32xf32>
    %c3_235 = arith.constant 3 : index
    %c16_236 = arith.constant 16 : index
    %c0_237 = arith.constant 0 : index
    %612 = vector.load %arg1[%c3_235, %c16_236, %c0_237] : memref<6x144x192xf32, #tpu.memory_space<vmem>>, vector<1x32x192xf32>
    %613 = vector.shape_cast %612 : vector<1x32x192xf32> to vector<32x192xf32>
    %c3_238 = arith.constant 3 : index
    %c48_239 = arith.constant 48 : index
    %c0_240 = arith.constant 0 : index
    %614 = vector.load %arg1[%c3_238, %c48_239, %c0_240] : memref<6x144x192xf32, #tpu.memory_space<vmem>>, vector<1x32x64xf32>
    %615 = vector.shape_cast %614 : vector<1x32x64xf32> to vector<32x64xf32>
    %c3_241 = arith.constant 3 : index
    %c80_242 = arith.constant 80 : index
    %c0_243 = arith.constant 0 : index
    %616 = vector.load %arg1[%c3_241, %c80_242, %c0_243] : memref<6x144x192xf32, #tpu.memory_space<vmem>>, vector<1x64x16xf32>
    %617 = vector.shape_cast %616 : vector<1x64x16xf32> to vector<64x16xf32>
    %c3_244 = arith.constant 3 : index
    %c0_245 = arith.constant 0 : index
    %c0_246 = arith.constant 0 : index
    %618 = vector.load %arg2[%c3_244, %c0_245, %c0_246] : memref<6x8x192xf32, #tpu.memory_space<vmem>>, vector<1x1x32xf32>
    %619 = vector.shape_cast %618 : vector<1x1x32xf32> to vector<1x32xf32>
    %c3_247 = arith.constant 3 : index
    %c1_248 = arith.constant 1 : index
    %c0_249 = arith.constant 0 : index
    %620 = vector.load %arg2[%c3_247, %c1_248, %c0_249] : memref<6x8x192xf32, #tpu.memory_space<vmem>>, vector<1x1x192xf32>
    %621 = vector.shape_cast %620 : vector<1x1x192xf32> to vector<1x192xf32>
    %c3_250 = arith.constant 3 : index
    %c2_251 = arith.constant 2 : index
    %c0_252 = arith.constant 0 : index
    %622 = vector.load %arg2[%c3_250, %c2_251, %c0_252] : memref<6x8x192xf32, #tpu.memory_space<vmem>>, vector<1x1x32xf32>
    %623 = vector.shape_cast %622 : vector<1x1x32xf32> to vector<1x32xf32>
    %c3_253 = arith.constant 3 : index
    %c3_254 = arith.constant 3 : index
    %c0_255 = arith.constant 0 : index
    %624 = vector.load %arg2[%c3_253, %c3_254, %c0_255] : memref<6x8x192xf32, #tpu.memory_space<vmem>>, vector<1x1x32xf32>
    %625 = vector.shape_cast %624 : vector<1x1x32xf32> to vector<1x32xf32>
    %c3_256 = arith.constant 3 : index
    %c4_257 = arith.constant 4 : index
    %c0_258 = arith.constant 0 : index
    %626 = vector.load %arg2[%c3_256, %c4_257, %c0_258] : memref<6x8x192xf32, #tpu.memory_space<vmem>>, vector<1x1x32xf32>
    %627 = vector.shape_cast %626 : vector<1x1x32xf32> to vector<1x32xf32>
    %c3_259 = arith.constant 3 : index
    %c5_260 = arith.constant 5 : index
    %c0_261 = arith.constant 0 : index
    %628 = vector.load %arg2[%c3_259, %c5_260, %c0_261] : memref<6x8x192xf32, #tpu.memory_space<vmem>>, vector<1x1x64xf32>
    %629 = vector.shape_cast %628 : vector<1x1x64xf32> to vector<1x64xf32>
    %c3_262 = arith.constant 3 : index
    %c6_263 = arith.constant 6 : index
    %c0_264 = arith.constant 0 : index
    %630 = vector.load %arg2[%c3_262, %c6_263, %c0_264] : memref<6x8x192xf32, #tpu.memory_space<vmem>>, vector<1x1x16xf32>
    %631 = vector.shape_cast %630 : vector<1x1x16xf32> to vector<1x16xf32>
    %cst_265 = arith.constant dense<0.000000e+00> : vector<8x32xf32>
    %632 = tpu.matmul %9, %611, %cst_265 {dimension_numbers = #tpu.dot_dimension_numbers<[1], [0], [0], [1], [0, 0, 1, 1], [], []>} : vector<8x16xf32>, vector<16x32xf32>, vector<8x32xf32> -> vector<8x32xf32>
    %633 = vector.broadcast %619 : vector<1x32xf32> to vector<8x32xf32>
    %634 = arith.addf %632, %633 : vector<8x32xf32>
    %cst_266 = arith.constant 0.000000e+00 : f32
    %635 = vector.broadcast %cst_266 : f32 to vector<8x32xf32>
    %636 = arith.maximumf %634, %635 : vector<8x32xf32>
    %cst_267 = arith.constant dense<0.000000e+00> : vector<8x192xf32>
    %637 = tpu.matmul %636, %613, %cst_267 {dimension_numbers = #tpu.dot_dimension_numbers<[1], [0], [0], [1], [0, 0, 1, 1], [], []>} : vector<8x32xf32>, vector<32x192xf32>, vector<8x192xf32> -> vector<8x192xf32>
    %638 = vector.broadcast %621 : vector<1x192xf32> to vector<8x192xf32>
    %639 = arith.addf %637, %638 : vector<8x192xf32>
    %640 = vector.extract_strided_slice %639 {offsets = [0, 0], sizes = [8, 32], strides = [1, 1]} : vector<8x192xf32> to vector<8x32xf32>
    %641 = vector.extract_strided_slice %639 {offsets = [0, 32], sizes = [8, 32], strides = [1, 1]} : vector<8x192xf32> to vector<8x32xf32>
    %642 = vector.extract_strided_slice %640 {offsets = [0, 0], sizes = [8, 8], strides = [1, 1]} : vector<8x32xf32> to vector<8x8xf32>
    %643 = vector.extract_strided_slice %641 {offsets = [0, 0], sizes = [8, 8], strides = [1, 1]} : vector<8x32xf32> to vector<8x8xf32>
    %cst_268 = arith.constant dense<0.000000e+00> : vector<8x8xf32>
    %644 = tpu.matmul %642, %643, %cst_268 {dimension_numbers = #tpu.dot_dimension_numbers<[1], [1], [0], [0], [0, 0, 1, 0], [], []>} : vector<8x8xf32>, vector<8x8xf32>, vector<8x8xf32> -> vector<8x8xf32>
    %cst_269 = arith.constant 0.353553385 : f32
    %645 = vector.broadcast %cst_269 : f32 to vector<8x8xf32>
    %646 = arith.mulf %644, %645 : vector<8x8xf32>
    %cst_270 = arith.constant dense<0xFF800000> : vector<8xf32>
    %647 = vector.multi_reduction <maximumf>, %646, %cst_270 [1] : vector<8x8xf32> to vector<8xf32>
    %648 = vector.shape_cast %647 : vector<8xf32> to vector<8x1xf32>
    %649 = vector.broadcast %648 : vector<8x1xf32> to vector<8x8xf32>
    %650 = arith.subf %646, %649 : vector<8x8xf32>
    %651 = math.exp %650 : vector<8x8xf32>
    %cst_271 = arith.constant dense<0.000000e+00> : vector<8xf32>
    %652 = vector.multi_reduction <add>, %651, %cst_271 [1] : vector<8x8xf32> to vector<8xf32>
    %653 = vector.shape_cast %652 : vector<8xf32> to vector<8x1xf32>
    %654 = tpu.reciprocal %653 {approx = true} : vector<8x1xf32> -> vector<8x1xf32>
    %655 = vector.broadcast %654 : vector<8x1xf32> to vector<8x8xf32>
    %656 = arith.mulf %651, %655 : vector<8x8xf32>
    %657 = vector.extract_strided_slice %639 {offsets = [0, 64], sizes = [8, 32], strides = [1, 1]} : vector<8x192xf32> to vector<8x32xf32>
    %658 = vector.extract_strided_slice %640 {offsets = [0, 8], sizes = [8, 8], strides = [1, 1]} : vector<8x32xf32> to vector<8x8xf32>
    %659 = vector.extract_strided_slice %641 {offsets = [0, 8], sizes = [8, 8], strides = [1, 1]} : vector<8x32xf32> to vector<8x8xf32>
    %cst_272 = arith.constant dense<0.000000e+00> : vector<8x8xf32>
    %660 = tpu.matmul %658, %659, %cst_272 {dimension_numbers = #tpu.dot_dimension_numbers<[1], [1], [0], [0], [0, 0, 1, 0], [], []>} : vector<8x8xf32>, vector<8x8xf32>, vector<8x8xf32> -> vector<8x8xf32>
    %cst_273 = arith.constant 0.353553385 : f32
    %661 = vector.broadcast %cst_273 : f32 to vector<8x8xf32>
    %662 = arith.mulf %660, %661 : vector<8x8xf32>
    %cst_274 = arith.constant dense<0xFF800000> : vector<8xf32>
    %663 = vector.multi_reduction <maximumf>, %662, %cst_274 [1] : vector<8x8xf32> to vector<8xf32>
    %664 = vector.shape_cast %663 : vector<8xf32> to vector<8x1xf32>
    %665 = vector.broadcast %664 : vector<8x1xf32> to vector<8x8xf32>
    %666 = arith.subf %662, %665 : vector<8x8xf32>
    %667 = math.exp %666 : vector<8x8xf32>
    %cst_275 = arith.constant dense<0.000000e+00> : vector<8xf32>
    %668 = vector.multi_reduction <add>, %667, %cst_275 [1] : vector<8x8xf32> to vector<8xf32>
    %669 = vector.shape_cast %668 : vector<8xf32> to vector<8x1xf32>
    %670 = tpu.reciprocal %669 {approx = true} : vector<8x1xf32> -> vector<8x1xf32>
    %671 = vector.broadcast %670 : vector<8x1xf32> to vector<8x8xf32>
    %672 = arith.mulf %667, %671 : vector<8x8xf32>
    %673 = vector.extract_strided_slice %639 {offsets = [0, 96], sizes = [8, 32], strides = [1, 1]} : vector<8x192xf32> to vector<8x32xf32>
    %674 = vector.extract_strided_slice %640 {offsets = [0, 16], sizes = [8, 8], strides = [1, 1]} : vector<8x32xf32> to vector<8x8xf32>
    %675 = vector.extract_strided_slice %641 {offsets = [0, 16], sizes = [8, 8], strides = [1, 1]} : vector<8x32xf32> to vector<8x8xf32>
    %cst_276 = arith.constant dense<0.000000e+00> : vector<8x8xf32>
    %676 = tpu.matmul %674, %675, %cst_276 {dimension_numbers = #tpu.dot_dimension_numbers<[1], [1], [0], [0], [0, 0, 1, 0], [], []>} : vector<8x8xf32>, vector<8x8xf32>, vector<8x8xf32> -> vector<8x8xf32>
    %cst_277 = arith.constant 0.353553385 : f32
    %677 = vector.broadcast %cst_277 : f32 to vector<8x8xf32>
    %678 = arith.mulf %676, %677 : vector<8x8xf32>
    %cst_278 = arith.constant dense<0xFF800000> : vector<8xf32>
    %679 = vector.multi_reduction <maximumf>, %678, %cst_278 [1] : vector<8x8xf32> to vector<8xf32>
    %680 = vector.shape_cast %679 : vector<8xf32> to vector<8x1xf32>
    %681 = vector.broadcast %680 : vector<8x1xf32> to vector<8x8xf32>
    %682 = arith.subf %678, %681 : vector<8x8xf32>
    %683 = math.exp %682 : vector<8x8xf32>
    %cst_279 = arith.constant dense<0.000000e+00> : vector<8xf32>
    %684 = vector.multi_reduction <add>, %683, %cst_279 [1] : vector<8x8xf32> to vector<8xf32>
    %685 = vector.shape_cast %684 : vector<8xf32> to vector<8x1xf32>
    %686 = tpu.reciprocal %685 {approx = true} : vector<8x1xf32> -> vector<8x1xf32>
    %687 = vector.broadcast %686 : vector<8x1xf32> to vector<8x8xf32>
    %688 = arith.mulf %683, %687 : vector<8x8xf32>
    %689 = vector.extract_strided_slice %639 {offsets = [0, 128], sizes = [8, 32], strides = [1, 1]} : vector<8x192xf32> to vector<8x32xf32>
    %690 = vector.extract_strided_slice %640 {offsets = [0, 24], sizes = [8, 8], strides = [1, 1]} : vector<8x32xf32> to vector<8x8xf32>
    %691 = vector.extract_strided_slice %641 {offsets = [0, 24], sizes = [8, 8], strides = [1, 1]} : vector<8x32xf32> to vector<8x8xf32>
    %cst_280 = arith.constant dense<0.000000e+00> : vector<8x8xf32>
    %692 = tpu.matmul %690, %691, %cst_280 {dimension_numbers = #tpu.dot_dimension_numbers<[1], [1], [0], [0], [0, 0, 1, 0], [], []>} : vector<8x8xf32>, vector<8x8xf32>, vector<8x8xf32> -> vector<8x8xf32>
    %cst_281 = arith.constant 0.353553385 : f32
    %693 = vector.broadcast %cst_281 : f32 to vector<8x8xf32>
    %694 = arith.mulf %692, %693 : vector<8x8xf32>
    %cst_282 = arith.constant dense<0xFF800000> : vector<8xf32>
    %695 = vector.multi_reduction <maximumf>, %694, %cst_282 [1] : vector<8x8xf32> to vector<8xf32>
    %696 = vector.shape_cast %695 : vector<8xf32> to vector<8x1xf32>
    %697 = vector.broadcast %696 : vector<8x1xf32> to vector<8x8xf32>
    %698 = arith.subf %694, %697 : vector<8x8xf32>
    %699 = math.exp %698 : vector<8x8xf32>
    %cst_283 = arith.constant dense<0.000000e+00> : vector<8xf32>
    %700 = vector.multi_reduction <add>, %699, %cst_283 [1] : vector<8x8xf32> to vector<8xf32>
    %701 = vector.shape_cast %700 : vector<8xf32> to vector<8x1xf32>
    %702 = tpu.reciprocal %701 {approx = true} : vector<8x1xf32> -> vector<8x1xf32>
    %703 = vector.broadcast %702 : vector<8x1xf32> to vector<8x8xf32>
    %704 = arith.mulf %699, %703 : vector<8x8xf32>
    %705 = vector.extract_strided_slice %639 {offsets = [0, 160], sizes = [8, 32], strides = [1, 1]} : vector<8x192xf32> to vector<8x32xf32>
    %706 = tpu.concatenate %656, %672, %688, %704 in 1 : vector<8x8xf32>, vector<8x8xf32>, vector<8x8xf32>, vector<8x8xf32> -> vector<8x32xf32>
    %707 = tpu.concatenate %657, %673, %689, %705 in 0 : vector<8x32xf32>, vector<8x32xf32>, vector<8x32xf32>, vector<8x32xf32> -> vector<32x32xf32>
    %cst_284 = arith.constant dense<0.000000e+00> : vector<8x32xf32>
    %708 = tpu.matmul %706, %707, %cst_284 {dimension_numbers = #tpu.dot_dimension_numbers<[1], [0], [0], [1], [0, 0, 1, 1], [], []>} : vector<8x32xf32>, vector<32x32xf32>, vector<8x32xf32> -> vector<8x32xf32>
    %709 = vector.broadcast %623 : vector<1x32xf32> to vector<8x32xf32>
    %710 = arith.addf %708, %709 : vector<8x32xf32>
    %711 = arith.addf %710, %636 : vector<8x32xf32>
    %cst_285 = arith.constant dense<0.000000e+00> : vector<8xf32>
    %712 = vector.multi_reduction <add>, %711, %cst_285 [1] : vector<8x32xf32> to vector<8xf32>
    %713 = vector.shape_cast %712 : vector<8xf32> to vector<8x1xf32>
    %cst_286 = arith.constant 3.200000e+01 : f32
    %714 = vector.broadcast %cst_286 : f32 to vector<8x1xf32>
    %715 = arith.divf %713, %714 : vector<8x1xf32>
    %716 = vector.broadcast %715 : vector<8x1xf32> to vector<8x32xf32>
    %717 = arith.subf %711, %716 : vector<8x32xf32>
    %718 = vector.broadcast %715 : vector<8x1xf32> to vector<8x32xf32>
    %719 = arith.subf %711, %718 : vector<8x32xf32>
    %720 = arith.mulf %717, %719 : vector<8x32xf32>
    %cst_287 = arith.constant dense<0.000000e+00> : vector<8xf32>
    %721 = vector.multi_reduction <add>, %720, %cst_287 [1] : vector<8x32xf32> to vector<8xf32>
    %722 = vector.shape_cast %721 : vector<8xf32> to vector<8x1xf32>
    %cst_288 = arith.constant 3.200000e+01 : f32
    %723 = vector.broadcast %cst_288 : f32 to vector<8x1xf32>
    %724 = arith.divf %722, %723 : vector<8x1xf32>
    %725 = vector.broadcast %715 : vector<8x1xf32> to vector<8x32xf32>
    %726 = arith.subf %711, %725 : vector<8x32xf32>
    %cst_289 = arith.constant 9.99999974E-6 : f32
    %727 = vector.broadcast %cst_289 : f32 to vector<8x1xf32>
    %728 = arith.addf %724, %727 : vector<8x1xf32>
    %729 = math.rsqrt %728 : vector<8x1xf32>
    %730 = vector.broadcast %729 : vector<8x1xf32> to vector<8x32xf32>
    %731 = arith.mulf %726, %730 : vector<8x32xf32>
    %732 = vector.broadcast %625 : vector<1x32xf32> to vector<8x32xf32>
    %733 = arith.mulf %731, %732 : vector<8x32xf32>
    %734 = vector.broadcast %627 : vector<1x32xf32> to vector<8x32xf32>
    %735 = arith.addf %733, %734 : vector<8x32xf32>
    %cst_290 = arith.constant 0.000000e+00 : f32
    %736 = vector.broadcast %cst_290 : f32 to vector<8x32xf32>
    %737 = arith.maximumf %735, %736 : vector<8x32xf32>
    %cst_291 = arith.constant dense<0.000000e+00> : vector<8x64xf32>
    %738 = tpu.matmul %737, %615, %cst_291 {dimension_numbers = #tpu.dot_dimension_numbers<[1], [0], [0], [1], [0, 0, 1, 1], [], []>} : vector<8x32xf32>, vector<32x64xf32>, vector<8x64xf32> -> vector<8x64xf32>
    %739 = vector.broadcast %629 : vector<1x64xf32> to vector<8x64xf32>
    %740 = arith.addf %738, %739 : vector<8x64xf32>
    %cst_292 = arith.constant 0.000000e+00 : f32
    %741 = vector.broadcast %cst_292 : f32 to vector<8x64xf32>
    %742 = arith.maximumf %740, %741 : vector<8x64xf32>
    %cst_293 = arith.constant dense<0.000000e+00> : vector<8x16xf32>
    %743 = tpu.matmul %742, %617, %cst_293 {dimension_numbers = #tpu.dot_dimension_numbers<[1], [0], [0], [1], [0, 0, 1, 1], [], []>} : vector<8x64xf32>, vector<64x16xf32>, vector<8x16xf32> -> vector<8x16xf32>
    %744 = vector.broadcast %631 : vector<1x16xf32> to vector<8x16xf32>
    %745 = arith.addf %743, %744 : vector<8x16xf32>
    %746 = arith.mulf %745, %24 : vector<8x16xf32>
    %cst_294 = arith.constant 0.000000e+00 : f32
    %747 = vector.broadcast %cst_294 : f32 to vector<1x16xf32>
    %748 = arith.cmpf ogt, %11, %747 : vector<1x16xf32>
    %cst_295 = arith.constant -1.000000e+30 : f32
    %749 = vector.shape_cast %748 : vector<1x16xi1> to vector<1x16xi1>
    %750 = vector.broadcast %749 : vector<1x16xi1> to vector<8x16xi1>
    %751 = vector.broadcast %cst_295 : f32 to vector<8x16xf32>
    %752 = arith.select %750, %746, %751 : vector<8x16xi1>, vector<8x16xf32>
    %cst_296 = arith.constant dense<0xFF800000> : vector<8xf32>
    %753 = vector.multi_reduction <maximumf>, %752, %cst_296 [1] : vector<8x16xf32> to vector<8xf32>
    %754 = vector.shape_cast %753 : vector<8xf32> to vector<8x1xf32>
    %cst_297 = arith.constant 0.000000e+00 : f32
    %755 = vector.broadcast %cst_297 : f32 to vector<1x16xf32>
    %756 = arith.cmpf ogt, %12, %755 : vector<1x16xf32>
    %cst_298 = arith.constant -1.000000e+30 : f32
    %757 = vector.shape_cast %756 : vector<1x16xi1> to vector<1x16xi1>
    %758 = vector.broadcast %757 : vector<1x16xi1> to vector<8x16xi1>
    %759 = vector.broadcast %cst_298 : f32 to vector<8x16xf32>
    %760 = arith.select %758, %746, %759 : vector<8x16xi1>, vector<8x16xf32>
    %cst_299 = arith.constant dense<0xFF800000> : vector<8xf32>
    %761 = vector.multi_reduction <maximumf>, %760, %cst_299 [1] : vector<8x16xf32> to vector<8xf32>
    %762 = vector.shape_cast %761 : vector<8xf32> to vector<8x1xf32>
    %cst_300 = arith.constant 0.000000e+00 : f32
    %763 = vector.broadcast %cst_300 : f32 to vector<1x16xf32>
    %764 = arith.cmpf ogt, %13, %763 : vector<1x16xf32>
    %cst_301 = arith.constant -1.000000e+30 : f32
    %765 = vector.shape_cast %764 : vector<1x16xi1> to vector<1x16xi1>
    %766 = vector.broadcast %765 : vector<1x16xi1> to vector<8x16xi1>
    %767 = vector.broadcast %cst_301 : f32 to vector<8x16xf32>
    %768 = arith.select %766, %746, %767 : vector<8x16xi1>, vector<8x16xf32>
    %cst_302 = arith.constant dense<0xFF800000> : vector<8xf32>
    %769 = vector.multi_reduction <maximumf>, %768, %cst_302 [1] : vector<8x16xf32> to vector<8xf32>
    %770 = vector.shape_cast %769 : vector<8xf32> to vector<8x1xf32>
    %771 = vector.broadcast %754 : vector<8x1xf32> to vector<8x16xf32>
    %772 = vector.broadcast %11 : vector<1x16xf32> to vector<8x16xf32>
    %773 = arith.mulf %771, %772 : vector<8x16xf32>
    %774 = vector.broadcast %762 : vector<8x1xf32> to vector<8x16xf32>
    %775 = vector.broadcast %12 : vector<1x16xf32> to vector<8x16xf32>
    %776 = arith.mulf %774, %775 : vector<8x16xf32>
    %777 = arith.addf %773, %776 : vector<8x16xf32>
    %778 = vector.broadcast %770 : vector<8x1xf32> to vector<8x16xf32>
    %779 = vector.broadcast %13 : vector<1x16xf32> to vector<8x16xf32>
    %780 = arith.mulf %778, %779 : vector<8x16xf32>
    %781 = arith.addf %777, %780 : vector<8x16xf32>
    %782 = arith.subf %746, %781 : vector<8x16xf32>
    %783 = vector.broadcast %14 : vector<1x16xf32> to vector<8x16xf32>
    %784 = arith.mulf %782, %783 : vector<8x16xf32>
    %785 = math.exp %784 : vector<8x16xf32>
    %786 = vector.broadcast %14 : vector<1x16xf32> to vector<8x16xf32>
    %787 = arith.mulf %785, %786 : vector<8x16xf32>
    %cst_303 = arith.constant dense<0.000000e+00> : vector<8x8xf32>
    %788 = tpu.matmul %787, %10, %cst_303 {dimension_numbers = #tpu.dot_dimension_numbers<[1], [1], [0], [0], [0, 0, 1, 0], [], []>} : vector<8x16xf32>, vector<8x16xf32>, vector<8x8xf32> -> vector<8x8xf32>
    %cst_304 = arith.constant dense<0.000000e+00> : vector<8x16xf32>
    %789 = tpu.matmul %788, %10, %cst_304 {dimension_numbers = #tpu.dot_dimension_numbers<[1], [0], [0], [1], [0, 0, 1, 1], [], []>} : vector<8x8xf32>, vector<8x16xf32>, vector<8x16xf32> -> vector<8x16xf32>
    %790 = vector.broadcast %17 : vector<1x16xf32> to vector<8x16xf32>
    %791 = arith.addf %789, %790 : vector<8x16xf32>
    %792 = tpu.reciprocal %791 {approx = true} : vector<8x16xf32> -> vector<8x16xf32>
    %793 = arith.mulf %787, %792 : vector<8x16xf32>
    %794 = vector.broadcast %17 : vector<1x16xf32> to vector<8x16xf32>
    %795 = arith.mulf %746, %794 : vector<8x16xf32>
    %cst_305 = arith.constant 0.000000e+00 : f32
    %796 = vector.broadcast %cst_305 : f32 to vector<8x16xf32>
    %797 = arith.subf %796, %795 : vector<8x16xf32>
    %798 = math.exp %797 : vector<8x16xf32>
    %cst_306 = arith.constant 1.000000e+00 : f32
    %799 = vector.broadcast %cst_306 : f32 to vector<8x16xf32>
    %800 = arith.addf %799, %798 : vector<8x16xf32>
    %801 = tpu.reciprocal %800 {approx = true} : vector<8x16xf32> -> vector<8x16xf32>
    %802 = vector.broadcast %17 : vector<1x16xf32> to vector<8x16xf32>
    %803 = arith.mulf %801, %802 : vector<8x16xf32>
    %804 = arith.addf %793, %803 : vector<8x16xf32>
    %c4_307 = arith.constant 4 : index
    %c0_308 = arith.constant 0 : index
    %c0_309 = arith.constant 0 : index
    %805 = vector.load %arg1[%c4_307, %c0_308, %c0_309] : memref<6x144x192xf32, #tpu.memory_space<vmem>>, vector<1x16x32xf32>
    %806 = vector.shape_cast %805 : vector<1x16x32xf32> to vector<16x32xf32>
    %c4_310 = arith.constant 4 : index
    %c16_311 = arith.constant 16 : index
    %c0_312 = arith.constant 0 : index
    %807 = vector.load %arg1[%c4_310, %c16_311, %c0_312] : memref<6x144x192xf32, #tpu.memory_space<vmem>>, vector<1x32x192xf32>
    %808 = vector.shape_cast %807 : vector<1x32x192xf32> to vector<32x192xf32>
    %c4_313 = arith.constant 4 : index
    %c48_314 = arith.constant 48 : index
    %c0_315 = arith.constant 0 : index
    %809 = vector.load %arg1[%c4_313, %c48_314, %c0_315] : memref<6x144x192xf32, #tpu.memory_space<vmem>>, vector<1x32x64xf32>
    %810 = vector.shape_cast %809 : vector<1x32x64xf32> to vector<32x64xf32>
    %c4_316 = arith.constant 4 : index
    %c80_317 = arith.constant 80 : index
    %c0_318 = arith.constant 0 : index
    %811 = vector.load %arg1[%c4_316, %c80_317, %c0_318] : memref<6x144x192xf32, #tpu.memory_space<vmem>>, vector<1x64x16xf32>
    %812 = vector.shape_cast %811 : vector<1x64x16xf32> to vector<64x16xf32>
    %c4_319 = arith.constant 4 : index
    %c0_320 = arith.constant 0 : index
    %c0_321 = arith.constant 0 : index
    %813 = vector.load %arg2[%c4_319, %c0_320, %c0_321] : memref<6x8x192xf32, #tpu.memory_space<vmem>>, vector<1x1x32xf32>
    %814 = vector.shape_cast %813 : vector<1x1x32xf32> to vector<1x32xf32>
    %c4_322 = arith.constant 4 : index
    %c1_323 = arith.constant 1 : index
    %c0_324 = arith.constant 0 : index
    %815 = vector.load %arg2[%c4_322, %c1_323, %c0_324] : memref<6x8x192xf32, #tpu.memory_space<vmem>>, vector<1x1x192xf32>
    %816 = vector.shape_cast %815 : vector<1x1x192xf32> to vector<1x192xf32>
    %c4_325 = arith.constant 4 : index
    %c2_326 = arith.constant 2 : index
    %c0_327 = arith.constant 0 : index
    %817 = vector.load %arg2[%c4_325, %c2_326, %c0_327] : memref<6x8x192xf32, #tpu.memory_space<vmem>>, vector<1x1x32xf32>
    %818 = vector.shape_cast %817 : vector<1x1x32xf32> to vector<1x32xf32>
    %c4_328 = arith.constant 4 : index
    %c3_329 = arith.constant 3 : index
    %c0_330 = arith.constant 0 : index
    %819 = vector.load %arg2[%c4_328, %c3_329, %c0_330] : memref<6x8x192xf32, #tpu.memory_space<vmem>>, vector<1x1x32xf32>
    %820 = vector.shape_cast %819 : vector<1x1x32xf32> to vector<1x32xf32>
    %c4_331 = arith.constant 4 : index
    %c4_332 = arith.constant 4 : index
    %c0_333 = arith.constant 0 : index
    %821 = vector.load %arg2[%c4_331, %c4_332, %c0_333] : memref<6x8x192xf32, #tpu.memory_space<vmem>>, vector<1x1x32xf32>
    %822 = vector.shape_cast %821 : vector<1x1x32xf32> to vector<1x32xf32>
    %c4_334 = arith.constant 4 : index
    %c5_335 = arith.constant 5 : index
    %c0_336 = arith.constant 0 : index
    %823 = vector.load %arg2[%c4_334, %c5_335, %c0_336] : memref<6x8x192xf32, #tpu.memory_space<vmem>>, vector<1x1x64xf32>
    %824 = vector.shape_cast %823 : vector<1x1x64xf32> to vector<1x64xf32>
    %c4_337 = arith.constant 4 : index
    %c6_338 = arith.constant 6 : index
    %c0_339 = arith.constant 0 : index
    %825 = vector.load %arg2[%c4_337, %c6_338, %c0_339] : memref<6x8x192xf32, #tpu.memory_space<vmem>>, vector<1x1x16xf32>
    %826 = vector.shape_cast %825 : vector<1x1x16xf32> to vector<1x16xf32>
    %cst_340 = arith.constant dense<0.000000e+00> : vector<8x32xf32>
    %827 = tpu.matmul %9, %806, %cst_340 {dimension_numbers = #tpu.dot_dimension_numbers<[1], [0], [0], [1], [0, 0, 1, 1], [], []>} : vector<8x16xf32>, vector<16x32xf32>, vector<8x32xf32> -> vector<8x32xf32>
    %828 = vector.broadcast %814 : vector<1x32xf32> to vector<8x32xf32>
    %829 = arith.addf %827, %828 : vector<8x32xf32>
    %cst_341 = arith.constant 0.000000e+00 : f32
    %830 = vector.broadcast %cst_341 : f32 to vector<8x32xf32>
    %831 = arith.maximumf %829, %830 : vector<8x32xf32>
    %cst_342 = arith.constant dense<0.000000e+00> : vector<8x192xf32>
    %832 = tpu.matmul %831, %808, %cst_342 {dimension_numbers = #tpu.dot_dimension_numbers<[1], [0], [0], [1], [0, 0, 1, 1], [], []>} : vector<8x32xf32>, vector<32x192xf32>, vector<8x192xf32> -> vector<8x192xf32>
    %833 = vector.broadcast %816 : vector<1x192xf32> to vector<8x192xf32>
    %834 = arith.addf %832, %833 : vector<8x192xf32>
    %835 = vector.extract_strided_slice %834 {offsets = [0, 0], sizes = [8, 32], strides = [1, 1]} : vector<8x192xf32> to vector<8x32xf32>
    %836 = vector.extract_strided_slice %834 {offsets = [0, 32], sizes = [8, 32], strides = [1, 1]} : vector<8x192xf32> to vector<8x32xf32>
    %837 = vector.extract_strided_slice %835 {offsets = [0, 0], sizes = [8, 8], strides = [1, 1]} : vector<8x32xf32> to vector<8x8xf32>
    %838 = vector.extract_strided_slice %836 {offsets = [0, 0], sizes = [8, 8], strides = [1, 1]} : vector<8x32xf32> to vector<8x8xf32>
    %cst_343 = arith.constant dense<0.000000e+00> : vector<8x8xf32>
    %839 = tpu.matmul %837, %838, %cst_343 {dimension_numbers = #tpu.dot_dimension_numbers<[1], [1], [0], [0], [0, 0, 1, 0], [], []>} : vector<8x8xf32>, vector<8x8xf32>, vector<8x8xf32> -> vector<8x8xf32>
    %cst_344 = arith.constant 0.353553385 : f32
    %840 = vector.broadcast %cst_344 : f32 to vector<8x8xf32>
    %841 = arith.mulf %839, %840 : vector<8x8xf32>
    %cst_345 = arith.constant dense<0xFF800000> : vector<8xf32>
    %842 = vector.multi_reduction <maximumf>, %841, %cst_345 [1] : vector<8x8xf32> to vector<8xf32>
    %843 = vector.shape_cast %842 : vector<8xf32> to vector<8x1xf32>
    %844 = vector.broadcast %843 : vector<8x1xf32> to vector<8x8xf32>
    %845 = arith.subf %841, %844 : vector<8x8xf32>
    %846 = math.exp %845 : vector<8x8xf32>
    %cst_346 = arith.constant dense<0.000000e+00> : vector<8xf32>
    %847 = vector.multi_reduction <add>, %846, %cst_346 [1] : vector<8x8xf32> to vector<8xf32>
    %848 = vector.shape_cast %847 : vector<8xf32> to vector<8x1xf32>
    %849 = tpu.reciprocal %848 {approx = true} : vector<8x1xf32> -> vector<8x1xf32>
    %850 = vector.broadcast %849 : vector<8x1xf32> to vector<8x8xf32>
    %851 = arith.mulf %846, %850 : vector<8x8xf32>
    %852 = vector.extract_strided_slice %834 {offsets = [0, 64], sizes = [8, 32], strides = [1, 1]} : vector<8x192xf32> to vector<8x32xf32>
    %853 = vector.extract_strided_slice %835 {offsets = [0, 8], sizes = [8, 8], strides = [1, 1]} : vector<8x32xf32> to vector<8x8xf32>
    %854 = vector.extract_strided_slice %836 {offsets = [0, 8], sizes = [8, 8], strides = [1, 1]} : vector<8x32xf32> to vector<8x8xf32>
    %cst_347 = arith.constant dense<0.000000e+00> : vector<8x8xf32>
    %855 = tpu.matmul %853, %854, %cst_347 {dimension_numbers = #tpu.dot_dimension_numbers<[1], [1], [0], [0], [0, 0, 1, 0], [], []>} : vector<8x8xf32>, vector<8x8xf32>, vector<8x8xf32> -> vector<8x8xf32>
    %cst_348 = arith.constant 0.353553385 : f32
    %856 = vector.broadcast %cst_348 : f32 to vector<8x8xf32>
    %857 = arith.mulf %855, %856 : vector<8x8xf32>
    %cst_349 = arith.constant dense<0xFF800000> : vector<8xf32>
    %858 = vector.multi_reduction <maximumf>, %857, %cst_349 [1] : vector<8x8xf32> to vector<8xf32>
    %859 = vector.shape_cast %858 : vector<8xf32> to vector<8x1xf32>
    %860 = vector.broadcast %859 : vector<8x1xf32> to vector<8x8xf32>
    %861 = arith.subf %857, %860 : vector<8x8xf32>
    %862 = math.exp %861 : vector<8x8xf32>
    %cst_350 = arith.constant dense<0.000000e+00> : vector<8xf32>
    %863 = vector.multi_reduction <add>, %862, %cst_350 [1] : vector<8x8xf32> to vector<8xf32>
    %864 = vector.shape_cast %863 : vector<8xf32> to vector<8x1xf32>
    %865 = tpu.reciprocal %864 {approx = true} : vector<8x1xf32> -> vector<8x1xf32>
    %866 = vector.broadcast %865 : vector<8x1xf32> to vector<8x8xf32>
    %867 = arith.mulf %862, %866 : vector<8x8xf32>
    %868 = vector.extract_strided_slice %834 {offsets = [0, 96], sizes = [8, 32], strides = [1, 1]} : vector<8x192xf32> to vector<8x32xf32>
    %869 = vector.extract_strided_slice %835 {offsets = [0, 16], sizes = [8, 8], strides = [1, 1]} : vector<8x32xf32> to vector<8x8xf32>
    %870 = vector.extract_strided_slice %836 {offsets = [0, 16], sizes = [8, 8], strides = [1, 1]} : vector<8x32xf32> to vector<8x8xf32>
    %cst_351 = arith.constant dense<0.000000e+00> : vector<8x8xf32>
    %871 = tpu.matmul %869, %870, %cst_351 {dimension_numbers = #tpu.dot_dimension_numbers<[1], [1], [0], [0], [0, 0, 1, 0], [], []>} : vector<8x8xf32>, vector<8x8xf32>, vector<8x8xf32> -> vector<8x8xf32>
    %cst_352 = arith.constant 0.353553385 : f32
    %872 = vector.broadcast %cst_352 : f32 to vector<8x8xf32>
    %873 = arith.mulf %871, %872 : vector<8x8xf32>
    %cst_353 = arith.constant dense<0xFF800000> : vector<8xf32>
    %874 = vector.multi_reduction <maximumf>, %873, %cst_353 [1] : vector<8x8xf32> to vector<8xf32>
    %875 = vector.shape_cast %874 : vector<8xf32> to vector<8x1xf32>
    %876 = vector.broadcast %875 : vector<8x1xf32> to vector<8x8xf32>
    %877 = arith.subf %873, %876 : vector<8x8xf32>
    %878 = math.exp %877 : vector<8x8xf32>
    %cst_354 = arith.constant dense<0.000000e+00> : vector<8xf32>
    %879 = vector.multi_reduction <add>, %878, %cst_354 [1] : vector<8x8xf32> to vector<8xf32>
    %880 = vector.shape_cast %879 : vector<8xf32> to vector<8x1xf32>
    %881 = tpu.reciprocal %880 {approx = true} : vector<8x1xf32> -> vector<8x1xf32>
    %882 = vector.broadcast %881 : vector<8x1xf32> to vector<8x8xf32>
    %883 = arith.mulf %878, %882 : vector<8x8xf32>
    %884 = vector.extract_strided_slice %834 {offsets = [0, 128], sizes = [8, 32], strides = [1, 1]} : vector<8x192xf32> to vector<8x32xf32>
    %885 = vector.extract_strided_slice %835 {offsets = [0, 24], sizes = [8, 8], strides = [1, 1]} : vector<8x32xf32> to vector<8x8xf32>
    %886 = vector.extract_strided_slice %836 {offsets = [0, 24], sizes = [8, 8], strides = [1, 1]} : vector<8x32xf32> to vector<8x8xf32>
    %cst_355 = arith.constant dense<0.000000e+00> : vector<8x8xf32>
    %887 = tpu.matmul %885, %886, %cst_355 {dimension_numbers = #tpu.dot_dimension_numbers<[1], [1], [0], [0], [0, 0, 1, 0], [], []>} : vector<8x8xf32>, vector<8x8xf32>, vector<8x8xf32> -> vector<8x8xf32>
    %cst_356 = arith.constant 0.353553385 : f32
    %888 = vector.broadcast %cst_356 : f32 to vector<8x8xf32>
    %889 = arith.mulf %887, %888 : vector<8x8xf32>
    %cst_357 = arith.constant dense<0xFF800000> : vector<8xf32>
    %890 = vector.multi_reduction <maximumf>, %889, %cst_357 [1] : vector<8x8xf32> to vector<8xf32>
    %891 = vector.shape_cast %890 : vector<8xf32> to vector<8x1xf32>
    %892 = vector.broadcast %891 : vector<8x1xf32> to vector<8x8xf32>
    %893 = arith.subf %889, %892 : vector<8x8xf32>
    %894 = math.exp %893 : vector<8x8xf32>
    %cst_358 = arith.constant dense<0.000000e+00> : vector<8xf32>
    %895 = vector.multi_reduction <add>, %894, %cst_358 [1] : vector<8x8xf32> to vector<8xf32>
    %896 = vector.shape_cast %895 : vector<8xf32> to vector<8x1xf32>
    %897 = tpu.reciprocal %896 {approx = true} : vector<8x1xf32> -> vector<8x1xf32>
    %898 = vector.broadcast %897 : vector<8x1xf32> to vector<8x8xf32>
    %899 = arith.mulf %894, %898 : vector<8x8xf32>
    %900 = vector.extract_strided_slice %834 {offsets = [0, 160], sizes = [8, 32], strides = [1, 1]} : vector<8x192xf32> to vector<8x32xf32>
    %901 = tpu.concatenate %851, %867, %883, %899 in 1 : vector<8x8xf32>, vector<8x8xf32>, vector<8x8xf32>, vector<8x8xf32> -> vector<8x32xf32>
    %902 = tpu.concatenate %852, %868, %884, %900 in 0 : vector<8x32xf32>, vector<8x32xf32>, vector<8x32xf32>, vector<8x32xf32> -> vector<32x32xf32>
    %cst_359 = arith.constant dense<0.000000e+00> : vector<8x32xf32>
    %903 = tpu.matmul %901, %902, %cst_359 {dimension_numbers = #tpu.dot_dimension_numbers<[1], [0], [0], [1], [0, 0, 1, 1], [], []>} : vector<8x32xf32>, vector<32x32xf32>, vector<8x32xf32> -> vector<8x32xf32>
    %904 = vector.broadcast %818 : vector<1x32xf32> to vector<8x32xf32>
    %905 = arith.addf %903, %904 : vector<8x32xf32>
    %906 = arith.addf %905, %831 : vector<8x32xf32>
    %cst_360 = arith.constant dense<0.000000e+00> : vector<8xf32>
    %907 = vector.multi_reduction <add>, %906, %cst_360 [1] : vector<8x32xf32> to vector<8xf32>
    %908 = vector.shape_cast %907 : vector<8xf32> to vector<8x1xf32>
    %cst_361 = arith.constant 3.200000e+01 : f32
    %909 = vector.broadcast %cst_361 : f32 to vector<8x1xf32>
    %910 = arith.divf %908, %909 : vector<8x1xf32>
    %911 = vector.broadcast %910 : vector<8x1xf32> to vector<8x32xf32>
    %912 = arith.subf %906, %911 : vector<8x32xf32>
    %913 = vector.broadcast %910 : vector<8x1xf32> to vector<8x32xf32>
    %914 = arith.subf %906, %913 : vector<8x32xf32>
    %915 = arith.mulf %912, %914 : vector<8x32xf32>
    %cst_362 = arith.constant dense<0.000000e+00> : vector<8xf32>
    %916 = vector.multi_reduction <add>, %915, %cst_362 [1] : vector<8x32xf32> to vector<8xf32>
    %917 = vector.shape_cast %916 : vector<8xf32> to vector<8x1xf32>
    %cst_363 = arith.constant 3.200000e+01 : f32
    %918 = vector.broadcast %cst_363 : f32 to vector<8x1xf32>
    %919 = arith.divf %917, %918 : vector<8x1xf32>
    %920 = vector.broadcast %910 : vector<8x1xf32> to vector<8x32xf32>
    %921 = arith.subf %906, %920 : vector<8x32xf32>
    %cst_364 = arith.constant 9.99999974E-6 : f32
    %922 = vector.broadcast %cst_364 : f32 to vector<8x1xf32>
    %923 = arith.addf %919, %922 : vector<8x1xf32>
    %924 = math.rsqrt %923 : vector<8x1xf32>
    %925 = vector.broadcast %924 : vector<8x1xf32> to vector<8x32xf32>
    %926 = arith.mulf %921, %925 : vector<8x32xf32>
    %927 = vector.broadcast %820 : vector<1x32xf32> to vector<8x32xf32>
    %928 = arith.mulf %926, %927 : vector<8x32xf32>
    %929 = vector.broadcast %822 : vector<1x32xf32> to vector<8x32xf32>
    %930 = arith.addf %928, %929 : vector<8x32xf32>
    %cst_365 = arith.constant 0.000000e+00 : f32
    %931 = vector.broadcast %cst_365 : f32 to vector<8x32xf32>
    %932 = arith.maximumf %930, %931 : vector<8x32xf32>
    %cst_366 = arith.constant dense<0.000000e+00> : vector<8x64xf32>
    %933 = tpu.matmul %932, %810, %cst_366 {dimension_numbers = #tpu.dot_dimension_numbers<[1], [0], [0], [1], [0, 0, 1, 1], [], []>} : vector<8x32xf32>, vector<32x64xf32>, vector<8x64xf32> -> vector<8x64xf32>
    %934 = vector.broadcast %824 : vector<1x64xf32> to vector<8x64xf32>
    %935 = arith.addf %933, %934 : vector<8x64xf32>
    %cst_367 = arith.constant 0.000000e+00 : f32
    %936 = vector.broadcast %cst_367 : f32 to vector<8x64xf32>
    %937 = arith.maximumf %935, %936 : vector<8x64xf32>
    %cst_368 = arith.constant dense<0.000000e+00> : vector<8x16xf32>
    %938 = tpu.matmul %937, %812, %cst_368 {dimension_numbers = #tpu.dot_dimension_numbers<[1], [0], [0], [1], [0, 0, 1, 1], [], []>} : vector<8x64xf32>, vector<64x16xf32>, vector<8x16xf32> -> vector<8x16xf32>
    %939 = vector.broadcast %826 : vector<1x16xf32> to vector<8x16xf32>
    %940 = arith.addf %938, %939 : vector<8x16xf32>
    %941 = arith.mulf %940, %24 : vector<8x16xf32>
    %cst_369 = arith.constant 0.000000e+00 : f32
    %942 = vector.broadcast %cst_369 : f32 to vector<1x16xf32>
    %943 = arith.cmpf ogt, %11, %942 : vector<1x16xf32>
    %cst_370 = arith.constant -1.000000e+30 : f32
    %944 = vector.shape_cast %943 : vector<1x16xi1> to vector<1x16xi1>
    %945 = vector.broadcast %944 : vector<1x16xi1> to vector<8x16xi1>
    %946 = vector.broadcast %cst_370 : f32 to vector<8x16xf32>
    %947 = arith.select %945, %941, %946 : vector<8x16xi1>, vector<8x16xf32>
    %cst_371 = arith.constant dense<0xFF800000> : vector<8xf32>
    %948 = vector.multi_reduction <maximumf>, %947, %cst_371 [1] : vector<8x16xf32> to vector<8xf32>
    %949 = vector.shape_cast %948 : vector<8xf32> to vector<8x1xf32>
    %cst_372 = arith.constant 0.000000e+00 : f32
    %950 = vector.broadcast %cst_372 : f32 to vector<1x16xf32>
    %951 = arith.cmpf ogt, %12, %950 : vector<1x16xf32>
    %cst_373 = arith.constant -1.000000e+30 : f32
    %952 = vector.shape_cast %951 : vector<1x16xi1> to vector<1x16xi1>
    %953 = vector.broadcast %952 : vector<1x16xi1> to vector<8x16xi1>
    %954 = vector.broadcast %cst_373 : f32 to vector<8x16xf32>
    %955 = arith.select %953, %941, %954 : vector<8x16xi1>, vector<8x16xf32>
    %cst_374 = arith.constant dense<0xFF800000> : vector<8xf32>
    %956 = vector.multi_reduction <maximumf>, %955, %cst_374 [1] : vector<8x16xf32> to vector<8xf32>
    %957 = vector.shape_cast %956 : vector<8xf32> to vector<8x1xf32>
    %cst_375 = arith.constant 0.000000e+00 : f32
    %958 = vector.broadcast %cst_375 : f32 to vector<1x16xf32>
    %959 = arith.cmpf ogt, %13, %958 : vector<1x16xf32>
    %cst_376 = arith.constant -1.000000e+30 : f32
    %960 = vector.shape_cast %959 : vector<1x16xi1> to vector<1x16xi1>
    %961 = vector.broadcast %960 : vector<1x16xi1> to vector<8x16xi1>
    %962 = vector.broadcast %cst_376 : f32 to vector<8x16xf32>
    %963 = arith.select %961, %941, %962 : vector<8x16xi1>, vector<8x16xf32>
    %cst_377 = arith.constant dense<0xFF800000> : vector<8xf32>
    %964 = vector.multi_reduction <maximumf>, %963, %cst_377 [1] : vector<8x16xf32> to vector<8xf32>
    %965 = vector.shape_cast %964 : vector<8xf32> to vector<8x1xf32>
    %966 = vector.broadcast %949 : vector<8x1xf32> to vector<8x16xf32>
    %967 = vector.broadcast %11 : vector<1x16xf32> to vector<8x16xf32>
    %968 = arith.mulf %966, %967 : vector<8x16xf32>
    %969 = vector.broadcast %957 : vector<8x1xf32> to vector<8x16xf32>
    %970 = vector.broadcast %12 : vector<1x16xf32> to vector<8x16xf32>
    %971 = arith.mulf %969, %970 : vector<8x16xf32>
    %972 = arith.addf %968, %971 : vector<8x16xf32>
    %973 = vector.broadcast %965 : vector<8x1xf32> to vector<8x16xf32>
    %974 = vector.broadcast %13 : vector<1x16xf32> to vector<8x16xf32>
    %975 = arith.mulf %973, %974 : vector<8x16xf32>
    %976 = arith.addf %972, %975 : vector<8x16xf32>
    %977 = arith.subf %941, %976 : vector<8x16xf32>
    %978 = vector.broadcast %14 : vector<1x16xf32> to vector<8x16xf32>
    %979 = arith.mulf %977, %978 : vector<8x16xf32>
    %980 = math.exp %979 : vector<8x16xf32>
    %981 = vector.broadcast %14 : vector<1x16xf32> to vector<8x16xf32>
    %982 = arith.mulf %980, %981 : vector<8x16xf32>
    %cst_378 = arith.constant dense<0.000000e+00> : vector<8x8xf32>
    %983 = tpu.matmul %982, %10, %cst_378 {dimension_numbers = #tpu.dot_dimension_numbers<[1], [1], [0], [0], [0, 0, 1, 0], [], []>} : vector<8x16xf32>, vector<8x16xf32>, vector<8x8xf32> -> vector<8x8xf32>
    %cst_379 = arith.constant dense<0.000000e+00> : vector<8x16xf32>
    %984 = tpu.matmul %983, %10, %cst_379 {dimension_numbers = #tpu.dot_dimension_numbers<[1], [0], [0], [1], [0, 0, 1, 1], [], []>} : vector<8x8xf32>, vector<8x16xf32>, vector<8x16xf32> -> vector<8x16xf32>
    %985 = vector.broadcast %17 : vector<1x16xf32> to vector<8x16xf32>
    %986 = arith.addf %984, %985 : vector<8x16xf32>
    %987 = tpu.reciprocal %986 {approx = true} : vector<8x16xf32> -> vector<8x16xf32>
    %988 = arith.mulf %982, %987 : vector<8x16xf32>
    %989 = vector.broadcast %17 : vector<1x16xf32> to vector<8x16xf32>
    %990 = arith.mulf %941, %989 : vector<8x16xf32>
    %cst_380 = arith.constant 0.000000e+00 : f32
    %991 = vector.broadcast %cst_380 : f32 to vector<8x16xf32>
    %992 = arith.subf %991, %990 : vector<8x16xf32>
    %993 = math.exp %992 : vector<8x16xf32>
    %cst_381 = arith.constant 1.000000e+00 : f32
    %994 = vector.broadcast %cst_381 : f32 to vector<8x16xf32>
    %995 = arith.addf %994, %993 : vector<8x16xf32>
    %996 = tpu.reciprocal %995 {approx = true} : vector<8x16xf32> -> vector<8x16xf32>
    %997 = vector.broadcast %17 : vector<1x16xf32> to vector<8x16xf32>
    %998 = arith.mulf %996, %997 : vector<8x16xf32>
    %999 = arith.addf %988, %998 : vector<8x16xf32>
    %c5_382 = arith.constant 5 : index
    %c0_383 = arith.constant 0 : index
    %c0_384 = arith.constant 0 : index
    %1000 = vector.load %arg1[%c5_382, %c0_383, %c0_384] : memref<6x144x192xf32, #tpu.memory_space<vmem>>, vector<1x16x32xf32>
    %1001 = vector.shape_cast %1000 : vector<1x16x32xf32> to vector<16x32xf32>
    %c5_385 = arith.constant 5 : index
    %c16_386 = arith.constant 16 : index
    %c0_387 = arith.constant 0 : index
    %1002 = vector.load %arg1[%c5_385, %c16_386, %c0_387] : memref<6x144x192xf32, #tpu.memory_space<vmem>>, vector<1x32x192xf32>
    %1003 = vector.shape_cast %1002 : vector<1x32x192xf32> to vector<32x192xf32>
    %c5_388 = arith.constant 5 : index
    %c48_389 = arith.constant 48 : index
    %c0_390 = arith.constant 0 : index
    %1004 = vector.load %arg1[%c5_388, %c48_389, %c0_390] : memref<6x144x192xf32, #tpu.memory_space<vmem>>, vector<1x32x64xf32>
    %1005 = vector.shape_cast %1004 : vector<1x32x64xf32> to vector<32x64xf32>
    %c5_391 = arith.constant 5 : index
    %c80_392 = arith.constant 80 : index
    %c0_393 = arith.constant 0 : index
    %1006 = vector.load %arg1[%c5_391, %c80_392, %c0_393] : memref<6x144x192xf32, #tpu.memory_space<vmem>>, vector<1x64x16xf32>
    %1007 = vector.shape_cast %1006 : vector<1x64x16xf32> to vector<64x16xf32>
    %c5_394 = arith.constant 5 : index
    %c0_395 = arith.constant 0 : index
    %c0_396 = arith.constant 0 : index
    %1008 = vector.load %arg2[%c5_394, %c0_395, %c0_396] : memref<6x8x192xf32, #tpu.memory_space<vmem>>, vector<1x1x32xf32>
    %1009 = vector.shape_cast %1008 : vector<1x1x32xf32> to vector<1x32xf32>
    %c5_397 = arith.constant 5 : index
    %c1_398 = arith.constant 1 : index
    %c0_399 = arith.constant 0 : index
    %1010 = vector.load %arg2[%c5_397, %c1_398, %c0_399] : memref<6x8x192xf32, #tpu.memory_space<vmem>>, vector<1x1x192xf32>
    %1011 = vector.shape_cast %1010 : vector<1x1x192xf32> to vector<1x192xf32>
    %c5_400 = arith.constant 5 : index
    %c2_401 = arith.constant 2 : index
    %c0_402 = arith.constant 0 : index
    %1012 = vector.load %arg2[%c5_400, %c2_401, %c0_402] : memref<6x8x192xf32, #tpu.memory_space<vmem>>, vector<1x1x32xf32>
    %1013 = vector.shape_cast %1012 : vector<1x1x32xf32> to vector<1x32xf32>
    %c5_403 = arith.constant 5 : index
    %c3_404 = arith.constant 3 : index
    %c0_405 = arith.constant 0 : index
    %1014 = vector.load %arg2[%c5_403, %c3_404, %c0_405] : memref<6x8x192xf32, #tpu.memory_space<vmem>>, vector<1x1x32xf32>
    %1015 = vector.shape_cast %1014 : vector<1x1x32xf32> to vector<1x32xf32>
    %c5_406 = arith.constant 5 : index
    %c4_407 = arith.constant 4 : index
    %c0_408 = arith.constant 0 : index
    %1016 = vector.load %arg2[%c5_406, %c4_407, %c0_408] : memref<6x8x192xf32, #tpu.memory_space<vmem>>, vector<1x1x32xf32>
    %1017 = vector.shape_cast %1016 : vector<1x1x32xf32> to vector<1x32xf32>
    %c5_409 = arith.constant 5 : index
    %c5_410 = arith.constant 5 : index
    %c0_411 = arith.constant 0 : index
    %1018 = vector.load %arg2[%c5_409, %c5_410, %c0_411] : memref<6x8x192xf32, #tpu.memory_space<vmem>>, vector<1x1x64xf32>
    %1019 = vector.shape_cast %1018 : vector<1x1x64xf32> to vector<1x64xf32>
    %c5_412 = arith.constant 5 : index
    %c6_413 = arith.constant 6 : index
    %c0_414 = arith.constant 0 : index
    %1020 = vector.load %arg2[%c5_412, %c6_413, %c0_414] : memref<6x8x192xf32, #tpu.memory_space<vmem>>, vector<1x1x16xf32>
    %1021 = vector.shape_cast %1020 : vector<1x1x16xf32> to vector<1x16xf32>
    %cst_415 = arith.constant dense<0.000000e+00> : vector<8x32xf32>
    %1022 = tpu.matmul %9, %1001, %cst_415 {dimension_numbers = #tpu.dot_dimension_numbers<[1], [0], [0], [1], [0, 0, 1, 1], [], []>} : vector<8x16xf32>, vector<16x32xf32>, vector<8x32xf32> -> vector<8x32xf32>
    %1023 = vector.broadcast %1009 : vector<1x32xf32> to vector<8x32xf32>
    %1024 = arith.addf %1022, %1023 : vector<8x32xf32>
    %cst_416 = arith.constant 0.000000e+00 : f32
    %1025 = vector.broadcast %cst_416 : f32 to vector<8x32xf32>
    %1026 = arith.maximumf %1024, %1025 : vector<8x32xf32>
    %cst_417 = arith.constant dense<0.000000e+00> : vector<8x192xf32>
    %1027 = tpu.matmul %1026, %1003, %cst_417 {dimension_numbers = #tpu.dot_dimension_numbers<[1], [0], [0], [1], [0, 0, 1, 1], [], []>} : vector<8x32xf32>, vector<32x192xf32>, vector<8x192xf32> -> vector<8x192xf32>
    %1028 = vector.broadcast %1011 : vector<1x192xf32> to vector<8x192xf32>
    %1029 = arith.addf %1027, %1028 : vector<8x192xf32>
    %1030 = vector.extract_strided_slice %1029 {offsets = [0, 0], sizes = [8, 32], strides = [1, 1]} : vector<8x192xf32> to vector<8x32xf32>
    %1031 = vector.extract_strided_slice %1029 {offsets = [0, 32], sizes = [8, 32], strides = [1, 1]} : vector<8x192xf32> to vector<8x32xf32>
    %1032 = vector.extract_strided_slice %1030 {offsets = [0, 0], sizes = [8, 8], strides = [1, 1]} : vector<8x32xf32> to vector<8x8xf32>
    %1033 = vector.extract_strided_slice %1031 {offsets = [0, 0], sizes = [8, 8], strides = [1, 1]} : vector<8x32xf32> to vector<8x8xf32>
    %cst_418 = arith.constant dense<0.000000e+00> : vector<8x8xf32>
    %1034 = tpu.matmul %1032, %1033, %cst_418 {dimension_numbers = #tpu.dot_dimension_numbers<[1], [1], [0], [0], [0, 0, 1, 0], [], []>} : vector<8x8xf32>, vector<8x8xf32>, vector<8x8xf32> -> vector<8x8xf32>
    %cst_419 = arith.constant 0.353553385 : f32
    %1035 = vector.broadcast %cst_419 : f32 to vector<8x8xf32>
    %1036 = arith.mulf %1034, %1035 : vector<8x8xf32>
    %cst_420 = arith.constant dense<0xFF800000> : vector<8xf32>
    %1037 = vector.multi_reduction <maximumf>, %1036, %cst_420 [1] : vector<8x8xf32> to vector<8xf32>
    %1038 = vector.shape_cast %1037 : vector<8xf32> to vector<8x1xf32>
    %1039 = vector.broadcast %1038 : vector<8x1xf32> to vector<8x8xf32>
    %1040 = arith.subf %1036, %1039 : vector<8x8xf32>
    %1041 = math.exp %1040 : vector<8x8xf32>
    %cst_421 = arith.constant dense<0.000000e+00> : vector<8xf32>
    %1042 = vector.multi_reduction <add>, %1041, %cst_421 [1] : vector<8x8xf32> to vector<8xf32>
    %1043 = vector.shape_cast %1042 : vector<8xf32> to vector<8x1xf32>
    %1044 = tpu.reciprocal %1043 {approx = true} : vector<8x1xf32> -> vector<8x1xf32>
    %1045 = vector.broadcast %1044 : vector<8x1xf32> to vector<8x8xf32>
    %1046 = arith.mulf %1041, %1045 : vector<8x8xf32>
    %1047 = vector.extract_strided_slice %1029 {offsets = [0, 64], sizes = [8, 32], strides = [1, 1]} : vector<8x192xf32> to vector<8x32xf32>
    %1048 = vector.extract_strided_slice %1030 {offsets = [0, 8], sizes = [8, 8], strides = [1, 1]} : vector<8x32xf32> to vector<8x8xf32>
    %1049 = vector.extract_strided_slice %1031 {offsets = [0, 8], sizes = [8, 8], strides = [1, 1]} : vector<8x32xf32> to vector<8x8xf32>
    %cst_422 = arith.constant dense<0.000000e+00> : vector<8x8xf32>
    %1050 = tpu.matmul %1048, %1049, %cst_422 {dimension_numbers = #tpu.dot_dimension_numbers<[1], [1], [0], [0], [0, 0, 1, 0], [], []>} : vector<8x8xf32>, vector<8x8xf32>, vector<8x8xf32> -> vector<8x8xf32>
    %cst_423 = arith.constant 0.353553385 : f32
    %1051 = vector.broadcast %cst_423 : f32 to vector<8x8xf32>
    %1052 = arith.mulf %1050, %1051 : vector<8x8xf32>
    %cst_424 = arith.constant dense<0xFF800000> : vector<8xf32>
    %1053 = vector.multi_reduction <maximumf>, %1052, %cst_424 [1] : vector<8x8xf32> to vector<8xf32>
    %1054 = vector.shape_cast %1053 : vector<8xf32> to vector<8x1xf32>
    %1055 = vector.broadcast %1054 : vector<8x1xf32> to vector<8x8xf32>
    %1056 = arith.subf %1052, %1055 : vector<8x8xf32>
    %1057 = math.exp %1056 : vector<8x8xf32>
    %cst_425 = arith.constant dense<0.000000e+00> : vector<8xf32>
    %1058 = vector.multi_reduction <add>, %1057, %cst_425 [1] : vector<8x8xf32> to vector<8xf32>
    %1059 = vector.shape_cast %1058 : vector<8xf32> to vector<8x1xf32>
    %1060 = tpu.reciprocal %1059 {approx = true} : vector<8x1xf32> -> vector<8x1xf32>
    %1061 = vector.broadcast %1060 : vector<8x1xf32> to vector<8x8xf32>
    %1062 = arith.mulf %1057, %1061 : vector<8x8xf32>
    %1063 = vector.extract_strided_slice %1029 {offsets = [0, 96], sizes = [8, 32], strides = [1, 1]} : vector<8x192xf32> to vector<8x32xf32>
    %1064 = vector.extract_strided_slice %1030 {offsets = [0, 16], sizes = [8, 8], strides = [1, 1]} : vector<8x32xf32> to vector<8x8xf32>
    %1065 = vector.extract_strided_slice %1031 {offsets = [0, 16], sizes = [8, 8], strides = [1, 1]} : vector<8x32xf32> to vector<8x8xf32>
    %cst_426 = arith.constant dense<0.000000e+00> : vector<8x8xf32>
    %1066 = tpu.matmul %1064, %1065, %cst_426 {dimension_numbers = #tpu.dot_dimension_numbers<[1], [1], [0], [0], [0, 0, 1, 0], [], []>} : vector<8x8xf32>, vector<8x8xf32>, vector<8x8xf32> -> vector<8x8xf32>
    %cst_427 = arith.constant 0.353553385 : f32
    %1067 = vector.broadcast %cst_427 : f32 to vector<8x8xf32>
    %1068 = arith.mulf %1066, %1067 : vector<8x8xf32>
    %cst_428 = arith.constant dense<0xFF800000> : vector<8xf32>
    %1069 = vector.multi_reduction <maximumf>, %1068, %cst_428 [1] : vector<8x8xf32> to vector<8xf32>
    %1070 = vector.shape_cast %1069 : vector<8xf32> to vector<8x1xf32>
    %1071 = vector.broadcast %1070 : vector<8x1xf32> to vector<8x8xf32>
    %1072 = arith.subf %1068, %1071 : vector<8x8xf32>
    %1073 = math.exp %1072 : vector<8x8xf32>
    %cst_429 = arith.constant dense<0.000000e+00> : vector<8xf32>
    %1074 = vector.multi_reduction <add>, %1073, %cst_429 [1] : vector<8x8xf32> to vector<8xf32>
    %1075 = vector.shape_cast %1074 : vector<8xf32> to vector<8x1xf32>
    %1076 = tpu.reciprocal %1075 {approx = true} : vector<8x1xf32> -> vector<8x1xf32>
    %1077 = vector.broadcast %1076 : vector<8x1xf32> to vector<8x8xf32>
    %1078 = arith.mulf %1073, %1077 : vector<8x8xf32>
    %1079 = vector.extract_strided_slice %1029 {offsets = [0, 128], sizes = [8, 32], strides = [1, 1]} : vector<8x192xf32> to vector<8x32xf32>
    %1080 = vector.extract_strided_slice %1030 {offsets = [0, 24], sizes = [8, 8], strides = [1, 1]} : vector<8x32xf32> to vector<8x8xf32>
    %1081 = vector.extract_strided_slice %1031 {offsets = [0, 24], sizes = [8, 8], strides = [1, 1]} : vector<8x32xf32> to vector<8x8xf32>
    %cst_430 = arith.constant dense<0.000000e+00> : vector<8x8xf32>
    %1082 = tpu.matmul %1080, %1081, %cst_430 {dimension_numbers = #tpu.dot_dimension_numbers<[1], [1], [0], [0], [0, 0, 1, 0], [], []>} : vector<8x8xf32>, vector<8x8xf32>, vector<8x8xf32> -> vector<8x8xf32>
    %cst_431 = arith.constant 0.353553385 : f32
    %1083 = vector.broadcast %cst_431 : f32 to vector<8x8xf32>
    %1084 = arith.mulf %1082, %1083 : vector<8x8xf32>
    %cst_432 = arith.constant dense<0xFF800000> : vector<8xf32>
    %1085 = vector.multi_reduction <maximumf>, %1084, %cst_432 [1] : vector<8x8xf32> to vector<8xf32>
    %1086 = vector.shape_cast %1085 : vector<8xf32> to vector<8x1xf32>
    %1087 = vector.broadcast %1086 : vector<8x1xf32> to vector<8x8xf32>
    %1088 = arith.subf %1084, %1087 : vector<8x8xf32>
    %1089 = math.exp %1088 : vector<8x8xf32>
    %cst_433 = arith.constant dense<0.000000e+00> : vector<8xf32>
    %1090 = vector.multi_reduction <add>, %1089, %cst_433 [1] : vector<8x8xf32> to vector<8xf32>
    %1091 = vector.shape_cast %1090 : vector<8xf32> to vector<8x1xf32>
    %1092 = tpu.reciprocal %1091 {approx = true} : vector<8x1xf32> -> vector<8x1xf32>
    %1093 = vector.broadcast %1092 : vector<8x1xf32> to vector<8x8xf32>
    %1094 = arith.mulf %1089, %1093 : vector<8x8xf32>
    %1095 = vector.extract_strided_slice %1029 {offsets = [0, 160], sizes = [8, 32], strides = [1, 1]} : vector<8x192xf32> to vector<8x32xf32>
    %1096 = tpu.concatenate %1046, %1062, %1078, %1094 in 1 : vector<8x8xf32>, vector<8x8xf32>, vector<8x8xf32>, vector<8x8xf32> -> vector<8x32xf32>
    %1097 = tpu.concatenate %1047, %1063, %1079, %1095 in 0 : vector<8x32xf32>, vector<8x32xf32>, vector<8x32xf32>, vector<8x32xf32> -> vector<32x32xf32>
    %cst_434 = arith.constant dense<0.000000e+00> : vector<8x32xf32>
    %1098 = tpu.matmul %1096, %1097, %cst_434 {dimension_numbers = #tpu.dot_dimension_numbers<[1], [0], [0], [1], [0, 0, 1, 1], [], []>} : vector<8x32xf32>, vector<32x32xf32>, vector<8x32xf32> -> vector<8x32xf32>
    %1099 = vector.broadcast %1013 : vector<1x32xf32> to vector<8x32xf32>
    %1100 = arith.addf %1098, %1099 : vector<8x32xf32>
    %1101 = arith.addf %1100, %1026 : vector<8x32xf32>
    %cst_435 = arith.constant dense<0.000000e+00> : vector<8xf32>
    %1102 = vector.multi_reduction <add>, %1101, %cst_435 [1] : vector<8x32xf32> to vector<8xf32>
    %1103 = vector.shape_cast %1102 : vector<8xf32> to vector<8x1xf32>
    %cst_436 = arith.constant 3.200000e+01 : f32
    %1104 = vector.broadcast %cst_436 : f32 to vector<8x1xf32>
    %1105 = arith.divf %1103, %1104 : vector<8x1xf32>
    %1106 = vector.broadcast %1105 : vector<8x1xf32> to vector<8x32xf32>
    %1107 = arith.subf %1101, %1106 : vector<8x32xf32>
    %1108 = vector.broadcast %1105 : vector<8x1xf32> to vector<8x32xf32>
    %1109 = arith.subf %1101, %1108 : vector<8x32xf32>
    %1110 = arith.mulf %1107, %1109 : vector<8x32xf32>
    %cst_437 = arith.constant dense<0.000000e+00> : vector<8xf32>
    %1111 = vector.multi_reduction <add>, %1110, %cst_437 [1] : vector<8x32xf32> to vector<8xf32>
    %1112 = vector.shape_cast %1111 : vector<8xf32> to vector<8x1xf32>
    %cst_438 = arith.constant 3.200000e+01 : f32
    %1113 = vector.broadcast %cst_438 : f32 to vector<8x1xf32>
    %1114 = arith.divf %1112, %1113 : vector<8x1xf32>
    %1115 = vector.broadcast %1105 : vector<8x1xf32> to vector<8x32xf32>
    %1116 = arith.subf %1101, %1115 : vector<8x32xf32>
    %cst_439 = arith.constant 9.99999974E-6 : f32
    %1117 = vector.broadcast %cst_439 : f32 to vector<8x1xf32>
    %1118 = arith.addf %1114, %1117 : vector<8x1xf32>
    %1119 = math.rsqrt %1118 : vector<8x1xf32>
    %1120 = vector.broadcast %1119 : vector<8x1xf32> to vector<8x32xf32>
    %1121 = arith.mulf %1116, %1120 : vector<8x32xf32>
    %1122 = vector.broadcast %1015 : vector<1x32xf32> to vector<8x32xf32>
    %1123 = arith.mulf %1121, %1122 : vector<8x32xf32>
    %1124 = vector.broadcast %1017 : vector<1x32xf32> to vector<8x32xf32>
    %1125 = arith.addf %1123, %1124 : vector<8x32xf32>
    %cst_440 = arith.constant 0.000000e+00 : f32
    %1126 = vector.broadcast %cst_440 : f32 to vector<8x32xf32>
    %1127 = arith.maximumf %1125, %1126 : vector<8x32xf32>
    %cst_441 = arith.constant dense<0.000000e+00> : vector<8x64xf32>
    %1128 = tpu.matmul %1127, %1005, %cst_441 {dimension_numbers = #tpu.dot_dimension_numbers<[1], [0], [0], [1], [0, 0, 1, 1], [], []>} : vector<8x32xf32>, vector<32x64xf32>, vector<8x64xf32> -> vector<8x64xf32>
    %1129 = vector.broadcast %1019 : vector<1x64xf32> to vector<8x64xf32>
    %1130 = arith.addf %1128, %1129 : vector<8x64xf32>
    %cst_442 = arith.constant 0.000000e+00 : f32
    %1131 = vector.broadcast %cst_442 : f32 to vector<8x64xf32>
    %1132 = arith.maximumf %1130, %1131 : vector<8x64xf32>
    %cst_443 = arith.constant dense<0.000000e+00> : vector<8x16xf32>
    %1133 = tpu.matmul %1132, %1007, %cst_443 {dimension_numbers = #tpu.dot_dimension_numbers<[1], [0], [0], [1], [0, 0, 1, 1], [], []>} : vector<8x64xf32>, vector<64x16xf32>, vector<8x16xf32> -> vector<8x16xf32>
    %1134 = vector.broadcast %1021 : vector<1x16xf32> to vector<8x16xf32>
    %1135 = arith.addf %1133, %1134 : vector<8x16xf32>
    %1136 = arith.mulf %1135, %24 : vector<8x16xf32>
    %cst_444 = arith.constant 0.000000e+00 : f32
    %1137 = vector.broadcast %cst_444 : f32 to vector<1x16xf32>
    %1138 = arith.cmpf ogt, %11, %1137 : vector<1x16xf32>
    %cst_445 = arith.constant -1.000000e+30 : f32
    %1139 = vector.shape_cast %1138 : vector<1x16xi1> to vector<1x16xi1>
    %1140 = vector.broadcast %1139 : vector<1x16xi1> to vector<8x16xi1>
    %1141 = vector.broadcast %cst_445 : f32 to vector<8x16xf32>
    %1142 = arith.select %1140, %1136, %1141 : vector<8x16xi1>, vector<8x16xf32>
    %cst_446 = arith.constant dense<0xFF800000> : vector<8xf32>
    %1143 = vector.multi_reduction <maximumf>, %1142, %cst_446 [1] : vector<8x16xf32> to vector<8xf32>
    %1144 = vector.shape_cast %1143 : vector<8xf32> to vector<8x1xf32>
    %cst_447 = arith.constant 0.000000e+00 : f32
    %1145 = vector.broadcast %cst_447 : f32 to vector<1x16xf32>
    %1146 = arith.cmpf ogt, %12, %1145 : vector<1x16xf32>
    %cst_448 = arith.constant -1.000000e+30 : f32
    %1147 = vector.shape_cast %1146 : vector<1x16xi1> to vector<1x16xi1>
    %1148 = vector.broadcast %1147 : vector<1x16xi1> to vector<8x16xi1>
    %1149 = vector.broadcast %cst_448 : f32 to vector<8x16xf32>
    %1150 = arith.select %1148, %1136, %1149 : vector<8x16xi1>, vector<8x16xf32>
    %cst_449 = arith.constant dense<0xFF800000> : vector<8xf32>
    %1151 = vector.multi_reduction <maximumf>, %1150, %cst_449 [1] : vector<8x16xf32> to vector<8xf32>
    %1152 = vector.shape_cast %1151 : vector<8xf32> to vector<8x1xf32>
    %cst_450 = arith.constant 0.000000e+00 : f32
    %1153 = vector.broadcast %cst_450 : f32 to vector<1x16xf32>
    %1154 = arith.cmpf ogt, %13, %1153 : vector<1x16xf32>
    %cst_451 = arith.constant -1.000000e+30 : f32
    %1155 = vector.shape_cast %1154 : vector<1x16xi1> to vector<1x16xi1>
    %1156 = vector.broadcast %1155 : vector<1x16xi1> to vector<8x16xi1>
    %1157 = vector.broadcast %cst_451 : f32 to vector<8x16xf32>
    %1158 = arith.select %1156, %1136, %1157 : vector<8x16xi1>, vector<8x16xf32>
    %cst_452 = arith.constant dense<0xFF800000> : vector<8xf32>
    %1159 = vector.multi_reduction <maximumf>, %1158, %cst_452 [1] : vector<8x16xf32> to vector<8xf32>
    %1160 = vector.shape_cast %1159 : vector<8xf32> to vector<8x1xf32>
    %1161 = vector.broadcast %1144 : vector<8x1xf32> to vector<8x16xf32>
    %1162 = vector.broadcast %11 : vector<1x16xf32> to vector<8x16xf32>
    %1163 = arith.mulf %1161, %1162 : vector<8x16xf32>
    %1164 = vector.broadcast %1152 : vector<8x1xf32> to vector<8x16xf32>
    %1165 = vector.broadcast %12 : vector<1x16xf32> to vector<8x16xf32>
    %1166 = arith.mulf %1164, %1165 : vector<8x16xf32>
    %1167 = arith.addf %1163, %1166 : vector<8x16xf32>
    %1168 = vector.broadcast %1160 : vector<8x1xf32> to vector<8x16xf32>
    %1169 = vector.broadcast %13 : vector<1x16xf32> to vector<8x16xf32>
    %1170 = arith.mulf %1168, %1169 : vector<8x16xf32>
    %1171 = arith.addf %1167, %1170 : vector<8x16xf32>
    %1172 = arith.subf %1136, %1171 : vector<8x16xf32>
    %1173 = vector.broadcast %14 : vector<1x16xf32> to vector<8x16xf32>
    %1174 = arith.mulf %1172, %1173 : vector<8x16xf32>
    %1175 = math.exp %1174 : vector<8x16xf32>
    %1176 = vector.broadcast %14 : vector<1x16xf32> to vector<8x16xf32>
    %1177 = arith.mulf %1175, %1176 : vector<8x16xf32>
    %cst_453 = arith.constant dense<0.000000e+00> : vector<8x8xf32>
    %1178 = tpu.matmul %1177, %10, %cst_453 {dimension_numbers = #tpu.dot_dimension_numbers<[1], [1], [0], [0], [0, 0, 1, 0], [], []>} : vector<8x16xf32>, vector<8x16xf32>, vector<8x8xf32> -> vector<8x8xf32>
    %cst_454 = arith.constant dense<0.000000e+00> : vector<8x16xf32>
    %1179 = tpu.matmul %1178, %10, %cst_454 {dimension_numbers = #tpu.dot_dimension_numbers<[1], [0], [0], [1], [0, 0, 1, 1], [], []>} : vector<8x8xf32>, vector<8x16xf32>, vector<8x16xf32> -> vector<8x16xf32>
    %1180 = vector.broadcast %17 : vector<1x16xf32> to vector<8x16xf32>
    %1181 = arith.addf %1179, %1180 : vector<8x16xf32>
    %1182 = tpu.reciprocal %1181 {approx = true} : vector<8x16xf32> -> vector<8x16xf32>
    %1183 = arith.mulf %1177, %1182 : vector<8x16xf32>
    %1184 = vector.broadcast %17 : vector<1x16xf32> to vector<8x16xf32>
    %1185 = arith.mulf %1136, %1184 : vector<8x16xf32>
    %cst_455 = arith.constant 0.000000e+00 : f32
    %1186 = vector.broadcast %cst_455 : f32 to vector<8x16xf32>
    %1187 = arith.subf %1186, %1185 : vector<8x16xf32>
    %1188 = math.exp %1187 : vector<8x16xf32>
    %cst_456 = arith.constant 1.000000e+00 : f32
    %1189 = vector.broadcast %cst_456 : f32 to vector<8x16xf32>
    %1190 = arith.addf %1189, %1188 : vector<8x16xf32>
    %1191 = tpu.reciprocal %1190 {approx = true} : vector<8x16xf32> -> vector<8x16xf32>
    %1192 = vector.broadcast %17 : vector<1x16xf32> to vector<8x16xf32>
    %1193 = arith.mulf %1191, %1192 : vector<8x16xf32>
    %1194 = arith.addf %1183, %1193 : vector<8x16xf32>
    %1195 = arith.addf %219, %414 : vector<8x16xf32>
    %1196 = arith.addf %1195, %609 : vector<8x16xf32>
    %1197 = arith.addf %1196, %804 : vector<8x16xf32>
    %cst_457 = arith.constant 2.500000e-01 : f32
    %1198 = vector.broadcast %cst_457 : f32 to vector<8x16xf32>
    %1199 = arith.mulf %1197, %1198 : vector<8x16xf32>
    %1200 = arith.minimumf %219, %414 : vector<8x16xf32>
    %1201 = arith.maximumf %219, %414 : vector<8x16xf32>
    %1202 = arith.minimumf %1201, %609 : vector<8x16xf32>
    %1203 = arith.maximumf %1201, %609 : vector<8x16xf32>
    %1204 = arith.minimumf %1203, %804 : vector<8x16xf32>
    %1205 = arith.maximumf %1203, %804 : vector<8x16xf32>
    %1206 = arith.minimumf %1205, %999 : vector<8x16xf32>
    %1207 = arith.maximumf %1205, %999 : vector<8x16xf32>
    %1208 = arith.minimumf %1207, %1194 : vector<8x16xf32>
    %1209 = arith.maximumf %1207, %1194 : vector<8x16xf32>
    %1210 = arith.minimumf %1200, %1202 : vector<8x16xf32>
    %1211 = arith.maximumf %1200, %1202 : vector<8x16xf32>
    %1212 = arith.minimumf %1211, %1204 : vector<8x16xf32>
    %1213 = arith.maximumf %1211, %1204 : vector<8x16xf32>
    %1214 = arith.minimumf %1213, %1206 : vector<8x16xf32>
    %1215 = arith.maximumf %1213, %1206 : vector<8x16xf32>
    %1216 = arith.minimumf %1215, %1208 : vector<8x16xf32>
    %1217 = arith.maximumf %1215, %1208 : vector<8x16xf32>
    %1218 = arith.minimumf %1210, %1212 : vector<8x16xf32>
    %1219 = arith.maximumf %1210, %1212 : vector<8x16xf32>
    %1220 = arith.minimumf %1219, %1214 : vector<8x16xf32>
    %1221 = arith.maximumf %1219, %1214 : vector<8x16xf32>
    %1222 = arith.minimumf %1221, %1216 : vector<8x16xf32>
    %1223 = arith.minimumf %1218, %1220 : vector<8x16xf32>
    %1224 = arith.maximumf %1218, %1220 : vector<8x16xf32>
    %1225 = arith.minimumf %1224, %1222 : vector<8x16xf32>
    %1226 = arith.minimumf %1223, %1225 : vector<8x16xf32>
    %1227 = arith.maximumf %1223, %1225 : vector<8x16xf32>
    %1228 = arith.subf %1227, %1226 : vector<8x16xf32>
    %cst_458 = arith.constant 5.000000e-01 : f32
    %1229 = vector.broadcast %cst_458 : f32 to vector<8x16xf32>
    %1230 = arith.mulf %1228, %1229 : vector<8x16xf32>
    %1231 = arith.addf %1226, %1230 : vector<8x16xf32>
    %1232 = arith.subf %1209, %1217 : vector<8x16xf32>
    %cst_459 = arith.constant 5.000000e-01 : f32
    %1233 = vector.broadcast %cst_459 : f32 to vector<8x16xf32>
    %1234 = arith.mulf %1232, %1233 : vector<8x16xf32>
    %1235 = arith.addf %1217, %1234 : vector<8x16xf32>
    %1236 = tpu.concatenate %1199, %1231, %1235 in 1 : vector<8x16xf32>, vector<8x16xf32>, vector<8x16xf32> -> vector<8x48xf32>
    %c0_460 = arith.constant 0 : index
    %c0_461 = arith.constant 0 : index
    %1237 = vector.load %arg4[%c0_460, %c0_461] : memref<8x48xf32, #tpu.memory_space<vmem>>, vector<8x48xf32>
    tpu.vector_store %arg4[%c0_460, %c0_461], %1236 {strides = array<i32>} : memref<8x48xf32, #tpu.memory_space<vmem>>, vector<8x48xf32>,
    return
  }
}

</mosaic_0001>

<llo_original>
// kernel: endpoint_ensemble_forward.1
$region0: #{endpoint_ensemble_forward.1}
  #allocation0 [shape = 'u32[]', space=smem, size = 0x4, offset = 0x4, fixed_abs, tag = 'smem constant byte address 0x4 - core index']
  #allocation1 [shape = 'u32[144,128]{1,0:T(1,128)}', space=vmem, size = 0x12000, scoped, tag = 'internal scratch']
  %s0 = inlined_call_operand.hbm [shape: f32[8,16], index: 0, kind: input, shape index: {}]
  %s1 = inlined_call_operand.hbm [shape: f32[6,144,192], index: 1, kind: input, shape index: {}]
  %s2 = inlined_call_operand.hbm [shape: f32[6,8,192], index: 2, kind: input, shape index: {}]
  %s3 = inlined_call_operand.hbm [shape: f32[16,16], index: 3, kind: input, shape index: {}]
  %s4 = inlined_call_operand.vmem [shape: f32[8,48], index: 4, kind: output, shape index: {}]
  %s5 = sld [smem:[#allocation0]]
  $region42: #{endpoint_ensemble_forward.1} parent=0
    _
  %s7 = ssub.s32 1, %s5
  %s8 = scalar_select 0, %s7, %s5
  $region1: #{endpoint_ensemble_forward.1} parent=0
    #allocation2 [shape = 'u8[4096]{0}', space=vmem, size = 0x1000, scoped, tag = 'input window, operand 0, single buffered']
    #allocation3 [shape = 's32[1]{0}', space=sflag, size = 0x4, scoped, tag = 'scoped memory for endpoint_ensemble_forward.1']
    #allocation4 [shape = 'u8[884736]{0}', space=vmem, size = 0xd8000, scoped, tag = 'input window, operand 1, single buffered']
    #allocation5 [shape = 's32[1]{0}', space=sflag, size = 0x4, scoped, tag = 'scoped memory for endpoint_ensemble_forward.1']
    #allocation6 [shape = 'u8[49152]{0}', space=vmem, size = 0xc000, scoped, tag = 'input window, operand 2, single buffered']
    #allocation7 [shape = 'u8[8192]{0}', space=vmem, size = 0x2000, scoped, tag = 'input window, operand 3, single buffered']
    #allocation8 [shape = 's32[1]{0}', space=sflag, size = 0x4, scoped, tag = 'scoped memory for endpoint_ensemble_forward.1']
    %9 = vsyncpa [#allocation3], 0
    %10 = vsyncpa [#allocation5], 0
    %11 = vsyncpa [#allocation8], 0
    // Predicated region
    $region2: #{endpoint_ensemble_forward.1} parent=1 // pred_check
      _
    $region3: #{endpoint_ensemble_forward.1} parent=1 // pred_check_branch
      %13 = sbr.rel (0) target = $region5
    $region4: #{endpoint_ensemble_forward.1} parent=1 // pred_region
      %s15 = ssub.s32 128, 128
      %16 = vsyncadd [#allocation3], %s15
      %s18 = sshll.u32 [#allocation2], 4
      %s19 = int_to_ptr.vmem [resolvable:$true] %s18
      %21 = dma.hbm_to_vmem [thread:$0]  %s0, 128, %s19, [#allocation3]
    $region5: #{endpoint_ensemble_forward.1} parent=1 // pred_fallthru
      _
    // Predicated region
    $region6: #{endpoint_ensemble_forward.1} parent=1 // pred_check
      _
    $region7: #{endpoint_ensemble_forward.1} parent=1 // pred_check_branch
      %23 = sbr.rel (0) target = $region9
    $region8: #{endpoint_ensemble_forward.1} parent=1 // pred_region
      %s25 = ssub.s32 27648, 27648
      %26 = vsyncadd [#allocation5], %s25
      %s27 = sshll.u32 [#allocation4], 4
      %s28 = int_to_ptr.vmem [resolvable:$true] %s27
      %33 = dma.hbm_to_vmem [thread:$0]  %s1, 27648, %s28, [#allocation5], 256, 256, 16
    $region9: #{endpoint_ensemble_forward.1} parent=1 // pred_fallthru
      _
    // Predicated region
    $region10: #{endpoint_ensemble_forward.1} parent=1 // pred_check
      _
    $region11: #{endpoint_ensemble_forward.1} parent=1 // pred_check_branch
      %35 = sbr.rel (0) target = $region13
    $region12: #{endpoint_ensemble_forward.1} parent=1 // pred_region
      %s37 = ssub.s32 1536, 1536
      %38 = vsyncadd [#allocation5], %s37
      %s39 = sshll.u32 [#allocation6], 4
      %s40 = int_to_ptr.vmem [resolvable:$true] %s39
      %45 = dma.hbm_to_vmem [thread:$0]  %s2, 1536, %s40, [#allocation5], 256, 256, 16
    $region13: #{endpoint_ensemble_forward.1} parent=1 // pred_fallthru
      _
    // Predicated region
    $region14: #{endpoint_ensemble_forward.1} parent=1 // pred_check
      _
    $region15: #{endpoint_ensemble_forward.1} parent=1 // pred_check_branch
      %47 = sbr.rel (0) target = $region17
    $region16: #{endpoint_ensemble_forward.1} parent=1 // pred_region
      %s49 = ssub.s32 256, 256
      %50 = vsyncadd [#allocation8], %s49
      %s51 = sshll.u32 [#allocation7], 4
      %s52 = int_to_ptr.vmem [resolvable:$true] %s51
      %57 = dma.hbm_to_vmem [thread:$0]  %s3, 256, %s52, [#allocation8], 128, 128, 8
    $region17: #{endpoint_ensemble_forward.1} parent=1 // pred_fallthru
      _
    // Predicated region
    $region18: #{endpoint_ensemble_forward.1} parent=1 // pred_check
      _
    $region19: #{endpoint_ensemble_forward.1} parent=1 // pred_check_branch
      %59 = sbr.rel (0) target = $region21
    $region20: #{endpoint_ensemble_forward.1} parent=1 // pred_region
      %60 = dma.done [#allocation3], 128
    $region21: #{endpoint_ensemble_forward.1} parent=1 // pred_fallthru
      _
    // Predicated region
    $region22: #{endpoint_ensemble_forward.1} parent=1 // pred_check
      _
    $region23: #{endpoint_ensemble_forward.1} parent=1 // pred_check_branch
      %62 = sbr.rel (0) target = $region25
    $region24: #{endpoint_ensemble_forward.1} parent=1 // pred_region
      %63 = dma.done [#allocation5], 27648
    $region25: #{endpoint_ensemble_forward.1} parent=1 // pred_fallthru
      _
    // Predicated region
    $region26: #{endpoint_ensemble_forward.1} parent=1 // pred_check
      _
    $region27: #{endpoint_ensemble_forward.1} parent=1 // pred_check_branch
      %65 = sbr.rel (0) target = $region29
    $region28: #{endpoint_ensemble_forward.1} parent=1 // pred_region
      %66 = dma.done [#allocation5], 1536
    $region29: #{endpoint_ensemble_forward.1} parent=1 // pred_fallthru
      _
    // Predicated region
    $region30: #{endpoint_ensemble_forward.1} parent=1 // pred_check
      _
    $region31: #{endpoint_ensemble_forward.1} parent=1 // pred_check_branch
      %68 = sbr.rel (0) target = $region33
    $region32: #{endpoint_ensemble_forward.1} parent=1 // pred_region
      %69 = dma.done [#allocation8], 256
    $region33: #{endpoint_ensemble_forward.1} parent=1 // pred_fallthru
      _
    %v70 = vld [vmem:[#allocation2] sm:$0xff]
    %vm71 = vcmp.gt.f32.partialorder %v70, 0.5
    %v72 = vsel %vm71, 1, 0
    %v73 = vcvt.s32.f32 %v72
    %v74 = vadd.f32 %v70, 0.01
    %v75 = vrcp.pop 1.01
    %v76 = vmul.f32 %v74, %v75
    %v77 = vld [vmem:[#allocation7] sm:$0xff]
    %v78 = vld [vmem:[#allocation7] sm:$0x1]
    %v79 = vld [vmem:[#allocation7 + $0x1] sm:$0x1]
    %v80 = vld [vmem:[#allocation7 + $0x2] sm:$0x1]
    %v81 = vld [vmem:[#allocation7 + $0x8] sm:$0x1]
    %v82 = vld [vmem:[#allocation7 + $0x9] sm:$0x1]
    %v83 = vsub.f32 1.0, %v81
    %v84 = vsub.f32 %v73, 1.0
    %v85 = vlaneseq
    %v86 = vshrl.u32 %v85, 7
    %v87 = vsub.s32 0, %v86
    %v88 = vrot.slane %v82, %v87
    %90 = vset.pattern.permute.xlu0 15
    %91 = vperm.xlu0 %90, %v84
    %v92 = vpop.permute.xlu0 %91
    %v94 = vmul.f32 %v88, %v92
    %v95 = vadd.f32 %v94, 1.0
    %v96 = vld [vmem:[#allocation4] sm:$0xff]
    %v97 = vld [vmem:[#allocation4 + $0x10] sm:$0xff]
    %v98 = vld [vmem:[#allocation4 + $0x20] sm:$0xff]
    %v99 = vld [vmem:[#allocation4 + $0x28] sm:$0xff]
    %v100 = vld [vmem:[#allocation4 + $0x30] sm:$0xff]
    %v101 = vld [vmem:[#allocation4 + $0x38] sm:$0xff]
    %v102 = vld [vmem:[#allocation4 + $0x40] sm:$0xff]
    %v103 = vld [vmem:[#allocation4 + $0x48] sm:$0xff]
    %v104 = vld [vmem:[#allocation4 + $0x50] sm:$0xff]
    %v105 = vld [vmem:[#allocation4 + $0x58] sm:$0xff]
    %v106 = vld [vmem:[#allocation4 + $0x60] sm:$0xff]
    %v107 = vld [vmem:[#allocation4 + $0x70] sm:$0xff]
    %v108 = vld [vmem:[#allocation4 + $0x80] sm:$0xff]
    %v109 = vld [vmem:[#allocation4 + $0x90] sm:$0xff]
    %v110 = vld [vmem:[#allocation4 + $0xa0] sm:$0xff]
    %v111 = vld [vmem:[#allocation4 + $0xb0] sm:$0xff]
    %v112 = vld [vmem:[#allocation4 + $0xc0] sm:$0xff]
    %v113 = vld [vmem:[#allocation4 + $0xd0] sm:$0xff]
    %v114 = vld [vmem:[#allocation4 + $0xe0] sm:$0xff]
    %v115 = vld [vmem:[#allocation4 + $0xf0] sm:$0xff]
    %v116 = vld [vmem:[#allocation4 + $0x100] sm:$0xff]
    %v117 = vld [vmem:[#allocation4 + $0x110] sm:$0xff]
    %v118 = vld [vmem:[#allocation6] ss:$0 sm:$0xff]
    %s119 = scalar_lea.vmem [#allocation6], 1
    %v120 = vld [vmem:[%s119] ss:$8 sm:$0x3]
    %v121 = vld [vmem:[#allocation6 + $0x2] ss:$0 sm:$0xff]
    %v122 = vld [vmem:[#allocation6 + $0x3] ss:$0 sm:$0xff]
    %v123 = vld [vmem:[#allocation6 + $0x4] ss:$0 sm:$0xff]
    %v124 = vld [vmem:[#allocation6 + $0x5] ss:$0 sm:$0xff]
    %v125 = vld [vmem:[#allocation6 + $0x6] ss:$0 sm:$0xff]
    %vm126 = vcmask 130048
    %v128 = vsel %vm126, %v76, 0
    %130 = vmatprep.subr.mxu0 0.0
    %131 = vmatpush1.msra.mxu0 0.0
    %132 = vmatprep.subr.mxu0 0.0
    %133 = vmatpush1.msra.mxu0 0.0
    %134 = vmatprep.subr.mxu0 0.0
    %135 = vmatpush1.msra.mxu0 0.0
    %136 = vmatprep.subr.mxu0 0.0
    %137 = vmatpush1.msra.mxu0 0.0
    %138 = vmatprep.subr.mxu0 0.0
    %139 = vmatpush1.msra.mxu0 0.0
    %140 = vmatprep.subr.mxu0 0.0
    %141 = vmatpush1.msra.mxu0 0.0
    %142 = vmatprep.subr.mxu0 0.0
    %143 = vmatpush1.msra.mxu0 0.0
    %144 = vmatprep.subr.mxu0 0.0
    %145 = vmatpush1.msra.mxu0 0.0
    %146 = vmatprep.subr.mxu0 0.0
    %147 = vmatpush1.msra.mxu0 0.0
    %148 = vmatprep.subr.mxu0 0.0
    %149 = vmatpush1.msra.mxu0 0.0
    %150 = vmatprep.subr.mxu0 0.0
    %151 = vmatpush1.msra.mxu0 0.0
    %152 = vmatprep.subr.mxu0 0.0
    %153 = vmatpush1.msra.mxu0 0.0
    %154 = vmatprep.subr.mxu0 0.0
    %155 = vmatpush1.msra.mxu0 0.0
    %156 = vmatprep.subr.mxu0 0.0
    %157 = vmatpush1.msra.mxu0 0.0
    %158 = vmatprep.subr.mxu0 0.0
    %159 = vmatpush1.msra.mxu0 %v97
    %160 = vmatprep.subr.mxu0 0.0
    %161 = vmatpush1.msra.mxu0 %v96
    %162 = vmatprep.subr.mxu0 0.0
    %163 = vmatpush2.msra.mxu0 0.0
    %164 = vmatprep.subr.mxu0 0.0
    %165 = vmatpush2.msra.mxu0 0.0
    %166 = vmatprep.subr.mxu0 0.0
    %167 = vmatpush2.msra.mxu0 0.0
    %168 = vmatprep.subr.mxu0 0.0
    %169 = vmatpush2.msra.mxu0 0.0
    %170 = vmatprep.subr.mxu0 0.0
    %171 = vmatpush2.msra.mxu0 0.0
    %172 = vmatprep.subr.mxu0 0.0
    %173 = vmatpush2.msra.mxu0 0.0
    %174 = vmatprep.subr.mxu0 0.0
    %175 = vmatpush2.msra.mxu0 0.0
    %176 = vmatprep.subr.mxu0 0.0
    %177 = vmatpush2.msra.mxu0 0.0
    %178 = vmatprep.subr.mxu0 0.0
    %179 = vmatpush2.msra.mxu0 0.0
    %180 = vmatprep.subr.mxu0 0.0
    %181 = vmatpush2.msra.mxu0 0.0
    %182 = vmatprep.subr.mxu0 0.0
    %183 = vmatpush2.msra.mxu0 0.0
    %184 = vmatprep.subr.mxu0 0.0
    %185 = vmatpush2.msra.mxu0 0.0
    %186 = vmatprep.subr.mxu0 0.0
    %187 = vmatpush2.msra.mxu0 0.0
    %188 = vmatprep.subr.mxu0 0.0
    %189 = vmatpush2.msra.mxu0 0.0
    %190 = vmatprep.subr.mxu0 0.0
    %191 = vmatpush2.msra.mxu0 0.0
    %192 = vmatprep.subr.mxu0 0.0
    %193 = vmatpush2.msra.mxu0 0.0
    %194 = vmatprep.mubr.f32.mxu0 0.0
    %195 = vmatmul.mubr.f32.gmra.mxu0 %v128
    %v196 = vpop.f32.mrf.mxu0
    %v197 = vadd.f32 %v118, %v196
    %v198 = vpop.f32.mrf.mxu0
    %199 = vdwg.mxu0
    %v200 = vmax.f32 %v197, 0.0
    %v202 = vlaneseq
    %v203 = vshrl.u32 %v202, 7
    %v204 = vsub.s32 0, %v203
    %v205 = vrot.slane %v120, %v204
    %v206 = vlaneseq
    %v207 = vshrl.u32 %v206, 7
    %v208 = vsub.s32 1, %v207
    %v209 = vrot.slane %v120, %v208
    %vm212 = vcmask 261120
    %v214 = vsel %vm212, %v200, 0
    %216 = vmatprep.subr.mxu0 0.0
    %217 = vmatpush1.msra.mxu0 0.0
    %218 = vmatprep.subr.mxu0 0.0
    %219 = vmatpush1.msra.mxu0 0.0
    %220 = vmatprep.subr.mxu0 0.0
    %221 = vmatpush1.msra.mxu0 0.0
    %222 = vmatprep.subr.mxu0 0.0
    %223 = vmatpush1.msra.mxu0 0.0
    %224 = vmatprep.subr.mxu0 0.0
    %225 = vmatpush1.msra.mxu0 0.0
    %226 = vmatprep.subr.mxu0 0.0
    %227 = vmatpush1.msra.mxu0 0.0
    %228 = vmatprep.subr.mxu0 0.0
    %229 = vmatpush1.msra.mxu0 0.0
    %230 = vmatprep.subr.mxu0 0.0
    %231 = vmatpush1.msra.mxu0 0.0
    %232 = vmatprep.subr.mxu0 0.0
    %233 = vmatpush1.msra.mxu0 0.0
    %234 = vmatprep.subr.mxu0 0.0
    %235 = vmatpush1.msra.mxu0 0.0
    %236 = vmatprep.subr.mxu0 0.0
    %237 = vmatpush1.msra.mxu0 0.0
    %238 = vmatprep.subr.mxu0 0.0
    %239 = vmatpush1.msra.mxu0 0.0
    %240 = vmatprep.subr.mxu0 %v105
    %241 = vmatpush1.msra.mxu0 %v104
    %242 = vmatprep.subr.mxu0 %v103
    %243 = vmatpush1.msra.mxu0 %v102
    %244 = vmatprep.subr.mxu0 %v101
    %245 = vmatpush1.msra.mxu0 %v100
    %246 = vmatprep.subr.mxu0 %v99
    %247 = vmatpush1.msra.mxu0 %v98
    %248 = vmatprep.subr.mxu0 0.0
    %249 = vmatpush2.msra.mxu0 0.0
    %250 = vmatprep.subr.mxu0 0.0
    %251 = vmatpush2.msra.mxu0 0.0
    %252 = vmatprep.subr.mxu0 0.0
    %253 = vmatpush2.msra.mxu0 0.0
    %254 = vmatprep.subr.mxu0 0.0
    %255 = vmatpush2.msra.mxu0 0.0
    %256 = vmatprep.subr.mxu0 0.0
    %257 = vmatpush2.msra.mxu0 0.0
    %258 = vmatprep.subr.mxu0 0.0
    %259 = vmatpush2.msra.mxu0 0.0
    %260 = vmatprep.subr.mxu0 0.0
    %261 = vmatpush2.msra.mxu0 0.0
    %262 = vmatprep.subr.mxu0 0.0
    %263 = vmatpush2.msra.mxu0 0.0
    %264 = vmatprep.subr.mxu0 0.0
    %265 = vmatpush2.msra.mxu0 0.0
    %266 = vmatprep.subr.mxu0 0.0
    %267 = vmatpush2.msra.mxu0 0.0
    %268 = vmatprep.subr.mxu0 0.0
    %269 = vmatpush2.msra.mxu0 0.0
    %270 = vmatprep.subr.mxu0 0.0
    %271 = vmatpush2.msra.mxu0 0.0
    %272 = vmatprep.subr.mxu0 0.0
    %273 = vmatpush2.msra.mxu0 0.0
    %274 = vmatprep.subr.mxu0 0.0
    %275 = vmatpush2.msra.mxu0 0.0
    %276 = vmatprep.subr.mxu0 0.0
    %277 = vmatpush2.msra.mxu0 0.0
    %278 = vmatprep.subr.mxu0 0.0
    %279 = vmatpush2.msra.mxu0 0.0
    %280 = vmatprep.mubr.f32.mxu0 0.0
    %281 = vmatmul.mubr.f32.gmra.mxu0 %v214
    %v282 = vpop.f32.mrf.mxu0
    %v283 = vadd.f32 %v205, %v282
    %v284 = vpop.f32.mrf.mxu0
    %v285 = vadd.f32 %v209, %v284
    %286 = vdwg.mxu0
    %288 = vrot.lane.b32.xlu0 %v283, 96
    %v289 = vpop.permute.xlu0 %288
    %vm290 = vcmask 64512
    %v291 = vsel %vm290, %v283, 0
    %v293 = vsel %vm290, %v289, 0
    %295 = vmatprep.subr.mxu0 0.0
    %296 = vmatpush1.xpose.msra.mxu0 0.0
    %297 = vmatprep.subr.mxu0 0.0
    %298 = vmatpush1.xpose.msra.mxu0 0.0
    %299 = vmatprep.subr.mxu0 0.0
    %300 = vmatpush1.xpose.msra.mxu0 0.0
    %301 = vmatprep.subr.mxu0 0.0
    %302 = vmatpush1.xpose.msra.mxu0 0.0
    %303 = vmatprep.subr.mxu0 0.0
    %304 = vmatpush1.xpose.msra.mxu0 0.0
    %305 = vmatprep.subr.mxu0 0.0
    %306 = vmatpush1.xpose.msra.mxu0 0.0
    %307 = vmatprep.subr.mxu0 0.0
    %308 = vmatpush1.xpose.msra.mxu0 0.0
    %309 = vmatprep.subr.mxu0 0.0
    %310 = vmatpush1.xpose.msra.mxu0 0.0
    %311 = vmatprep.subr.mxu0 0.0
    %312 = vmatpush1.xpose.msra.mxu0 0.0
    %313 = vmatprep.subr.mxu0 0.0
    %314 = vmatpush1.xpose.msra.mxu0 0.0
    %315 = vmatprep.subr.mxu0 0.0
    %316 = vmatpush1.xpose.msra.mxu0 0.0
    %317 = vmatprep.subr.mxu0 0.0
    %318 = vmatpush1.xpose.msra.mxu0 0.0
    %319 = vmatprep.subr.mxu0 0.0
    %320 = vmatpush1.xpose.msra.mxu0 0.0
    %321 = vmatprep.subr.mxu0 0.0
    %322 = vmatpush1.xpose.msra.mxu0 0.0
    %323 = vmatprep.subr.mxu0 0.0
    %324 = vmatpush1.xpose.msra.mxu0 0.0
    %325 = vmatprep.subr.mxu0 0.0
    %326 = vmatpush1.xpose.msra.mxu0 %v293
    %327 = vmatprep.subr.mxu0 0.0
    %328 = vmatpush2.xpose.msra.mxu0 0.0
    %329 = vmatprep.subr.mxu0 0.0
    %330 = vmatpush2.xpose.msra.mxu0 0.0
    %331 = vmatprep.subr.mxu0 0.0
    %332 = vmatpush2.xpose.msra.mxu0 0.0
    %333 = vmatprep.subr.mxu0 0.0
    %334 = vmatpush2.xpose.msra.mxu0 0.0
    %335 = vmatprep.subr.mxu0 0.0
    %336 = vmatpush2.xpose.msra.mxu0 0.0
    %337 = vmatprep.subr.mxu0 0.0
    %338 = vmatpush2.xpose.msra.mxu0 0.0
    %339 = vmatprep.subr.mxu0 0.0
    %340 = vmatpush2.xpose.msra.mxu0 0.0
    %341 = vmatprep.subr.mxu0 0.0
    %342 = vmatpush2.xpose.msra.mxu0 0.0
    %343 = vmatprep.subr.mxu0 0.0
    %344 = vmatpush2.xpose.msra.mxu0 0.0
    %345 = vmatprep.subr.mxu0 0.0
    %346 = vmatpush2.xpose.msra.mxu0 0.0
    %347 = vmatprep.subr.mxu0 0.0
    %348 = vmatpush2.xpose.msra.mxu0 0.0
    %349 = vmatprep.subr.mxu0 0.0
    %350 = vmatpush2.xpose.msra.mxu0 0.0
    %351 = vmatprep.subr.mxu0 0.0
    %352 = vmatpush2.xpose.msra.mxu0 0.0
    %353 = vmatprep.subr.mxu0 0.0
    %354 = vmatpush2.xpose.msra.mxu0 0.0
    %355 = vmatprep.subr.mxu0 0.0
    %356 = vmatpush2.xpose.msra.mxu0 0.0
    %357 = vmatprep.subr.mxu0 0.0
    %358 = vmatpush2.xpose.msra.mxu0 0.0
    %359 = vmatprep.mubr.f32.mxu0 0.0
    %360 = vmatmul.mubr.f32.gmra.mxu0 %v291
    %v361 = vpop.f32.mrf.mxu0
    %v362 = vadd.f32 0.0, %v361
    %v363 = vpop.f32.mrf.mxu0
    %364 = vdwg.mxu0
    %v365 = vmul.f32 %v362, 0.35355338
    %v366 = vsel %vm290, %v365, -inf
    %367 = vmax.xlane.f32.xlu0 %v366
    %v368 = vpop.xlane.xlu0 %367
    %v369 = vsub.f32 %v365, %v368
    %v370 = vmul.f32 %v369, 1.442695
    %v371 = vpow.pop %v370
    %v372 = vsel %vm290, %v371, 0.0
    %373 = vadd.xlane.f32.xlu0 %v372
    %v374 = vpop.xlane.xlu0 %373
    %v375 = vrcp.pop %v374
    %v376 = vmul.f32 %v371, %v375
    %377 = vrot.lane.b32.xlu0 %v283, 120
    %v378 = vpop.permute.xlu0 %377
    %379 = vrot.lane.b32.xlu0 %v283, 88
    %v380 = vpop.permute.xlu0 %379
    %v381 = vsel %vm290, %v378, 0
    %v383 = vsel %vm290, %v380, 0
    %385 = vmatprep.subr.mxu0 0.0
    %386 = vmatpush1.xpose.msra.mxu0 0.0
    %387 = vmatprep.subr.mxu0 0.0
    %388 = vmatpush1.xpose.msra.mxu0 0.0
    %389 = vmatprep.subr.mxu0 0.0
    %390 = vmatpush1.xpose.msra.mxu0 0.0
    %391 = vmatprep.subr.mxu0 0.0
    %392 = vmatpush1.xpose.msra.mxu0 0.0
    %393 = vmatprep.subr.mxu0 0.0
    %394 = vmatpush1.xpose.msra.mxu0 0.0
    %395 = vmatprep.subr.mxu0 0.0
    %396 = vmatpush1.xpose.msra.mxu0 0.0
    %397 = vmatprep.subr.mxu0 0.0
    %398 = vmatpush1.xpose.msra.mxu0 0.0
    %399 = vmatprep.subr.mxu0 0.0
    %400 = vmatpush1.xpose.msra.mxu0 0.0
    %401 = vmatprep.subr.mxu0 0.0
    %402 = vmatpush1.xpose.msra.mxu0 0.0
    %403 = vmatprep.subr.mxu0 0.0
    %404 = vmatpush1.xpose.msra.mxu0 0.0
    %405 = vmatprep.subr.mxu0 0.0
    %406 = vmatpush1.xpose.msra.mxu0 0.0
    %407 = vmatprep.subr.mxu0 0.0
    %408 = vmatpush1.xpose.msra.mxu0 0.0
    %409 = vmatprep.subr.mxu0 0.0
    %410 = vmatpush1.xpose.msra.mxu0 0.0
    %411 = vmatprep.subr.mxu0 0.0
    %412 = vmatpush1.xpose.msra.mxu0 0.0
    %413 = vmatprep.subr.mxu0 0.0
    %414 = vmatpush1.xpose.msra.mxu0 0.0
    %415 = vmatprep.subr.mxu0 0.0
    %416 = vmatpush1.xpose.msra.mxu0 %v383
    %417 = vmatprep.subr.mxu0 0.0
    %418 = vmatpush2.xpose.msra.mxu0 0.0
    %419 = vmatprep.subr.mxu0 0.0
    %420 = vmatpush2.xpose.msra.mxu0 0.0
    %421 = vmatprep.subr.mxu0 0.0
    %422 = vmatpush2.xpose.msra.mxu0 0.0
    %423 = vmatprep.subr.mxu0 0.0
    %424 = vmatpush2.xpose.msra.mxu0 0.0
    %425 = vmatprep.subr.mxu0 0.0
    %426 = vmatpush2.xpose.msra.mxu0 0.0
    %427 = vmatprep.subr.mxu0 0.0
    %428 = vmatpush2.xpose.msra.mxu0 0.0
    %429 = vmatprep.subr.mxu0 0.0
    %430 = vmatpush2.xpose.msra.mxu0 0.0
    %431 = vmatprep.subr.mxu0 0.0
    %432 = vmatpush2.xpose.msra.mxu0 0.0
    %433 = vmatprep.subr.mxu0 0.0
    %434 = vmatpush2.xpose.msra.mxu0 0.0
    %435 = vmatprep.subr.mxu0 0.0
    %436 = vmatpush2.xpose.msra.mxu0 0.0
    %437 = vmatprep.subr.mxu0 0.0
    %438 = vmatpush2.xpose.msra.mxu0 0.0
    %439 = vmatprep.subr.mxu0 0.0
    %440 = vmatpush2.xpose.msra.mxu0 0.0
    %441 = vmatprep.subr.mxu0 0.0
    %442 = vmatpush2.xpose.msra.mxu0 0.0
    %443 = vmatprep.subr.mxu0 0.0
    %444 = vmatpush2.xpose.msra.mxu0 0.0
    %445 = vmatprep.subr.mxu0 0.0
    %446 = vmatpush2.xpose.msra.mxu0 0.0
    %447 = vmatprep.subr.mxu0 0.0
    %448 = vmatpush2.xpose.msra.mxu0 0.0
    %449 = vmatprep.mubr.f32.mxu0 0.0
    %450 = vmatmul.mubr.f32.gmra.mxu0 %v381
    %v451 = vpop.f32.mrf.mxu0
    %v452 = vadd.f32 0.0, %v451
    %v453 = vpop.f32.mrf.mxu0
    %454 = vdwg.mxu0
    %v455 = vmul.f32 %v452, 0.35355338
    %v456 = vsel %vm290, %v455, -inf
    %457 = vmax.xlane.f32.xlu0 %v456
    %v458 = vpop.xlane.xlu0 %457
    %v459 = vsub.f32 %v455, %v458
    %v460 = vmul.f32 %v459, 1.442695
    %v461 = vpow.pop %v460
    %v462 = vsel %vm290, %v461, 0.0
    %463 = vadd.xlane.f32.xlu0 %v462
    %v464 = vpop.xlane.xlu0 %463
    %v465 = vrcp.pop %v464
    %v466 = vmul.f32 %v461, %v465
    %467 = vrot.lane.b32.xlu0 %v283, 112
    %v468 = vpop.permute.xlu0 %467
    %469 = vrot.lane.b32.xlu0 %v283, 80
    %v470 = vpop.permute.xlu0 %469
    %v471 = vsel %vm290, %v468, 0
    %v473 = vsel %vm290, %v470, 0
    %475 = vmatprep.subr.mxu0 0.0
    %476 = vmatpush1.xpose.msra.mxu0 0.0
    %477 = vmatprep.subr.mxu0 0.0
    %478 = vmatpush1.xpose.msra.mxu0 0.0
    %479 = vmatprep.subr.mxu0 0.0
    %480 = vmatpush1.xpose.msra.mxu0 0.0
    %481 = vmatprep.subr.mxu0 0.0
    %482 = vmatpush1.xpose.msra.mxu0 0.0
    %483 = vmatprep.subr.mxu0 0.0
    %484 = vmatpush1.xpose.msra.mxu0 0.0
    %485 = vmatprep.subr.mxu0 0.0
    %486 = vmatpush1.xpose.msra.mxu0 0.0
    %487 = vmatprep.subr.mxu0 0.0
    %488 = vmatpush1.xpose.msra.mxu0 0.0
    %489 = vmatprep.subr.mxu0 0.0
    %490 = vmatpush1.xpose.msra.mxu0 0.0
    %491 = vmatprep.subr.mxu0 0.0
    %492 = vmatpush1.xpose.msra.mxu0 0.0
    %493 = vmatprep.subr.mxu0 0.0
    %494 = vmatpush1.xpose.msra.mxu0 0.0
    %495 = vmatprep.subr.mxu0 0.0
    %496 = vmatpush1.xpose.msra.mxu0 0.0
    %497 = vmatprep.subr.mxu0 0.0
    %498 = vmatpush1.xpose.msra.mxu0 0.0
    %499 = vmatprep.subr.mxu0 0.0
    %500 = vmatpush1.xpose.msra.mxu0 0.0
    %501 = vmatprep.subr.mxu0 0.0
    %502 = vmatpush1.xpose.msra.mxu0 0.0
    %503 = vmatprep.subr.mxu0 0.0
    %504 = vmatpush1.xpose.msra.mxu0 0.0
    %505 = vmatprep.subr.mxu0 0.0
    %506 = vmatpush1.xpose.msra.mxu0 %v473
    %507 = vmatprep.subr.mxu0 0.0
    %508 = vmatpush2.xpose.msra.mxu0 0.0
    %509 = vmatprep.subr.mxu0 0.0
    %510 = vmatpush2.xpose.msra.mxu0 0.0
    %511 = vmatprep.subr.mxu0 0.0
    %512 = vmatpush2.xpose.msra.mxu0 0.0
    %513 = vmatprep.subr.mxu0 0.0
    %514 = vmatpush2.xpose.msra.mxu0 0.0
    %515 = vmatprep.subr.mxu0 0.0
    %516 = vmatpush2.xpose.msra.mxu0 0.0
    %517 = vmatprep.subr.mxu0 0.0
    %518 = vmatpush2.xpose.msra.mxu0 0.0
    %519 = vmatprep.subr.mxu0 0.0
    %520 = vmatpush2.xpose.msra.mxu0 0.0
    %521 = vmatprep.subr.mxu0 0.0
    %522 = vmatpush2.xpose.msra.mxu0 0.0
    %523 = vmatprep.subr.mxu0 0.0
    %524 = vmatpush2.xpose.msra.mxu0 0.0
    %525 = vmatprep.subr.mxu0 0.0
    %526 = vmatpush2.xpose.msra.mxu0 0.0
    %527 = vmatprep.subr.mxu0 0.0
    %528 = vmatpush2.xpose.msra.mxu0 0.0
    %529 = vmatprep.subr.mxu0 0.0
    %530 = vmatpush2.xpose.msra.mxu0 0.0
    %531 = vmatprep.subr.mxu0 0.0
    %532 = vmatpush2.xpose.msra.mxu0 0.0
    %533 = vmatprep.subr.mxu0 0.0
    %534 = vmatpush2.xpose.msra.mxu0 0.0
    %535 = vmatprep.subr.mxu0 0.0
    %536 = vmatpush2.xpose.msra.mxu0 0.0
    %537 = vmatprep.subr.mxu0 0.0
    %538 = vmatpush2.xpose.msra.mxu0 0.0
    %539 = vmatprep.mubr.f32.mxu0 0.0
    %540 = vmatmul.mubr.f32.gmra.mxu0 %v471
    %v541 = vpop.f32.mrf.mxu0
    %v542 = vadd.f32 0.0, %v541
    %v543 = vpop.f32.mrf.mxu0
    %544 = vdwg.mxu0
    %v545 = vmul.f32 %v542, 0.35355338
    %v546 = vsel %vm290, %v545, -inf
    %547 = vmax.xlane.f32.xlu0 %v546
    %v548 = vpop.xlane.xlu0 %547
    %v549 = vsub.f32 %v545, %v548
    %v550 = vmul.f32 %v549, 1.442695
    %v551 = vpow.pop %v550
    %v552 = vsel %vm290, %v551, 0.0
    %553 = vadd.xlane.f32.xlu0 %v552
    %v554 = vpop.xlane.xlu0 %553
    %v555 = vrcp.pop %v554
    %v556 = vmul.f32 %v551, %v555
    %557 = vrot.lane.b32.xlu0 %v283, 104
    %v558 = vpop.permute.xlu0 %557
    %559 = vrot.lane.b32.xlu0 %v283, 72
    %v560 = vpop.permute.xlu0 %559
    %v561 = vsel %vm290, %v558, 0
    %v563 = vsel %vm290, %v560, 0
    %565 = vmatprep.subr.mxu0 0.0
    %566 = vmatpush1.xpose.msra.mxu0 0.0
    %567 = vmatprep.subr.mxu0 0.0
    %568 = vmatpush1.xpose.msra.mxu0 0.0
    %569 = vmatprep.subr.mxu0 0.0
    %570 = vmatpush1.xpose.msra.mxu0 0.0
    %571 = vmatprep.subr.mxu0 0.0
    %572 = vmatpush1.xpose.msra.mxu0 0.0
    %573 = vmatprep.subr.mxu0 0.0
    %574 = vmatpush1.xpose.msra.mxu0 0.0
    %575 = vmatprep.subr.mxu0 0.0
    %576 = vmatpush1.xpose.msra.mxu0 0.0
    %577 = vmatprep.subr.mxu0 0.0
    %578 = vmatpush1.xpose.msra.mxu0 0.0
    %579 = vmatprep.subr.mxu0 0.0
    %580 = vmatpush1.xpose.msra.mxu0 0.0
    %581 = vmatprep.subr.mxu0 0.0
    %582 = vmatpush1.xpose.msra.mxu0 0.0
    %583 = vmatprep.subr.mxu0 0.0
    %584 = vmatpush1.xpose.msra.mxu0 0.0
    %585 = vmatprep.subr.mxu0 0.0
    %586 = vmatpush1.xpose.msra.mxu0 0.0
    %587 = vmatprep.subr.mxu0 0.0
    %588 = vmatpush1.xpose.msra.mxu0 0.0
    %589 = vmatprep.subr.mxu0 0.0
    %590 = vmatpush1.xpose.msra.mxu0 0.0
    %591 = vmatprep.subr.mxu0 0.0
    %592 = vmatpush1.xpose.msra.mxu0 0.0
    %593 = vmatprep.subr.mxu0 0.0
    %594 = vmatpush1.xpose.msra.mxu0 0.0
    %595 = vmatprep.subr.mxu0 0.0
    %596 = vmatpush1.xpose.msra.mxu0 %v563
    %597 = vmatprep.subr.mxu0 0.0
    %598 = vmatpush2.xpose.msra.mxu0 0.0
    %599 = vmatprep.subr.mxu0 0.0
    %600 = vmatpush2.xpose.msra.mxu0 0.0
    %601 = vmatprep.subr.mxu0 0.0
    %602 = vmatpush2.xpose.msra.mxu0 0.0
    %603 = vmatprep.subr.mxu0 0.0
    %604 = vmatpush2.xpose.msra.mxu0 0.0
    %605 = vmatprep.subr.mxu0 0.0
    %606 = vmatpush2.xpose.msra.mxu0 0.0
    %607 = vmatprep.subr.mxu0 0.0
    %608 = vmatpush2.xpose.msra.mxu0 0.0
    %609 = vmatprep.subr.mxu0 0.0
    %610 = vmatpush2.xpose.msra.mxu0 0.0
    %611 = vmatprep.subr.mxu0 0.0
    %612 = vmatpush2.xpose.msra.mxu0 0.0
    %613 = vmatprep.subr.mxu0 0.0
    %614 = vmatpush2.xpose.msra.mxu0 0.0
    %615 = vmatprep.subr.mxu0 0.0
    %616 = vmatpush2.xpose.msra.mxu0 0.0
    %617 = vmatprep.subr.mxu0 0.0
    %618 = vmatpush2.xpose.msra.mxu0 0.0
    %619 = vmatprep.subr.mxu0 0.0
    %620 = vmatpush2.xpose.msra.mxu0 0.0
    %621 = vmatprep.subr.mxu0 0.0
    %622 = vmatpush2.xpose.msra.mxu0 0.0
    %623 = vmatprep.subr.mxu0 0.0
    %624 = vmatpush2.xpose.msra.mxu0 0.0
    %625 = vmatprep.subr.mxu0 0.0
    %626 = vmatpush2.xpose.msra.mxu0 0.0
    %627 = vmatprep.subr.mxu0 0.0
    %628 = vmatpush2.xpose.msra.mxu0 0.0
    %629 = vmatprep.mubr.f32.mxu0 0.0
    %630 = vmatmul.mubr.f32.gmra.mxu0 %v561
    %v631 = vpop.f32.mrf.mxu0
    %v632 = vadd.f32 0.0, %v631
    %v633 = vpop.f32.mrf.mxu0
    %634 = vdwg.mxu0
    %v635 = vmul.f32 %v632, 0.35355338
    %v636 = vsel %vm290, %v635, -inf
    %637 = vmax.xlane.f32.xlu0 %v636
    %v638 = vpop.xlane.xlu0 %637
    %v639 = vsub.f32 %v635, %v638
    %v640 = vmul.f32 %v639, 1.442695
    %v641 = vpow.pop %v640
    %v642 = vsel %vm290, %v641, 0.0
    %643 = vadd.xlane.f32.xlu0 %v642
    %v644 = vpop.xlane.xlu0 %643
    %v645 = vrcp.pop %v644
    %v646 = vmul.f32 %v641, %v645
    %648 = vrot.lane.b32.xlu0 %v466, 8
    %v649 = vpop.permute.xlu0 %648
    %652 = vrot.lane.b32.xlu0 %v556, 16
    %v653 = vpop.permute.xlu0 %652
    %656 = vrot.lane.b32.xlu0 %v646, 24
    %v657 = vpop.permute.xlu0 %656
    %v659 = vsel %vm290, %v376, %v649
    %v660 = vsel %vm126, %v659, %v653
    %vm661 = vcmask 195584
    %v662 = vsel %vm661, %v660, %v657
    %664 = vrot.lane.b32.xlu0 %v285, 64
    %v665 = vpop.permute.xlu0 %664
    %666 = vrot.lane.b32.xlu0 %v285, 32
    %v667 = vpop.permute.xlu0 %666
    %668 = vrot.lane.b32.xlu0 %v283, 64
    %v669 = vpop.permute.xlu0 %668
    %670 = vrot.lane.b32.xlu0 %v289, 64
    %v671 = vpop.permute.xlu0 %670
    %672 = vrot.lane.b32.xlu0 %v665, 64
    %v673 = vpop.permute.xlu0 %672
    %674 = vrot.lane.b32.xlu0 %v667, 64
    %v675 = vpop.permute.xlu0 %674
    %v681 = vsel %vm212, %v662, 0
    %683 = vmatprep.subr.mxu0 0.0
    %684 = vmatpush1.msra.mxu0 0.0
    %685 = vmatprep.subr.mxu0 0.0
    %686 = vmatpush1.msra.mxu0 0.0
    %687 = vmatprep.subr.mxu0 0.0
    %688 = vmatpush1.msra.mxu0 0.0
    %689 = vmatprep.subr.mxu0 0.0
    %690 = vmatpush1.msra.mxu0 0.0
    %691 = vmatprep.subr.mxu0 0.0
    %692 = vmatpush1.msra.mxu0 0.0
    %693 = vmatprep.subr.mxu0 0.0
    %694 = vmatpush1.msra.mxu0 0.0
    %695 = vmatprep.subr.mxu0 0.0
    %696 = vmatpush1.msra.mxu0 0.0
    %697 = vmatprep.subr.mxu0 0.0
    %698 = vmatpush1.msra.mxu0 0.0
    %699 = vmatprep.subr.mxu0 0.0
    %700 = vmatpush1.msra.mxu0 0.0
    %701 = vmatprep.subr.mxu0 0.0
    %702 = vmatpush1.msra.mxu0 0.0
    %703 = vmatprep.subr.mxu0 0.0
    %704 = vmatpush1.msra.mxu0 0.0
    %705 = vmatprep.subr.mxu0 0.0
    %706 = vmatpush1.msra.mxu0 0.0
    %707 = vmatprep.subr.mxu0 0.0
    %708 = vmatpush1.msra.mxu0 %v675
    %709 = vmatprep.subr.mxu0 0.0
    %710 = vmatpush1.msra.mxu0 %v673
    %711 = vmatprep.subr.mxu0 0.0
    %712 = vmatpush1.msra.mxu0 %v671
    %713 = vmatprep.subr.mxu0 0.0
    %714 = vmatpush1.msra.mxu0 %v669
    %715 = vmatprep.subr.mxu0 0.0
    %716 = vmatpush2.msra.mxu0 0.0
    %717 = vmatprep.subr.mxu0 0.0
    %718 = vmatpush2.msra.mxu0 0.0
    %719 = vmatprep.subr.mxu0 0.0
    %720 = vmatpush2.msra.mxu0 0.0
    %721 = vmatprep.subr.mxu0 0.0
    %722 = vmatpush2.msra.mxu0 0.0
    %723 = vmatprep.subr.mxu0 0.0
    %724 = vmatpush2.msra.mxu0 0.0
    %725 = vmatprep.subr.mxu0 0.0
    %726 = vmatpush2.msra.mxu0 0.0
    %727 = vmatprep.subr.mxu0 0.0
    %728 = vmatpush2.msra.mxu0 0.0
    %729 = vmatprep.subr.mxu0 0.0
    %730 = vmatpush2.msra.mxu0 0.0
    %731 = vmatprep.subr.mxu0 0.0
    %732 = vmatpush2.msra.mxu0 0.0
    %733 = vmatprep.subr.mxu0 0.0
    %734 = vmatpush2.msra.mxu0 0.0
    %735 = vmatprep.subr.mxu0 0.0
    %736 = vmatpush2.msra.mxu0 0.0
    %737 = vmatprep.subr.mxu0 0.0
    %738 = vmatpush2.msra.mxu0 0.0
    %739 = vmatprep.subr.mxu0 0.0
    %740 = vmatpush2.msra.mxu0 0.0
    %741 = vmatprep.subr.mxu0 0.0
    %742 = vmatpush2.msra.mxu0 0.0
    %743 = vmatprep.subr.mxu0 0.0
    %744 = vmatpush2.msra.mxu0 0.0
    %745 = vmatprep.subr.mxu0 0.0
    %746 = vmatpush2.msra.mxu0 0.0
    %747 = vmatprep.mubr.f32.mxu0 0.0
    %748 = vmatmul.mubr.f32.gmra.mxu0 %v681
    %v749 = vpop.f32.mrf.mxu0
    %v750 = vadd.f32 %v121, %v749
    %v751 = vpop.f32.mrf.mxu0
    %752 = vdwg.mxu0
    %v753 = vadd.f32 %v750, %v200
    %v754 = vsel %vm212, %v753, 0.0
    %755 = vadd.xlane.f32.xlu0 %v754
    %v756 = vpop.xlane.xlu0 %755
    %v757 = vrcp.pop 32.0
    %v758 = vmul.f32 %v756, %v757
    %v759 = vsub.f32 %v753, %v758
    %v760 = vmul.f32 %v759, %v759
    %v761 = vsel %vm212, %v760, 0.0
    %762 = vadd.xlane.f32.xlu0 %v761
    %v763 = vpop.xlane.xlu0 %762
    %v764 = vmul.f32 %v763, %v757
    %v765 = vadd.f32 %v764, 1e-05
    %v766 = vrsqrt.pop %v765
    %v767 = vmul.f32 %v759, %v766
    %v768 = vmul.f32 %v767, %v122
    %v769 = vadd.f32 %v768, %v123
    %v770 = vmax.f32 %v769, 0.0
    %v772 = vsel %vm212, %v770, 0
    %774 = vmatprep.subr.mxu0 0.0
    %775 = vmatpush1.msra.mxu0 0.0
    %776 = vmatprep.subr.mxu0 0.0
    %777 = vmatpush1.msra.mxu0 0.0
    %778 = vmatprep.subr.mxu0 0.0
    %779 = vmatpush1.msra.mxu0 0.0
    %780 = vmatprep.subr.mxu0 0.0
    %781 = vmatpush1.msra.mxu0 0.0
    %782 = vmatprep.subr.mxu0 0.0
    %783 = vmatpush1.msra.mxu0 0.0
    %784 = vmatprep.subr.mxu0 0.0
    %785 = vmatpush1.msra.mxu0 0.0
    %786 = vmatprep.subr.mxu0 0.0
    %787 = vmatpush1.msra.mxu0 0.0
    %788 = vmatprep.subr.mxu0 0.0
    %789 = vmatpush1.msra.mxu0 0.0
    %790 = vmatprep.subr.mxu0 0.0
    %791 = vmatpush1.msra.mxu0 0.0
    %792 = vmatprep.subr.mxu0 0.0
    %793 = vmatpush1.msra.mxu0 0.0
    %794 = vmatprep.subr.mxu0 0.0
    %795 = vmatpush1.msra.mxu0 0.0
    %796 = vmatprep.subr.mxu0 0.0
    %797 = vmatpush1.msra.mxu0 0.0
    %798 = vmatprep.subr.mxu0 0.0
    %799 = vmatpush1.msra.mxu0 %v109
    %800 = vmatprep.subr.mxu0 0.0
    %801 = vmatpush1.msra.mxu0 %v108
    %802 = vmatprep.subr.mxu0 0.0
    %803 = vmatpush1.msra.mxu0 %v107
    %804 = vmatprep.subr.mxu0 0.0
    %805 = vmatpush1.msra.mxu0 %v106
    %806 = vmatprep.subr.mxu0 0.0
    %807 = vmatpush2.msra.mxu0 0.0
    %808 = vmatprep.subr.mxu0 0.0
    %809 = vmatpush2.msra.mxu0 0.0
    %810 = vmatprep.subr.mxu0 0.0
    %811 = vmatpush2.msra.mxu0 0.0
    %812 = vmatprep.subr.mxu0 0.0
    %813 = vmatpush2.msra.mxu0 0.0
    %814 = vmatprep.subr.mxu0 0.0
    %815 = vmatpush2.msra.mxu0 0.0
    %816 = vmatprep.subr.mxu0 0.0
    %817 = vmatpush2.msra.mxu0 0.0
    %818 = vmatprep.subr.mxu0 0.0
    %819 = vmatpush2.msra.mxu0 0.0
    %820 = vmatprep.subr.mxu0 0.0
    %821 = vmatpush2.msra.mxu0 0.0
    %822 = vmatprep.subr.mxu0 0.0
    %823 = vmatpush2.msra.mxu0 0.0
    %824 = vmatprep.subr.mxu0 0.0
    %825 = vmatpush2.msra.mxu0 0.0
    %826 = vmatprep.subr.mxu0 0.0
    %827 = vmatpush2.msra.mxu0 0.0
    %828 = vmatprep.subr.mxu0 0.0
    %829 = vmatpush2.msra.mxu0 0.0
    %830 = vmatprep.subr.mxu0 0.0
    %831 = vmatpush2.msra.mxu0 0.0
    %832 = vmatprep.subr.mxu0 0.0
    %833 = vmatpush2.msra.mxu0 0.0
    %834 = vmatprep.subr.mxu0 0.0
    %835 = vmatpush2.msra.mxu0 0.0
    %836 = vmatprep.subr.mxu0 0.0
    %837 = vmatpush2.msra.mxu0 0.0
    %838 = vmatprep.mubr.f32.mxu0 0.0
    %839 = vmatmul.mubr.f32.gmra.mxu0 %v772
    %v840 = vpop.f32.mrf.mxu0
    %v841 = vadd.f32 %v124, %v840
    %v842 = vpop.f32.mrf.mxu0
    %843 = vdwg.mxu0
    %v844 = vmax.f32 %v841, 0.0
    %vm845 = vcmask 523264
    %v847 = vsel %vm845, %v844, 0
    %849 = vmatprep.subr.mxu0 0.0
    %850 = vmatpush1.msra.mxu0 0.0
    %851 = vmatprep.subr.mxu0 0.0
    %852 = vmatpush1.msra.mxu0 0.0
    %853 = vmatprep.subr.mxu0 0.0
    %854 = vmatpush1.msra.mxu0 0.0
    %855 = vmatprep.subr.mxu0 0.0
    %856 = vmatpush1.msra.mxu0 0.0
    %857 = vmatprep.subr.mxu0 0.0
    %858 = vmatpush1.msra.mxu0 0.0
    %859 = vmatprep.subr.mxu0 0.0
    %860 = vmatpush1.msra.mxu0 0.0
    %861 = vmatprep.subr.mxu0 0.0
    %862 = vmatpush1.msra.mxu0 0.0
    %863 = vmatprep.subr.mxu0 0.0
    %864 = vmatpush1.msra.mxu0 0.0
    %865 = vmatprep.subr.mxu0 0.0
    %866 = vmatpush1.msra.mxu0 %v117
    %867 = vmatprep.subr.mxu0 0.0
    %868 = vmatpush1.msra.mxu0 %v116
    %869 = vmatprep.subr.mxu0 0.0
    %870 = vmatpush1.msra.mxu0 %v115
    %871 = vmatprep.subr.mxu0 0.0
    %872 = vmatpush1.msra.mxu0 %v114
    %873 = vmatprep.subr.mxu0 0.0
    %874 = vmatpush1.msra.mxu0 %v113
    %875 = vmatprep.subr.mxu0 0.0
    %876 = vmatpush1.msra.mxu0 %v112
    %877 = vmatprep.subr.mxu0 0.0
    %878 = vmatpush1.msra.mxu0 %v111
    %879 = vmatprep.subr.mxu0 0.0
    %880 = vmatpush1.msra.mxu0 %v110
    %881 = vmatprep.subr.mxu0 0.0
    %882 = vmatpush2.msra.mxu0 0.0
    %883 = vmatprep.subr.mxu0 0.0
    %884 = vmatpush2.msra.mxu0 0.0
    %885 = vmatprep.subr.mxu0 0.0
    %886 = vmatpush2.msra.mxu0 0.0
    %887 = vmatprep.subr.mxu0 0.0
    %888 = vmatpush2.msra.mxu0 0.0
    %889 = vmatprep.subr.mxu0 0.0
    %890 = vmatpush2.msra.mxu0 0.0
    %891 = vmatprep.subr.mxu0 0.0
    %892 = vmatpush2.msra.mxu0 0.0
    %893 = vmatprep.subr.mxu0 0.0
    %894 = vmatpush2.msra.mxu0 0.0
    %895 = vmatprep.subr.mxu0 0.0
    %896 = vmatpush2.msra.mxu0 0.0
    %897 = vmatprep.subr.mxu0 0.0
    %898 = vmatpush2.msra.mxu0 0.0
    %899 = vmatprep.subr.mxu0 0.0
    %900 = vmatpush2.msra.mxu0 0.0
    %901 = vmatprep.subr.mxu0 0.0
    %902 = vmatpush2.msra.mxu0 0.0
    %903 = vmatprep.subr.mxu0 0.0
    %904 = vmatpush2.msra.mxu0 0.0
    %905 = vmatprep.subr.mxu0 0.0
    %906 = vmatpush2.msra.mxu0 0.0
    %907 = vmatprep.subr.mxu0 0.0
    %908 = vmatpush2.msra.mxu0 0.0
    %909 = vmatprep.subr.mxu0 0.0
    %910 = vmatpush2.msra.mxu0 0.0
    %911 = vmatprep.subr.mxu0 0.0
    %912 = vmatpush2.msra.mxu0 0.0
    %913 = vmatprep.mubr.f32.mxu0 0.0
    %914 = vmatmul.mubr.f32.gmra.mxu0 %v847
    %v915 = vpop.f32.mrf.mxu0
    %v916 = vadd.f32 %v125, %v915
    %v917 = vpop.f32.mrf.mxu0
    %918 = vdwg.mxu0
    %v919 = vmul.f32 %v916, %v95
    %vm920 = vcmp.gt.f32.partialorder %v78, 0.0
    %v921 = vsel %vm920, 1, 0
    %v922 = vlaneseq
    %v923 = vshrl.u32 %v922, 7
    %v924 = vsub.s32 0, %v923
    %v925 = vrot.slane %v921, %v924
    %vm926 = vcmp.eq.s32.totalorder %v925, 1
    %v927 = vsel %vm926, %v919, -1e+30
    %v928 = vsel %vm126, %v927, -inf
    %929 = vmax.xlane.f32.xlu0 %v928
    %v930 = vpop.xlane.xlu0 %929
    %vm931 = vcmp.gt.f32.partialorder %v79, 0.0
    %v932 = vsel %vm931, 1, 0
    %v933 = vlaneseq
    %v934 = vshrl.u32 %v933, 7
    %v935 = vsub.s32 0, %v934
    %v936 = vrot.slane %v932, %v935
    %vm937 = vcmp.eq.s32.totalorder %v936, 1
    %v938 = vsel %vm937, %v919, -1e+30
    %v939 = vsel %vm126, %v938, -inf
    %940 = vmax.xlane.f32.xlu0 %v939
    %v941 = vpop.xlane.xlu0 %940
    %vm942 = vcmp.gt.f32.partialorder %v80, 0.0
    %v943 = vsel %vm942, 1, 0
    %v944 = vlaneseq
    %v945 = vshrl.u32 %v944, 7
    %v946 = vsub.s32 0, %v945
    %v947 = vrot.slane %v943, %v946
    %vm948 = vcmp.eq.s32.totalorder %v947, 1
    %v949 = vsel %vm948, %v919, -1e+30
    %v950 = vsel %vm126, %v949, -inf
    %951 = vmax.xlane.f32.xlu0 %v950
    %v952 = vpop.xlane.xlu0 %951
    %v953 = vlaneseq
    %v954 = vshrl.u32 %v953, 7
    %v955 = vsub.s32 0, %v954
    %v956 = vrot.slane %v78, %v955
    %v957 = vmul.f32 %v930, %v956
    %v958 = vlaneseq
    %v959 = vshrl.u32 %v958, 7
    %v960 = vsub.s32 0, %v959
    %v961 = vrot.slane %v79, %v960
    %v962 = vmul.f32 %v941, %v961
    %v963 = vadd.f32 %v957, %v962
    %v964 = vlaneseq
    %v965 = vshrl.u32 %v964, 7
    %v966 = vsub.s32 0, %v965
    %v967 = vrot.slane %v80, %v966
    %v968 = vmul.f32 %v952, %v967
    %v969 = vadd.f32 %v963, %v968
    %v970 = vsub.f32 %v919, %v969
    %v971 = vlaneseq
    %v972 = vshrl.u32 %v971, 7
    %v973 = vsub.s32 0, %v972
    %v974 = vrot.slane %v81, %v973
    %v975 = vmul.f32 %v970, %v974
    %v976 = vmul.f32 %v975, 1.442695
    %v977 = vpow.pop %v976
    %v978 = vmul.f32 %v977, %v974
    %v980 = vsel %vm126, %v978, 0
    %v983 = vsel %vm126, %v77, 0
    %985 = vmatprep.subr.mxu0 0.0
    %986 = vmatpush1.xpose.msra.mxu0 0.0
    %987 = vmatprep.subr.mxu0 0.0
    %988 = vmatpush1.xpose.msra.mxu0 0.0
    %989 = vmatprep.subr.mxu0 0.0
    %990 = vmatpush1.xpose.msra.mxu0 0.0
    %991 = vmatprep.subr.mxu0 0.0
    %992 = vmatpush1.xpose.msra.mxu0 0.0
    %993 = vmatprep.subr.mxu0 0.0
    %994 = vmatpush1.xpose.msra.mxu0 0.0
    %995 = vmatprep.subr.mxu0 0.0
    %996 = vmatpush1.xpose.msra.mxu0 0.0
    %997 = vmatprep.subr.mxu0 0.0
    %998 = vmatpush1.xpose.msra.mxu0 0.0
    %999 = vmatprep.subr.mxu0 0.0
    %1000 = vmatpush1.xpose.msra.mxu0 0.0
    %1001 = vmatprep.subr.mxu0 0.0
    %1002 = vmatpush1.xpose.msra.mxu0 0.0
    %1003 = vmatprep.subr.mxu0 0.0
    %1004 = vmatpush1.xpose.msra.mxu0 0.0
    %1005 = vmatprep.subr.mxu0 0.0
    %1006 = vmatpush1.xpose.msra.mxu0 0.0
    %1007 = vmatprep.subr.mxu0 0.0
    %1008 = vmatpush1.xpose.msra.mxu0 0.0
    %1009 = vmatprep.subr.mxu0 0.0
    %1010 = vmatpush1.xpose.msra.mxu0 0.0
    %1011 = vmatprep.subr.mxu0 0.0
    %1012 = vmatpush1.xpose.msra.mxu0 0.0
    %1013 = vmatprep.subr.mxu0 0.0
    %1014 = vmatpush1.xpose.msra.mxu0 0.0
    %1015 = vmatprep.subr.mxu0 0.0
    %1016 = vmatpush1.xpose.msra.mxu0 %v983
    %1017 = vmatprep.subr.mxu0 0.0
    %1018 = vmatpush2.xpose.msra.mxu0 0.0
    %1019 = vmatprep.subr.mxu0 0.0
    %1020 = vmatpush2.xpose.msra.mxu0 0.0
    %1021 = vmatprep.subr.mxu0 0.0
    %1022 = vmatpush2.xpose.msra.mxu0 0.0
    %1023 = vmatprep.subr.mxu0 0.0
    %1024 = vmatpush2.xpose.msra.mxu0 0.0
    %1025 = vmatprep.subr.mxu0 0.0
    %1026 = vmatpush2.xpose.msra.mxu0 0.0
    %1027 = vmatprep.subr.mxu0 0.0
    %1028 = vmatpush2.xpose.msra.mxu0 0.0
    %1029 = vmatprep.subr.mxu0 0.0
    %1030 = vmatpush2.xpose.msra.mxu0 0.0
    %1031 = vmatprep.subr.mxu0 0.0
    %1032 = vmatpush2.xpose.msra.mxu0 0.0
    %1033 = vmatprep.subr.mxu0 0.0
    %1034 = vmatpush2.xpose.msra.mxu0 0.0
    %1035 = vmatprep.subr.mxu0 0.0
    %1036 = vmatpush2.xpose.msra.mxu0 0.0
    %1037 = vmatprep.subr.mxu0 0.0
    %1038 = vmatpush2.xpose.msra.mxu0 0.0
    %1039 = vmatprep.subr.mxu0 0.0
    %1040 = vmatpush2.xpose.msra.mxu0 0.0
    %1041 = vmatprep.subr.mxu0 0.0
    %1042 = vmatpush2.xpose.msra.mxu0 0.0
    %1043 = vmatprep.subr.mxu0 0.0
    %1044 = vmatpush2.xpose.msra.mxu0 0.0
    %1045 = vmatprep.subr.mxu0 0.0
    %1046 = vmatpush2.xpose.msra.mxu0 0.0
    %1047 = vmatprep.subr.mxu0 0.0
    %1048 = vmatpush2.xpose.msra.mxu0 0.0
    %1049 = vmatprep.mubr.f32.mxu0 0.0
    %1050 = vmatmul.mubr.f32.gmra.mxu0 %v980
    %v1051 = vpop.f32.mrf.mxu0
    %v1052 = vadd.f32 0.0, %v1051
    %v1053 = vpop.f32.mrf.mxu0
    %1054 = vdwg.mxu0
    %v1055 = vlaneseq
    %v1056 = vshrl.u32 %v1055, 7
    %v1057 = vsub.s32 0, %v1056
    %v1058 = vrot.slane %v83, %v1057
    %v1060 = vsel %vm290, %v1052, 0
    %1062 = vmatprep.subr.mxu0 0.0
    %1063 = vmatpush1.msra.mxu0 0.0
    %1064 = vmatprep.subr.mxu0 0.0
    %1065 = vmatpush1.msra.mxu0 0.0
    %1066 = vmatprep.subr.mxu0 0.0
    %1067 = vmatpush1.msra.mxu0 0.0
    %1068 = vmatprep.subr.mxu0 0.0
    %1069 = vmatpush1.msra.mxu0 0.0
    %1070 = vmatprep.subr.mxu0 0.0
    %1071 = vmatpush1.msra.mxu0 0.0
    %1072 = vmatprep.subr.mxu0 0.0
    %1073 = vmatpush1.msra.mxu0 0.0
    %1074 = vmatprep.subr.mxu0 0.0
    %1075 = vmatpush1.msra.mxu0 0.0
    %1076 = vmatprep.subr.mxu0 0.0
    %1077 = vmatpush1.msra.mxu0 0.0
    %1078 = vmatprep.subr.mxu0 0.0
    %1079 = vmatpush1.msra.mxu0 0.0
    %1080 = vmatprep.subr.mxu0 0.0
    %1081 = vmatpush1.msra.mxu0 0.0
    %1082 = vmatprep.subr.mxu0 0.0
    %1083 = vmatpush1.msra.mxu0 0.0
    %1084 = vmatprep.subr.mxu0 0.0
    %1085 = vmatpush1.msra.mxu0 0.0
    %1086 = vmatprep.subr.mxu0 0.0
    %1087 = vmatpush1.msra.mxu0 0.0
    %1088 = vmatprep.subr.mxu0 0.0
    %1089 = vmatpush1.msra.mxu0 0.0
    %1090 = vmatprep.subr.mxu0 0.0
    %1091 = vmatpush1.msra.mxu0 0.0
    %1092 = vmatprep.subr.mxu0 0.0
    %1093 = vmatpush1.msra.mxu0 %v77
    %1094 = vmatprep.subr.mxu0 0.0
    %1095 = vmatpush2.msra.mxu0 0.0
    %1096 = vmatprep.subr.mxu0 0.0
    %1097 = vmatpush2.msra.mxu0 0.0
    %1098 = vmatprep.subr.mxu0 0.0
    %1099 = vmatpush2.msra.mxu0 0.0
    %1100 = vmatprep.subr.mxu0 0.0
    %1101 = vmatpush2.msra.mxu0 0.0
    %1102 = vmatprep.subr.mxu0 0.0
    %1103 = vmatpush2.msra.mxu0 0.0
    %1104 = vmatprep.subr.mxu0 0.0
    %1105 = vmatpush2.msra.mxu0 0.0
    %1106 = vmatprep.subr.mxu0 0.0
    %1107 = vmatpush2.msra.mxu0 0.0
    %1108 = vmatprep.subr.mxu0 0.0
    %1109 = vmatpush2.msra.mxu0 0.0
    %1110 = vmatprep.subr.mxu0 0.0
    %1111 = vmatpush2.msra.mxu0 0.0
    %1112 = vmatprep.subr.mxu0 0.0
    %1113 = vmatpush2.msra.mxu0 0.0
    %1114 = vmatprep.subr.mxu0 0.0
    %1115 = vmatpush2.msra.mxu0 0.0
    %1116 = vmatprep.subr.mxu0 0.0
    %1117 = vmatpush2.msra.mxu0 0.0
    %1118 = vmatprep.subr.mxu0 0.0
    %1119 = vmatpush2.msra.mxu0 0.0
    %1120 = vmatprep.subr.mxu0 0.0
    %1121 = vmatpush2.msra.mxu0 0.0
    %1122 = vmatprep.subr.mxu0 0.0
    %1123 = vmatpush2.msra.mxu0 0.0
    %1124 = vmatprep.subr.mxu0 0.0
    %1125 = vmatpush2.msra.mxu0 0.0
    %1126 = vmatprep.mubr.f32.mxu0 0.0
    %1127 = vmatmul.mubr.f32.gmra.mxu0 %v1060
    %v1128 = vpop.f32.mrf.mxu0
    %v1129 = vadd.f32 %v1058, %v1128
    %v1130 = vpop.f32.mrf.mxu0
    %1131 = vdwg.mxu0
    %v1132 = vrcp.pop %v1129
    %v1133 = vmul.f32 %v978, %v1132
    %v1134 = vmul.f32 %v919, %v1058
    %v1135 = vsub.f32 0.0, %v1134
    %v1136 = vmul.f32 %v1135, 1.442695
    %v1137 = vpow.pop %v1136
    %v1138 = vadd.f32 %v1137, 1.0
    %v1139 = vrcp.pop %v1138
    %v1140 = vmul.f32 %v1139, %v1058
    %v1141 = vadd.f32 %v1133, %v1140
    %s1142 = scalar_lea.vmem [#allocation4], 288
    %v1143 = vld [vmem:[%s1142] sm:$0xff]
    %v1144 = vld [vmem:[%s1142 + $0x10] sm:$0xff]
    %v1145 = vld [vmem:[%s1142 + $0x20] sm:$0xff]
    %v1146 = vld [vmem:[%s1142 + $0x28] sm:$0xff]
    %v1147 = vld [vmem:[%s1142 + $0x30] sm:$0xff]
    %v1148 = vld [vmem:[%s1142 + $0x38] sm:$0xff]
    %v1149 = vld [vmem:[%s1142 + $0x40] sm:$0xff]
    %v1150 = vld [vmem:[%s1142 + $0x48] sm:$0xff]
    %v1151 = vld [vmem:[%s1142 + $0x50] sm:$0xff]
    %v1152 = vld [vmem:[%s1142 + $0x58] sm:$0xff]
    %v1153 = vld [vmem:[%s1142 + $0x60] sm:$0xff]
    %v1154 = vld [vmem:[%s1142 + $0x70] sm:$0xff]
    %v1155 = vld [vmem:[%s1142 + $0x80] sm:$0xff]
    %v1156 = vld [vmem:[%s1142 + $0x90] sm:$0xff]
    %v1157 = vld [vmem:[%s1142 + $0xa0] sm:$0xff]
    %v1158 = vld [vmem:[%s1142 + $0xb0] sm:$0xff]
    %v1159 = vld [vmem:[%s1142 + $0xc0] sm:$0xff]
    %v1160 = vld [vmem:[%s1142 + $0xd0] sm:$0xff]
    %v1161 = vld [vmem:[%s1142 + $0xe0] sm:$0xff]
    %v1162 = vld [vmem:[%s1142 + $0xf0] sm:$0xff]
    %v1163 = vld [vmem:[%s1142 + $0x100] sm:$0xff]
    %v1164 = vld [vmem:[%s1142 + $0x110] sm:$0xff]
    %s1165 = scalar_lea.vmem [#allocation6], 16
    %v1166 = vld [vmem:[%s1165] ss:$0 sm:$0xff]
    %s1167 = scalar_lea.vmem %s1165, 1 [#allocation6]
    %v1168 = vld [vmem:[%s1167] ss:$8 sm:$0x3]
    %v1169 = vld [vmem:[%s1165 + $0x2] ss:$0 sm:$0xff]
    %v1170 = vld [vmem:[%s1165 + $0x3] ss:$0 sm:$0xff]
    %v1171 = vld [vmem:[%s1165 + $0x4] ss:$0 sm:$0xff]
    %v1172 = vld [vmem:[%s1165 + $0x5] ss:$0 sm:$0xff]
    %v1173 = vld [vmem:[%s1165 + $0x6] ss:$0 sm:$0xff]
    %1174 = vmatprep.subr.mxu0 0.0
    %1175 = vmatpush1.msra.mxu0 0.0
    %1176 = vmatprep.subr.mxu0 0.0
    %1177 = vmatpush1.msra.mxu0 0.0
    %1178 = vmatprep.subr.mxu0 0.0
    %1179 = vmatpush1.msra.mxu0 0.0
    %1180 = vmatprep.subr.mxu0 0.0
    %1181 = vmatpush1.msra.mxu0 0.0
    %1182 = vmatprep.subr.mxu0 0.0
    %1183 = vmatpush1.msra.mxu0 0.0
    %1184 = vmatprep.subr.mxu0 0.0
    %1185 = vmatpush1.msra.mxu0 0.0
    %1186 = vmatprep.subr.mxu0 0.0
    %1187 = vmatpush1.msra.mxu0 0.0
    %1188 = vmatprep.subr.mxu0 0.0
    %1189 = vmatpush1.msra.mxu0 0.0
    %1190 = vmatprep.subr.mxu0 0.0
    %1191 = vmatpush1.msra.mxu0 0.0
    %1192 = vmatprep.subr.mxu0 0.0
    %1193 = vmatpush1.msra.mxu0 0.0
    %1194 = vmatprep.subr.mxu0 0.0
    %1195 = vmatpush1.msra.mxu0 0.0
    %1196 = vmatprep.subr.mxu0 0.0
    %1197 = vmatpush1.msra.mxu0 0.0
    %1198 = vmatprep.subr.mxu0 0.0
    %1199 = vmatpush1.msra.mxu0 0.0
    %1200 = vmatprep.subr.mxu0 0.0
    %1201 = vmatpush1.msra.mxu0 0.0
    %1202 = vmatprep.subr.mxu0 0.0
    %1203 = vmatpush1.msra.mxu0 %v1144
    %1204 = vmatprep.subr.mxu0 0.0
    %1205 = vmatpush1.msra.mxu0 %v1143
    %1206 = vmatprep.subr.mxu0 0.0
    %1207 = vmatpush2.msra.mxu0 0.0
    %1208 = vmatprep.subr.mxu0 0.0
    %1209 = vmatpush2.msra.mxu0 0.0
    %1210 = vmatprep.subr.mxu0 0.0
    %1211 = vmatpush2.msra.mxu0 0.0
    %1212 = vmatprep.subr.mxu0 0.0
    %1213 = vmatpush2.msra.mxu0 0.0
    %1214 = vmatprep.subr.mxu0 0.0
    %1215 = vmatpush2.msra.mxu0 0.0
    %1216 = vmatprep.subr.mxu0 0.0
    %1217 = vmatpush2.msra.mxu0 0.0
    %1218 = vmatprep.subr.mxu0 0.0
    %1219 = vmatpush2.msra.mxu0 0.0
    %1220 = vmatprep.subr.mxu0 0.0
    %1221 = vmatpush2.msra.mxu0 0.0
    %1222 = vmatprep.subr.mxu0 0.0
    %1223 = vmatpush2.msra.mxu0 0.0
    %1224 = vmatprep.subr.mxu0 0.0
    %1225 = vmatpush2.msra.mxu0 0.0
    %1226 = vmatprep.subr.mxu0 0.0
    %1227 = vmatpush2.msra.mxu0 0.0
    %1228 = vmatprep.subr.mxu0 0.0
    %1229 = vmatpush2.msra.mxu0 0.0
    %1230 = vmatprep.subr.mxu0 0.0
    %1231 = vmatpush2.msra.mxu0 0.0
    %1232 = vmatprep.subr.mxu0 0.0
    %1233 = vmatpush2.msra.mxu0 0.0
    %1234 = vmatprep.subr.mxu0 0.0
    %1235 = vmatpush2.msra.mxu0 0.0
    %1236 = vmatprep.subr.mxu0 0.0
    %1237 = vmatpush2.msra.mxu0 0.0
    %1238 = vmatprep.mubr.f32.mxu0 0.0
    %1239 = vmatmul.mubr.f32.gmra.mxu0 %v128
    %v1240 = vpop.f32.mrf.mxu0
    %v1241 = vadd.f32 %v1166, %v1240
    %v1242 = vpop.f32.mrf.mxu0
    %1243 = vdwg.mxu0
    %v1244 = vmax.f32 %v1241, 0.0
    %v1246 = vlaneseq
    %v1247 = vshrl.u32 %v1246, 7
    %v1248 = vsub.s32 0, %v1247
    %v1249 = vrot.slane %v1168, %v1248
    %v1250 = vlaneseq
    %v1251 = vshrl.u32 %v1250, 7
    %v1252 = vsub.s32 1, %v1251
    %v1253 = vrot.slane %v1168, %v1252
    %v1257 = vsel %vm212, %v1244, 0
    %1259 = vmatprep.subr.mxu0 0.0
    %1260 = vmatpush1.msra.mxu0 0.0
    %1261 = vmatprep.subr.mxu0 0.0
    %1262 = vmatpush1.msra.mxu0 0.0
    %1263 = vmatprep.subr.mxu0 0.0
    %1264 = vmatpush1.msra.mxu0 0.0
    %1265 = vmatprep.subr.mxu0 0.0
    %1266 = vmatpush1.msra.mxu0 0.0
    %1267 = vmatprep.subr.mxu0 0.0
    %1268 = vmatpush1.msra.mxu0 0.0
    %1269 = vmatprep.subr.mxu0 0.0
    %1270 = vmatpush1.msra.mxu0 0.0
    %1271 = vmatprep.subr.mxu0 0.0
    %1272 = vmatpush1.msra.mxu0 0.0
    %1273 = vmatprep.subr.mxu0 0.0
    %1274 = vmatpush1.msra.mxu0 0.0
    %1275 = vmatprep.subr.mxu0 0.0
    %1276 = vmatpush1.msra.mxu0 0.0
    %1277 = vmatprep.subr.mxu0 0.0
    %1278 = vmatpush1.msra.mxu0 0.0
    %1279 = vmatprep.subr.mxu0 0.0
    %1280 = vmatpush1.msra.mxu0 0.0
    %1281 = vmatprep.subr.mxu0 0.0
    %1282 = vmatpush1.msra.mxu0 0.0
    %1283 = vmatprep.subr.mxu0 %v1152
    %1284 = vmatpush1.msra.mxu0 %v1151
    %1285 = vmatprep.subr.mxu0 %v1150
    %1286 = vmatpush1.msra.mxu0 %v1149
    %1287 = vmatprep.subr.mxu0 %v1148
    %1288 = vmatpush1.msra.mxu0 %v1147
    %1289 = vmatprep.subr.mxu0 %v1146
    %1290 = vmatpush1.msra.mxu0 %v1145
    %1291 = vmatprep.subr.mxu0 0.0
    %1292 = vmatpush2.msra.mxu0 0.0
    %1293 = vmatprep.subr.mxu0 0.0
    %1294 = vmatpush2.msra.mxu0 0.0
    %1295 = vmatprep.subr.mxu0 0.0
    %1296 = vmatpush2.msra.mxu0 0.0
    %1297 = vmatprep.subr.mxu0 0.0
    %1298 = vmatpush2.msra.mxu0 0.0
    %1299 = vmatprep.subr.mxu0 0.0
    %1300 = vmatpush2.msra.mxu0 0.0
    %1301 = vmatprep.subr.mxu0 0.0
    %1302 = vmatpush2.msra.mxu0 0.0
    %1303 = vmatprep.subr.mxu0 0.0
    %1304 = vmatpush2.msra.mxu0 0.0
    %1305 = vmatprep.subr.mxu0 0.0
    %1306 = vmatpush2.msra.mxu0 0.0
    %1307 = vmatprep.subr.mxu0 0.0
    %1308 = vmatpush2.msra.mxu0 0.0
    %1309 = vmatprep.subr.mxu0 0.0
    %1310 = vmatpush2.msra.mxu0 0.0
    %1311 = vmatprep.subr.mxu0 0.0
    %1312 = vmatpush2.msra.mxu0 0.0
    %1313 = vmatprep.subr.mxu0 0.0
    %1314 = vmatpush2.msra.mxu0 0.0
    %1315 = vmatprep.subr.mxu0 0.0
    %1316 = vmatpush2.msra.mxu0 0.0
    %1317 = vmatprep.subr.mxu0 0.0
    %1318 = vmatpush2.msra.mxu0 0.0
    %1319 = vmatprep.subr.mxu0 0.0
    %1320 = vmatpush2.msra.mxu0 0.0
    %1321 = vmatprep.subr.mxu0 0.0
    %1322 = vmatpush2.msra.mxu0 0.0
    %1323 = vmatprep.mubr.f32.mxu0 0.0
    %1324 = vmatmul.mubr.f32.gmra.mxu0 %v1257
    %v1325 = vpop.f32.mrf.mxu0
    %v1326 = vadd.f32 %v1249, %v1325
    %v1327 = vpop.f32.mrf.mxu0
    %v1328 = vadd.f32 %v1253, %v1327
    %1329 = vdwg.mxu0
    %1331 = vrot.lane.b32.xlu0 %v1326, 96
    %v1332 = vpop.permute.xlu0 %1331
    %v1333 = vsel %vm290, %v1326, 0
    %v1335 = vsel %vm290, %v1332, 0
    %1337 = vmatprep.subr.mxu0 0.0
    %1338 = vmatpush1.xpose.msra.mxu0 0.0
    %1339 = vmatprep.subr.mxu0 0.0
    %1340 = vmatpush1.xpose.msra.mxu0 0.0
    %1341 = vmatprep.subr.mxu0 0.0
    %1342 = vmatpush1.xpose.msra.mxu0 0.0
    %1343 = vmatprep.subr.mxu0 0.0
    %1344 = vmatpush1.xpose.msra.mxu0 0.0
    %1345 = vmatprep.subr.mxu0 0.0
    %1346 = vmatpush1.xpose.msra.mxu0 0.0
    %1347 = vmatprep.subr.mxu0 0.0
    %1348 = vmatpush1.xpose.msra.mxu0 0.0
    %1349 = vmatprep.subr.mxu0 0.0
    %1350 = vmatpush1.xpose.msra.mxu0 0.0
    %1351 = vmatprep.subr.mxu0 0.0
    %1352 = vmatpush1.xpose.msra.mxu0 0.0
    %1353 = vmatprep.subr.mxu0 0.0
    %1354 = vmatpush1.xpose.msra.mxu0 0.0
    %1355 = vmatprep.subr.mxu0 0.0
    %1356 = vmatpush1.xpose.msra.mxu0 0.0
    %1357 = vmatprep.subr.mxu0 0.0
    %1358 = vmatpush1.xpose.msra.mxu0 0.0
    %1359 = vmatprep.subr.mxu0 0.0
    %1360 = vmatpush1.xpose.msra.mxu0 0.0
    %1361 = vmatprep.subr.mxu0 0.0
    %1362 = vmatpush1.xpose.msra.mxu0 0.0
    %1363 = vmatprep.subr.mxu0 0.0
    %1364 = vmatpush1.xpose.msra.mxu0 0.0
    %1365 = vmatprep.subr.mxu0 0.0
    %1366 = vmatpush1.xpose.msra.mxu0 0.0
    %1367 = vmatprep.subr.mxu0 0.0
    %1368 = vmatpush1.xpose.msra.mxu0 %v1335
    %1369 = vmatprep.subr.mxu0 0.0
    %1370 = vmatpush2.xpose.msra.mxu0 0.0
    %1371 = vmatprep.subr.mxu0 0.0
    %1372 = vmatpush2.xpose.msra.mxu0 0.0
    %1373 = vmatprep.subr.mxu0 0.0
    %1374 = vmatpush2.xpose.msra.mxu0 0.0
    %1375 = vmatprep.subr.mxu0 0.0
    %1376 = vmatpush2.xpose.msra.mxu0 0.0
    %1377 = vmatprep.subr.mxu0 0.0
    %1378 = vmatpush2.xpose.msra.mxu0 0.0
    %1379 = vmatprep.subr.mxu0 0.0
    %1380 = vmatpush2.xpose.msra.mxu0 0.0
    %1381 = vmatprep.subr.mxu0 0.0
    %1382 = vmatpush2.xpose.msra.mxu0 0.0
    %1383 = vmatprep.subr.mxu0 0.0
    %1384 = vmatpush2.xpose.msra.mxu0 0.0
    %1385 = vmatprep.subr.mxu0 0.0
    %1386 = vmatpush2.xpose.msra.mxu0 0.0
    %1387 = vmatprep.subr.mxu0 0.0
    %1388 = vmatpush2.xpose.msra.mxu0 0.0
    %1389 = vmatprep.subr.mxu0 0.0
    %1390 = vmatpush2.xpose.msra.mxu0 0.0
    %1391 = vmatprep.subr.mxu0 0.0
    %1392 = vmatpush2.xpose.msra.mxu0 0.0
    %1393 = vmatprep.subr.mxu0 0.0
    %1394 = vmatpush2.xpose.msra.mxu0 0.0
    %1395 = vmatprep.subr.mxu0 0.0
    %1396 = vmatpush2.xpose.msra.mxu0 0.0
    %1397 = vmatprep.subr.mxu0 0.0
    %1398 = vmatpush2.xpose.msra.mxu0 0.0
    %1399 = vmatprep.subr.mxu0 0.0
    %1400 = vmatpush2.xpose.msra.mxu0 0.0
    %1401 = vmatprep.mubr.f32.mxu0 0.0
    %1402 = vmatmul.mubr.f32.gmra.mxu0 %v1333
    %v1403 = vpop.f32.mrf.mxu0
    %v1404 = vadd.f32 0.0, %v1403
    %v1405 = vpop.f32.mrf.mxu0
    %1406 = vdwg.mxu0
    %v1407 = vmul.f32 %v1404, 0.35355338
    %v1408 = vsel %vm290, %v1407, -inf
    %1409 = vmax.xlane.f32.xlu0 %v1408
    %v1410 = vpop.xlane.xlu0 %1409
    %v1411 = vsub.f32 %v1407, %v1410
    %v1412 = vmul.f32 %v1411, 1.442695
    %v1413 = vpow.pop %v1412
    %v1414 = vsel %vm290, %v1413, 0.0
    %1415 = vadd.xlane.f32.xlu0 %v1414
    %v1416 = vpop.xlane.xlu0 %1415
    %v1417 = vrcp.pop %v1416
    %v1418 = vmul.f32 %v1413, %v1417
    %1419 = vrot.lane.b32.xlu0 %v1326, 120
    %v1420 = vpop.permute.xlu0 %1419
    %1421 = vrot.lane.b32.xlu0 %v1326, 88
    %v1422 = vpop.permute.xlu0 %1421
    %v1423 = vsel %vm290, %v1420, 0
    %v1425 = vsel %vm290, %v1422, 0
    %1427 = vmatprep.subr.mxu0 0.0
    %1428 = vmatpush1.xpose.msra.mxu0 0.0
    %1429 = vmatprep.subr.mxu0 0.0
    %1430 = vmatpush1.xpose.msra.mxu0 0.0
    %1431 = vmatprep.subr.mxu0 0.0
    %1432 = vmatpush1.xpose.msra.mxu0 0.0
    %1433 = vmatprep.subr.mxu0 0.0
    %1434 = vmatpush1.xpose.msra.mxu0 0.0
    %1435 = vmatprep.subr.mxu0 0.0
    %1436 = vmatpush1.xpose.msra.mxu0 0.0
    %1437 = vmatprep.subr.mxu0 0.0
    %1438 = vmatpush1.xpose.msra.mxu0 0.0
    %1439 = vmatprep.subr.mxu0 0.0
    %1440 = vmatpush1.xpose.msra.mxu0 0.0
    %1441 = vmatprep.subr.mxu0 0.0
    %1442 = vmatpush1.xpose.msra.mxu0 0.0
    %1443 = vmatprep.subr.mxu0 0.0
    %1444 = vmatpush1.xpose.msra.mxu0 0.0
    %1445 = vmatprep.subr.mxu0 0.0
    %1446 = vmatpush1.xpose.msra.mxu0 0.0
    %1447 = vmatprep.subr.mxu0 0.0
    %1448 = vmatpush1.xpose.msra.mxu0 0.0
    %1449 = vmatprep.subr.mxu0 0.0
    %1450 = vmatpush1.xpose.msra.mxu0 0.0
    %1451 = vmatprep.subr.mxu0 0.0
    %1452 = vmatpush1.xpose.msra.mxu0 0.0
    %1453 = vmatprep.subr.mxu0 0.0
    %1454 = vmatpush1.xpose.msra.mxu0 0.0
    %1455 = vmatprep.subr.mxu0 0.0
    %1456 = vmatpush1.xpose.msra.mxu0 0.0
    %1457 = vmatprep.subr.mxu0 0.0
    %1458 = vmatpush1.xpose.msra.mxu0 %v1425
    %1459 = vmatprep.subr.mxu0 0.0
    %1460 = vmatpush2.xpose.msra.mxu0 0.0
    %1461 = vmatprep.subr.mxu0 0.0
    %1462 = vmatpush2.xpose.msra.mxu0 0.0
    %1463 = vmatprep.subr.mxu0 0.0
    %1464 = vmatpush2.xpose.msra.mxu0 0.0
    %1465 = vmatprep.subr.mxu0 0.0
    %1466 = vmatpush2.xpose.msra.mxu0 0.0
    %1467 = vmatprep.subr.mxu0 0.0
    %1468 = vmatpush2.xpose.msra.mxu0 0.0
    %1469 = vmatprep.subr.mxu0 0.0
    %1470 = vmatpush2.xpose.msra.mxu0 0.0
    %1471 = vmatprep.subr.mxu0 0.0
    %1472 = vmatpush2.xpose.msra.mxu0 0.0
    %1473 = vmatprep.subr.mxu0 0.0
    %1474 = vmatpush2.xpose.msra.mxu0 0.0
    %1475 = vmatprep.subr.mxu0 0.0
    %1476 = vmatpush2.xpose.msra.mxu0 0.0
    %1477 = vmatprep.subr.mxu0 0.0
    %1478 = vmatpush2.xpose.msra.mxu0 0.0
    %1479 = vmatprep.subr.mxu0 0.0
    %1480 = vmatpush2.xpose.msra.mxu0 0.0
    %1481 = vmatprep.subr.mxu0 0.0
    %1482 = vmatpush2.xpose.msra.mxu0 0.0
    %1483 = vmatprep.subr.mxu0 0.0
    %1484 = vmatpush2.xpose.msra.mxu0 0.0
    %1485 = vmatprep.subr.mxu0 0.0
    %1486 = vmatpush2.xpose.msra.mxu0 0.0
    %1487 = vmatprep.subr.mxu0 0.0
    %1488 = vmatpush2.xpose.msra.mxu0 0.0
    %1489 = vmatprep.subr.mxu0 0.0
    %1490 = vmatpush2.xpose.msra.mxu0 0.0
    %1491 = vmatprep.mubr.f32.mxu0 0.0
    %1492 = vmatmul.mubr.f32.gmra.mxu0 %v1423
    %v1493 = vpop.f32.mrf.mxu0
    %v1494 = vadd.f32 0.0, %v1493
    %v1495 = vpop.f32.mrf.mxu0
    %1496 = vdwg.mxu0
    %v1497 = vmul.f32 %v1494, 0.35355338
    %v1498 = vsel %vm290, %v1497, -inf
    %1499 = vmax.xlane.f32.xlu0 %v1498
    %v1500 = vpop.xlane.xlu0 %1499
    %v1501 = vsub.f32 %v1497, %v1500
    %v1502 = vmul.f32 %v1501, 1.442695
    %v1503 = vpow.pop %v1502
    %v1504 = vsel %vm290, %v1503, 0.0
    %1505 = vadd.xlane.f32.xlu0 %v1504
    %v1506 = vpop.xlane.xlu0 %1505
    %v1507 = vrcp.pop %v1506
    %v1508 = vmul.f32 %v1503, %v1507
    %1509 = vrot.lane.b32.xlu0 %v1326, 112
    %v1510 = vpop.permute.xlu0 %1509
    %1511 = vrot.lane.b32.xlu0 %v1326, 80
    %v1512 = vpop.permute.xlu0 %1511
    %v1513 = vsel %vm290, %v1510, 0
    %v1515 = vsel %vm290, %v1512, 0
    %1517 = vmatprep.subr.mxu0 0.0
    %1518 = vmatpush1.xpose.msra.mxu0 0.0
    %1519 = vmatprep.subr.mxu0 0.0
    %1520 = vmatpush1.xpose.msra.mxu0 0.0
    %1521 = vmatprep.subr.mxu0 0.0
    %1522 = vmatpush1.xpose.msra.mxu0 0.0
    %1523 = vmatprep.subr.mxu0 0.0
    %1524 = vmatpush1.xpose.msra.mxu0 0.0
    %1525 = vmatprep.subr.mxu0 0.0
    %1526 = vmatpush1.xpose.msra.mxu0 0.0
    %1527 = vmatprep.subr.mxu0 0.0
    %1528 = vmatpush1.xpose.msra.mxu0 0.0
    %1529 = vmatprep.subr.mxu0 0.0
    %1530 = vmatpush1.xpose.msra.mxu0 0.0
    %1531 = vmatprep.subr.mxu0 0.0
    %1532 = vmatpush1.xpose.msra.mxu0 0.0
    %1533 = vmatprep.subr.mxu0 0.0
    %1534 = vmatpush1.xpose.msra.mxu0 0.0
    %1535 = vmatprep.subr.mxu0 0.0
    %1536 = vmatpush1.xpose.msra.mxu0 0.0
    %1537 = vmatprep.subr.mxu0 0.0
    %1538 = vmatpush1.xpose.msra.mxu0 0.0
    %1539 = vmatprep.subr.mxu0 0.0
    %1540 = vmatpush1.xpose.msra.mxu0 0.0
    %1541 = vmatprep.subr.mxu0 0.0
    %1542 = vmatpush1.xpose.msra.mxu0 0.0
    %1543 = vmatprep.subr.mxu0 0.0
    %1544 = vmatpush1.xpose.msra.mxu0 0.0
    %1545 = vmatprep.subr.mxu0 0.0
    %1546 = vmatpush1.xpose.msra.mxu0 0.0
    %1547 = vmatprep.subr.mxu0 0.0
    %1548 = vmatpush1.xpose.msra.mxu0 %v1515
    %1549 = vmatprep.subr.mxu0 0.0
    %1550 = vmatpush2.xpose.msra.mxu0 0.0
    %1551 = vmatprep.subr.mxu0 0.0
    %1552 = vmatpush2.xpose.msra.mxu0 0.0
    %1553 = vmatprep.subr.mxu0 0.0
    %1554 = vmatpush2.xpose.msra.mxu0 0.0
    %1555 = vmatprep.subr.mxu0 0.0
    %1556 = vmatpush2.xpose.msra.mxu0 0.0
    %1557 = vmatprep.subr.mxu0 0.0
    %1558 = vmatpush2.xpose.msra.mxu0 0.0
    %1559 = vmatprep.subr.mxu0 0.0
    %1560 = vmatpush2.xpose.msra.mxu0 0.0
    %1561 = vmatprep.subr.mxu0 0.0
    %1562 = vmatpush2.xpose.msra.mxu0 0.0
    %1563 = vmatprep.subr.mxu0 0.0
    %1564 = vmatpush2.xpose.msra.mxu0 0.0
    %1565 = vmatprep.subr.mxu0 0.0
    %1566 = vmatpush2.xpose.msra.mxu0 0.0
    %1567 = vmatprep.subr.mxu0 0.0
    %1568 = vmatpush2.xpose.msra.mxu0 0.0
    %1569 = vmatprep.subr.mxu0 0.0
    %1570 = vmatpush2.xpose.msra.mxu0 0.0
    %1571 = vmatprep.subr.mxu0 0.0
    %1572 = vmatpush2.xpose.msra.mxu0 0.0
    %1573 = vmatprep.subr.mxu0 0.0
    %1574 = vmatpush2.xpose.msra.mxu0 0.0
    %1575 = vmatprep.subr.mxu0 0.0
    %1576 = vmatpush2.xpose.msra.mxu0 0.0
    %1577 = vmatprep.subr.mxu0 0.0
    %1578 = vmatpush2.xpose.msra.mxu0 0.0
    %1579 = vmatprep.subr.mxu0 0.0
    %1580 = vmatpush2.xpose.msra.mxu0 0.0
    %1581 = vmatprep.mubr.f32.mxu0 0.0
    %1582 = vmatmul.mubr.f32.gmra.mxu0 %v1513
    %v1583 = vpop.f32.mrf.mxu0
    %v1584 = vadd.f32 0.0, %v1583
    %v1585 = vpop.f32.mrf.mxu0
    %1586 = vdwg.mxu0
    %v1587 = vmul.f32 %v1584, 0.35355338
    %v1588 = vsel %vm290, %v1587, -inf
    %1589 = vmax.xlane.f32.xlu0 %v1588
    %v1590 = vpop.xlane.xlu0 %1589
    %v1591 = vsub.f32 %v1587, %v1590
    %v1592 = vmul.f32 %v1591, 1.442695
    %v1593 = vpow.pop %v1592
    %v1594 = vsel %vm290, %v1593, 0.0
    %1595 = vadd.xlane.f32.xlu0 %v1594
    %v1596 = vpop.xlane.xlu0 %1595
    %v1597 = vrcp.pop %v1596
    %v1598 = vmul.f32 %v1593, %v1597
    %1599 = vrot.lane.b32.xlu0 %v1326, 104
    %v1600 = vpop.permute.xlu0 %1599
    %1601 = vrot.lane.b32.xlu0 %v1326, 72
    %v1602 = vpop.permute.xlu0 %1601
    %v1603 = vsel %vm290, %v1600, 0
    %v1605 = vsel %vm290, %v1602, 0
    %1607 = vmatprep.subr.mxu0 0.0
    %1608 = vmatpush1.xpose.msra.mxu0 0.0
    %1609 = vmatprep.subr.mxu0 0.0
    %1610 = vmatpush1.xpose.msra.mxu0 0.0
    %1611 = vmatprep.subr.mxu0 0.0
    %1612 = vmatpush1.xpose.msra.mxu0 0.0
    %1613 = vmatprep.subr.mxu0 0.0
    %1614 = vmatpush1.xpose.msra.mxu0 0.0
    %1615 = vmatprep.subr.mxu0 0.0
    %1616 = vmatpush1.xpose.msra.mxu0 0.0
    %1617 = vmatprep.subr.mxu0 0.0
    %1618 = vmatpush1.xpose.msra.mxu0 0.0
    %1619 = vmatprep.subr.mxu0 0.0
    %1620 = vmatpush1.xpose.msra.mxu0 0.0
    %1621 = vmatprep.subr.mxu0 0.0
    %1622 = vmatpush1.xpose.msra.mxu0 0.0
    %1623 = vmatprep.subr.mxu0 0.0
    %1624 = vmatpush1.xpose.msra.mxu0 0.0
    %1625 = vmatprep.subr.mxu0 0.0
    %1626 = vmatpush1.xpose.msra.mxu0 0.0
    %1627 = vmatprep.subr.mxu0 0.0
    %1628 = vmatpush1.xpose.msra.mxu0 0.0
    %1629 = vmatprep.subr.mxu0 0.0
    %1630 = vmatpush1.xpose.msra.mxu0 0.0
    %1631 = vmatprep.subr.mxu0 0.0
    %1632 = vmatpush1.xpose.msra.mxu0 0.0
    %1633 = vmatprep.subr.mxu0 0.0
    %1634 = vmatpush1.xpose.msra.mxu0 0.0
    %1635 = vmatprep.subr.mxu0 0.0
    %1636 = vmatpush1.xpose.msra.mxu0 0.0
    %1637 = vmatprep.subr.mxu0 0.0
    %1638 = vmatpush1.xpose.msra.mxu0 %v1605
    %1639 = vmatprep.subr.mxu0 0.0
    %1640 = vmatpush2.xpose.msra.mxu0 0.0
    %1641 = vmatprep.subr.mxu0 0.0
    %1642 = vmatpush2.xpose.msra.mxu0 0.0
    %1643 = vmatprep.subr.mxu0 0.0
    %1644 = vmatpush2.xpose.msra.mxu0 0.0
    %1645 = vmatprep.subr.mxu0 0.0
    %1646 = vmatpush2.xpose.msra.mxu0 0.0
    %1647 = vmatprep.subr.mxu0 0.0
    %1648 = vmatpush2.xpose.msra.mxu0 0.0
    %1649 = vmatprep.subr.mxu0 0.0
    %1650 = vmatpush2.xpose.msra.mxu0 0.0
    %1651 = vmatprep.subr.mxu0 0.0
    %1652 = vmatpush2.xpose.msra.mxu0 0.0
    %1653 = vmatprep.subr.mxu0 0.0
    %1654 = vmatpush2.xpose.msra.mxu0 0.0
    %1655 = vmatprep.subr.mxu0 0.0
    %1656 = vmatpush2.xpose.msra.mxu0 0.0
    %1657 = vmatprep.subr.mxu0 0.0
    %1658 = vmatpush2.xpose.msra.mxu0 0.0
    %1659 = vmatprep.subr.mxu0 0.0
    %1660 = vmatpush2.xpose.msra.mxu0 0.0
    %1661 = vmatprep.subr.mxu0 0.0
    %1662 = vmatpush2.xpose.msra.mxu0 0.0
    %1663 = vmatprep.subr.mxu0 0.0
    %1664 = vmatpush2.xpose.msra.mxu0 0.0
    %1665 = vmatprep.subr.mxu0 0.0
    %1666 = vmatpush2.xpose.msra.mxu0 0.0
    %1667 = vmatprep.subr.mxu0 0.0
    %1668 = vmatpush2.xpose.msra.mxu0 0.0
    %1669 = vmatprep.subr.mxu0 0.0
    %1670 = vmatpush2.xpose.msra.mxu0 0.0
    %1671 = vmatprep.mubr.f32.mxu0 0.0
    %1672 = vmatmul.mubr.f32.gmra.mxu0 %v1603
    %v1673 = vpop.f32.mrf.mxu0
    %v1674 = vadd.f32 0.0, %v1673
    %v1675 = vpop.f32.mrf.mxu0
    %1676 = vdwg.mxu0
    %v1677 = vmul.f32 %v1674, 0.35355338
    %v1678 = vsel %vm290, %v1677, -inf
    %1679 = vmax.xlane.f32.xlu0 %v1678
    %v1680 = vpop.xlane.xlu0 %1679
    %v1681 = vsub.f32 %v1677, %v1680
    %v1682 = vmul.f32 %v1681, 1.442695
    %v1683 = vpow.pop %v1682
    %v1684 = vsel %vm290, %v1683, 0.0
    %1685 = vadd.xlane.f32.xlu0 %v1684
    %v1686 = vpop.xlane.xlu0 %1685
    %v1687 = vrcp.pop %v1686
    %v1688 = vmul.f32 %v1683, %v1687
    %1690 = vrot.lane.b32.xlu0 %v1508, 8
    %v1691 = vpop.permute.xlu0 %1690
    %1694 = vrot.lane.b32.xlu0 %v1598, 16
    %v1695 = vpop.permute.xlu0 %1694
    %1698 = vrot.lane.b32.xlu0 %v1688, 24
    %v1699 = vpop.permute.xlu0 %1698
    %v1701 = vsel %vm290, %v1418, %v1691
    %v1702 = vsel %vm126, %v1701, %v1695
    %v1703 = vsel %vm661, %v1702, %v1699
    %1705 = vrot.lane.b32.xlu0 %v1328, 64
    %v1706 = vpop.permute.xlu0 %1705
    %1707 = vrot.lane.b32.xlu0 %v1328, 32
    %v1708 = vpop.permute.xlu0 %1707
    %1709 = vrot.lane.b32.xlu0 %v1326, 64
    %v1710 = vpop.permute.xlu0 %1709
    %1711 = vrot.lane.b32.xlu0 %v1332, 64
    %v1712 = vpop.permute.xlu0 %1711
    %1713 = vrot.lane.b32.xlu0 %v1706, 64
    %v1714 = vpop.permute.xlu0 %1713
    %1715 = vrot.lane.b32.xlu0 %v1708, 64
    %v1716 = vpop.permute.xlu0 %1715
    %v1722 = vsel %vm212, %v1703, 0
    %1724 = vmatprep.subr.mxu0 0.0
    %1725 = vmatpush1.msra.mxu0 0.0
    %1726 = vmatprep.subr.mxu0 0.0
    %1727 = vmatpush1.msra.mxu0 0.0
    %1728 = vmatprep.subr.mxu0 0.0
    %1729 = vmatpush1.msra.mxu0 0.0
    %1730 = vmatprep.subr.mxu0 0.0
    %1731 = vmatpush1.msra.mxu0 0.0
    %1732 = vmatprep.subr.mxu0 0.0
    %1733 = vmatpush1.msra.mxu0 0.0
    %1734 = vmatprep.subr.mxu0 0.0
    %1735 = vmatpush1.msra.mxu0 0.0
    %1736 = vmatprep.subr.mxu0 0.0
    %1737 = vmatpush1.msra.mxu0 0.0
    %1738 = vmatprep.subr.mxu0 0.0
    %1739 = vmatpush1.msra.mxu0 0.0
    %1740 = vmatprep.subr.mxu0 0.0
    %1741 = vmatpush1.msra.mxu0 0.0
    %1742 = vmatprep.subr.mxu0 0.0
    %1743 = vmatpush1.msra.mxu0 0.0
    %1744 = vmatprep.subr.mxu0 0.0
    %1745 = vmatpush1.msra.mxu0 0.0
    %1746 = vmatprep.subr.mxu0 0.0
    %1747 = vmatpush1.msra.mxu0 0.0
    %1748 = vmatprep.subr.mxu0 0.0
    %1749 = vmatpush1.msra.mxu0 %v1716
    %1750 = vmatprep.subr.mxu0 0.0
    %1751 = vmatpush1.msra.mxu0 %v1714
    %1752 = vmatprep.subr.mxu0 0.0
    %1753 = vmatpush1.msra.mxu0 %v1712
    %1754 = vmatprep.subr.mxu0 0.0
    %1755 = vmatpush1.msra.mxu0 %v1710
    %1756 = vmatprep.subr.mxu0 0.0
    %1757 = vmatpush2.msra.mxu0 0.0
    %1758 = vmatprep.subr.mxu0 0.0
    %1759 = vmatpush2.msra.mxu0 0.0
    %1760 = vmatprep.subr.mxu0 0.0
    %1761 = vmatpush2.msra.mxu0 0.0
    %1762 = vmatprep.subr.mxu0 0.0
    %1763 = vmatpush2.msra.mxu0 0.0
    %1764 = vmatprep.subr.mxu0 0.0
    %1765 = vmatpush2.msra.mxu0 0.0
    %1766 = vmatprep.subr.mxu0 0.0
    %1767 = vmatpush2.msra.mxu0 0.0
    %1768 = vmatprep.subr.mxu0 0.0
    %1769 = vmatpush2.msra.mxu0 0.0
    %1770 = vmatprep.subr.mxu0 0.0
    %1771 = vmatpush2.msra.mxu0 0.0
    %1772 = vmatprep.subr.mxu0 0.0
    %1773 = vmatpush2.msra.mxu0 0.0
    %1774 = vmatprep.subr.mxu0 0.0
    %1775 = vmatpush2.msra.mxu0 0.0
    %1776 = vmatprep.subr.mxu0 0.0
    %1777 = vmatpush2.msra.mxu0 0.0
    %1778 = vmatprep.subr.mxu0 0.0
    %1779 = vmatpush2.msra.mxu0 0.0
    %1780 = vmatprep.subr.mxu0 0.0
    %1781 = vmatpush2.msra.mxu0 0.0
    %1782 = vmatprep.subr.mxu0 0.0
    %1783 = vmatpush2.msra.mxu0 0.0
    %1784 = vmatprep.subr.mxu0 0.0
    %1785 = vmatpush2.msra.mxu0 0.0
    %1786 = vmatprep.subr.mxu0 0.0
    %1787 = vmatpush2.msra.mxu0 0.0
    %1788 = vmatprep.mubr.f32.mxu0 0.0
    %1789 = vmatmul.mubr.f32.gmra.mxu0 %v1722
    %v1790 = vpop.f32.mrf.mxu0
    %v1791 = vadd.f32 %v1169, %v1790
    %v1792 = vpop.f32.mrf.mxu0
    %1793 = vdwg.mxu0
    %v1794 = vadd.f32 %v1791, %v1244
    %v1795 = vsel %vm212, %v1794, 0.0
    %1796 = vadd.xlane.f32.xlu0 %v1795
    %v1797 = vpop.xlane.xlu0 %1796
    %v1798 = vmul.f32 %v1797, %v757
    %v1799 = vsub.f32 %v1794, %v1798
    %v1800 = vmul.f32 %v1799, %v1799
    %v1801 = vsel %vm212, %v1800, 0.0
    %1802 = vadd.xlane.f32.xlu0 %v1801
    %v1803 = vpop.xlane.xlu0 %1802
    %v1804 = vmul.f32 %v1803, %v757
    %v1805 = vadd.f32 %v1804, 1e-05
    %v1806 = vrsqrt.pop %v1805
    %v1807 = vmul.f32 %v1799, %v1806
    %v1808 = vmul.f32 %v1807, %v1170
    %v1809 = vadd.f32 %v1808, %v1171
    %v1810 = vmax.f32 %v1809, 0.0
    %v1812 = vsel %vm212, %v1810, 0
    %1814 = vmatprep.subr.mxu0 0.0
    %1815 = vmatpush1.msra.mxu0 0.0
    %1816 = vmatprep.subr.mxu0 0.0
    %1817 = vmatpush1.msra.mxu0 0.0
    %1818 = vmatprep.subr.mxu0 0.0
    %1819 = vmatpush1.msra.mxu0 0.0
    %1820 = vmatprep.subr.mxu0 0.0
    %1821 = vmatpush1.msra.mxu0 0.0
    %1822 = vmatprep.subr.mxu0 0.0
    %1823 = vmatpush1.msra.mxu0 0.0
    %1824 = vmatprep.subr.mxu0 0.0
    %1825 = vmatpush1.msra.mxu0 0.0
    %1826 = vmatprep.subr.mxu0 0.0
    %1827 = vmatpush1.msra.mxu0 0.0
    %1828 = vmatprep.subr.mxu0 0.0
    %1829 = vmatpush1.msra.mxu0 0.0
    %1830 = vmatprep.subr.mxu0 0.0
    %1831 = vmatpush1.msra.mxu0 0.0
    %1832 = vmatprep.subr.mxu0 0.0
    %1833 = vmatpush1.msra.mxu0 0.0
    %1834 = vmatprep.subr.mxu0 0.0
    %1835 = vmatpush1.msra.mxu0 0.0
    %1836 = vmatprep.subr.mxu0 0.0
    %1837 = vmatpush1.msra.mxu0 0.0
    %1838 = vmatprep.subr.mxu0 0.0
    %1839 = vmatpush1.msra.mxu0 %v1156
    %1840 = vmatprep.subr.mxu0 0.0
    %1841 = vmatpush1.msra.mxu0 %v1155
    %1842 = vmatprep.subr.mxu0 0.0
    %1843 = vmatpush1.msra.mxu0 %v1154
    %1844 = vmatprep.subr.mxu0 0.0
    %1845 = vmatpush1.msra.mxu0 %v1153
    %1846 = vmatprep.subr.mxu0 0.0
    %1847 = vmatpush2.msra.mxu0 0.0
    %1848 = vmatprep.subr.mxu0 0.0
    %1849 = vmatpush2.msra.mxu0 0.0
    %1850 = vmatprep.subr.mxu0 0.0
    %1851 = vmatpush2.msra.mxu0 0.0
    %1852 = vmatprep.subr.mxu0 0.0
    %1853 = vmatpush2.msra.mxu0 0.0
    %1854 = vmatprep.subr.mxu0 0.0
    %1855 = vmatpush2.msra.mxu0 0.0
    %1856 = vmatprep.subr.mxu0 0.0
    %1857 = vmatpush2.msra.mxu0 0.0
    %1858 = vmatprep.subr.mxu0 0.0
    %1859 = vmatpush2.msra.mxu0 0.0
    %1860 = vmatprep.subr.mxu0 0.0
    %1861 = vmatpush2.msra.mxu0 0.0
    %1862 = vmatprep.subr.mxu0 0.0
    %1863 = vmatpush2.msra.mxu0 0.0
    %1864 = vmatprep.subr.mxu0 0.0
    %1865 = vmatpush2.msra.mxu0 0.0
    %1866 = vmatprep.subr.mxu0 0.0
    %1867 = vmatpush2.msra.mxu0 0.0
    %1868 = vmatprep.subr.mxu0 0.0
    %1869 = vmatpush2.msra.mxu0 0.0
    %1870 = vmatprep.subr.mxu0 0.0
    %1871 = vmatpush2.msra.mxu0 0.0
    %1872 = vmatprep.subr.mxu0 0.0
    %1873 = vmatpush2.msra.mxu0 0.0
    %1874 = vmatprep.subr.mxu0 0.0
    %1875 = vmatpush2.msra.mxu0 0.0
    %1876 = vmatprep.subr.mxu0 0.0
    %1877 = vmatpush2.msra.mxu0 0.0
    %1878 = vmatprep.mubr.f32.mxu0 0.0
    %1879 = vmatmul.mubr.f32.gmra.mxu0 %v1812
    %v1880 = vpop.f32.mrf.mxu0
    %v1881 = vadd.f32 %v1172, %v1880
    %v1882 = vpop.f32.mrf.mxu0
    %1883 = vdwg.mxu0
    %v1884 = vmax.f32 %v1881, 0.0
    %v1886 = vsel %vm845, %v1884, 0
    %1888 = vmatprep.subr.mxu0 0.0
    %1889 = vmatpush1.msra.mxu0 0.0
    %1890 = vmatprep.subr.mxu0 0.0
    %1891 = vmatpush1.msra.mxu0 0.0
    %1892 = vmatprep.subr.mxu0 0.0
    %1893 = vmatpush1.msra.mxu0 0.0
    %1894 = vmatprep.subr.mxu0 0.0
    %1895 = vmatpush1.msra.mxu0 0.0
    %1896 = vmatprep.subr.mxu0 0.0
    %1897 = vmatpush1.msra.mxu0 0.0
    %1898 = vmatprep.subr.mxu0 0.0
    %1899 = vmatpush1.msra.mxu0 0.0
    %1900 = vmatprep.subr.mxu0 0.0
    %1901 = vmatpush1.msra.mxu0 0.0
    %1902 = vmatprep.subr.mxu0 0.0
    %1903 = vmatpush1.msra.mxu0 0.0
    %1904 = vmatprep.subr.mxu0 0.0
    %1905 = vmatpush1.msra.mxu0 %v1164
    %1906 = vmatprep.subr.mxu0 0.0
    %1907 = vmatpush1.msra.mxu0 %v1163
    %1908 = vmatprep.subr.mxu0 0.0
    %1909 = vmatpush1.msra.mxu0 %v1162
    %1910 = vmatprep.subr.mxu0 0.0
    %1911 = vmatpush1.msra.mxu0 %v1161
    %1912 = vmatprep.subr.mxu0 0.0
    %1913 = vmatpush1.msra.mxu0 %v1160
    %1914 = vmatprep.subr.mxu0 0.0
    %1915 = vmatpush1.msra.mxu0 %v1159
    %1916 = vmatprep.subr.mxu0 0.0
    %1917 = vmatpush1.msra.mxu0 %v1158
    %1918 = vmatprep.subr.mxu0 0.0
    %1919 = vmatpush1.msra.mxu0 %v1157
    %1920 = vmatprep.subr.mxu0 0.0
    %1921 = vmatpush2.msra.mxu0 0.0
    %1922 = vmatprep.subr.mxu0 0.0
    %1923 = vmatpush2.msra.mxu0 0.0
    %1924 = vmatprep.subr.mxu0 0.0
    %1925 = vmatpush2.msra.mxu0 0.0
    %1926 = vmatprep.subr.mxu0 0.0
    %1927 = vmatpush2.msra.mxu0 0.0
    %1928 = vmatprep.subr.mxu0 0.0
    %1929 = vmatpush2.msra.mxu0 0.0
    %1930 = vmatprep.subr.mxu0 0.0
    %1931 = vmatpush2.msra.mxu0 0.0
    %1932 = vmatprep.subr.mxu0 0.0
    %1933 = vmatpush2.msra.mxu0 0.0
    %1934 = vmatprep.subr.mxu0 0.0
    %1935 = vmatpush2.msra.mxu0 0.0
    %1936 = vmatprep.subr.mxu0 0.0
    %1937 = vmatpush2.msra.mxu0 0.0
    %1938 = vmatprep.subr.mxu0 0.0
    %1939 = vmatpush2.msra.mxu0 0.0
    %1940 = vmatprep.subr.mxu0 0.0
    %1941 = vmatpush2.msra.mxu0 0.0
    %1942 = vmatprep.subr.mxu0 0.0
    %1943 = vmatpush2.msra.mxu0 0.0
    %1944 = vmatprep.subr.mxu0 0.0
    %1945 = vmatpush2.msra.mxu0 0.0
    %1946 = vmatprep.subr.mxu0 0.0
    %1947 = vmatpush2.msra.mxu0 0.0
    %1948 = vmatprep.subr.mxu0 0.0
    %1949 = vmatpush2.msra.mxu0 0.0
    %1950 = vmatprep.subr.mxu0 0.0
    %1951 = vmatpush2.msra.mxu0 0.0
    %1952 = vmatprep.mubr.f32.mxu0 0.0
    %1953 = vmatmul.mubr.f32.gmra.mxu0 %v1886
    %v1954 = vpop.f32.mrf.mxu0
    %v1955 = vadd.f32 %v1173, %v1954
    %v1956 = vpop.f32.mrf.mxu0
    %1957 = vdwg.mxu0
    %v1958 = vmul.f32 %v1955, %v95
    %v1959 = vsel %vm926, %v1958, -1e+30
    %v1960 = vsel %vm126, %v1959, -inf
    %1961 = vmax.xlane.f32.xlu0 %v1960
    %v1962 = vpop.xlane.xlu0 %1961
    %v1963 = vsel %vm937, %v1958, -1e+30
    %v1964 = vsel %vm126, %v1963, -inf
    %1965 = vmax.xlane.f32.xlu0 %v1964
    %v1966 = vpop.xlane.xlu0 %1965
    %v1967 = vsel %vm948, %v1958, -1e+30
    %v1968 = vsel %vm126, %v1967, -inf
    %1969 = vmax.xlane.f32.xlu0 %v1968
    %v1970 = vpop.xlane.xlu0 %1969
    %v1971 = vmul.f32 %v1962, %v956
    %v1972 = vmul.f32 %v1966, %v961
    %v1973 = vadd.f32 %v1971, %v1972
    %v1974 = vmul.f32 %v1970, %v967
    %v1975 = vadd.f32 %v1973, %v1974
    %v1976 = vsub.f32 %v1958, %v1975
    %v1977 = vmul.f32 %v1976, %v974
    %v1978 = vmul.f32 %v1977, 1.442695
    %v1979 = vpow.pop %v1978
    %v1980 = vmul.f32 %v1979, %v974
    %v1982 = vsel %vm126, %v1980, 0
    %1984 = vmatprep.subr.mxu0 0.0
    %1985 = vmatpush1.xpose.msra.mxu0 0.0
    %1986 = vmatprep.subr.mxu0 0.0
    %1987 = vmatpush1.xpose.msra.mxu0 0.0
    %1988 = vmatprep.subr.mxu0 0.0
    %1989 = vmatpush1.xpose.msra.mxu0 0.0
    %1990 = vmatprep.subr.mxu0 0.0
    %1991 = vmatpush1.xpose.msra.mxu0 0.0
    %1992 = vmatprep.subr.mxu0 0.0
    %1993 = vmatpush1.xpose.msra.mxu0 0.0
    %1994 = vmatprep.subr.mxu0 0.0
    %1995 = vmatpush1.xpose.msra.mxu0 0.0
    %1996 = vmatprep.subr.mxu0 0.0
    %1997 = vmatpush1.xpose.msra.mxu0 0.0
    %1998 = vmatprep.subr.mxu0 0.0
    %1999 = vmatpush1.xpose.msra.mxu0 0.0
    %2000 = vmatprep.subr.mxu0 0.0
    %2001 = vmatpush1.xpose.msra.mxu0 0.0
    %2002 = vmatprep.subr.mxu0 0.0
    %2003 = vmatpush1.xpose.msra.mxu0 0.0
    %2004 = vmatprep.subr.mxu0 0.0
    %2005 = vmatpush1.xpose.msra.mxu0 0.0
    %2006 = vmatprep.subr.mxu0 0.0
    %2007 = vmatpush1.xpose.msra.mxu0 0.0
    %2008 = vmatprep.subr.mxu0 0.0
    %2009 = vmatpush1.xpose.msra.mxu0 0.0
    %2010 = vmatprep.subr.mxu0 0.0
    %2011 = vmatpush1.xpose.msra.mxu0 0.0
    %2012 = vmatprep.subr.mxu0 0.0
    %2013 = vmatpush1.xpose.msra.mxu0 0.0
    %2014 = vmatprep.subr.mxu0 0.0
    %2015 = vmatpush1.xpose.msra.mxu0 %v983
    %2016 = vmatprep.subr.mxu0 0.0
    %2017 = vmatpush2.xpose.msra.mxu0 0.0
    %2018 = vmatprep.subr.mxu0 0.0
    %2019 = vmatpush2.xpose.msra.mxu0 0.0
    %2020 = vmatprep.subr.mxu0 0.0
    %2021 = vmatpush2.xpose.msra.mxu0 0.0
    %2022 = vmatprep.subr.mxu0 0.0
    %2023 = vmatpush2.xpose.msra.mxu0 0.0
    %2024 = vmatprep.subr.mxu0 0.0
    %2025 = vmatpush2.xpose.msra.mxu0 0.0
    %2026 = vmatprep.subr.mxu0 0.0
    %2027 = vmatpush2.xpose.msra.mxu0 0.0
    %2028 = vmatprep.subr.mxu0 0.0
    %2029 = vmatpush2.xpose.msra.mxu0 0.0
    %2030 = vmatprep.subr.mxu0 0.0
    %2031 = vmatpush2.xpose.msra.mxu0 0.0
    %2032 = vmatprep.subr.mxu0 0.0
    %2033 = vmatpush2.xpose.msra.mxu0 0.0
    %2034 = vmatprep.subr.mxu0 0.0
    %2035 = vmatpush2.xpose.msra.mxu0 0.0
    %2036 = vmatprep.subr.mxu0 0.0
    %2037 = vmatpush2.xpose.msra.mxu0 0.0
    %2038 = vmatprep.subr.mxu0 0.0
    %2039 = vmatpush2.xpose.msra.mxu0 0.0
    %2040 = vmatprep.subr.mxu0 0.0
    %2041 = vmatpush2.xpose.msra.mxu0 0.0
    %2042 = vmatprep.subr.mxu0 0.0
    %2043 = vmatpush2.xpose.msra.mxu0 0.0
    %2044 = vmatprep.subr.mxu0 0.0
    %2045 = vmatpush2.xpose.msra.mxu0 0.0
    %2046 = vmatprep.subr.mxu0 0.0
    %2047 = vmatpush2.xpose.msra.mxu0 0.0
    %2048 = vmatprep.mubr.f32.mxu0 0.0
    %2049 = vmatmul.mubr.f32.gmra.mxu0 %v1982
    %v2050 = vpop.f32.mrf.mxu0
    %v2051 = vadd.f32 0.0, %v2050
    %v2052 = vpop.f32.mrf.mxu0
    %2053 = vdwg.mxu0
    %v2055 = vsel %vm290, %v2051, 0
    %2057 = vmatprep.subr.mxu0 0.0
    %2058 = vmatpush1.msra.mxu0 0.0
    %2059 = vmatprep.subr.mxu0 0.0
    %2060 = vmatpush1.msra.mxu0 0.0
    %2061 = vmatprep.subr.mxu0 0.0
    %2062 = vmatpush1.msra.mxu0 0.0
    %2063 = vmatprep.subr.mxu0 0.0
    %2064 = vmatpush1.msra.mxu0 0.0
    %2065 = vmatprep.subr.mxu0 0.0
    %2066 = vmatpush1.msra.mxu0 0.0
    %2067 = vmatprep.subr.mxu0 0.0
    %2068 = vmatpush1.msra.mxu0 0.0
    %2069 = vmatprep.subr.mxu0 0.0
    %2070 = vmatpush1.msra.mxu0 0.0
    %2071 = vmatprep.subr.mxu0 0.0
    %2072 = vmatpush1.msra.mxu0 0.0
    %2073 = vmatprep.subr.mxu0 0.0
    %2074 = vmatpush1.msra.mxu0 0.0
    %2075 = vmatprep.subr.mxu0 0.0
    %2076 = vmatpush1.msra.mxu0 0.0
    %2077 = vmatprep.subr.mxu0 0.0
    %2078 = vmatpush1.msra.mxu0 0.0
    %2079 = vmatprep.subr.mxu0 0.0
    %2080 = vmatpush1.msra.mxu0 0.0
    %2081 = vmatprep.subr.mxu0 0.0
    %2082 = vmatpush1.msra.mxu0 0.0
    %2083 = vmatprep.subr.mxu0 0.0
    %2084 = vmatpush1.msra.mxu0 0.0
    %2085 = vmatprep.subr.mxu0 0.0
    %2086 = vmatpush1.msra.mxu0 0.0
    %2087 = vmatprep.subr.mxu0 0.0
    %2088 = vmatpush1.msra.mxu0 %v77
    %2089 = vmatprep.subr.mxu0 0.0
    %2090 = vmatpush2.msra.mxu0 0.0
    %2091 = vmatprep.subr.mxu0 0.0
    %2092 = vmatpush2.msra.mxu0 0.0
    %2093 = vmatprep.subr.mxu0 0.0
    %2094 = vmatpush2.msra.mxu0 0.0
    %2095 = vmatprep.subr.mxu0 0.0
    %2096 = vmatpush2.msra.mxu0 0.0
    %2097 = vmatprep.subr.mxu0 0.0
    %2098 = vmatpush2.msra.mxu0 0.0
    %2099 = vmatprep.subr.mxu0 0.0
    %2100 = vmatpush2.msra.mxu0 0.0
    %2101 = vmatprep.subr.mxu0 0.0
    %2102 = vmatpush2.msra.mxu0 0.0
    %2103 = vmatprep.subr.mxu0 0.0
    %2104 = vmatpush2.msra.mxu0 0.0
    %2105 = vmatprep.subr.mxu0 0.0
    %2106 = vmatpush2.msra.mxu0 0.0
    %2107 = vmatprep.subr.mxu0 0.0
    %2108 = vmatpush2.msra.mxu0 0.0
    %2109 = vmatprep.subr.mxu0 0.0
    %2110 = vmatpush2.msra.mxu0 0.0
    %2111 = vmatprep.subr.mxu0 0.0
    %2112 = vmatpush2.msra.mxu0 0.0
    %2113 = vmatprep.subr.mxu0 0.0
    %2114 = vmatpush2.msra.mxu0 0.0
    %2115 = vmatprep.subr.mxu0 0.0
    %2116 = vmatpush2.msra.mxu0 0.0
    %2117 = vmatprep.subr.mxu0 0.0
    %2118 = vmatpush2.msra.mxu0 0.0
    %2119 = vmatprep.subr.mxu0 0.0
    %2120 = vmatpush2.msra.mxu0 0.0
    %2121 = vmatprep.mubr.f32.mxu0 0.0
    %2122 = vmatmul.mubr.f32.gmra.mxu0 %v2055
    %v2123 = vpop.f32.mrf.mxu0
    %v2124 = vadd.f32 %v1058, %v2123
    %v2125 = vpop.f32.mrf.mxu0
    %2126 = vdwg.mxu0
    %v2127 = vrcp.pop %v2124
    %v2128 = vmul.f32 %v1980, %v2127
    %v2129 = vmul.f32 %v1958, %v1058
    %v2130 = vsub.f32 0.0, %v2129
    %v2131 = vmul.f32 %v2130, 1.442695
    %v2132 = vpow.pop %v2131
    %v2133 = vadd.f32 %v2132, 1.0
    %v2134 = vrcp.pop %v2133
    %v2135 = vmul.f32 %v2134, %v1058
    %v2136 = vadd.f32 %v2128, %v2135
    %s2137 = scalar_lea.vmem [#allocation4], 576
    %v2138 = vld [vmem:[%s2137] sm:$0xff]
    %v2139 = vld [vmem:[%s2137 + $0x10] sm:$0xff]
    %v2140 = vld [vmem:[%s2137 + $0x20] sm:$0xff]
    %v2141 = vld [vmem:[%s2137 + $0x28] sm:$0xff]
    %v2142 = vld [vmem:[%s2137 + $0x30] sm:$0xff]
    %v2143 = vld [vmem:[%s2137 + $0x38] sm:$0xff]
    %v2144 = vld [vmem:[%s2137 + $0x40] sm:$0xff]
    %v2145 = vld [vmem:[%s2137 + $0x48] sm:$0xff]
    %v2146 = vld [vmem:[%s2137 + $0x50] sm:$0xff]
    %v2147 = vld [vmem:[%s2137 + $0x58] sm:$0xff]
    %v2148 = vld [vmem:[%s2137 + $0x60] sm:$0xff]
    %v2149 = vld [vmem:[%s2137 + $0x70] sm:$0xff]
    %v2150 = vld [vmem:[%s2137 + $0x80] sm:$0xff]
    %v2151 = vld [vmem:[%s2137 + $0x90] sm:$0xff]
    %v2152 = vld [vmem:[%s2137 + $0xa0] sm:$0xff]
    %v2153 = vld [vmem:[%s2137 + $0xb0] sm:$0xff]
    %v2154 = vld [vmem:[%s2137 + $0xc0] sm:$0xff]
    %v2155 = vld [vmem:[%s2137 + $0xd0] sm:$0xff]
    %v2156 = vld [vmem:[%s2137 + $0xe0] sm:$0xff]
    %v2157 = vld [vmem:[%s2137 + $0xf0] sm:$0xff]
    %v2158 = vld [vmem:[%s2137 + $0x100] sm:$0xff]
    %v2159 = vld [vmem:[%s2137 + $0x110] sm:$0xff]
    %s2160 = scalar_lea.vmem [#allocation6], 32
    %v2161 = vld [vmem:[%s2160] ss:$0 sm:$0xff]
    %s2162 = scalar_lea.vmem %s2160, 1 [#allocation6]
    %v2163 = vld [vmem:[%s2162] ss:$8 sm:$0x3]
    %v2164 = vld [vmem:[%s2160 + $0x2] ss:$0 sm:$0xff]
    %v2165 = vld [vmem:[%s2160 + $0x3] ss:$0 sm:$0xff]
    %v2166 = vld [vmem:[%s2160 + $0x4] ss:$0 sm:$0xff]
    %v2167 = vld [vmem:[%s2160 + $0x5] ss:$0 sm:$0xff]
    %v2168 = vld [vmem:[%s2160 + $0x6] ss:$0 sm:$0xff]
    %2169 = vmatprep.subr.mxu0 0.0
    %2170 = vmatpush1.msra.mxu0 0.0
    %2171 = vmatprep.subr.mxu0 0.0
    %2172 = vmatpush1.msra.mxu0 0.0
    %2173 = vmatprep.subr.mxu0 0.0
    %2174 = vmatpush1.msra.mxu0 0.0
    %2175 = vmatprep.subr.mxu0 0.0
    %2176 = vmatpush1.msra.mxu0 0.0
    %2177 = vmatprep.subr.mxu0 0.0
    %2178 = vmatpush1.msra.mxu0 0.0
    %2179 = vmatprep.subr.mxu0 0.0
    %2180 = vmatpush1.msra.mxu0 0.0
    %2181 = vmatprep.subr.mxu0 0.0
    %2182 = vmatpush1.msra.mxu0 0.0
    %2183 = vmatprep.subr.mxu0 0.0
    %2184 = vmatpush1.msra.mxu0 0.0
    %2185 = vmatprep.subr.mxu0 0.0
    %2186 = vmatpush1.msra.mxu0 0.0
    %2187 = vmatprep.subr.mxu0 0.0
    %2188 = vmatpush1.msra.mxu0 0.0
    %2189 = vmatprep.subr.mxu0 0.0
    %2190 = vmatpush1.msra.mxu0 0.0
    %2191 = vmatprep.subr.mxu0 0.0
    %2192 = vmatpush1.msra.mxu0 0.0
    %2193 = vmatprep.subr.mxu0 0.0
    %2194 = vmatpush1.msra.mxu0 0.0
    %2195 = vmatprep.subr.mxu0 0.0
    %2196 = vmatpush1.msra.mxu0 0.0
    %2197 = vmatprep.subr.mxu0 0.0
    %2198 = vmatpush1.msra.mxu0 %v2139
    %2199 = vmatprep.subr.mxu0 0.0
    %2200 = vmatpush1.msra.mxu0 %v2138
    %2201 = vmatprep.subr.mxu0 0.0
    %2202 = vmatpush2.msra.mxu0 0.0
    %2203 = vmatprep.subr.mxu0 0.0
    %2204 = vmatpush2.msra.mxu0 0.0
    %2205 = vmatprep.subr.mxu0 0.0
    %2206 = vmatpush2.msra.mxu0 0.0
    %2207 = vmatprep.subr.mxu0 0.0
    %2208 = vmatpush2.msra.mxu0 0.0
    %2209 = vmatprep.subr.mxu0 0.0
    %2210 = vmatpush2.msra.mxu0 0.0
    %2211 = vmatprep.subr.mxu0 0.0
    %2212 = vmatpush2.msra.mxu0 0.0
    %2213 = vmatprep.subr.mxu0 0.0
    %2214 = vmatpush2.msra.mxu0 0.0
    %2215 = vmatprep.subr.mxu0 0.0
    %2216 = vmatpush2.msra.mxu0 0.0
    %2217 = vmatprep.subr.mxu0 0.0
    %2218 = vmatpush2.msra.mxu0 0.0
    %2219 = vmatprep.subr.mxu0 0.0
    %2220 = vmatpush2.msra.mxu0 0.0
    %2221 = vmatprep.subr.mxu0 0.0
    %2222 = vmatpush2.msra.mxu0 0.0
    %2223 = vmatprep.subr.mxu0 0.0
    %2224 = vmatpush2.msra.mxu0 0.0
    %2225 = vmatprep.subr.mxu0 0.0
    %2226 = vmatpush2.msra.mxu0 0.0
    %2227 = vmatprep.subr.mxu0 0.0
    %2228 = vmatpush2.msra.mxu0 0.0
    %2229 = vmatprep.subr.mxu0 0.0
    %2230 = vmatpush2.msra.mxu0 0.0
    %2231 = vmatprep.subr.mxu0 0.0
    %2232 = vmatpush2.msra.mxu0 0.0
    %2233 = vmatprep.mubr.f32.mxu0 0.0
    %2234 = vmatmul.mubr.f32.gmra.mxu0 %v128
    %v2235 = vpop.f32.mrf.mxu0
    %v2236 = vadd.f32 %v2161, %v2235
    %v2237 = vpop.f32.mrf.mxu0
    %2238 = vdwg.mxu0
    %v2239 = vmax.f32 %v2236, 0.0
    %v2241 = vlaneseq
    %v2242 = vshrl.u32 %v2241, 7
    %v2243 = vsub.s32 0, %v2242
    %v2244 = vrot.slane %v2163, %v2243
    %v2245 = vlaneseq
    %v2246 = vshrl.u32 %v2245, 7
    %v2247 = vsub.s32 1, %v2246
    %v2248 = vrot.slane %v2163, %v2247
    %v2252 = vsel %vm212, %v2239, 0
    %2254 = vmatprep.subr.mxu0 0.0
    %2255 = vmatpush1.msra.mxu0 0.0
    %2256 = vmatprep.subr.mxu0 0.0
    %2257 = vmatpush1.msra.mxu0 0.0
    %2258 = vmatprep.subr.mxu0 0.0
    %2259 = vmatpush1.msra.mxu0 0.0
    %2260 = vmatprep.subr.mxu0 0.0
    %2261 = vmatpush1.msra.mxu0 0.0
    %2262 = vmatprep.subr.mxu0 0.0
    %2263 = vmatpush1.msra.mxu0 0.0
    %2264 = vmatprep.subr.mxu0 0.0
    %2265 = vmatpush1.msra.mxu0 0.0
    %2266 = vmatprep.subr.mxu0 0.0
    %2267 = vmatpush1.msra.mxu0 0.0
    %2268 = vmatprep.subr.mxu0 0.0
    %2269 = vmatpush1.msra.mxu0 0.0
    %2270 = vmatprep.subr.mxu0 0.0
    %2271 = vmatpush1.msra.mxu0 0.0
    %2272 = vmatprep.subr.mxu0 0.0
    %2273 = vmatpush1.msra.mxu0 0.0
    %2274 = vmatprep.subr.mxu0 0.0
    %2275 = vmatpush1.msra.mxu0 0.0
    %2276 = vmatprep.subr.mxu0 0.0
    %2277 = vmatpush1.msra.mxu0 0.0
    %2278 = vmatprep.subr.mxu0 %v2147
    %2279 = vmatpush1.msra.mxu0 %v2146
    %2280 = vmatprep.subr.mxu0 %v2145
    %2281 = vmatpush1.msra.mxu0 %v2144
    %2282 = vmatprep.subr.mxu0 %v2143
    %2283 = vmatpush1.msra.mxu0 %v2142
    %2284 = vmatprep.subr.mxu0 %v2141
    %2285 = vmatpush1.msra.mxu0 %v2140
    %2286 = vmatprep.subr.mxu0 0.0
    %2287 = vmatpush2.msra.mxu0 0.0
    %2288 = vmatprep.subr.mxu0 0.0
    %2289 = vmatpush2.msra.mxu0 0.0
    %2290 = vmatprep.subr.mxu0 0.0
    %2291 = vmatpush2.msra.mxu0 0.0
    %2292 = vmatprep.subr.mxu0 0.0
    %2293 = vmatpush2.msra.mxu0 0.0
    %2294 = vmatprep.subr.mxu0 0.0
    %2295 = vmatpush2.msra.mxu0 0.0
    %2296 = vmatprep.subr.mxu0 0.0
    %2297 = vmatpush2.msra.mxu0 0.0
    %2298 = vmatprep.subr.mxu0 0.0
    %2299 = vmatpush2.msra.mxu0 0.0
    %2300 = vmatprep.subr.mxu0 0.0
    %2301 = vmatpush2.msra.mxu0 0.0
    %2302 = vmatprep.subr.mxu0 0.0
    %2303 = vmatpush2.msra.mxu0 0.0
    %2304 = vmatprep.subr.mxu0 0.0
    %2305 = vmatpush2.msra.mxu0 0.0
    %2306 = vmatprep.subr.mxu0 0.0
    %2307 = vmatpush2.msra.mxu0 0.0
    %2308 = vmatprep.subr.mxu0 0.0
    %2309 = vmatpush2.msra.mxu0 0.0
    %2310 = vmatprep.subr.mxu0 0.0
    %2311 = vmatpush2.msra.mxu0 0.0
    %2312 = vmatprep.subr.mxu0 0.0
    %2313 = vmatpush2.msra.mxu0 0.0
    %2314 = vmatprep.subr.mxu0 0.0
    %2315 = vmatpush2.msra.mxu0 0.0
    %2316 = vmatprep.subr.mxu0 0.0
    %2317 = vmatpush2.msra.mxu0 0.0
    %2318 = vmatprep.mubr.f32.mxu0 0.0
    %2319 = vmatmul.mubr.f32.gmra.mxu0 %v2252
    %v2320 = vpop.f32.mrf.mxu0
    %v2321 = vadd.f32 %v2244, %v2320
    %v2322 = vpop.f32.mrf.mxu0
    %v2323 = vadd.f32 %v2248, %v2322
    %2324 = vdwg.mxu0
    %2326 = vrot.lane.b32.xlu0 %v2321, 96
    %v2327 = vpop.permute.xlu0 %2326
    %v2328 = vsel %vm290, %v2321, 0
    %v2330 = vsel %vm290, %v2327, 0
    %2332 = vmatprep.subr.mxu0 0.0
    %2333 = vmatpush1.xpose.msra.mxu0 0.0
    %2334 = vmatprep.subr.mxu0 0.0
    %2335 = vmatpush1.xpose.msra.mxu0 0.0
    %2336 = vmatprep.subr.mxu0 0.0
    %2337 = vmatpush1.xpose.msra.mxu0 0.0
    %2338 = vmatprep.subr.mxu0 0.0
    %2339 = vmatpush1.xpose.msra.mxu0 0.0
    %2340 = vmatprep.subr.mxu0 0.0
    %2341 = vmatpush1.xpose.msra.mxu0 0.0
    %2342 = vmatprep.subr.mxu0 0.0
    %2343 = vmatpush1.xpose.msra.mxu0 0.0
    %2344 = vmatprep.subr.mxu0 0.0
    %2345 = vmatpush1.xpose.msra.mxu0 0.0
    %2346 = vmatprep.subr.mxu0 0.0
    %2347 = vmatpush1.xpose.msra.mxu0 0.0
    %2348 = vmatprep.subr.mxu0 0.0
    %2349 = vmatpush1.xpose.msra.mxu0 0.0
    %2350 = vmatprep.subr.mxu0 0.0
    %2351 = vmatpush1.xpose.msra.mxu0 0.0
    %2352 = vmatprep.subr.mxu0 0.0
    %2353 = vmatpush1.xpose.msra.mxu0 0.0
    %2354 = vmatprep.subr.mxu0 0.0
    %2355 = vmatpush1.xpose.msra.mxu0 0.0
    %2356 = vmatprep.subr.mxu0 0.0
    %2357 = vmatpush1.xpose.msra.mxu0 0.0
    %2358 = vmatprep.subr.mxu0 0.0
    %2359 = vmatpush1.xpose.msra.mxu0 0.0
    %2360 = vmatprep.subr.mxu0 0.0
    %2361 = vmatpush1.xpose.msra.mxu0 0.0
    %2362 = vmatprep.subr.mxu0 0.0
    %2363 = vmatpush1.xpose.msra.mxu0 %v2330
    %2364 = vmatprep.subr.mxu0 0.0
    %2365 = vmatpush2.xpose.msra.mxu0 0.0
    %2366 = vmatprep.subr.mxu0 0.0
    %2367 = vmatpush2.xpose.msra.mxu0 0.0
    %2368 = vmatprep.subr.mxu0 0.0
    %2369 = vmatpush2.xpose.msra.mxu0 0.0
    %2370 = vmatprep.subr.mxu0 0.0
    %2371 = vmatpush2.xpose.msra.mxu0 0.0
    %2372 = vmatprep.subr.mxu0 0.0
    %2373 = vmatpush2.xpose.msra.mxu0 0.0
    %2374 = vmatprep.subr.mxu0 0.0
    %2375 = vmatpush2.xpose.msra.mxu0 0.0
    %2376 = vmatprep.subr.mxu0 0.0
    %2377 = vmatpush2.xpose.msra.mxu0 0.0
    %2378 = vmatprep.subr.mxu0 0.0
    %2379 = vmatpush2.xpose.msra.mxu0 0.0
    %2380 = vmatprep.subr.mxu0 0.0
    %2381 = vmatpush2.xpose.msra.mxu0 0.0
    %2382 = vmatprep.subr.mxu0 0.0
    %2383 = vmatpush2.xpose.msra.mxu0 0.0
    %2384 = vmatprep.subr.mxu0 0.0
    %2385 = vmatpush2.xpose.msra.mxu0 0.0
    %2386 = vmatprep.subr.mxu0 0.0
    %2387 = vmatpush2.xpose.msra.mxu0 0.0
    %2388 = vmatprep.subr.mxu0 0.0
    %2389 = vmatpush2.xpose.msra.mxu0 0.0
    %2390 = vmatprep.subr.mxu0 0.0
    %2391 = vmatpush2.xpose.msra.mxu0 0.0
    %2392 = vmatprep.subr.mxu0 0.0
    %2393 = vmatpush2.xpose.msra.mxu0 0.0
    %2394 = vmatprep.subr.mxu0 0.0
    %2395 = vmatpush2.xpose.msra.mxu0 0.0
    %2396 = vmatprep.mubr.f32.mxu0 0.0
    %2397 = vmatmul.mubr.f32.gmra.mxu0 %v2328
    %v2398 = vpop.f32.mrf.mxu0
    %v2399 = vadd.f32 0.0, %v2398
    %v2400 = vpop.f32.mrf.mxu0
    %2401 = vdwg.mxu0
    %v2402 = vmul.f32 %v2399, 0.35355338
    %v2403 = vsel %vm290, %v2402, -inf
    %2404 = vmax.xlane.f32.xlu0 %v2403
    %v2405 = vpop.xlane.xlu0 %2404
    %v2406 = vsub.f32 %v2402, %v2405
    %v2407 = vmul.f32 %v2406, 1.442695
    %v2408 = vpow.pop %v2407
    %v2409 = vsel %vm290, %v2408, 0.0
    %2410 = vadd.xlane.f32.xlu0 %v2409
    %v2411 = vpop.xlane.xlu0 %2410
    %v2412 = vrcp.pop %v2411
    %v2413 = vmul.f32 %v2408, %v2412
    %2414 = vrot.lane.b32.xlu0 %v2321, 120
    %v2415 = vpop.permute.xlu0 %2414
    %2416 = vrot.lane.b32.xlu0 %v2321, 88
    %v2417 = vpop.permute.xlu0 %2416
    %v2418 = vsel %vm290, %v2415, 0
    %v2420 = vsel %vm290, %v2417, 0
    %2422 = vmatprep.subr.mxu0 0.0
    %2423 = vmatpush1.xpose.msra.mxu0 0.0
    %2424 = vmatprep.subr.mxu0 0.0
    %2425 = vmatpush1.xpose.msra.mxu0 0.0
    %2426 = vmatprep.subr.mxu0 0.0
    %2427 = vmatpush1.xpose.msra.mxu0 0.0
    %2428 = vmatprep.subr.mxu0 0.0
    %2429 = vmatpush1.xpose.msra.mxu0 0.0
    %2430 = vmatprep.subr.mxu0 0.0
    %2431 = vmatpush1.xpose.msra.mxu0 0.0
    %2432 = vmatprep.subr.mxu0 0.0
    %2433 = vmatpush1.xpose.msra.mxu0 0.0
    %2434 = vmatprep.subr.mxu0 0.0
    %2435 = vmatpush1.xpose.msra.mxu0 0.0
    %2436 = vmatprep.subr.mxu0 0.0
    %2437 = vmatpush1.xpose.msra.mxu0 0.0
    %2438 = vmatprep.subr.mxu0 0.0
    %2439 = vmatpush1.xpose.msra.mxu0 0.0
    %2440 = vmatprep.subr.mxu0 0.0
    %2441 = vmatpush1.xpose.msra.mxu0 0.0
    %2442 = vmatprep.subr.mxu0 0.0
    %2443 = vmatpush1.xpose.msra.mxu0 0.0
    %2444 = vmatprep.subr.mxu0 0.0
    %2445 = vmatpush1.xpose.msra.mxu0 0.0
    %2446 = vmatprep.subr.mxu0 0.0
    %2447 = vmatpush1.xpose.msra.mxu0 0.0
    %2448 = vmatprep.subr.mxu0 0.0
    %2449 = vmatpush1.xpose.msra.mxu0 0.0
    %2450 = vmatprep.subr.mxu0 0.0
    %2451 = vmatpush1.xpose.msra.mxu0 0.0
    %2452 = vmatprep.subr.mxu0 0.0
    %2453 = vmatpush1.xpose.msra.mxu0 %v2420
    %2454 = vmatprep.subr.mxu0 0.0
    %2455 = vmatpush2.xpose.msra.mxu0 0.0
    %2456 = vmatprep.subr.mxu0 0.0
    %2457 = vmatpush2.xpose.msra.mxu0 0.0
    %2458 = vmatprep.subr.mxu0 0.0
    %2459 = vmatpush2.xpose.msra.mxu0 0.0
    %2460 = vmatprep.subr.mxu0 0.0
    %2461 = vmatpush2.xpose.msra.mxu0 0.0
    %2462 = vmatprep.subr.mxu0 0.0
    %2463 = vmatpush2.xpose.msra.mxu0 0.0
    %2464 = vmatprep.subr.mxu0 0.0
    %2465 = vmatpush2.xpose.msra.mxu0 0.0
    %2466 = vmatprep.subr.mxu0 0.0
    %2467 = vmatpush2.xpose.msra.mxu0 0.0
    %2468 = vmatprep.subr.mxu0 0.0
    %2469 = vmatpush2.xpose.msra.mxu0 0.0
    %2470 = vmatprep.subr.mxu0 0.0
    %2471 = vmatpush2.xpose.msra.mxu0 0.0
    %2472 = vmatprep.subr.mxu0 0.0
    %2473 = vmatpush2.xpose.msra.mxu0 0.0
    %2474 = vmatprep.subr.mxu0 0.0
    %2475 = vmatpush2.xpose.msra.mxu0 0.0
    %2476 = vmatprep.subr.mxu0 0.0
    %2477 = vmatpush2.xpose.msra.mxu0 0.0
    %2478 = vmatprep.subr.mxu0 0.0
    %2479 = vmatpush2.xpose.msra.mxu0 0.0
    %2480 = vmatprep.subr.mxu0 0.0
    %2481 = vmatpush2.xpose.msra.mxu0 0.0
    %2482 = vmatprep.subr.mxu0 0.0
    %2483 = vmatpush2.xpose.msra.mxu0 0.0
    %2484 = vmatprep.subr.mxu0 0.0
    %2485 = vmatpush2.xpose.msra.mxu0 0.0
    %2486 = vmatprep.mubr.f32.mxu0 0.0
    %2487 = vmatmul.mubr.f32.gmra.mxu0 %v2418
    %v2488 = vpop.f32.mrf.mxu0
    %v2489 = vadd.f32 0.0, %v2488
    %v2490 = vpop.f32.mrf.mxu0
    %2491 = vdwg.mxu0
    %v2492 = vmul.f32 %v2489, 0.35355338
    %v2493 = vsel %vm290, %v2492, -inf
    %2494 = vmax.xlane.f32.xlu0 %v2493
    %v2495 = vpop.xlane.xlu0 %2494
    %v2496 = vsub.f32 %v2492, %v2495
    %v2497 = vmul.f32 %v2496, 1.442695
    %v2498 = vpow.pop %v2497
    %v2499 = vsel %vm290, %v2498, 0.0
    %2500 = vadd.xlane.f32.xlu0 %v2499
    %v2501 = vpop.xlane.xlu0 %2500
    %v2502 = vrcp.pop %v2501
    %v2503 = vmul.f32 %v2498, %v2502
    %2504 = vrot.lane.b32.xlu0 %v2321, 112
    %v2505 = vpop.permute.xlu0 %2504
    %2506 = vrot.lane.b32.xlu0 %v2321, 80
    %v2507 = vpop.permute.xlu0 %2506
    %v2508 = vsel %vm290, %v2505, 0
    %v2510 = vsel %vm290, %v2507, 0
    %2512 = vmatprep.subr.mxu0 0.0
    %2513 = vmatpush1.xpose.msra.mxu0 0.0
    %2514 = vmatprep.subr.mxu0 0.0
    %2515 = vmatpush1.xpose.msra.mxu0 0.0
    %2516 = vmatprep.subr.mxu0 0.0
    %2517 = vmatpush1.xpose.msra.mxu0 0.0
    %2518 = vmatprep.subr.mxu0 0.0
    %2519 = vmatpush1.xpose.msra.mxu0 0.0
    %2520 = vmatprep.subr.mxu0 0.0
    %2521 = vmatpush1.xpose.msra.mxu0 0.0
    %2522 = vmatprep.subr.mxu0 0.0
    %2523 = vmatpush1.xpose.msra.mxu0 0.0
    %2524 = vmatprep.subr.mxu0 0.0
    %2525 = vmatpush1.xpose.msra.mxu0 0.0
    %2526 = vmatprep.subr.mxu0 0.0
    %2527 = vmatpush1.xpose.msra.mxu0 0.0
    %2528 = vmatprep.subr.mxu0 0.0
    %2529 = vmatpush1.xpose.msra.mxu0 0.0
    %2530 = vmatprep.subr.mxu0 0.0
    %2531 = vmatpush1.xpose.msra.mxu0 0.0
    %2532 = vmatprep.subr.mxu0 0.0
    %2533 = vmatpush1.xpose.msra.mxu0 0.0
    %2534 = vmatprep.subr.mxu0 0.0
    %2535 = vmatpush1.xpose.msra.mxu0 0.0
    %2536 = vmatprep.subr.mxu0 0.0
    %2537 = vmatpush1.xpose.msra.mxu0 0.0
    %2538 = vmatprep.subr.mxu0 0.0
    %2539 = vmatpush1.xpose.msra.mxu0 0.0
    %2540 = vmatprep.subr.mxu0 0.0
    %2541 = vmatpush1.xpose.msra.mxu0 0.0
    %2542 = vmatprep.subr.mxu0 0.0
    %2543 = vmatpush1.xpose.msra.mxu0 %v2510
    %2544 = vmatprep.subr.mxu0 0.0
    %2545 = vmatpush2.xpose.msra.mxu0 0.0
    %2546 = vmatprep.subr.mxu0 0.0
    %2547 = vmatpush2.xpose.msra.mxu0 0.0
    %2548 = vmatprep.subr.mxu0 0.0
    %2549 = vmatpush2.xpose.msra.mxu0 0.0
    %2550 = vmatprep.subr.mxu0 0.0
    %2551 = vmatpush2.xpose.msra.mxu0 0.0
    %2552 = vmatprep.subr.mxu0 0.0
    %2553 = vmatpush2.xpose.msra.mxu0 0.0
    %2554 = vmatprep.subr.mxu0 0.0
    %2555 = vmatpush2.xpose.msra.mxu0 0.0
    %2556 = vmatprep.subr.mxu0 0.0
    %2557 = vmatpush2.xpose.msra.mxu0 0.0
    %2558 = vmatprep.subr.mxu0 0.0
    %2559 = vmatpush2.xpose.msra.mxu0 0.0
    %2560 = vmatprep.subr.mxu0 0.0
    %2561 = vmatpush2.xpose.msra.mxu0 0.0
    %2562 = vmatprep.subr.mxu0 0.0
    %2563 = vmatpush2.xpose.msra.mxu0 0.0
    %2564 = vmatprep.subr.mxu0 0.0
    %2565 = vmatpush2.xpose.msra.mxu0 0.0
    %2566 = vmatprep.subr.mxu0 0.0
    %2567 = vmatpush2.xpose.msra.mxu0 0.0
    %2568 = vmatprep.subr.mxu0 0.0
    %2569 = vmatpush2.xpose.msra.mxu0 0.0
    %2570 = vmatprep.subr.mxu0 0.0
    %2571 = vmatpush2.xpose.msra.mxu0 0.0
    %2572 = vmatprep.subr.mxu0 0.0
    %2573 = vmatpush2.xpose.msra.mxu0 0.0
    %2574 = vmatprep.subr.mxu0 0.0
    %2575 = vmatpush2.xpose.msra.mxu0 0.0
    %2576 = vmatprep.mubr.f32.mxu0 0.0
    %2577 = vmatmul.mubr.f32.gmra.mxu0 %v2508
    %v2578 = vpop.f32.mrf.mxu0
    %v2579 = vadd.f32 0.0, %v2578
    %v2580 = vpop.f32.mrf.mxu0
    %2581 = vdwg.mxu0
    %v2582 = vmul.f32 %v2579, 0.35355338
    %v2583 = vsel %vm290, %v2582, -inf
    %2584 = vmax.xlane.f32.xlu0 %v2583
    %v2585 = vpop.xlane.xlu0 %2584
    %v2586 = vsub.f32 %v2582, %v2585
    %v2587 = vmul.f32 %v2586, 1.442695
    %v2588 = vpow.pop %v2587
    %v2589 = vsel %vm290, %v2588, 0.0
    %2590 = vadd.xlane.f32.xlu0 %v2589
    %v2591 = vpop.xlane.xlu0 %2590
    %v2592 = vrcp.pop %v2591
    %v2593 = vmul.f32 %v2588, %v2592
    %2594 = vrot.lane.b32.xlu0 %v2321, 104
    %v2595 = vpop.permute.xlu0 %2594
    %2596 = vrot.lane.b32.xlu0 %v2321, 72
    %v2597 = vpop.permute.xlu0 %2596
    %v2598 = vsel %vm290, %v2595, 0
    %v2600 = vsel %vm290, %v2597, 0
    %2602 = vmatprep.subr.mxu0 0.0
    %2603 = vmatpush1.xpose.msra.mxu0 0.0
    %2604 = vmatprep.subr.mxu0 0.0
    %2605 = vmatpush1.xpose.msra.mxu0 0.0
    %2606 = vmatprep.subr.mxu0 0.0
    %2607 = vmatpush1.xpose.msra.mxu0 0.0
    %2608 = vmatprep.subr.mxu0 0.0
    %2609 = vmatpush1.xpose.msra.mxu0 0.0
    %2610 = vmatprep.subr.mxu0 0.0
    %2611 = vmatpush1.xpose.msra.mxu0 0.0
    %2612 = vmatprep.subr.mxu0 0.0
    %2613 = vmatpush1.xpose.msra.mxu0 0.0
    %2614 = vmatprep.subr.mxu0 0.0
    %2615 = vmatpush1.xpose.msra.mxu0 0.0
    %2616 = vmatprep.subr.mxu0 0.0
    %2617 = vmatpush1.xpose.msra.mxu0 0.0
    %2618 = vmatprep.subr.mxu0 0.0
    %2619 = vmatpush1.xpose.msra.mxu0 0.0
    %2620 = vmatprep.subr.mxu0 0.0
    %2621 = vmatpush1.xpose.msra.mxu0 0.0
    %2622 = vmatprep.subr.mxu0 0.0
    %2623 = vmatpush1.xpose.msra.mxu0 0.0
    %2624 = vmatprep.subr.mxu0 0.0
    %2625 = vmatpush1.xpose.msra.mxu0 0.0
    %2626 = vmatprep.subr.mxu0 0.0
    %2627 = vmatpush1.xpose.msra.mxu0 0.0
    %2628 = vmatprep.subr.mxu0 0.0
    %2629 = vmatpush1.xpose.msra.mxu0 0.0
    %2630 = vmatprep.subr.mxu0 0.0
    %2631 = vmatpush1.xpose.msra.mxu0 0.0
    %2632 = vmatprep.subr.mxu0 0.0
    %2633 = vmatpush1.xpose.msra.mxu0 %v2600
    %2634 = vmatprep.subr.mxu0 0.0
    %2635 = vmatpush2.xpose.msra.mxu0 0.0
    %2636 = vmatprep.subr.mxu0 0.0
    %2637 = vmatpush2.xpose.msra.mxu0 0.0
    %2638 = vmatprep.subr.mxu0 0.0
    %2639 = vmatpush2.xpose.msra.mxu0 0.0
    %2640 = vmatprep.subr.mxu0 0.0
    %2641 = vmatpush2.xpose.msra.mxu0 0.0
    %2642 = vmatprep.subr.mxu0 0.0
    %2643 = vmatpush2.xpose.msra.mxu0 0.0
    %2644 = vmatprep.subr.mxu0 0.0
    %2645 = vmatpush2.xpose.msra.mxu0 0.0
    %2646 = vmatprep.subr.mxu0 0.0
    %2647 = vmatpush2.xpose.msra.mxu0 0.0
    %2648 = vmatprep.subr.mxu0 0.0
    %2649 = vmatpush2.xpose.msra.mxu0 0.0
    %2650 = vmatprep.subr.mxu0 0.0
    %2651 = vmatpush2.xpose.msra.mxu0 0.0
    %2652 = vmatprep.subr.mxu0 0.0
    %2653 = vmatpush2.xpose.msra.mxu0 0.0
    %2654 = vmatprep.subr.mxu0 0.0
    %2655 = vmatpush2.xpose.msra.mxu0 0.0
    %2656 = vmatprep.subr.mxu0 0.0
    %2657 = vmatpush2.xpose.msra.mxu0 0.0
    %2658 = vmatprep.subr.mxu0 0.0
    %2659 = vmatpush2.xpose.msra.mxu0 0.0
    %2660 = vmatprep.subr.mxu0 0.0
    %2661 = vmatpush2.xpose.msra.mxu0 0.0
    %2662 = vmatprep.subr.mxu0 0.0
    %2663 = vmatpush2.xpose.msra.mxu0 0.0
    %2664 = vmatprep.subr.mxu0 0.0
    %2665 = vmatpush2.xpose.msra.mxu0 0.0
    %2666 = vmatprep.mubr.f32.mxu0 0.0
    %2667 = vmatmul.mubr.f32.gmra.mxu0 %v2598
    %v2668 = vpop.f32.mrf.mxu0
    %v2669 = vadd.f32 0.0, %v2668
    %v2670 = vpop.f32.mrf.mxu0
    %2671 = vdwg.mxu0
    %v2672 = vmul.f32 %v2669, 0.35355338
    %v2673 = vsel %vm290, %v2672, -inf
    %2674 = vmax.xlane.f32.xlu0 %v2673
    %v2675 = vpop.xlane.xlu0 %2674
    %v2676 = vsub.f32 %v2672, %v2675
    %v2677 = vmul.f32 %v2676, 1.442695
    %v2678 = vpow.pop %v2677
    %v2679 = vsel %vm290, %v2678, 0.0
    %2680 = vadd.xlane.f32.xlu0 %v2679
    %v2681 = vpop.xlane.xlu0 %2680
    %v2682 = vrcp.pop %v2681
    %v2683 = vmul.f32 %v2678, %v2682
    %2685 = vrot.lane.b32.xlu0 %v2503, 8
    %v2686 = vpop.permute.xlu0 %2685
    %2689 = vrot.lane.b32.xlu0 %v2593, 16
    %v2690 = vpop.permute.xlu0 %2689
    %2693 = vrot.lane.b32.xlu0 %v2683, 24
    %v2694 = vpop.permute.xlu0 %2693
    %v2696 = vsel %vm290, %v2413, %v2686
    %v2697 = vsel %vm126, %v2696, %v2690
    %v2698 = vsel %vm661, %v2697, %v2694
    %2700 = vrot.lane.b32.xlu0 %v2323, 64
    %v2701 = vpop.permute.xlu0 %2700
    %2702 = vrot.lane.b32.xlu0 %v2323, 32
    %v2703 = vpop.permute.xlu0 %2702
    %2704 = vrot.lane.b32.xlu0 %v2321, 64
    %v2705 = vpop.permute.xlu0 %2704
    %2706 = vrot.lane.b32.xlu0 %v2327, 64
    %v2707 = vpop.permute.xlu0 %2706
    %2708 = vrot.lane.b32.xlu0 %v2701, 64
    %v2709 = vpop.permute.xlu0 %2708
    %2710 = vrot.lane.b32.xlu0 %v2703, 64
    %v2711 = vpop.permute.xlu0 %2710
    %v2717 = vsel %vm212, %v2698, 0
    %2719 = vmatprep.subr.mxu0 0.0
    %2720 = vmatpush1.msra.mxu0 0.0
    %2721 = vmatprep.subr.mxu0 0.0
    %2722 = vmatpush1.msra.mxu0 0.0
    %2723 = vmatprep.subr.mxu0 0.0
    %2724 = vmatpush1.msra.mxu0 0.0
    %2725 = vmatprep.subr.mxu0 0.0
    %2726 = vmatpush1.msra.mxu0 0.0
    %2727 = vmatprep.subr.mxu0 0.0
    %2728 = vmatpush1.msra.mxu0 0.0
    %2729 = vmatprep.subr.mxu0 0.0
    %2730 = vmatpush1.msra.mxu0 0.0
    %2731 = vmatprep.subr.mxu0 0.0
    %2732 = vmatpush1.msra.mxu0 0.0
    %2733 = vmatprep.subr.mxu0 0.0
    %2734 = vmatpush1.msra.mxu0 0.0
    %2735 = vmatprep.subr.mxu0 0.0
    %2736 = vmatpush1.msra.mxu0 0.0
    %2737 = vmatprep.subr.mxu0 0.0
    %2738 = vmatpush1.msra.mxu0 0.0
    %2739 = vmatprep.subr.mxu0 0.0
    %2740 = vmatpush1.msra.mxu0 0.0
    %2741 = vmatprep.subr.mxu0 0.0
    %2742 = vmatpush1.msra.mxu0 0.0
    %2743 = vmatprep.subr.mxu0 0.0
    %2744 = vmatpush1.msra.mxu0 %v2711
    %2745 = vmatprep.subr.mxu0 0.0
    %2746 = vmatpush1.msra.mxu0 %v2709
    %2747 = vmatprep.subr.mxu0 0.0
    %2748 = vmatpush1.msra.mxu0 %v2707
    %2749 = vmatprep.subr.mxu0 0.0
    %2750 = vmatpush1.msra.mxu0 %v2705
    %2751 = vmatprep.subr.mxu0 0.0
    %2752 = vmatpush2.msra.mxu0 0.0
    %2753 = vmatprep.subr.mxu0 0.0
    %2754 = vmatpush2.msra.mxu0 0.0
    %2755 = vmatprep.subr.mxu0 0.0
    %2756 = vmatpush2.msra.mxu0 0.0
    %2757 = vmatprep.subr.mxu0 0.0
    %2758 = vmatpush2.msra.mxu0 0.0
    %2759 = vmatprep.subr.mxu0 0.0
    %2760 = vmatpush2.msra.mxu0 0.0
    %2761 = vmatprep.subr.mxu0 0.0
    %2762 = vmatpush2.msra.mxu0 0.0
    %2763 = vmatprep.subr.mxu0 0.0
    %2764 = vmatpush2.msra.mxu0 0.0
    %2765 = vmatprep.subr.mxu0 0.0
    %2766 = vmatpush2.msra.mxu0 0.0
    %2767 = vmatprep.subr.mxu0 0.0
    %2768 = vmatpush2.msra.mxu0 0.0
    %2769 = vmatprep.subr.mxu0 0.0
    %2770 = vmatpush2.msra.mxu0 0.0
    %2771 = vmatprep.subr.mxu0 0.0
    %2772 = vmatpush2.msra.mxu0 0.0
    %2773 = vmatprep.subr.mxu0 0.0
    %2774 = vmatpush2.msra.mxu0 0.0
    %2775 = vmatprep.subr.mxu0 0.0
    %2776 = vmatpush2.msra.mxu0 0.0
    %2777 = vmatprep.subr.mxu0 0.0
    %2778 = vmatpush2.msra.mxu0 0.0
    %2779 = vmatprep.subr.mxu0 0.0
    %2780 = vmatpush2.msra.mxu0 0.0
    %2781 = vmatprep.subr.mxu0 0.0
    %2782 = vmatpush2.msra.mxu0 0.0
    %2783 = vmatprep.mubr.f32.mxu0 0.0
    %2784 = vmatmul.mubr.f32.gmra.mxu0 %v2717
    %v2785 = vpop.f32.mrf.mxu0
    %v2786 = vadd.f32 %v2164, %v2785
    %v2787 = vpop.f32.mrf.mxu0
    %2788 = vdwg.mxu0
    %v2789 = vadd.f32 %v2786, %v2239
    %v2790 = vsel %vm212, %v2789, 0.0
    %2791 = vadd.xlane.f32.xlu0 %v2790
    %v2792 = vpop.xlane.xlu0 %2791
    %v2793 = vmul.f32 %v2792, %v757
    %v2794 = vsub.f32 %v2789, %v2793
    %v2795 = vmul.f32 %v2794, %v2794
    %v2796 = vsel %vm212, %v2795, 0.0
    %2797 = vadd.xlane.f32.xlu0 %v2796
    %v2798 = vpop.xlane.xlu0 %2797
    %v2799 = vmul.f32 %v2798, %v757
    %v2800 = vadd.f32 %v2799, 1e-05
    %v2801 = vrsqrt.pop %v2800
    %v2802 = vmul.f32 %v2794, %v2801
    %v2803 = vmul.f32 %v2802, %v2165
    %v2804 = vadd.f32 %v2803, %v2166
    %v2805 = vmax.f32 %v2804, 0.0
    %v2807 = vsel %vm212, %v2805, 0
    %2809 = vmatprep.subr.mxu0 0.0
    %2810 = vmatpush1.msra.mxu0 0.0
    %2811 = vmatprep.subr.mxu0 0.0
    %2812 = vmatpush1.msra.mxu0 0.0
    %2813 = vmatprep.subr.mxu0 0.0
    %2814 = vmatpush1.msra.mxu0 0.0
    %2815 = vmatprep.subr.mxu0 0.0
    %2816 = vmatpush1.msra.mxu0 0.0
    %2817 = vmatprep.subr.mxu0 0.0
    %2818 = vmatpush1.msra.mxu0 0.0
    %2819 = vmatprep.subr.mxu0 0.0
    %2820 = vmatpush1.msra.mxu0 0.0
    %2821 = vmatprep.subr.mxu0 0.0
    %2822 = vmatpush1.msra.mxu0 0.0
    %2823 = vmatprep.subr.mxu0 0.0
    %2824 = vmatpush1.msra.mxu0 0.0
    %2825 = vmatprep.subr.mxu0 0.0
    %2826 = vmatpush1.msra.mxu0 0.0
    %2827 = vmatprep.subr.mxu0 0.0
    %2828 = vmatpush1.msra.mxu0 0.0
    %2829 = vmatprep.subr.mxu0 0.0
    %2830 = vmatpush1.msra.mxu0 0.0
    %2831 = vmatprep.subr.mxu0 0.0
    %2832 = vmatpush1.msra.mxu0 0.0
    %2833 = vmatprep.subr.mxu0 0.0
    %2834 = vmatpush1.msra.mxu0 %v2151
    %2835 = vmatprep.subr.mxu0 0.0
    %2836 = vmatpush1.msra.mxu0 %v2150
    %2837 = vmatprep.subr.mxu0 0.0
    %2838 = vmatpush1.msra.mxu0 %v2149
    %2839 = vmatprep.subr.mxu0 0.0
    %2840 = vmatpush1.msra.mxu0 %v2148
    %2841 = vmatprep.subr.mxu0 0.0
    %2842 = vmatpush2.msra.mxu0 0.0
    %2843 = vmatprep.subr.mxu0 0.0
    %2844 = vmatpush2.msra.mxu0 0.0
    %2845 = vmatprep.subr.mxu0 0.0
    %2846 = vmatpush2.msra.mxu0 0.0
    %2847 = vmatprep.subr.mxu0 0.0
    %2848 = vmatpush2.msra.mxu0 0.0
    %2849 = vmatprep.subr.mxu0 0.0
    %2850 = vmatpush2.msra.mxu0 0.0
    %2851 = vmatprep.subr.mxu0 0.0
    %2852 = vmatpush2.msra.mxu0 0.0
    %2853 = vmatprep.subr.mxu0 0.0
    %2854 = vmatpush2.msra.mxu0 0.0
    %2855 = vmatprep.subr.mxu0 0.0
    %2856 = vmatpush2.msra.mxu0 0.0
    %2857 = vmatprep.subr.mxu0 0.0
    %2858 = vmatpush2.msra.mxu0 0.0
    %2859 = vmatprep.subr.mxu0 0.0
    %2860 = vmatpush2.msra.mxu0 0.0
    %2861 = vmatprep.subr.mxu0 0.0
    %2862 = vmatpush2.msra.mxu0 0.0
    %2863 = vmatprep.subr.mxu0 0.0
    %2864 = vmatpush2.msra.mxu0 0.0
    %2865 = vmatprep.subr.mxu0 0.0
    %2866 = vmatpush2.msra.mxu0 0.0
    %2867 = vmatprep.subr.mxu0 0.0
    %2868 = vmatpush2.msra.mxu0 0.0
    %2869 = vmatprep.subr.mxu0 0.0
    %2870 = vmatpush2.msra.mxu0 0.0
    %2871 = vmatprep.subr.mxu0 0.0
    %2872 = vmatpush2.msra.mxu0 0.0
    %2873 = vmatprep.mubr.f32.mxu0 0.0
    %2874 = vmatmul.mubr.f32.gmra.mxu0 %v2807
    %v2875 = vpop.f32.mrf.mxu0
    %v2876 = vadd.f32 %v2167, %v2875
    %v2877 = vpop.f32.mrf.mxu0
    %2878 = vdwg.mxu0
    %v2879 = vmax.f32 %v2876, 0.0
    %v2881 = vsel %vm845, %v2879, 0
    %2883 = vmatprep.subr.mxu0 0.0
    %2884 = vmatpush1.msra.mxu0 0.0
    %2885 = vmatprep.subr.mxu0 0.0
    %2886 = vmatpush1.msra.mxu0 0.0
    %2887 = vmatprep.subr.mxu0 0.0
    %2888 = vmatpush1.msra.mxu0 0.0
    %2889 = vmatprep.subr.mxu0 0.0
    %2890 = vmatpush1.msra.mxu0 0.0
    %2891 = vmatprep.subr.mxu0 0.0
    %2892 = vmatpush1.msra.mxu0 0.0
    %2893 = vmatprep.subr.mxu0 0.0
    %2894 = vmatpush1.msra.mxu0 0.0
    %2895 = vmatprep.subr.mxu0 0.0
    %2896 = vmatpush1.msra.mxu0 0.0
    %2897 = vmatprep.subr.mxu0 0.0
    %2898 = vmatpush1.msra.mxu0 0.0
    %2899 = vmatprep.subr.mxu0 0.0
    %2900 = vmatpush1.msra.mxu0 %v2159
    %2901 = vmatprep.subr.mxu0 0.0
    %2902 = vmatpush1.msra.mxu0 %v2158
    %2903 = vmatprep.subr.mxu0 0.0
    %2904 = vmatpush1.msra.mxu0 %v2157
    %2905 = vmatprep.subr.mxu0 0.0
    %2906 = vmatpush1.msra.mxu0 %v2156
    %2907 = vmatprep.subr.mxu0 0.0
    %2908 = vmatpush1.msra.mxu0 %v2155
    %2909 = vmatprep.subr.mxu0 0.0
    %2910 = vmatpush1.msra.mxu0 %v2154
    %2911 = vmatprep.subr.mxu0 0.0
    %2912 = vmatpush1.msra.mxu0 %v2153
    %2913 = vmatprep.subr.mxu0 0.0
    %2914 = vmatpush1.msra.mxu0 %v2152
    %2915 = vmatprep.subr.mxu0 0.0
    %2916 = vmatpush2.msra.mxu0 0.0
    %2917 = vmatprep.subr.mxu0 0.0
    %2918 = vmatpush2.msra.mxu0 0.0
    %2919 = vmatprep.subr.mxu0 0.0
    %2920 = vmatpush2.msra.mxu0 0.0
    %2921 = vmatprep.subr.mxu0 0.0
    %2922 = vmatpush2.msra.mxu0 0.0
    %2923 = vmatprep.subr.mxu0 0.0
    %2924 = vmatpush2.msra.mxu0 0.0
    %2925 = vmatprep.subr.mxu0 0.0
    %2926 = vmatpush2.msra.mxu0 0.0
    %2927 = vmatprep.subr.mxu0 0.0
    %2928 = vmatpush2.msra.mxu0 0.0
    %2929 = vmatprep.subr.mxu0 0.0
    %2930 = vmatpush2.msra.mxu0 0.0
    %2931 = vmatprep.subr.mxu0 0.0
    %2932 = vmatpush2.msra.mxu0 0.0
    %2933 = vmatprep.subr.mxu0 0.0
    %2934 = vmatpush2.msra.mxu0 0.0
    %2935 = vmatprep.subr.mxu0 0.0
    %2936 = vmatpush2.msra.mxu0 0.0
    %2937 = vmatprep.subr.mxu0 0.0
    %2938 = vmatpush2.msra.mxu0 0.0
    %2939 = vmatprep.subr.mxu0 0.0
    %2940 = vmatpush2.msra.mxu0 0.0
    %2941 = vmatprep.subr.mxu0 0.0
    %2942 = vmatpush2.msra.mxu0 0.0
    %2943 = vmatprep.subr.mxu0 0.0
    %2944 = vmatpush2.msra.mxu0 0.0
    %2945 = vmatprep.subr.mxu0 0.0
    %2946 = vmatpush2.msra.mxu0 0.0
    %2947 = vmatprep.mubr.f32.mxu0 0.0
    %2948 = vmatmul.mubr.f32.gmra.mxu0 %v2881
    %v2949 = vpop.f32.mrf.mxu0
    %v2950 = vadd.f32 %v2168, %v2949
    %v2951 = vpop.f32.mrf.mxu0
    %2952 = vdwg.mxu0
    %v2953 = vmul.f32 %v2950, %v95
    %v2954 = vsel %vm926, %v2953, -1e+30
    %v2955 = vsel %vm126, %v2954, -inf
    %2956 = vmax.xlane.f32.xlu0 %v2955
    %v2957 = vpop.xlane.xlu0 %2956
    %v2958 = vsel %vm937, %v2953, -1e+30
    %v2959 = vsel %vm126, %v2958, -inf
    %2960 = vmax.xlane.f32.xlu0 %v2959
    %v2961 = vpop.xlane.xlu0 %2960
    %v2962 = vsel %vm948, %v2953, -1e+30
    %v2963 = vsel %vm126, %v2962, -inf
    %2964 = vmax.xlane.f32.xlu0 %v2963
    %v2965 = vpop.xlane.xlu0 %2964
    %v2966 = vmul.f32 %v2957, %v956
    %v2967 = vmul.f32 %v2961, %v961
    %v2968 = vadd.f32 %v2966, %v2967
    %v2969 = vmul.f32 %v2965, %v967
    %v2970 = vadd.f32 %v2968, %v2969
    %v2971 = vsub.f32 %v2953, %v2970
    %v2972 = vmul.f32 %v2971, %v974
    %v2973 = vmul.f32 %v2972, 1.442695
    %v2974 = vpow.pop %v2973
    %v2975 = vmul.f32 %v2974, %v974
    %v2977 = vsel %vm126, %v2975, 0
    %2979 = vmatprep.subr.mxu0 0.0
    %2980 = vmatpush1.xpose.msra.mxu0 0.0
    %2981 = vmatprep.subr.mxu0 0.0
    %2982 = vmatpush1.xpose.msra.mxu0 0.0
    %2983 = vmatprep.subr.mxu0 0.0
    %2984 = vmatpush1.xpose.msra.mxu0 0.0
    %2985 = vmatprep.subr.mxu0 0.0
    %2986 = vmatpush1.xpose.msra.mxu0 0.0
    %2987 = vmatprep.subr.mxu0 0.0
    %2988 = vmatpush1.xpose.msra.mxu0 0.0
    %2989 = vmatprep.subr.mxu0 0.0
    %2990 = vmatpush1.xpose.msra.mxu0 0.0
    %2991 = vmatprep.subr.mxu0 0.0
    %2992 = vmatpush1.xpose.msra.mxu0 0.0
    %2993 = vmatprep.subr.mxu0 0.0
    %2994 = vmatpush1.xpose.msra.mxu0 0.0
    %2995 = vmatprep.subr.mxu0 0.0
    %2996 = vmatpush1.xpose.msra.mxu0 0.0
    %2997 = vmatprep.subr.mxu0 0.0
    %2998 = vmatpush1.xpose.msra.mxu0 0.0
    %2999 = vmatprep.subr.mxu0 0.0
    %3000 = vmatpush1.xpose.msra.mxu0 0.0
    %3001 = vmatprep.subr.mxu0 0.0
    %3002 = vmatpush1.xpose.msra.mxu0 0.0
    %3003 = vmatprep.subr.mxu0 0.0
    %3004 = vmatpush1.xpose.msra.mxu0 0.0
    %3005 = vmatprep.subr.mxu0 0.0
    %3006 = vmatpush1.xpose.msra.mxu0 0.0
    %3007 = vmatprep.subr.mxu0 0.0
    %3008 = vmatpush1.xpose.msra.mxu0 0.0
    %3009 = vmatprep.subr.mxu0 0.0
    %3010 = vmatpush1.xpose.msra.mxu0 %v983
    %3011 = vmatprep.subr.mxu0 0.0
    %3012 = vmatpush2.xpose.msra.mxu0 0.0
    %3013 = vmatprep.subr.mxu0 0.0
    %3014 = vmatpush2.xpose.msra.mxu0 0.0
    %3015 = vmatprep.subr.mxu0 0.0
    %3016 = vmatpush2.xpose.msra.mxu0 0.0
    %3017 = vmatprep.subr.mxu0 0.0
    %3018 = vmatpush2.xpose.msra.mxu0 0.0
    %3019 = vmatprep.subr.mxu0 0.0
    %3020 = vmatpush2.xpose.msra.mxu0 0.0
    %3021 = vmatprep.subr.mxu0 0.0
    %3022 = vmatpush2.xpose.msra.mxu0 0.0
    %3023 = vmatprep.subr.mxu0 0.0
    %3024 = vmatpush2.xpose.msra.mxu0 0.0
    %3025 = vmatprep.subr.mxu0 0.0
    %3026 = vmatpush2.xpose.msra.mxu0 0.0
    %3027 = vmatprep.subr.mxu0 0.0
    %3028 = vmatpush2.xpose.msra.mxu0 0.0
    %3029 = vmatprep.subr.mxu0 0.0
    %3030 = vmatpush2.xpose.msra.mxu0 0.0
    %3031 = vmatprep.subr.mxu0 0.0
    %3032 = vmatpush2.xpose.msra.mxu0 0.0
    %3033 = vmatprep.subr.mxu0 0.0
    %3034 = vmatpush2.xpose.msra.mxu0 0.0
    %3035 = vmatprep.subr.mxu0 0.0
    %3036 = vmatpush2.xpose.msra.mxu0 0.0
    %3037 = vmatprep.subr.mxu0 0.0
    %3038 = vmatpush2.xpose.msra.mxu0 0.0
    %3039 = vmatprep.subr.mxu0 0.0
    %3040 = vmatpush2.xpose.msra.mxu0 0.0
    %3041 = vmatprep.subr.mxu0 0.0
    %3042 = vmatpush2.xpose.msra.mxu0 0.0
    %3043 = vmatprep.mubr.f32.mxu0 0.0
    %3044 = vmatmul.mubr.f32.gmra.mxu0 %v2977
    %v3045 = vpop.f32.mrf.mxu0
    %v3046 = vadd.f32 0.0, %v3045
    %v3047 = vpop.f32.mrf.mxu0
    %3048 = vdwg.mxu0
    %v3050 = vsel %vm290, %v3046, 0
    %3052 = vmatprep.subr.mxu0 0.0
    %3053 = vmatpush1.msra.mxu0 0.0
    %3054 = vmatprep.subr.mxu0 0.0
    %3055 = vmatpush1.msra.mxu0 0.0
    %3056 = vmatprep.subr.mxu0 0.0
    %3057 = vmatpush1.msra.mxu0 0.0
    %3058 = vmatprep.subr.mxu0 0.0
    %3059 = vmatpush1.msra.mxu0 0.0
    %3060 = vmatprep.subr.mxu0 0.0
    %3061 = vmatpush1.msra.mxu0 0.0
    %3062 = vmatprep.subr.mxu0 0.0
    %3063 = vmatpush1.msra.mxu0 0.0
    %3064 = vmatprep.subr.mxu0 0.0
    %3065 = vmatpush1.msra.mxu0 0.0
    %3066 = vmatprep.subr.mxu0 0.0
    %3067 = vmatpush1.msra.mxu0 0.0
    %3068 = vmatprep.subr.mxu0 0.0
    %3069 = vmatpush1.msra.mxu0 0.0
    %3070 = vmatprep.subr.mxu0 0.0
    %3071 = vmatpush1.msra.mxu0 0.0
    %3072 = vmatprep.subr.mxu0 0.0
    %3073 = vmatpush1.msra.mxu0 0.0
    %3074 = vmatprep.subr.mxu0 0.0
    %3075 = vmatpush1.msra.mxu0 0.0
    %3076 = vmatprep.subr.mxu0 0.0
    %3077 = vmatpush1.msra.mxu0 0.0
    %3078 = vmatprep.subr.mxu0 0.0
    %3079 = vmatpush1.msra.mxu0 0.0
    %3080 = vmatprep.subr.mxu0 0.0
    %3081 = vmatpush1.msra.mxu0 0.0
    %3082 = vmatprep.subr.mxu0 0.0
    %3083 = vmatpush1.msra.mxu0 %v77
    %3084 = vmatprep.subr.mxu0 0.0
    %3085 = vmatpush2.msra.mxu0 0.0
    %3086 = vmatprep.subr.mxu0 0.0
    %3087 = vmatpush2.msra.mxu0 0.0
    %3088 = vmatprep.subr.mxu0 0.0
    %3089 = vmatpush2.msra.mxu0 0.0
    %3090 = vmatprep.subr.mxu0 0.0
    %3091 = vmatpush2.msra.mxu0 0.0
    %3092 = vmatprep.subr.mxu0 0.0
    %3093 = vmatpush2.msra.mxu0 0.0
    %3094 = vmatprep.subr.mxu0 0.0
    %3095 = vmatpush2.msra.mxu0 0.0
    %3096 = vmatprep.subr.mxu0 0.0
    %3097 = vmatpush2.msra.mxu0 0.0
    %3098 = vmatprep.subr.mxu0 0.0
    %3099 = vmatpush2.msra.mxu0 0.0
    %3100 = vmatprep.subr.mxu0 0.0
    %3101 = vmatpush2.msra.mxu0 0.0
    %3102 = vmatprep.subr.mxu0 0.0
    %3103 = vmatpush2.msra.mxu0 0.0
    %3104 = vmatprep.subr.mxu0 0.0
    %3105 = vmatpush2.msra.mxu0 0.0
    %3106 = vmatprep.subr.mxu0 0.0
    %3107 = vmatpush2.msra.mxu0 0.0
    %3108 = vmatprep.subr.mxu0 0.0
    %3109 = vmatpush2.msra.mxu0 0.0
    %3110 = vmatprep.subr.mxu0 0.0
    %3111 = vmatpush2.msra.mxu0 0.0
    %3112 = vmatprep.subr.mxu0 0.0
    %3113 = vmatpush2.msra.mxu0 0.0
    %3114 = vmatprep.subr.mxu0 0.0
    %3115 = vmatpush2.msra.mxu0 0.0
    %3116 = vmatprep.mubr.f32.mxu0 0.0
    %3117 = vmatmul.mubr.f32.gmra.mxu0 %v3050
    %v3118 = vpop.f32.mrf.mxu0
    %v3119 = vadd.f32 %v1058, %v3118
    %v3120 = vpop.f32.mrf.mxu0
    %3121 = vdwg.mxu0
    %v3122 = vrcp.pop %v3119
    %v3123 = vmul.f32 %v2975, %v3122
    %v3124 = vmul.f32 %v2953, %v1058
    %v3125 = vsub.f32 0.0, %v3124
    %v3126 = vmul.f32 %v3125, 1.442695
    %v3127 = vpow.pop %v3126
    %v3128 = vadd.f32 %v3127, 1.0
    %v3129 = vrcp.pop %v3128
    %v3130 = vmul.f32 %v3129, %v1058
    %v3131 = vadd.f32 %v3123, %v3130
    %s3132 = scalar_lea.vmem [#allocation4], 864
    %v3133 = vld [vmem:[%s3132] sm:$0xff]
    %v3134 = vld [vmem:[%s3132 + $0x10] sm:$0xff]
    %v3135 = vld [vmem:[%s3132 + $0x20] sm:$0xff]
    %v3136 = vld [vmem:[%s3132 + $0x28] sm:$0xff]
    %v3137 = vld [vmem:[%s3132 + $0x30] sm:$0xff]
    %v3138 = vld [vmem:[%s3132 + $0x38] sm:$0xff]
    %v3139 = vld [vmem:[%s3132 + $0x40] sm:$0xff]
    %v3140 = vld [vmem:[%s3132 + $0x48] sm:$0xff]
    %v3141 = vld [vmem:[%s3132 + $0x50] sm:$0xff]
    %v3142 = vld [vmem:[%s3132 + $0x58] sm:$0xff]
    %v3143 = vld [vmem:[%s3132 + $0x60] sm:$0xff]
    %v3144 = vld [vmem:[%s3132 + $0x70] sm:$0xff]
    %v3145 = vld [vmem:[%s3132 + $0x80] sm:$0xff]
    %v3146 = vld [vmem:[%s3132 + $0x90] sm:$0xff]
    %v3147 = vld [vmem:[%s3132 + $0xa0] sm:$0xff]
    %v3148 = vld [vmem:[%s3132 + $0xb0] sm:$0xff]
    %v3149 = vld [vmem:[%s3132 + $0xc0] sm:$0xff]
    %v3150 = vld [vmem:[%s3132 + $0xd0] sm:$0xff]
    %v3151 = vld [vmem:[%s3132 + $0xe0] sm:$0xff]
    %v3152 = vld [vmem:[%s3132 + $0xf0] sm:$0xff]
    %v3153 = vld [vmem:[%s3132 + $0x100] sm:$0xff]
    %v3154 = vld [vmem:[%s3132 + $0x110] sm:$0xff]
    %s3155 = scalar_lea.vmem [#allocation6], 48
    %v3156 = vld [vmem:[%s3155] ss:$0 sm:$0xff]
    %s3157 = scalar_lea.vmem %s3155, 1 [#allocation6]
    %v3158 = vld [vmem:[%s3157] ss:$8 sm:$0x3]
    %v3159 = vld [vmem:[%s3155 + $0x2] ss:$0 sm:$0xff]
    %v3160 = vld [vmem:[%s3155 + $0x3] ss:$0 sm:$0xff]
    %v3161 = vld [vmem:[%s3155 + $0x4] ss:$0 sm:$0xff]
    %v3162 = vld [vmem:[%s3155 + $0x5] ss:$0 sm:$0xff]
    %v3163 = vld [vmem:[%s3155 + $0x6] ss:$0 sm:$0xff]
    %3164 = vmatprep.subr.mxu0 0.0
    %3165 = vmatpush1.msra.mxu0 0.0
    %3166 = vmatprep.subr.mxu0 0.0
    %3167 = vmatpush1.msra.mxu0 0.0
    %3168 = vmatprep.subr.mxu0 0.0
    %3169 = vmatpush1.msra.mxu0 0.0
    %3170 = vmatprep.subr.mxu0 0.0
    %3171 = vmatpush1.msra.mxu0 0.0
    %3172 = vmatprep.subr.mxu0 0.0
    %3173 = vmatpush1.msra.mxu0 0.0
    %3174 = vmatprep.subr.mxu0 0.0
    %3175 = vmatpush1.msra.mxu0 0.0
    %3176 = vmatprep.subr.mxu0 0.0
    %3177 = vmatpush1.msra.mxu0 0.0
    %3178 = vmatprep.subr.mxu0 0.0
    %3179 = vmatpush1.msra.mxu0 0.0
    %3180 = vmatprep.subr.mxu0 0.0
    %3181 = vmatpush1.msra.mxu0 0.0
    %3182 = vmatprep.subr.mxu0 0.0
    %3183 = vmatpush1.msra.mxu0 0.0
    %3184 = vmatprep.subr.mxu0 0.0
    %3185 = vmatpush1.msra.mxu0 0.0
    %3186 = vmatprep.subr.mxu0 0.0
    %3187 = vmatpush1.msra.mxu0 0.0
    %3188 = vmatprep.subr.mxu0 0.0
    %3189 = vmatpush1.msra.mxu0 0.0
    %3190 = vmatprep.subr.mxu0 0.0
    %3191 = vmatpush1.msra.mxu0 0.0
    %3192 = vmatprep.subr.mxu0 0.0
    %3193 = vmatpush1.msra.mxu0 %v3134
    %3194 = vmatprep.subr.mxu0 0.0
    %3195 = vmatpush1.msra.mxu0 %v3133
    %3196 = vmatprep.subr.mxu0 0.0
    %3197 = vmatpush2.msra.mxu0 0.0
    %3198 = vmatprep.subr.mxu0 0.0
    %3199 = vmatpush2.msra.mxu0 0.0
    %3200 = vmatprep.subr.mxu0 0.0
    %3201 = vmatpush2.msra.mxu0 0.0
    %3202 = vmatprep.subr.mxu0 0.0
    %3203 = vmatpush2.msra.mxu0 0.0
    %3204 = vmatprep.subr.mxu0 0.0
    %3205 = vmatpush2.msra.mxu0 0.0
    %3206 = vmatprep.subr.mxu0 0.0
    %3207 = vmatpush2.msra.mxu0 0.0
    %3208 = vmatprep.subr.mxu0 0.0
    %3209 = vmatpush2.msra.mxu0 0.0
    %3210 = vmatprep.subr.mxu0 0.0
    %3211 = vmatpush2.msra.mxu0 0.0
    %3212 = vmatprep.subr.mxu0 0.0
    %3213 = vmatpush2.msra.mxu0 0.0
    %3214 = vmatprep.subr.mxu0 0.0
    %3215 = vmatpush2.msra.mxu0 0.0
    %3216 = vmatprep.subr.mxu0 0.0
    %3217 = vmatpush2.msra.mxu0 0.0
    %3218 = vmatprep.subr.mxu0 0.0
    %3219 = vmatpush2.msra.mxu0 0.0
    %3220 = vmatprep.subr.mxu0 0.0
    %3221 = vmatpush2.msra.mxu0 0.0
    %3222 = vmatprep.subr.mxu0 0.0
    %3223 = vmatpush2.msra.mxu0 0.0
    %3224 = vmatprep.subr.mxu0 0.0
    %3225 = vmatpush2.msra.mxu0 0.0
    %3226 = vmatprep.subr.mxu0 0.0
    %3227 = vmatpush2.msra.mxu0 0.0
    %3228 = vmatprep.mubr.f32.mxu0 0.0
    %3229 = vmatmul.mubr.f32.gmra.mxu0 %v128
    %v3230 = vpop.f32.mrf.mxu0
    %v3231 = vadd.f32 %v3156, %v3230
    %v3232 = vpop.f32.mrf.mxu0
    %3233 = vdwg.mxu0
    %v3234 = vmax.f32 %v3231, 0.0
    %v3236 = vlaneseq
    %v3237 = vshrl.u32 %v3236, 7
    %v3238 = vsub.s32 0, %v3237
    %v3239 = vrot.slane %v3158, %v3238
    %v3240 = vlaneseq
    %v3241 = vshrl.u32 %v3240, 7
    %v3242 = vsub.s32 1, %v3241
    %v3243 = vrot.slane %v3158, %v3242
    %v3247 = vsel %vm212, %v3234, 0
    %3249 = vmatprep.subr.mxu0 0.0
    %3250 = vmatpush1.msra.mxu0 0.0
    %3251 = vmatprep.subr.mxu0 0.0
    %3252 = vmatpush1.msra.mxu0 0.0
    %3253 = vmatprep.subr.mxu0 0.0
    %3254 = vmatpush1.msra.mxu0 0.0
    %3255 = vmatprep.subr.mxu0 0.0
    %3256 = vmatpush1.msra.mxu0 0.0
    %3257 = vmatprep.subr.mxu0 0.0
    %3258 = vmatpush1.msra.mxu0 0.0
    %3259 = vmatprep.subr.mxu0 0.0
    %3260 = vmatpush1.msra.mxu0 0.0
    %3261 = vmatprep.subr.mxu0 0.0
    %3262 = vmatpush1.msra.mxu0 0.0
    %3263 = vmatprep.subr.mxu0 0.0
    %3264 = vmatpush1.msra.mxu0 0.0
    %3265 = vmatprep.subr.mxu0 0.0
    %3266 = vmatpush1.msra.mxu0 0.0
    %3267 = vmatprep.subr.mxu0 0.0
    %3268 = vmatpush1.msra.mxu0 0.0
    %3269 = vmatprep.subr.mxu0 0.0
    %3270 = vmatpush1.msra.mxu0 0.0
    %3271 = vmatprep.subr.mxu0 0.0
    %3272 = vmatpush1.msra.mxu0 0.0
    %3273 = vmatprep.subr.mxu0 %v3142
    %3274 = vmatpush1.msra.mxu0 %v3141
    %3275 = vmatprep.subr.mxu0 %v3140
    %3276 = vmatpush1.msra.mxu0 %v3139
    %3277 = vmatprep.subr.mxu0 %v3138
    %3278 = vmatpush1.msra.mxu0 %v3137
    %3279 = vmatprep.subr.mxu0 %v3136
    %3280 = vmatpush1.msra.mxu0 %v3135
    %3281 = vmatprep.subr.mxu0 0.0
    %3282 = vmatpush2.msra.mxu0 0.0
    %3283 = vmatprep.subr.mxu0 0.0
    %3284 = vmatpush2.msra.mxu0 0.0
    %3285 = vmatprep.subr.mxu0 0.0
    %3286 = vmatpush2.msra.mxu0 0.0
    %3287 = vmatprep.subr.mxu0 0.0
    %3288 = vmatpush2.msra.mxu0 0.0
    %3289 = vmatprep.subr.mxu0 0.0
    %3290 = vmatpush2.msra.mxu0 0.0
    %3291 = vmatprep.subr.mxu0 0.0
    %3292 = vmatpush2.msra.mxu0 0.0
    %3293 = vmatprep.subr.mxu0 0.0
    %3294 = vmatpush2.msra.mxu0 0.0
    %3295 = vmatprep.subr.mxu0 0.0
    %3296 = vmatpush2.msra.mxu0 0.0
    %3297 = vmatprep.subr.mxu0 0.0
    %3298 = vmatpush2.msra.mxu0 0.0
    %3299 = vmatprep.subr.mxu0 0.0
    %3300 = vmatpush2.msra.mxu0 0.0
    %3301 = vmatprep.subr.mxu0 0.0
    %3302 = vmatpush2.msra.mxu0 0.0
    %3303 = vmatprep.subr.mxu0 0.0
    %3304 = vmatpush2.msra.mxu0 0.0
    %3305 = vmatprep.subr.mxu0 0.0
    %3306 = vmatpush2.msra.mxu0 0.0
    %3307 = vmatprep.subr.mxu0 0.0
    %3308 = vmatpush2.msra.mxu0 0.0
    %3309 = vmatprep.subr.mxu0 0.0
    %3310 = vmatpush2.msra.mxu0 0.0
    %3311 = vmatprep.subr.mxu0 0.0
    %3312 = vmatpush2.msra.mxu0 0.0
    %3313 = vmatprep.mubr.f32.mxu0 0.0
    %3314 = vmatmul.mubr.f32.gmra.mxu0 %v3247
    %v3315 = vpop.f32.mrf.mxu0
    %v3316 = vadd.f32 %v3239, %v3315
    %v3317 = vpop.f32.mrf.mxu0
    %v3318 = vadd.f32 %v3243, %v3317
    %3319 = vdwg.mxu0
    %3321 = vrot.lane.b32.xlu0 %v3316, 96
    %v3322 = vpop.permute.xlu0 %3321
    %v3323 = vsel %vm290, %v3316, 0
    %v3325 = vsel %vm290, %v3322, 0
    %3327 = vmatprep.subr.mxu0 0.0
    %3328 = vmatpush1.xpose.msra.mxu0 0.0
    %3329 = vmatprep.subr.mxu0 0.0
    %3330 = vmatpush1.xpose.msra.mxu0 0.0
    %3331 = vmatprep.subr.mxu0 0.0
    %3332 = vmatpush1.xpose.msra.mxu0 0.0
    %3333 = vmatprep.subr.mxu0 0.0
    %3334 = vmatpush1.xpose.msra.mxu0 0.0
    %3335 = vmatprep.subr.mxu0 0.0
    %3336 = vmatpush1.xpose.msra.mxu0 0.0
    %3337 = vmatprep.subr.mxu0 0.0
    %3338 = vmatpush1.xpose.msra.mxu0 0.0
    %3339 = vmatprep.subr.mxu0 0.0
    %3340 = vmatpush1.xpose.msra.mxu0 0.0
    %3341 = vmatprep.subr.mxu0 0.0
    %3342 = vmatpush1.xpose.msra.mxu0 0.0
    %3343 = vmatprep.subr.mxu0 0.0
    %3344 = vmatpush1.xpose.msra.mxu0 0.0
    %3345 = vmatprep.subr.mxu0 0.0
    %3346 = vmatpush1.xpose.msra.mxu0 0.0
    %3347 = vmatprep.subr.mxu0 0.0
    %3348 = vmatpush1.xpose.msra.mxu0 0.0
    %3349 = vmatprep.subr.mxu0 0.0
    %3350 = vmatpush1.xpose.msra.mxu0 0.0
    %3351 = vmatprep.subr.mxu0 0.0
    %3352 = vmatpush1.xpose.msra.mxu0 0.0
    %3353 = vmatprep.subr.mxu0 0.0
    %3354 = vmatpush1.xpose.msra.mxu0 0.0
    %3355 = vmatprep.subr.mxu0 0.0
    %3356 = vmatpush1.xpose.msra.mxu0 0.0
    %3357 = vmatprep.subr.mxu0 0.0
    %3358 = vmatpush1.xpose.msra.mxu0 %v3325
    %3359 = vmatprep.subr.mxu0 0.0
    %3360 = vmatpush2.xpose.msra.mxu0 0.0
    %3361 = vmatprep.subr.mxu0 0.0
    %3362 = vmatpush2.xpose.msra.mxu0 0.0
    %3363 = vmatprep.subr.mxu0 0.0
    %3364 = vmatpush2.xpose.msra.mxu0 0.0
    %3365 = vmatprep.subr.mxu0 0.0
    %3366 = vmatpush2.xpose.msra.mxu0 0.0
    %3367 = vmatprep.subr.mxu0 0.0
    %3368 = vmatpush2.xpose.msra.mxu0 0.0
    %3369 = vmatprep.subr.mxu0 0.0
    %3370 = vmatpush2.xpose.msra.mxu0 0.0
    %3371 = vmatprep.subr.mxu0 0.0
    %3372 = vmatpush2.xpose.msra.mxu0 0.0
    %3373 = vmatprep.subr.mxu0 0.0
    %3374 = vmatpush2.xpose.msra.mxu0 0.0
    %3375 = vmatprep.subr.mxu0 0.0
    %3376 = vmatpush2.xpose.msra.mxu0 0.0
    %3377 = vmatprep.subr.mxu0 0.0
    %3378 = vmatpush2.xpose.msra.mxu0 0.0
    %3379 = vmatprep.subr.mxu0 0.0
    %3380 = vmatpush2.xpose.msra.mxu0 0.0
    %3381 = vmatprep.subr.mxu0 0.0
    %3382 = vmatpush2.xpose.msra.mxu0 0.0
    %3383 = vmatprep.subr.mxu0 0.0
    %3384 = vmatpush2.xpose.msra.mxu0 0.0
    %3385 = vmatprep.subr.mxu0 0.0
    %3386 = vmatpush2.xpose.msra.mxu0 0.0
    %3387 = vmatprep.subr.mxu0 0.0
    %3388 = vmatpush2.xpose.msra.mxu0 0.0
    %3389 = vmatprep.subr.mxu0 0.0
    %3390 = vmatpush2.xpose.msra.mxu0 0.0
    %3391 = vmatprep.mubr.f32.mxu0 0.0
    %3392 = vmatmul.mubr.f32.gmra.mxu0 %v3323
    %v3393 = vpop.f32.mrf.mxu0
    %v3394 = vadd.f32 0.0, %v3393
    %v3395 = vpop.f32.mrf.mxu0
    %3396 = vdwg.mxu0
    %v3397 = vmul.f32 %v3394, 0.35355338
    %v3398 = vsel %vm290, %v3397, -inf
    %3399 = vmax.xlane.f32.xlu0 %v3398
    %v3400 = vpop.xlane.xlu0 %3399
    %v3401 = vsub.f32 %v3397, %v3400
    %v3402 = vmul.f32 %v3401, 1.442695
    %v3403 = vpow.pop %v3402
    %v3404 = vsel %vm290, %v3403, 0.0
    %3405 = vadd.xlane.f32.xlu0 %v3404
    %v3406 = vpop.xlane.xlu0 %3405
    %v3407 = vrcp.pop %v3406
    %v3408 = vmul.f32 %v3403, %v3407
    %3409 = vrot.lane.b32.xlu0 %v3316, 120
    %v3410 = vpop.permute.xlu0 %3409
    %3411 = vrot.lane.b32.xlu0 %v3316, 88
    %v3412 = vpop.permute.xlu0 %3411
    %v3413 = vsel %vm290, %v3410, 0
    %v3415 = vsel %vm290, %v3412, 0
    %3417 = vmatprep.subr.mxu0 0.0
    %3418 = vmatpush1.xpose.msra.mxu0 0.0
    %3419 = vmatprep.subr.mxu0 0.0
    %3420 = vmatpush1.xpose.msra.mxu0 0.0
    %3421 = vmatprep.subr.mxu0 0.0
    %3422 = vmatpush1.xpose.msra.mxu0 0.0
    %3423 = vmatprep.subr.mxu0 0.0
    %3424 = vmatpush1.xpose.msra.mxu0 0.0
    %3425 = vmatprep.subr.mxu0 0.0
    %3426 = vmatpush1.xpose.msra.mxu0 0.0
    %3427 = vmatprep.subr.mxu0 0.0
    %3428 = vmatpush1.xpose.msra.mxu0 0.0
    %3429 = vmatprep.subr.mxu0 0.0
    %3430 = vmatpush1.xpose.msra.mxu0 0.0
    %3431 = vmatprep.subr.mxu0 0.0
    %3432 = vmatpush1.xpose.msra.mxu0 0.0
    %3433 = vmatprep.subr.mxu0 0.0
    %3434 = vmatpush1.xpose.msra.mxu0 0.0
    %3435 = vmatprep.subr.mxu0 0.0
    %3436 = vmatpush1.xpose.msra.mxu0 0.0
    %3437 = vmatprep.subr.mxu0 0.0
    %3438 = vmatpush1.xpose.msra.mxu0 0.0
    %3439 = vmatprep.subr.mxu0 0.0
    %3440 = vmatpush1.xpose.msra.mxu0 0.0
    %3441 = vmatprep.subr.mxu0 0.0
    %3442 = vmatpush1.xpose.msra.mxu0 0.0
    %3443 = vmatprep.subr.mxu0 0.0
    %3444 = vmatpush1.xpose.msra.mxu0 0.0
    %3445 = vmatprep.subr.mxu0 0.0
    %3446 = vmatpush1.xpose.msra.mxu0 0.0
    %3447 = vmatprep.subr.mxu0 0.0
    %3448 = vmatpush1.xpose.msra.mxu0 %v3415
    %3449 = vmatprep.subr.mxu0 0.0
    %3450 = vmatpush2.xpose.msra.mxu0 0.0
    %3451 = vmatprep.subr.mxu0 0.0
    %3452 = vmatpush2.xpose.msra.mxu0 0.0
    %3453 = vmatprep.subr.mxu0 0.0
    %3454 = vmatpush2.xpose.msra.mxu0 0.0
    %3455 = vmatprep.subr.mxu0 0.0
    %3456 = vmatpush2.xpose.msra.mxu0 0.0
    %3457 = vmatprep.subr.mxu0 0.0
    %3458 = vmatpush2.xpose.msra.mxu0 0.0
    %3459 = vmatprep.subr.mxu0 0.0
    %3460 = vmatpush2.xpose.msra.mxu0 0.0
    %3461 = vmatprep.subr.mxu0 0.0
    %3462 = vmatpush2.xpose.msra.mxu0 0.0
    %3463 = vmatprep.subr.mxu0 0.0
    %3464 = vmatpush2.xpose.msra.mxu0 0.0
    %3465 = vmatprep.subr.mxu0 0.0
    %3466 = vmatpush2.xpose.msra.mxu0 0.0
    %3467 = vmatprep.subr.mxu0 0.0
    %3468 = vmatpush2.xpose.msra.mxu0 0.0
    %3469 = vmatprep.subr.mxu0 0.0
    %3470 = vmatpush2.xpose.msra.mxu0 0.0
    %3471 = vmatprep.subr.mxu0 0.0
    %3472 = vmatpush2.xpose.msra.mxu0 0.0
    %3473 = vmatprep.subr.mxu0 0.0
    %3474 = vmatpush2.xpose.msra.mxu0 0.0
    %3475 = vmatprep.subr.mxu0 0.0
    %3476 = vmatpush2.xpose.msra.mxu0 0.0
    %3477 = vmatprep.subr.mxu0 0.0
    %3478 = vmatpush2.xpose.msra.mxu0 0.0
    %3479 = vmatprep.subr.mxu0 0.0
    %3480 = vmatpush2.xpose.msra.mxu0 0.0
    %3481 = vmatprep.mubr.f32.mxu0 0.0
    %3482 = vmatmul.mubr.f32.gmra.mxu0 %v3413
    %v3483 = vpop.f32.mrf.mxu0
    %v3484 = vadd.f32 0.0, %v3483
    %v3485 = vpop.f32.mrf.mxu0
    %3486 = vdwg.mxu0
    %v3487 = vmul.f32 %v3484, 0.35355338
    %v3488 = vsel %vm290, %v3487, -inf
    %3489 = vmax.xlane.f32.xlu0 %v3488
    %v3490 = vpop.xlane.xlu0 %3489
    %v3491 = vsub.f32 %v3487, %v3490
    %v3492 = vmul.f32 %v3491, 1.442695
    %v3493 = vpow.pop %v3492
    %v3494 = vsel %vm290, %v3493, 0.0
    %3495 = vadd.xlane.f32.xlu0 %v3494
    %v3496 = vpop.xlane.xlu0 %3495
    %v3497 = vrcp.pop %v3496
    %v3498 = vmul.f32 %v3493, %v3497
    %3499 = vrot.lane.b32.xlu0 %v3316, 112
    %v3500 = vpop.permute.xlu0 %3499
    %3501 = vrot.lane.b32.xlu0 %v3316, 80
    %v3502 = vpop.permute.xlu0 %3501
    %v3503 = vsel %vm290, %v3500, 0
    %v3505 = vsel %vm290, %v3502, 0
    %3507 = vmatprep.subr.mxu0 0.0
    %3508 = vmatpush1.xpose.msra.mxu0 0.0
    %3509 = vmatprep.subr.mxu0 0.0
    %3510 = vmatpush1.xpose.msra.mxu0 0.0
    %3511 = vmatprep.subr.mxu0 0.0
    %3512 = vmatpush1.xpose.msra.mxu0 0.0
    %3513 = vmatprep.subr.mxu0 0.0
    %3514 = vmatpush1.xpose.msra.mxu0 0.0
    %3515 = vmatprep.subr.mxu0 0.0
    %3516 = vmatpush1.xpose.msra.mxu0 0.0
    %3517 = vmatprep.subr.mxu0 0.0
    %3518 = vmatpush1.xpose.msra.mxu0 0.0
    %3519 = vmatprep.subr.mxu0 0.0
    %3520 = vmatpush1.xpose.msra.mxu0 0.0
    %3521 = vmatprep.subr.mxu0 0.0
    %3522 = vmatpush1.xpose.msra.mxu0 0.0
    %3523 = vmatprep.subr.mxu0 0.0
    %3524 = vmatpush1.xpose.msra.mxu0 0.0
    %3525 = vmatprep.subr.mxu0 0.0
    %3526 = vmatpush1.xpose.msra.mxu0 0.0
    %3527 = vmatprep.subr.mxu0 0.0
    %3528 = vmatpush1.xpose.msra.mxu0 0.0
    %3529 = vmatprep.subr.mxu0 0.0
    %3530 = vmatpush1.xpose.msra.mxu0 0.0
    %3531 = vmatprep.subr.mxu0 0.0
    %3532 = vmatpush1.xpose.msra.mxu0 0.0
    %3533 = vmatprep.subr.mxu0 0.0
    %3534 = vmatpush1.xpose.msra.mxu0 0.0
    %3535 = vmatprep.subr.mxu0 0.0
    %3536 = vmatpush1.xpose.msra.mxu0 0.0
    %3537 = vmatprep.subr.mxu0 0.0
    %3538 = vmatpush1.xpose.msra.mxu0 %v3505
    %3539 = vmatprep.subr.mxu0 0.0
    %3540 = vmatpush2.xpose.msra.mxu0 0.0
    %3541 = vmatprep.subr.mxu0 0.0
    %3542 = vmatpush2.xpose.msra.mxu0 0.0
    %3543 = vmatprep.subr.mxu0 0.0
    %3544 = vmatpush2.xpose.msra.mxu0 0.0
    %3545 = vmatprep.subr.mxu0 0.0
    %3546 = vmatpush2.xpose.msra.mxu0 0.0
    %3547 = vmatprep.subr.mxu0 0.0
    %3548 = vmatpush2.xpose.msra.mxu0 0.0
    %3549 = vmatprep.subr.mxu0 0.0
    %3550 = vmatpush2.xpose.msra.mxu0 0.0
    %3551 = vmatprep.subr.mxu0 0.0
    %3552 = vmatpush2.xpose.msra.mxu0 0.0
    %3553 = vmatprep.subr.mxu0 0.0
    %3554 = vmatpush2.xpose.msra.mxu0 0.0
    %3555 = vmatprep.subr.mxu0 0.0
    %3556 = vmatpush2.xpose.msra.mxu0 0.0
    %3557 = vmatprep.subr.mxu0 0.0
    %3558 = vmatpush2.xpose.msra.mxu0 0.0
    %3559 = vmatprep.subr.mxu0 0.0
    %3560 = vmatpush2.xpose.msra.mxu0 0.0
    %3561 = vmatprep.subr.mxu0 0.0
    %3562 = vmatpush2.xpose.msra.mxu0 0.0
    %3563 = vmatprep.subr.mxu0 0.0
    %3564 = vmatpush2.xpose.msra.mxu0 0.0
    %3565 = vmatprep.subr.mxu0 0.0
    %3566 = vmatpush2.xpose.msra.mxu0 0.0
    %3567 = vmatprep.subr.mxu0 0.0
    %3568 = vmatpush2.xpose.msra.mxu0 0.0
    %3569 = vmatprep.subr.mxu0 0.0
    %3570 = vmatpush2.xpose.msra.mxu0 0.0
    %3571 = vmatprep.mubr.f32.mxu0 0.0
    %3572 = vmatmul.mubr.f32.gmra.mxu0 %v3503
    %v3573 = vpop.f32.mrf.mxu0
    %v3574 = vadd.f32 0.0, %v3573
    %v3575 = vpop.f32.mrf.mxu0
    %3576 = vdwg.mxu0
    %v3577 = vmul.f32 %v3574, 0.35355338
    %v3578 = vsel %vm290, %v3577, -inf
    %3579 = vmax.xlane.f32.xlu0 %v3578
    %v3580 = vpop.xlane.xlu0 %3579
    %v3581 = vsub.f32 %v3577, %v3580
    %v3582 = vmul.f32 %v3581, 1.442695
    %v3583 = vpow.pop %v3582
    %v3584 = vsel %vm290, %v3583, 0.0
    %3585 = vadd.xlane.f32.xlu0 %v3584
    %v3586 = vpop.xlane.xlu0 %3585
    %v3587 = vrcp.pop %v3586
    %v3588 = vmul.f32 %v3583, %v3587
    %3589 = vrot.lane.b32.xlu0 %v3316, 104
    %v3590 = vpop.permute.xlu0 %3589
    %3591 = vrot.lane.b32.xlu0 %v3316, 72
    %v3592 = vpop.permute.xlu0 %3591
    %v3593 = vsel %vm290, %v3590, 0
    %v3595 = vsel %vm290, %v3592, 0
    %3597 = vmatprep.subr.mxu0 0.0
    %3598 = vmatpush1.xpose.msra.mxu0 0.0
    %3599 = vmatprep.subr.mxu0 0.0
    %3600 = vmatpush1.xpose.msra.mxu0 0.0
    %3601 = vmatprep.subr.mxu0 0.0
    %3602 = vmatpush1.xpose.msra.mxu0 0.0
    %3603 = vmatprep.subr.mxu0 0.0
    %3604 = vmatpush1.xpose.msra.mxu0 0.0
    %3605 = vmatprep.subr.mxu0 0.0
    %3606 = vmatpush1.xpose.msra.mxu0 0.0
    %3607 = vmatprep.subr.mxu0 0.0
    %3608 = vmatpush1.xpose.msra.mxu0 0.0
    %3609 = vmatprep.subr.mxu0 0.0
    %3610 = vmatpush1.xpose.msra.mxu0 0.0
    %3611 = vmatprep.subr.mxu0 0.0
    %3612 = vmatpush1.xpose.msra.mxu0 0.0
    %3613 = vmatprep.subr.mxu0 0.0
    %3614 = vmatpush1.xpose.msra.mxu0 0.0
    %3615 = vmatprep.subr.mxu0 0.0
    %3616 = vmatpush1.xpose.msra.mxu0 0.0
    %3617 = vmatprep.subr.mxu0 0.0
    %3618 = vmatpush1.xpose.msra.mxu0 0.0
    %3619 = vmatprep.subr.mxu0 0.0
    %3620 = vmatpush1.xpose.msra.mxu0 0.0
    %3621 = vmatprep.subr.mxu0 0.0
    %3622 = vmatpush1.xpose.msra.mxu0 0.0
    %3623 = vmatprep.subr.mxu0 0.0
    %3624 = vmatpush1.xpose.msra.mxu0 0.0
    %3625 = vmatprep.subr.mxu0 0.0
    %3626 = vmatpush1.xpose.msra.mxu0 0.0
    %3627 = vmatprep.subr.mxu0 0.0
    %3628 = vmatpush1.xpose.msra.mxu0 %v3595
    %3629 = vmatprep.subr.mxu0 0.0
    %3630 = vmatpush2.xpose.msra.mxu0 0.0
    %3631 = vmatprep.subr.mxu0 0.0
    %3632 = vmatpush2.xpose.msra.mxu0 0.0
    %3633 = vmatprep.subr.mxu0 0.0
    %3634 = vmatpush2.xpose.msra.mxu0 0.0
    %3635 = vmatprep.subr.mxu0 0.0
    %3636 = vmatpush2.xpose.msra.mxu0 0.0
    %3637 = vmatprep.subr.mxu0 0.0
    %3638 = vmatpush2.xpose.msra.mxu0 0.0
    %3639 = vmatprep.subr.mxu0 0.0
    %3640 = vmatpush2.xpose.msra.mxu0 0.0
    %3641 = vmatprep.subr.mxu0 0.0
    %3642 = vmatpush2.xpose.msra.mxu0 0.0
    %3643 = vmatprep.subr.mxu0 0.0
    %3644 = vmatpush2.xpose.msra.mxu0 0.0
    %3645 = vmatprep.subr.mxu0 0.0
    %3646 = vmatpush2.xpose.msra.mxu0 0.0
    %3647 = vmatprep.subr.mxu0 0.0
    %3648 = vmatpush2.xpose.msra.mxu0 0.0
    %3649 = vmatprep.subr.mxu0 0.0
    %3650 = vmatpush2.xpose.msra.mxu0 0.0
    %3651 = vmatprep.subr.mxu0 0.0
    %3652 = vmatpush2.xpose.msra.mxu0 0.0
    %3653 = vmatprep.subr.mxu0 0.0
    %3654 = vmatpush2.xpose.msra.mxu0 0.0
    %3655 = vmatprep.subr.mxu0 0.0
    %3656 = vmatpush2.xpose.msra.mxu0 0.0
    %3657 = vmatprep.subr.mxu0 0.0
    %3658 = vmatpush2.xpose.msra.mxu0 0.0
    %3659 = vmatprep.subr.mxu0 0.0
    %3660 = vmatpush2.xpose.msra.mxu0 0.0
    %3661 = vmatprep.mubr.f32.mxu0 0.0
    %3662 = vmatmul.mubr.f32.gmra.mxu0 %v3593
    %v3663 = vpop.f32.mrf.mxu0
    %v3664 = vadd.f32 0.0, %v3663
    %v3665 = vpop.f32.mrf.mxu0
    %3666 = vdwg.mxu0
    %v3667 = vmul.f32 %v3664, 0.35355338
    %v3668 = vsel %vm290, %v3667, -inf
    %3669 = vmax.xlane.f32.xlu0 %v3668
    %v3670 = vpop.xlane.xlu0 %3669
    %v3671 = vsub.f32 %v3667, %v3670
    %v3672 = vmul.f32 %v3671, 1.442695
    %v3673 = vpow.pop %v3672
    %v3674 = vsel %vm290, %v3673, 0.0
    %3675 = vadd.xlane.f32.xlu0 %v3674
    %v3676 = vpop.xlane.xlu0 %3675
    %v3677 = vrcp.pop %v3676
    %v3678 = vmul.f32 %v3673, %v3677
    %3680 = vrot.lane.b32.xlu0 %v3498, 8
    %v3681 = vpop.permute.xlu0 %3680
    %3684 = vrot.lane.b32.xlu0 %v3588, 16
    %v3685 = vpop.permute.xlu0 %3684
    %3688 = vrot.lane.b32.xlu0 %v3678, 24
    %v3689 = vpop.permute.xlu0 %3688
    %v3691 = vsel %vm290, %v3408, %v3681
    %v3692 = vsel %vm126, %v3691, %v3685
    %v3693 = vsel %vm661, %v3692, %v3689
    %3695 = vrot.lane.b32.xlu0 %v3318, 64
    %v3696 = vpop.permute.xlu0 %3695
    %3697 = vrot.lane.b32.xlu0 %v3318, 32
    %v3698 = vpop.permute.xlu0 %3697
    %3699 = vrot.lane.b32.xlu0 %v3316, 64
    %v3700 = vpop.permute.xlu0 %3699
    %3701 = vrot.lane.b32.xlu0 %v3322, 64
    %v3702 = vpop.permute.xlu0 %3701
    %3703 = vrot.lane.b32.xlu0 %v3696, 64
    %v3704 = vpop.permute.xlu0 %3703
    %3705 = vrot.lane.b32.xlu0 %v3698, 64
    %v3706 = vpop.permute.xlu0 %3705
    %v3712 = vsel %vm212, %v3693, 0
    %3714 = vmatprep.subr.mxu0 0.0
    %3715 = vmatpush1.msra.mxu0 0.0
    %3716 = vmatprep.subr.mxu0 0.0
    %3717 = vmatpush1.msra.mxu0 0.0
    %3718 = vmatprep.subr.mxu0 0.0
    %3719 = vmatpush1.msra.mxu0 0.0
    %3720 = vmatprep.subr.mxu0 0.0
    %3721 = vmatpush1.msra.mxu0 0.0
    %3722 = vmatprep.subr.mxu0 0.0
    %3723 = vmatpush1.msra.mxu0 0.0
    %3724 = vmatprep.subr.mxu0 0.0
    %3725 = vmatpush1.msra.mxu0 0.0
    %3726 = vmatprep.subr.mxu0 0.0
    %3727 = vmatpush1.msra.mxu0 0.0
    %3728 = vmatprep.subr.mxu0 0.0
    %3729 = vmatpush1.msra.mxu0 0.0
    %3730 = vmatprep.subr.mxu0 0.0
    %3731 = vmatpush1.msra.mxu0 0.0
    %3732 = vmatprep.subr.mxu0 0.0
    %3733 = vmatpush1.msra.mxu0 0.0
    %3734 = vmatprep.subr.mxu0 0.0
    %3735 = vmatpush1.msra.mxu0 0.0
    %3736 = vmatprep.subr.mxu0 0.0
    %3737 = vmatpush1.msra.mxu0 0.0
    %3738 = vmatprep.subr.mxu0 0.0
    %3739 = vmatpush1.msra.mxu0 %v3706
    %3740 = vmatprep.subr.mxu0 0.0
    %3741 = vmatpush1.msra.mxu0 %v3704
    %3742 = vmatprep.subr.mxu0 0.0
    %3743 = vmatpush1.msra.mxu0 %v3702
    %3744 = vmatprep.subr.mxu0 0.0
    %3745 = vmatpush1.msra.mxu0 %v3700
    %3746 = vmatprep.subr.mxu0 0.0
    %3747 = vmatpush2.msra.mxu0 0.0
    %3748 = vmatprep.subr.mxu0 0.0
    %3749 = vmatpush2.msra.mxu0 0.0
    %3750 = vmatprep.subr.mxu0 0.0
    %3751 = vmatpush2.msra.mxu0 0.0
    %3752 = vmatprep.subr.mxu0 0.0
    %3753 = vmatpush2.msra.mxu0 0.0
    %3754 = vmatprep.subr.mxu0 0.0
    %3755 = vmatpush2.msra.mxu0 0.0
    %3756 = vmatprep.subr.mxu0 0.0
    %3757 = vmatpush2.msra.mxu0 0.0
    %3758 = vmatprep.subr.mxu0 0.0
    %3759 = vmatpush2.msra.mxu0 0.0
    %3760 = vmatprep.subr.mxu0 0.0
    %3761 = vmatpush2.msra.mxu0 0.0
    %3762 = vmatprep.subr.mxu0 0.0
    %3763 = vmatpush2.msra.mxu0 0.0
    %3764 = vmatprep.subr.mxu0 0.0
    %3765 = vmatpush2.msra.mxu0 0.0
    %3766 = vmatprep.subr.mxu0 0.0
    %3767 = vmatpush2.msra.mxu0 0.0
    %3768 = vmatprep.subr.mxu0 0.0
    %3769 = vmatpush2.msra.mxu0 0.0
    %3770 = vmatprep.subr.mxu0 0.0
    %3771 = vmatpush2.msra.mxu0 0.0
    %3772 = vmatprep.subr.mxu0 0.0
    %3773 = vmatpush2.msra.mxu0 0.0
    %3774 = vmatprep.subr.mxu0 0.0
    %3775 = vmatpush2.msra.mxu0 0.0
    %3776 = vmatprep.subr.mxu0 0.0
    %3777 = vmatpush2.msra.mxu0 0.0
    %3778 = vmatprep.mubr.f32.mxu0 0.0
    %3779 = vmatmul.mubr.f32.gmra.mxu0 %v3712
    %v3780 = vpop.f32.mrf.mxu0
    %v3781 = vadd.f32 %v3159, %v3780
    %v3782 = vpop.f32.mrf.mxu0
    %3783 = vdwg.mxu0
    %v3784 = vadd.f32 %v3781, %v3234
    %v3785 = vsel %vm212, %v3784, 0.0
    %3786 = vadd.xlane.f32.xlu0 %v3785
    %v3787 = vpop.xlane.xlu0 %3786
    %v3788 = vmul.f32 %v3787, %v757
    %v3789 = vsub.f32 %v3784, %v3788
    %v3790 = vmul.f32 %v3789, %v3789
    %v3791 = vsel %vm212, %v3790, 0.0
    %3792 = vadd.xlane.f32.xlu0 %v3791
    %v3793 = vpop.xlane.xlu0 %3792
    %v3794 = vmul.f32 %v3793, %v757
    %v3795 = vadd.f32 %v3794, 1e-05
    %v3796 = vrsqrt.pop %v3795
    %v3797 = vmul.f32 %v3789, %v3796
    %v3798 = vmul.f32 %v3797, %v3160
    %v3799 = vadd.f32 %v3798, %v3161
    %v3800 = vmax.f32 %v3799, 0.0
    %v3802 = vsel %vm212, %v3800, 0
    %3804 = vmatprep.subr.mxu0 0.0
    %3805 = vmatpush1.msra.mxu0 0.0
    %3806 = vmatprep.subr.mxu0 0.0
    %3807 = vmatpush1.msra.mxu0 0.0
    %3808 = vmatprep.subr.mxu0 0.0
    %3809 = vmatpush1.msra.mxu0 0.0
    %3810 = vmatprep.subr.mxu0 0.0
    %3811 = vmatpush1.msra.mxu0 0.0
    %3812 = vmatprep.subr.mxu0 0.0
    %3813 = vmatpush1.msra.mxu0 0.0
    %3814 = vmatprep.subr.mxu0 0.0
    %3815 = vmatpush1.msra.mxu0 0.0
    %3816 = vmatprep.subr.mxu0 0.0
    %3817 = vmatpush1.msra.mxu0 0.0
    %3818 = vmatprep.subr.mxu0 0.0
    %3819 = vmatpush1.msra.mxu0 0.0
    %3820 = vmatprep.subr.mxu0 0.0
    %3821 = vmatpush1.msra.mxu0 0.0
    %3822 = vmatprep.subr.mxu0 0.0
    %3823 = vmatpush1.msra.mxu0 0.0
    %3824 = vmatprep.subr.mxu0 0.0
    %3825 = vmatpush1.msra.mxu0 0.0
    %3826 = vmatprep.subr.mxu0 0.0
    %3827 = vmatpush1.msra.mxu0 0.0
    %3828 = vmatprep.subr.mxu0 0.0
    %3829 = vmatpush1.msra.mxu0 %v3146
    %3830 = vmatprep.subr.mxu0 0.0
    %3831 = vmatpush1.msra.mxu0 %v3145
    %3832 = vmatprep.subr.mxu0 0.0
    %3833 = vmatpush1.msra.mxu0 %v3144
    %3834 = vmatprep.subr.mxu0 0.0
    %3835 = vmatpush1.msra.mxu0 %v3143
    %3836 = vmatprep.subr.mxu0 0.0
    %3837 = vmatpush2.msra.mxu0 0.0
    %3838 = vmatprep.subr.mxu0 0.0
    %3839 = vmatpush2.msra.mxu0 0.0
    %3840 = vmatprep.subr.mxu0 0.0
    %3841 = vmatpush2.msra.mxu0 0.0
    %3842 = vmatprep.subr.mxu0 0.0
    %3843 = vmatpush2.msra.mxu0 0.0
    %3844 = vmatprep.subr.mxu0 0.0
    %3845 = vmatpush2.msra.mxu0 0.0
    %3846 = vmatprep.subr.mxu0 0.0
    %3847 = vmatpush2.msra.mxu0 0.0
    %3848 = vmatprep.subr.mxu0 0.0
    %3849 = vmatpush2.msra.mxu0 0.0
    %3850 = vmatprep.subr.mxu0 0.0
    %3851 = vmatpush2.msra.mxu0 0.0
    %3852 = vmatprep.subr.mxu0 0.0
    %3853 = vmatpush2.msra.mxu0 0.0
    %3854 = vmatprep.subr.mxu0 0.0
    %3855 = vmatpush2.msra.mxu0 0.0
    %3856 = vmatprep.subr.mxu0 0.0
    %3857 = vmatpush2.msra.mxu0 0.0
    %3858 = vmatprep.subr.mxu0 0.0
    %3859 = vmatpush2.msra.mxu0 0.0
    %3860 = vmatprep.subr.mxu0 0.0
    %3861 = vmatpush2.msra.mxu0 0.0
    %3862 = vmatprep.subr.mxu0 0.0
    %3863 = vmatpush2.msra.mxu0 0.0
    %3864 = vmatprep.subr.mxu0 0.0
    %3865 = vmatpush2.msra.mxu0 0.0
    %3866 = vmatprep.subr.mxu0 0.0
    %3867 = vmatpush2.msra.mxu0 0.0
    %3868 = vmatprep.mubr.f32.mxu0 0.0
    %3869 = vmatmul.mubr.f32.gmra.mxu0 %v3802
    %v3870 = vpop.f32.mrf.mxu0
    %v3871 = vadd.f32 %v3162, %v3870
    %v3872 = vpop.f32.mrf.mxu0
    %3873 = vdwg.mxu0
    %v3874 = vmax.f32 %v3871, 0.0
    %v3876 = vsel %vm845, %v3874, 0
    %3878 = vmatprep.subr.mxu0 0.0
    %3879 = vmatpush1.msra.mxu0 0.0
    %3880 = vmatprep.subr.mxu0 0.0
    %3881 = vmatpush1.msra.mxu0 0.0
    %3882 = vmatprep.subr.mxu0 0.0
    %3883 = vmatpush1.msra.mxu0 0.0
    %3884 = vmatprep.subr.mxu0 0.0
    %3885 = vmatpush1.msra.mxu0 0.0
    %3886 = vmatprep.subr.mxu0 0.0
    %3887 = vmatpush1.msra.mxu0 0.0
    %3888 = vmatprep.subr.mxu0 0.0
    %3889 = vmatpush1.msra.mxu0 0.0
    %3890 = vmatprep.subr.mxu0 0.0
    %3891 = vmatpush1.msra.mxu0 0.0
    %3892 = vmatprep.subr.mxu0 0.0
    %3893 = vmatpush1.msra.mxu0 0.0
    %3894 = vmatprep.subr.mxu0 0.0
    %3895 = vmatpush1.msra.mxu0 %v3154
    %3896 = vmatprep.subr.mxu0 0.0
    %3897 = vmatpush1.msra.mxu0 %v3153
    %3898 = vmatprep.subr.mxu0 0.0
    %3899 = vmatpush1.msra.mxu0 %v3152
    %3900 = vmatprep.subr.mxu0 0.0
    %3901 = vmatpush1.msra.mxu0 %v3151
    %3902 = vmatprep.subr.mxu0 0.0
    %3903 = vmatpush1.msra.mxu0 %v3150
    %3904 = vmatprep.subr.mxu0 0.0
    %3905 = vmatpush1.msra.mxu0 %v3149
    %3906 = vmatprep.subr.mxu0 0.0
    %3907 = vmatpush1.msra.mxu0 %v3148
    %3908 = vmatprep.subr.mxu0 0.0
    %3909 = vmatpush1.msra.mxu0 %v3147
    %3910 = vmatprep.subr.mxu0 0.0
    %3911 = vmatpush2.msra.mxu0 0.0
    %3912 = vmatprep.subr.mxu0 0.0
    %3913 = vmatpush2.msra.mxu0 0.0
    %3914 = vmatprep.subr.mxu0 0.0
    %3915 = vmatpush2.msra.mxu0 0.0
    %3916 = vmatprep.subr.mxu0 0.0
    %3917 = vmatpush2.msra.mxu0 0.0
    %3918 = vmatprep.subr.mxu0 0.0
    %3919 = vmatpush2.msra.mxu0 0.0
    %3920 = vmatprep.subr.mxu0 0.0
    %3921 = vmatpush2.msra.mxu0 0.0
    %3922 = vmatprep.subr.mxu0 0.0
    %3923 = vmatpush2.msra.mxu0 0.0
    %3924 = vmatprep.subr.mxu0 0.0
    %3925 = vmatpush2.msra.mxu0 0.0
    %3926 = vmatprep.subr.mxu0 0.0
    %3927 = vmatpush2.msra.mxu0 0.0
    %3928 = vmatprep.subr.mxu0 0.0
    %3929 = vmatpush2.msra.mxu0 0.0
    %3930 = vmatprep.subr.mxu0 0.0
    %3931 = vmatpush2.msra.mxu0 0.0
    %3932 = vmatprep.subr.mxu0 0.0
    %3933 = vmatpush2.msra.mxu0 0.0
    %3934 = vmatprep.subr.mxu0 0.0
    %3935 = vmatpush2.msra.mxu0 0.0
    %3936 = vmatprep.subr.mxu0 0.0
    %3937 = vmatpush2.msra.mxu0 0.0
    %3938 = vmatprep.subr.mxu0 0.0
    %3939 = vmatpush2.msra.mxu0 0.0
    %3940 = vmatprep.subr.mxu0 0.0
    %3941 = vmatpush2.msra.mxu0 0.0
    %3942 = vmatprep.mubr.f32.mxu0 0.0
    %3943 = vmatmul.mubr.f32.gmra.mxu0 %v3876
    %v3944 = vpop.f32.mrf.mxu0
    %v3945 = vadd.f32 %v3163, %v3944
    %v3946 = vpop.f32.mrf.mxu0
    %3947 = vdwg.mxu0
    %v3948 = vmul.f32 %v3945, %v95
    %v3949 = vsel %vm926, %v3948, -1e+30
    %v3950 = vsel %vm126, %v3949, -inf
    %3951 = vmax.xlane.f32.xlu0 %v3950
    %v3952 = vpop.xlane.xlu0 %3951
    %v3953 = vsel %vm937, %v3948, -1e+30
    %v3954 = vsel %vm126, %v3953, -inf
    %3955 = vmax.xlane.f32.xlu0 %v3954
    %v3956 = vpop.xlane.xlu0 %3955
    %v3957 = vsel %vm948, %v3948, -1e+30
    %v3958 = vsel %vm126, %v3957, -inf
    %3959 = vmax.xlane.f32.xlu0 %v3958
    %v3960 = vpop.xlane.xlu0 %3959
    %v3961 = vmul.f32 %v3952, %v956
    %v3962 = vmul.f32 %v3956, %v961
    %v3963 = vadd.f32 %v3961, %v3962
    %v3964 = vmul.f32 %v3960, %v967
    %v3965 = vadd.f32 %v3963, %v3964
    %v3966 = vsub.f32 %v3948, %v3965
    %v3967 = vmul.f32 %v3966, %v974
    %v3968 = vmul.f32 %v3967, 1.442695
    %v3969 = vpow.pop %v3968
    %v3970 = vmul.f32 %v3969, %v974
    %v3972 = vsel %vm126, %v3970, 0
    %3974 = vmatprep.subr.mxu0 0.0
    %3975 = vmatpush1.xpose.msra.mxu0 0.0
    %3976 = vmatprep.subr.mxu0 0.0
    %3977 = vmatpush1.xpose.msra.mxu0 0.0
    %3978 = vmatprep.subr.mxu0 0.0
    %3979 = vmatpush1.xpose.msra.mxu0 0.0
    %3980 = vmatprep.subr.mxu0 0.0
    %3981 = vmatpush1.xpose.msra.mxu0 0.0
    %3982 = vmatprep.subr.mxu0 0.0
    %3983 = vmatpush1.xpose.msra.mxu0 0.0
    %3984 = vmatprep.subr.mxu0 0.0
    %3985 = vmatpush1.xpose.msra.mxu0 0.0
    %3986 = vmatprep.subr.mxu0 0.0
    %3987 = vmatpush1.xpose.msra.mxu0 0.0
    %3988 = vmatprep.subr.mxu0 0.0
    %3989 = vmatpush1.xpose.msra.mxu0 0.0
    %3990 = vmatprep.subr.mxu0 0.0
    %3991 = vmatpush1.xpose.msra.mxu0 0.0
    %3992 = vmatprep.subr.mxu0 0.0
    %3993 = vmatpush1.xpose.msra.mxu0 0.0
    %3994 = vmatprep.subr.mxu0 0.0
    %3995 = vmatpush1.xpose.msra.mxu0 0.0
    %3996 = vmatprep.subr.mxu0 0.0
    %3997 = vmatpush1.xpose.msra.mxu0 0.0
    %3998 = vmatprep.subr.mxu0 0.0
    %3999 = vmatpush1.xpose.msra.mxu0 0.0
    %4000 = vmatprep.subr.mxu0 0.0
    %4001 = vmatpush1.xpose.msra.mxu0 0.0
    %4002 = vmatprep.subr.mxu0 0.0
    %4003 = vmatpush1.xpose.msra.mxu0 0.0
    %4004 = vmatprep.subr.mxu0 0.0
    %4005 = vmatpush1.xpose.msra.mxu0 %v983
    %4006 = vmatprep.subr.mxu0 0.0
    %4007 = vmatpush2.xpose.msra.mxu0 0.0
    %4008 = vmatprep.subr.mxu0 0.0
    %4009 = vmatpush2.xpose.msra.mxu0 0.0
    %4010 = vmatprep.subr.mxu0 0.0
    %4011 = vmatpush2.xpose.msra.mxu0 0.0
    %4012 = vmatprep.subr.mxu0 0.0
    %4013 = vmatpush2.xpose.msra.mxu0 0.0
    %4014 = vmatprep.subr.mxu0 0.0
    %4015 = vmatpush2.xpose.msra.mxu0 0.0
    %4016 = vmatprep.subr.mxu0 0.0
    %4017 = vmatpush2.xpose.msra.mxu0 0.0
    %4018 = vmatprep.subr.mxu0 0.0
    %4019 = vmatpush2.xpose.msra.mxu0 0.0
    %4020 = vmatprep.subr.mxu0 0.0
    %4021 = vmatpush2.xpose.msra.mxu0 0.0
    %4022 = vmatprep.subr.mxu0 0.0
    %4023 = vmatpush2.xpose.msra.mxu0 0.0
    %4024 = vmatprep.subr.mxu0 0.0
    %4025 = vmatpush2.xpose.msra.mxu0 0.0
    %4026 = vmatprep.subr.mxu0 0.0
    %4027 = vmatpush2.xpose.msra.mxu0 0.0
    %4028 = vmatprep.subr.mxu0 0.0
    %4029 = vmatpush2.xpose.msra.mxu0 0.0
    %4030 = vmatprep.subr.mxu0 0.0
    %4031 = vmatpush2.xpose.msra.mxu0 0.0
    %4032 = vmatprep.subr.mxu0 0.0
    %4033 = vmatpush2.xpose.msra.mxu0 0.0
    %4034 = vmatprep.subr.mxu0 0.0
    %4035 = vmatpush2.xpose.msra.mxu0 0.0
    %4036 = vmatprep.subr.mxu0 0.0
    %4037 = vmatpush2.xpose.msra.mxu0 0.0
    %4038 = vmatprep.mubr.f32.mxu0 0.0
    %4039 = vmatmul.mubr.f32.gmra.mxu0 %v3972
    %v4040 = vpop.f32.mrf.mxu0
    %v4041 = vadd.f32 0.0, %v4040
    %v4042 = vpop.f32.mrf.mxu0
    %4043 = vdwg.mxu0
    %v4045 = vsel %vm290, %v4041, 0
    %4047 = vmatprep.subr.mxu0 0.0
    %4048 = vmatpush1.msra.mxu0 0.0
    %4049 = vmatprep.subr.mxu0 0.0
    %4050 = vmatpush1.msra.mxu0 0.0
    %4051 = vmatprep.subr.mxu0 0.0
    %4052 = vmatpush1.msra.mxu0 0.0
    %4053 = vmatprep.subr.mxu0 0.0
    %4054 = vmatpush1.msra.mxu0 0.0
    %4055 = vmatprep.subr.mxu0 0.0
    %4056 = vmatpush1.msra.mxu0 0.0
    %4057 = vmatprep.subr.mxu0 0.0
    %4058 = vmatpush1.msra.mxu0 0.0
    %4059 = vmatprep.subr.mxu0 0.0
    %4060 = vmatpush1.msra.mxu0 0.0
    %4061 = vmatprep.subr.mxu0 0.0
    %4062 = vmatpush1.msra.mxu0 0.0
    %4063 = vmatprep.subr.mxu0 0.0
    %4064 = vmatpush1.msra.mxu0 0.0
    %4065 = vmatprep.subr.mxu0 0.0
    %4066 = vmatpush1.msra.mxu0 0.0
    %4067 = vmatprep.subr.mxu0 0.0
    %4068 = vmatpush1.msra.mxu0 0.0
    %4069 = vmatprep.subr.mxu0 0.0
    %4070 = vmatpush1.msra.mxu0 0.0
    %4071 = vmatprep.subr.mxu0 0.0
    %4072 = vmatpush1.msra.mxu0 0.0
    %4073 = vmatprep.subr.mxu0 0.0
    %4074 = vmatpush1.msra.mxu0 0.0
    %4075 = vmatprep.subr.mxu0 0.0
    %4076 = vmatpush1.msra.mxu0 0.0
    %4077 = vmatprep.subr.mxu0 0.0
    %4078 = vmatpush1.msra.mxu0 %v77
    %4079 = vmatprep.subr.mxu0 0.0
    %4080 = vmatpush2.msra.mxu0 0.0
    %4081 = vmatprep.subr.mxu0 0.0
    %4082 = vmatpush2.msra.mxu0 0.0
    %4083 = vmatprep.subr.mxu0 0.0
    %4084 = vmatpush2.msra.mxu0 0.0
    %4085 = vmatprep.subr.mxu0 0.0
    %4086 = vmatpush2.msra.mxu0 0.0
    %4087 = vmatprep.subr.mxu0 0.0
    %4088 = vmatpush2.msra.mxu0 0.0
    %4089 = vmatprep.subr.mxu0 0.0
    %4090 = vmatpush2.msra.mxu0 0.0
    %4091 = vmatprep.subr.mxu0 0.0
    %4092 = vmatpush2.msra.mxu0 0.0
    %4093 = vmatprep.subr.mxu0 0.0
    %4094 = vmatpush2.msra.mxu0 0.0
    %4095 = vmatprep.subr.mxu0 0.0
    %4096 = vmatpush2.msra.mxu0 0.0
    %4097 = vmatprep.subr.mxu0 0.0
    %4098 = vmatpush2.msra.mxu0 0.0
    %4099 = vmatprep.subr.mxu0 0.0
    %4100 = vmatpush2.msra.mxu0 0.0
    %4101 = vmatprep.subr.mxu0 0.0
    %4102 = vmatpush2.msra.mxu0 0.0
    %4103 = vmatprep.subr.mxu0 0.0
    %4104 = vmatpush2.msra.mxu0 0.0
    %4105 = vmatprep.subr.mxu0 0.0
    %4106 = vmatpush2.msra.mxu0 0.0
    %4107 = vmatprep.subr.mxu0 0.0
    %4108 = vmatpush2.msra.mxu0 0.0
    %4109 = vmatprep.subr.mxu0 0.0
    %4110 = vmatpush2.msra.mxu0 0.0
    %4111 = vmatprep.mubr.f32.mxu0 0.0
    %4112 = vmatmul.mubr.f32.gmra.mxu0 %v4045
    %v4113 = vpop.f32.mrf.mxu0
    %v4114 = vadd.f32 %v1058, %v4113
    %v4115 = vpop.f32.mrf.mxu0
    %4116 = vdwg.mxu0
    %v4117 = vrcp.pop %v4114
    %v4118 = vmul.f32 %v3970, %v4117
    %v4119 = vmul.f32 %v3948, %v1058
    %v4120 = vsub.f32 0.0, %v4119
    %v4121 = vmul.f32 %v4120, 1.442695
    %v4122 = vpow.pop %v4121
    %v4123 = vadd.f32 %v4122, 1.0
    %v4124 = vrcp.pop %v4123
    %v4125 = vmul.f32 %v4124, %v1058
    %v4126 = vadd.f32 %v4118, %v4125
    %s4127 = scalar_lea.vmem [#allocation4], 1152
    %v4128 = vld [vmem:[%s4127] sm:$0xff]
    %v4129 = vld [vmem:[%s4127 + $0x10] sm:$0xff]
    %v4130 = vld [vmem:[%s4127 + $0x20] sm:$0xff]
    %v4131 = vld [vmem:[%s4127 + $0x28] sm:$0xff]
    %v4132 = vld [vmem:[%s4127 + $0x30] sm:$0xff]
    %v4133 = vld [vmem:[%s4127 + $0x38] sm:$0xff]
    %v4134 = vld [vmem:[%s4127 + $0x40] sm:$0xff]
    %v4135 = vld [vmem:[%s4127 + $0x48] sm:$0xff]
    %v4136 = vld [vmem:[%s4127 + $0x50] sm:$0xff]
    %v4137 = vld [vmem:[%s4127 + $0x58] sm:$0xff]
    %v4138 = vld [vmem:[%s4127 + $0x60] sm:$0xff]
    %v4139 = vld [vmem:[%s4127 + $0x70] sm:$0xff]
    %v4140 = vld [vmem:[%s4127 + $0x80] sm:$0xff]
    %v4141 = vld [vmem:[%s4127 + $0x90] sm:$0xff]
    %v4142 = vld [vmem:[%s4127 + $0xa0] sm:$0xff]
    %v4143 = vld [vmem:[%s4127 + $0xb0] sm:$0xff]
    %v4144 = vld [vmem:[%s4127 + $0xc0] sm:$0xff]
    %v4145 = vld [vmem:[%s4127 + $0xd0] sm:$0xff]
    %v4146 = vld [vmem:[%s4127 + $0xe0] sm:$0xff]
    %v4147 = vld [vmem:[%s4127 + $0xf0] sm:$0xff]
    %v4148 = vld [vmem:[%s4127 + $0x100] sm:$0xff]
    %v4149 = vld [vmem:[%s4127 + $0x110] sm:$0xff]
    %s4150 = scalar_lea.vmem [#allocation6], 64
    %v4151 = vld [vmem:[%s4150] ss:$0 sm:$0xff]
    %s4152 = scalar_lea.vmem %s4150, 1 [#allocation6]
    %v4153 = vld [vmem:[%s4152] ss:$8 sm:$0x3]
    %v4154 = vld [vmem:[%s4150 + $0x2] ss:$0 sm:$0xff]
    %v4155 = vld [vmem:[%s4150 + $0x3] ss:$0 sm:$0xff]
    %v4156 = vld [vmem:[%s4150 + $0x4] ss:$0 sm:$0xff]
    %v4157 = vld [vmem:[%s4150 + $0x5] ss:$0 sm:$0xff]
    %v4158 = vld [vmem:[%s4150 + $0x6] ss:$0 sm:$0xff]
    %4159 = vmatprep.subr.mxu0 0.0
    %4160 = vmatpush1.msra.mxu0 0.0
    %4161 = vmatprep.subr.mxu0 0.0
    %4162 = vmatpush1.msra.mxu0 0.0
    %4163 = vmatprep.subr.mxu0 0.0
    %4164 = vmatpush1.msra.mxu0 0.0
    %4165 = vmatprep.subr.mxu0 0.0
    %4166 = vmatpush1.msra.mxu0 0.0
    %4167 = vmatprep.subr.mxu0 0.0
    %4168 = vmatpush1.msra.mxu0 0.0
    %4169 = vmatprep.subr.mxu0 0.0
    %4170 = vmatpush1.msra.mxu0 0.0
    %4171 = vmatprep.subr.mxu0 0.0
    %4172 = vmatpush1.msra.mxu0 0.0
    %4173 = vmatprep.subr.mxu0 0.0
    %4174 = vmatpush1.msra.mxu0 0.0
    %4175 = vmatprep.subr.mxu0 0.0
    %4176 = vmatpush1.msra.mxu0 0.0
    %4177 = vmatprep.subr.mxu0 0.0
    %4178 = vmatpush1.msra.mxu0 0.0
    %4179 = vmatprep.subr.mxu0 0.0
    %4180 = vmatpush1.msra.mxu0 0.0
    %4181 = vmatprep.subr.mxu0 0.0
    %4182 = vmatpush1.msra.mxu0 0.0
    %4183 = vmatprep.subr.mxu0 0.0
    %4184 = vmatpush1.msra.mxu0 0.0
    %4185 = vmatprep.subr.mxu0 0.0
    %4186 = vmatpush1.msra.mxu0 0.0
    %4187 = vmatprep.subr.mxu0 0.0
    %4188 = vmatpush1.msra.mxu0 %v4129
    %4189 = vmatprep.subr.mxu0 0.0
    %4190 = vmatpush1.msra.mxu0 %v4128
    %4191 = vmatprep.subr.mxu0 0.0
    %4192 = vmatpush2.msra.mxu0 0.0
    %4193 = vmatprep.subr.mxu0 0.0
    %4194 = vmatpush2.msra.mxu0 0.0
    %4195 = vmatprep.subr.mxu0 0.0
    %4196 = vmatpush2.msra.mxu0 0.0
    %4197 = vmatprep.subr.mxu0 0.0
    %4198 = vmatpush2.msra.mxu0 0.0
    %4199 = vmatprep.subr.mxu0 0.0
    %4200 = vmatpush2.msra.mxu0 0.0
    %4201 = vmatprep.subr.mxu0 0.0
    %4202 = vmatpush2.msra.mxu0 0.0
    %4203 = vmatprep.subr.mxu0 0.0
    %4204 = vmatpush2.msra.mxu0 0.0
    %4205 = vmatprep.subr.mxu0 0.0
    %4206 = vmatpush2.msra.mxu0 0.0
    %4207 = vmatprep.subr.mxu0 0.0
    %4208 = vmatpush2.msra.mxu0 0.0
    %4209 = vmatprep.subr.mxu0 0.0
    %4210 = vmatpush2.msra.mxu0 0.0
    %4211 = vmatprep.subr.mxu0 0.0
    %4212 = vmatpush2.msra.mxu0 0.0
    %4213 = vmatprep.subr.mxu0 0.0
    %4214 = vmatpush2.msra.mxu0 0.0
    %4215 = vmatprep.subr.mxu0 0.0
    %4216 = vmatpush2.msra.mxu0 0.0
    %4217 = vmatprep.subr.mxu0 0.0
    %4218 = vmatpush2.msra.mxu0 0.0
    %4219 = vmatprep.subr.mxu0 0.0
    %4220 = vmatpush2.msra.mxu0 0.0
    %4221 = vmatprep.subr.mxu0 0.0
    %4222 = vmatpush2.msra.mxu0 0.0
    %4223 = vmatprep.mubr.f32.mxu0 0.0
    %4224 = vmatmul.mubr.f32.gmra.mxu0 %v128
    %v4225 = vpop.f32.mrf.mxu0
    %v4226 = vadd.f32 %v4151, %v4225
    %v4227 = vpop.f32.mrf.mxu0
    %4228 = vdwg.mxu0
    %v4229 = vmax.f32 %v4226, 0.0
    %v4231 = vlaneseq
    %v4232 = vshrl.u32 %v4231, 7
    %v4233 = vsub.s32 0, %v4232
    %v4234 = vrot.slane %v4153, %v4233
    %v4235 = vlaneseq
    %v4236 = vshrl.u32 %v4235, 7
    %v4237 = vsub.s32 1, %v4236
    %v4238 = vrot.slane %v4153, %v4237
    %v4242 = vsel %vm212, %v4229, 0
    %4244 = vmatprep.subr.mxu0 0.0
    %4245 = vmatpush1.msra.mxu0 0.0
    %4246 = vmatprep.subr.mxu0 0.0
    %4247 = vmatpush1.msra.mxu0 0.0
    %4248 = vmatprep.subr.mxu0 0.0
    %4249 = vmatpush1.msra.mxu0 0.0
    %4250 = vmatprep.subr.mxu0 0.0
    %4251 = vmatpush1.msra.mxu0 0.0
    %4252 = vmatprep.subr.mxu0 0.0
    %4253 = vmatpush1.msra.mxu0 0.0
    %4254 = vmatprep.subr.mxu0 0.0
    %4255 = vmatpush1.msra.mxu0 0.0
    %4256 = vmatprep.subr.mxu0 0.0
    %4257 = vmatpush1.msra.mxu0 0.0
    %4258 = vmatprep.subr.mxu0 0.0
    %4259 = vmatpush1.msra.mxu0 0.0
    %4260 = vmatprep.subr.mxu0 0.0
    %4261 = vmatpush1.msra.mxu0 0.0
    %4262 = vmatprep.subr.mxu0 0.0
    %4263 = vmatpush1.msra.mxu0 0.0
    %4264 = vmatprep.subr.mxu0 0.0
    %4265 = vmatpush1.msra.mxu0 0.0
    %4266 = vmatprep.subr.mxu0 0.0
    %4267 = vmatpush1.msra.mxu0 0.0
    %4268 = vmatprep.subr.mxu0 %v4137
    %4269 = vmatpush1.msra.mxu0 %v4136
    %4270 = vmatprep.subr.mxu0 %v4135
    %4271 = vmatpush1.msra.mxu0 %v4134
    %4272 = vmatprep.subr.mxu0 %v4133
    %4273 = vmatpush1.msra.mxu0 %v4132
    %4274 = vmatprep.subr.mxu0 %v4131
    %4275 = vmatpush1.msra.mxu0 %v4130
    %4276 = vmatprep.subr.mxu0 0.0
    %4277 = vmatpush2.msra.mxu0 0.0
    %4278 = vmatprep.subr.mxu0 0.0
    %4279 = vmatpush2.msra.mxu0 0.0
    %4280 = vmatprep.subr.mxu0 0.0
    %4281 = vmatpush2.msra.mxu0 0.0
    %4282 = vmatprep.subr.mxu0 0.0
    %4283 = vmatpush2.msra.mxu0 0.0
    %4284 = vmatprep.subr.mxu0 0.0
    %4285 = vmatpush2.msra.mxu0 0.0
    %4286 = vmatprep.subr.mxu0 0.0
    %4287 = vmatpush2.msra.mxu0 0.0
    %4288 = vmatprep.subr.mxu0 0.0
    %4289 = vmatpush2.msra.mxu0 0.0
    %4290 = vmatprep.subr.mxu0 0.0
    %4291 = vmatpush2.msra.mxu0 0.0
    %4292 = vmatprep.subr.mxu0 0.0
    %4293 = vmatpush2.msra.mxu0 0.0
    %4294 = vmatprep.subr.mxu0 0.0
    %4295 = vmatpush2.msra.mxu0 0.0
    %4296 = vmatprep.subr.mxu0 0.0
    %4297 = vmatpush2.msra.mxu0 0.0
    %4298 = vmatprep.subr.mxu0 0.0
    %4299 = vmatpush2.msra.mxu0 0.0
    %4300 = vmatprep.subr.mxu0 0.0
    %4301 = vmatpush2.msra.mxu0 0.0
    %4302 = vmatprep.subr.mxu0 0.0
    %4303 = vmatpush2.msra.mxu0 0.0
    %4304 = vmatprep.subr.mxu0 0.0
    %4305 = vmatpush2.msra.mxu0 0.0
    %4306 = vmatprep.subr.mxu0 0.0
    %4307 = vmatpush2.msra.mxu0 0.0
    %4308 = vmatprep.mubr.f32.mxu0 0.0
    %4309 = vmatmul.mubr.f32.gmra.mxu0 %v4242
    %v4310 = vpop.f32.mrf.mxu0
    %v4311 = vadd.f32 %v4234, %v4310
    %v4312 = vpop.f32.mrf.mxu0
    %v4313 = vadd.f32 %v4238, %v4312
    %4314 = vdwg.mxu0
    %4316 = vrot.lane.b32.xlu0 %v4311, 96
    %v4317 = vpop.permute.xlu0 %4316
    %v4318 = vsel %vm290, %v4311, 0
    %v4320 = vsel %vm290, %v4317, 0
    %4322 = vmatprep.subr.mxu0 0.0
    %4323 = vmatpush1.xpose.msra.mxu0 0.0
    %4324 = vmatprep.subr.mxu0 0.0
    %4325 = vmatpush1.xpose.msra.mxu0 0.0
    %4326 = vmatprep.subr.mxu0 0.0
    %4327 = vmatpush1.xpose.msra.mxu0 0.0
    %4328 = vmatprep.subr.mxu0 0.0
    %4329 = vmatpush1.xpose.msra.mxu0 0.0
    %4330 = vmatprep.subr.mxu0 0.0
    %4331 = vmatpush1.xpose.msra.mxu0 0.0
    %4332 = vmatprep.subr.mxu0 0.0
    %4333 = vmatpush1.xpose.msra.mxu0 0.0
    %4334 = vmatprep.subr.mxu0 0.0
    %4335 = vmatpush1.xpose.msra.mxu0 0.0
    %4336 = vmatprep.subr.mxu0 0.0
    %4337 = vmatpush1.xpose.msra.mxu0 0.0
    %4338 = vmatprep.subr.mxu0 0.0
    %4339 = vmatpush1.xpose.msra.mxu0 0.0
    %4340 = vmatprep.subr.mxu0 0.0
    %4341 = vmatpush1.xpose.msra.mxu0 0.0
    %4342 = vmatprep.subr.mxu0 0.0
    %4343 = vmatpush1.xpose.msra.mxu0 0.0
    %4344 = vmatprep.subr.mxu0 0.0
    %4345 = vmatpush1.xpose.msra.mxu0 0.0
    %4346 = vmatprep.subr.mxu0 0.0
    %4347 = vmatpush1.xpose.msra.mxu0 0.0
    %4348 = vmatprep.subr.mxu0 0.0
    %4349 = vmatpush1.xpose.msra.mxu0 0.0
    %4350 = vmatprep.subr.mxu0 0.0
    %4351 = vmatpush1.xpose.msra.mxu0 0.0
    %4352 = vmatprep.subr.mxu0 0.0
    %4353 = vmatpush1.xpose.msra.mxu0 %v4320
    %4354 = vmatprep.subr.mxu0 0.0
    %4355 = vmatpush2.xpose.msra.mxu0 0.0
    %4356 = vmatprep.subr.mxu0 0.0
    %4357 = vmatpush2.xpose.msra.mxu0 0.0
    %4358 = vmatprep.subr.mxu0 0.0
    %4359 = vmatpush2.xpose.msra.mxu0 0.0
    %4360 = vmatprep.subr.mxu0 0.0
    %4361 = vmatpush2.xpose.msra.mxu0 0.0
    %4362 = vmatprep.subr.mxu0 0.0
    %4363 = vmatpush2.xpose.msra.mxu0 0.0
    %4364 = vmatprep.subr.mxu0 0.0
    %4365 = vmatpush2.xpose.msra.mxu0 0.0
    %4366 = vmatprep.subr.mxu0 0.0
    %4367 = vmatpush2.xpose.msra.mxu0 0.0
    %4368 = vmatprep.subr.mxu0 0.0
    %4369 = vmatpush2.xpose.msra.mxu0 0.0
    %4370 = vmatprep.subr.mxu0 0.0
    %4371 = vmatpush2.xpose.msra.mxu0 0.0
    %4372 = vmatprep.subr.mxu0 0.0
    %4373 = vmatpush2.xpose.msra.mxu0 0.0
    %4374 = vmatprep.subr.mxu0 0.0
    %4375 = vmatpush2.xpose.msra.mxu0 0.0
    %4376 = vmatprep.subr.mxu0 0.0
    %4377 = vmatpush2.xpose.msra.mxu0 0.0
    %4378 = vmatprep.subr.mxu0 0.0
    %4379 = vmatpush2.xpose.msra.mxu0 0.0
    %4380 = vmatprep.subr.mxu0 0.0
    %4381 = vmatpush2.xpose.msra.mxu0 0.0
    %4382 = vmatprep.subr.mxu0 0.0
    %4383 = vmatpush2.xpose.msra.mxu0 0.0
    %4384 = vmatprep.subr.mxu0 0.0
    %4385 = vmatpush2.xpose.msra.mxu0 0.0
    %4386 = vmatprep.mubr.f32.mxu0 0.0
    %4387 = vmatmul.mubr.f32.gmra.mxu0 %v4318
    %v4388 = vpop.f32.mrf.mxu0
    %v4389 = vadd.f32 0.0, %v4388
    %v4390 = vpop.f32.mrf.mxu0
    %4391 = vdwg.mxu0
    %v4392 = vmul.f32 %v4389, 0.35355338
    %v4393 = vsel %vm290, %v4392, -inf
    %4394 = vmax.xlane.f32.xlu0 %v4393
    %v4395 = vpop.xlane.xlu0 %4394
    %v4396 = vsub.f32 %v4392, %v4395
    %v4397 = vmul.f32 %v4396, 1.442695
    %v4398 = vpow.pop %v4397
    %v4399 = vsel %vm290, %v4398, 0.0
    %4400 = vadd.xlane.f32.xlu0 %v4399
    %v4401 = vpop.xlane.xlu0 %4400
    %v4402 = vrcp.pop %v4401
    %v4403 = vmul.f32 %v4398, %v4402
    %4404 = vrot.lane.b32.xlu0 %v4311, 120
    %v4405 = vpop.permute.xlu0 %4404
    %4406 = vrot.lane.b32.xlu0 %v4311, 88
    %v4407 = vpop.permute.xlu0 %4406
    %v4408 = vsel %vm290, %v4405, 0
    %v4410 = vsel %vm290, %v4407, 0
    %4412 = vmatprep.subr.mxu0 0.0
    %4413 = vmatpush1.xpose.msra.mxu0 0.0
    %4414 = vmatprep.subr.mxu0 0.0
    %4415 = vmatpush1.xpose.msra.mxu0 0.0
    %4416 = vmatprep.subr.mxu0 0.0
    %4417 = vmatpush1.xpose.msra.mxu0 0.0
    %4418 = vmatprep.subr.mxu0 0.0
    %4419 = vmatpush1.xpose.msra.mxu0 0.0
    %4420 = vmatprep.subr.mxu0 0.0
    %4421 = vmatpush1.xpose.msra.mxu0 0.0
    %4422 = vmatprep.subr.mxu0 0.0
    %4423 = vmatpush1.xpose.msra.mxu0 0.0
    %4424 = vmatprep.subr.mxu0 0.0
    %4425 = vmatpush1.xpose.msra.mxu0 0.0
    %4426 = vmatprep.subr.mxu0 0.0
    %4427 = vmatpush1.xpose.msra.mxu0 0.0
    %4428 = vmatprep.subr.mxu0 0.0
    %4429 = vmatpush1.xpose.msra.mxu0 0.0
    %4430 = vmatprep.subr.mxu0 0.0
    %4431 = vmatpush1.xpose.msra.mxu0 0.0
    %4432 = vmatprep.subr.mxu0 0.0
    %4433 = vmatpush1.xpose.msra.mxu0 0.0
    %4434 = vmatprep.subr.mxu0 0.0
    %4435 = vmatpush1.xpose.msra.mxu0 0.0
    %4436 = vmatprep.subr.mxu0 0.0
    %4437 = vmatpush1.xpose.msra.mxu0 0.0
    %4438 = vmatprep.subr.mxu0 0.0
    %4439 = vmatpush1.xpose.msra.mxu0 0.0
    %4440 = vmatprep.subr.mxu0 0.0
    %4441 = vmatpush1.xpose.msra.mxu0 0.0
    %4442 = vmatprep.subr.mxu0 0.0
    %4443 = vmatpush1.xpose.msra.mxu0 %v4410
    %4444 = vmatprep.subr.mxu0 0.0
    %4445 = vmatpush2.xpose.msra.mxu0 0.0
    %4446 = vmatprep.subr.mxu0 0.0
    %4447 = vmatpush2.xpose.msra.mxu0 0.0
    %4448 = vmatprep.subr.mxu0 0.0
    %4449 = vmatpush2.xpose.msra.mxu0 0.0
    %4450 = vmatprep.subr.mxu0 0.0
    %4451 = vmatpush2.xpose.msra.mxu0 0.0
    %4452 = vmatprep.subr.mxu0 0.0
    %4453 = vmatpush2.xpose.msra.mxu0 0.0
    %4454 = vmatprep.subr.mxu0 0.0
    %4455 = vmatpush2.xpose.msra.mxu0 0.0
    %4456 = vmatprep.subr.mxu0 0.0
    %4457 = vmatpush2.xpose.msra.mxu0 0.0
    %4458 = vmatprep.subr.mxu0 0.0
    %4459 = vmatpush2.xpose.msra.mxu0 0.0
    %4460 = vmatprep.subr.mxu0 0.0
    %4461 = vmatpush2.xpose.msra.mxu0 0.0
    %4462 = vmatprep.subr.mxu0 0.0
    %4463 = vmatpush2.xpose.msra.mxu0 0.0
    %4464 = vmatprep.subr.mxu0 0.0
    %4465 = vmatpush2.xpose.msra.mxu0 0.0
    %4466 = vmatprep.subr.mxu0 0.0
    %4467 = vmatpush2.xpose.msra.mxu0 0.0
    %4468 = vmatprep.subr.mxu0 0.0
    %4469 = vmatpush2.xpose.msra.mxu0 0.0
    %4470 = vmatprep.subr.mxu0 0.0
    %4471 = vmatpush2.xpose.msra.mxu0 0.0
    %4472 = vmatprep.subr.mxu0 0.0
    %4473 = vmatpush2.xpose.msra.mxu0 0.0
    %4474 = vmatprep.subr.mxu0 0.0
    %4475 = vmatpush2.xpose.msra.mxu0 0.0
    %4476 = vmatprep.mubr.f32.mxu0 0.0
    %4477 = vmatmul.mubr.f32.gmra.mxu0 %v4408
    %v4478 = vpop.f32.mrf.mxu0
    %v4479 = vadd.f32 0.0, %v4478
    %v4480 = vpop.f32.mrf.mxu0
    %4481 = vdwg.mxu0
    %v4482 = vmul.f32 %v4479, 0.35355338
    %v4483 = vsel %vm290, %v4482, -inf
    %4484 = vmax.xlane.f32.xlu0 %v4483
    %v4485 = vpop.xlane.xlu0 %4484
    %v4486 = vsub.f32 %v4482, %v4485
    %v4487 = vmul.f32 %v4486, 1.442695
    %v4488 = vpow.pop %v4487
    %v4489 = vsel %vm290, %v4488, 0.0
    %4490 = vadd.xlane.f32.xlu0 %v4489
    %v4491 = vpop.xlane.xlu0 %4490
    %v4492 = vrcp.pop %v4491
    %v4493 = vmul.f32 %v4488, %v4492
    %4494 = vrot.lane.b32.xlu0 %v4311, 112
    %v4495 = vpop.permute.xlu0 %4494
    %4496 = vrot.lane.b32.xlu0 %v4311, 80
    %v4497 = vpop.permute.xlu0 %4496
    %v4498 = vsel %vm290, %v4495, 0
    %v4500 = vsel %vm290, %v4497, 0
    %4502 = vmatprep.subr.mxu0 0.0
    %4503 = vmatpush1.xpose.msra.mxu0 0.0
    %4504 = vmatprep.subr.mxu0 0.0
    %4505 = vmatpush1.xpose.msra.mxu0 0.0
    %4506 = vmatprep.subr.mxu0 0.0
    %4507 = vmatpush1.xpose.msra.mxu0 0.0
    %4508 = vmatprep.subr.mxu0 0.0
    %4509 = vmatpush1.xpose.msra.mxu0 0.0
    %4510 = vmatprep.subr.mxu0 0.0
    %4511 = vmatpush1.xpose.msra.mxu0 0.0
    %4512 = vmatprep.subr.mxu0 0.0
    %4513 = vmatpush1.xpose.msra.mxu0 0.0
    %4514 = vmatprep.subr.mxu0 0.0
    %4515 = vmatpush1.xpose.msra.mxu0 0.0
    %4516 = vmatprep.subr.mxu0 0.0
    %4517 = vmatpush1.xpose.msra.mxu0 0.0
    %4518 = vmatprep.subr.mxu0 0.0
    %4519 = vmatpush1.xpose.msra.mxu0 0.0
    %4520 = vmatprep.subr.mxu0 0.0
    %4521 = vmatpush1.xpose.msra.mxu0 0.0
    %4522 = vmatprep.subr.mxu0 0.0
    %4523 = vmatpush1.xpose.msra.mxu0 0.0
    %4524 = vmatprep.subr.mxu0 0.0
    %4525 = vmatpush1.xpose.msra.mxu0 0.0
    %4526 = vmatprep.subr.mxu0 0.0
    %4527 = vmatpush1.xpose.msra.mxu0 0.0
    %4528 = vmatprep.subr.mxu0 0.0
    %4529 = vmatpush1.xpose.msra.mxu0 0.0
    %4530 = vmatprep.subr.mxu0 0.0
    %4531 = vmatpush1.xpose.msra.mxu0 0.0
    %4532 = vmatprep.subr.mxu0 0.0
    %4533 = vmatpush1.xpose.msra.mxu0 %v4500
    %4534 = vmatprep.subr.mxu0 0.0
    %4535 = vmatpush2.xpose.msra.mxu0 0.0
    %4536 = vmatprep.subr.mxu0 0.0
    %4537 = vmatpush2.xpose.msra.mxu0 0.0
    %4538 = vmatprep.subr.mxu0 0.0
    %4539 = vmatpush2.xpose.msra.mxu0 0.0
    %4540 = vmatprep.subr.mxu0 0.0
    %4541 = vmatpush2.xpose.msra.mxu0 0.0
    %4542 = vmatprep.subr.mxu0 0.0
    %4543 = vmatpush2.xpose.msra.mxu0 0.0
    %4544 = vmatprep.subr.mxu0 0.0
    %4545 = vmatpush2.xpose.msra.mxu0 0.0
    %4546 = vmatprep.subr.mxu0 0.0
    %4547 = vmatpush2.xpose.msra.mxu0 0.0
    %4548 = vmatprep.subr.mxu0 0.0
    %4549 = vmatpush2.xpose.msra.mxu0 0.0
    %4550 = vmatprep.subr.mxu0 0.0
    %4551 = vmatpush2.xpose.msra.mxu0 0.0
    %4552 = vmatprep.subr.mxu0 0.0
    %4553 = vmatpush2.xpose.msra.mxu0 0.0
    %4554 = vmatprep.subr.mxu0 0.0
    %4555 = vmatpush2.xpose.msra.mxu0 0.0
    %4556 = vmatprep.subr.mxu0 0.0
    %4557 = vmatpush2.xpose.msra.mxu0 0.0
    %4558 = vmatprep.subr.mxu0 0.0
    %4559 = vmatpush2.xpose.msra.mxu0 0.0
    %4560 = vmatprep.subr.mxu0 0.0
    %4561 = vmatpush2.xpose.msra.mxu0 0.0
    %4562 = vmatprep.subr.mxu0 0.0
    %4563 = vmatpush2.xpose.msra.mxu0 0.0
    %4564 = vmatprep.subr.mxu0 0.0
    %4565 = vmatpush2.xpose.msra.mxu0 0.0
    %4566 = vmatprep.mubr.f32.mxu0 0.0
    %4567 = vmatmul.mubr.f32.gmra.mxu0 %v4498
    %v4568 = vpop.f32.mrf.mxu0
    %v4569 = vadd.f32 0.0, %v4568
    %v4570 = vpop.f32.mrf.mxu0
    %4571 = vdwg.mxu0
    %v4572 = vmul.f32 %v4569, 0.35355338
    %v4573 = vsel %vm290, %v4572, -inf
    %4574 = vmax.xlane.f32.xlu0 %v4573
    %v4575 = vpop.xlane.xlu0 %4574
    %v4576 = vsub.f32 %v4572, %v4575
    %v4577 = vmul.f32 %v4576, 1.442695
    %v4578 = vpow.pop %v4577
    %v4579 = vsel %vm290, %v4578, 0.0
    %4580 = vadd.xlane.f32.xlu0 %v4579
    %v4581 = vpop.xlane.xlu0 %4580
    %v4582 = vrcp.pop %v4581
    %v4583 = vmul.f32 %v4578, %v4582
    %4584 = vrot.lane.b32.xlu0 %v4311, 104
    %v4585 = vpop.permute.xlu0 %4584
    %4586 = vrot.lane.b32.xlu0 %v4311, 72
    %v4587 = vpop.permute.xlu0 %4586
    %v4588 = vsel %vm290, %v4585, 0
    %v4590 = vsel %vm290, %v4587, 0
    %4592 = vmatprep.subr.mxu0 0.0
    %4593 = vmatpush1.xpose.msra.mxu0 0.0
    %4594 = vmatprep.subr.mxu0 0.0
    %4595 = vmatpush1.xpose.msra.mxu0 0.0
    %4596 = vmatprep.subr.mxu0 0.0
    %4597 = vmatpush1.xpose.msra.mxu0 0.0
    %4598 = vmatprep.subr.mxu0 0.0
    %4599 = vmatpush1.xpose.msra.mxu0 0.0
    %4600 = vmatprep.subr.mxu0 0.0
    %4601 = vmatpush1.xpose.msra.mxu0 0.0
    %4602 = vmatprep.subr.mxu0 0.0
    %4603 = vmatpush1.xpose.msra.mxu0 0.0
    %4604 = vmatprep.subr.mxu0 0.0
    %4605 = vmatpush1.xpose.msra.mxu0 0.0
    %4606 = vmatprep.subr.mxu0 0.0
    %4607 = vmatpush1.xpose.msra.mxu0 0.0
    %4608 = vmatprep.subr.mxu0 0.0
    %4609 = vmatpush1.xpose.msra.mxu0 0.0
    %4610 = vmatprep.subr.mxu0 0.0
    %4611 = vmatpush1.xpose.msra.mxu0 0.0
    %4612 = vmatprep.subr.mxu0 0.0
    %4613 = vmatpush1.xpose.msra.mxu0 0.0
    %4614 = vmatprep.subr.mxu0 0.0
    %4615 = vmatpush1.xpose.msra.mxu0 0.0
    %4616 = vmatprep.subr.mxu0 0.0
    %4617 = vmatpush1.xpose.msra.mxu0 0.0
    %4618 = vmatprep.subr.mxu0 0.0
    %4619 = vmatpush1.xpose.msra.mxu0 0.0
    %4620 = vmatprep.subr.mxu0 0.0
    %4621 = vmatpush1.xpose.msra.mxu0 0.0
    %4622 = vmatprep.subr.mxu0 0.0
    %4623 = vmatpush1.xpose.msra.mxu0 %v4590
    %4624 = vmatprep.subr.mxu0 0.0
    %4625 = vmatpush2.xpose.msra.mxu0 0.0
    %4626 = vmatprep.subr.mxu0 0.0
    %4627 = vmatpush2.xpose.msra.mxu0 0.0
    %4628 = vmatprep.subr.mxu0 0.0
    %4629 = vmatpush2.xpose.msra.mxu0 0.0
    %4630 = vmatprep.subr.mxu0 0.0
    %4631 = vmatpush2.xpose.msra.mxu0 0.0
    %4632 = vmatprep.subr.mxu0 0.0
    %4633 = vmatpush2.xpose.msra.mxu0 0.0
    %4634 = vmatprep.subr.mxu0 0.0
    %4635 = vmatpush2.xpose.msra.mxu0 0.0
    %4636 = vmatprep.subr.mxu0 0.0
    %4637 = vmatpush2.xpose.msra.mxu0 0.0
    %4638 = vmatprep.subr.mxu0 0.0
    %4639 = vmatpush2.xpose.msra.mxu0 0.0
    %4640 = vmatprep.subr.mxu0 0.0
    %4641 = vmatpush2.xpose.msra.mxu0 0.0
    %4642 = vmatprep.subr.mxu0 0.0
    %4643 = vmatpush2.xpose.msra.mxu0 0.0
    %4644 = vmatprep.subr.mxu0 0.0
    %4645 = vmatpush2.xpose.msra.mxu0 0.0
    %4646 = vmatprep.subr.mxu0 0.0
    %4647 = vmatpush2.xpose.msra.mxu0 0.0
    %4648 = vmatprep.subr.mxu0 0.0
    %4649 = vmatpush2.xpose.msra.mxu0 0.0
    %4650 = vmatprep.subr.mxu0 0.0
    %4651 = vmatpush2.xpose.msra.mxu0 0.0
    %4652 = vmatprep.subr.mxu0 0.0
    %4653 = vmatpush2.xpose.msra.mxu0 0.0
    %4654 = vmatprep.subr.mxu0 0.0
    %4655 = vmatpush2.xpose.msra.mxu0 0.0
    %4656 = vmatprep.mubr.f32.mxu0 0.0
    %4657 = vmatmul.mubr.f32.gmra.mxu0 %v4588
    %v4658 = vpop.f32.mrf.mxu0
    %v4659 = vadd.f32 0.0, %v4658
    %v4660 = vpop.f32.mrf.mxu0
    %4661 = vdwg.mxu0
    %v4662 = vmul.f32 %v4659, 0.35355338
    %v4663 = vsel %vm290, %v4662, -inf
    %4664 = vmax.xlane.f32.xlu0 %v4663
    %v4665 = vpop.xlane.xlu0 %4664
    %v4666 = vsub.f32 %v4662, %v4665
    %v4667 = vmul.f32 %v4666, 1.442695
    %v4668 = vpow.pop %v4667
    %v4669 = vsel %vm290, %v4668, 0.0
    %4670 = vadd.xlane.f32.xlu0 %v4669
    %v4671 = vpop.xlane.xlu0 %4670
    %v4672 = vrcp.pop %v4671
    %v4673 = vmul.f32 %v4668, %v4672
    %4675 = vrot.lane.b32.xlu0 %v4493, 8
    %v4676 = vpop.permute.xlu0 %4675
    %4679 = vrot.lane.b32.xlu0 %v4583, 16
    %v4680 = vpop.permute.xlu0 %4679
    %4683 = vrot.lane.b32.xlu0 %v4673, 24
    %v4684 = vpop.permute.xlu0 %4683
    %v4686 = vsel %vm290, %v4403, %v4676
    %v4687 = vsel %vm126, %v4686, %v4680
    %v4688 = vsel %vm661, %v4687, %v4684
    %4690 = vrot.lane.b32.xlu0 %v4313, 64
    %v4691 = vpop.permute.xlu0 %4690
    %4692 = vrot.lane.b32.xlu0 %v4313, 32
    %v4693 = vpop.permute.xlu0 %4692
    %4694 = vrot.lane.b32.xlu0 %v4311, 64
    %v4695 = vpop.permute.xlu0 %4694
    %4696 = vrot.lane.b32.xlu0 %v4317, 64
    %v4697 = vpop.permute.xlu0 %4696
    %4698 = vrot.lane.b32.xlu0 %v4691, 64
    %v4699 = vpop.permute.xlu0 %4698
    %4700 = vrot.lane.b32.xlu0 %v4693, 64
    %v4701 = vpop.permute.xlu0 %4700
    %v4707 = vsel %vm212, %v4688, 0
    %4709 = vmatprep.subr.mxu0 0.0
    %4710 = vmatpush1.msra.mxu0 0.0
    %4711 = vmatprep.subr.mxu0 0.0
    %4712 = vmatpush1.msra.mxu0 0.0
    %4713 = vmatprep.subr.mxu0 0.0
    %4714 = vmatpush1.msra.mxu0 0.0
    %4715 = vmatprep.subr.mxu0 0.0
    %4716 = vmatpush1.msra.mxu0 0.0
    %4717 = vmatprep.subr.mxu0 0.0
    %4718 = vmatpush1.msra.mxu0 0.0
    %4719 = vmatprep.subr.mxu0 0.0
    %4720 = vmatpush1.msra.mxu0 0.0
    %4721 = vmatprep.subr.mxu0 0.0
    %4722 = vmatpush1.msra.mxu0 0.0
    %4723 = vmatprep.subr.mxu0 0.0
    %4724 = vmatpush1.msra.mxu0 0.0
    %4725 = vmatprep.subr.mxu0 0.0
    %4726 = vmatpush1.msra.mxu0 0.0
    %4727 = vmatprep.subr.mxu0 0.0
    %4728 = vmatpush1.msra.mxu0 0.0
    %4729 = vmatprep.subr.mxu0 0.0
    %4730 = vmatpush1.msra.mxu0 0.0
    %4731 = vmatprep.subr.mxu0 0.0
    %4732 = vmatpush1.msra.mxu0 0.0
    %4733 = vmatprep.subr.mxu0 0.0
    %4734 = vmatpush1.msra.mxu0 %v4701
    %4735 = vmatprep.subr.mxu0 0.0
    %4736 = vmatpush1.msra.mxu0 %v4699
    %4737 = vmatprep.subr.mxu0 0.0
    %4738 = vmatpush1.msra.mxu0 %v4697
    %4739 = vmatprep.subr.mxu0 0.0
    %4740 = vmatpush1.msra.mxu0 %v4695
    %4741 = vmatprep.subr.mxu0 0.0
    %4742 = vmatpush2.msra.mxu0 0.0
    %4743 = vmatprep.subr.mxu0 0.0
    %4744 = vmatpush2.msra.mxu0 0.0
    %4745 = vmatprep.subr.mxu0 0.0
    %4746 = vmatpush2.msra.mxu0 0.0
    %4747 = vmatprep.subr.mxu0 0.0
    %4748 = vmatpush2.msra.mxu0 0.0
    %4749 = vmatprep.subr.mxu0 0.0
    %4750 = vmatpush2.msra.mxu0 0.0
    %4751 = vmatprep.subr.mxu0 0.0
    %4752 = vmatpush2.msra.mxu0 0.0
    %4753 = vmatprep.subr.mxu0 0.0
    %4754 = vmatpush2.msra.mxu0 0.0
    %4755 = vmatprep.subr.mxu0 0.0
    %4756 = vmatpush2.msra.mxu0 0.0
    %4757 = vmatprep.subr.mxu0 0.0
    %4758 = vmatpush2.msra.mxu0 0.0
    %4759 = vmatprep.subr.mxu0 0.0
    %4760 = vmatpush2.msra.mxu0 0.0
    %4761 = vmatprep.subr.mxu0 0.0
    %4762 = vmatpush2.msra.mxu0 0.0
    %4763 = vmatprep.subr.mxu0 0.0
    %4764 = vmatpush2.msra.mxu0 0.0
    %4765 = vmatprep.subr.mxu0 0.0
    %4766 = vmatpush2.msra.mxu0 0.0
    %4767 = vmatprep.subr.mxu0 0.0
    %4768 = vmatpush2.msra.mxu0 0.0
    %4769 = vmatprep.subr.mxu0 0.0
    %4770 = vmatpush2.msra.mxu0 0.0
    %4771 = vmatprep.subr.mxu0 0.0
    %4772 = vmatpush2.msra.mxu0 0.0
    %4773 = vmatprep.mubr.f32.mxu0 0.0
    %4774 = vmatmul.mubr.f32.gmra.mxu0 %v4707
    %v4775 = vpop.f32.mrf.mxu0
    %v4776 = vadd.f32 %v4154, %v4775
    %v4777 = vpop.f32.mrf.mxu0
    %4778 = vdwg.mxu0
    %v4779 = vadd.f32 %v4776, %v4229
    %v4780 = vsel %vm212, %v4779, 0.0
    %4781 = vadd.xlane.f32.xlu0 %v4780
    %v4782 = vpop.xlane.xlu0 %4781
    %v4783 = vmul.f32 %v4782, %v757
    %v4784 = vsub.f32 %v4779, %v4783
    %v4785 = vmul.f32 %v4784, %v4784
    %v4786 = vsel %vm212, %v4785, 0.0
    %4787 = vadd.xlane.f32.xlu0 %v4786
    %v4788 = vpop.xlane.xlu0 %4787
    %v4789 = vmul.f32 %v4788, %v757
    %v4790 = vadd.f32 %v4789, 1e-05
    %v4791 = vrsqrt.pop %v4790
    %v4792 = vmul.f32 %v4784, %v4791
    %v4793 = vmul.f32 %v4792, %v4155
    %v4794 = vadd.f32 %v4793, %v4156
    %v4795 = vmax.f32 %v4794, 0.0
    %v4797 = vsel %vm212, %v4795, 0
    %4799 = vmatprep.subr.mxu0 0.0
    %4800 = vmatpush1.msra.mxu0 0.0
    %4801 = vmatprep.subr.mxu0 0.0
    %4802 = vmatpush1.msra.mxu0 0.0
    %4803 = vmatprep.subr.mxu0 0.0
    %4804 = vmatpush1.msra.mxu0 0.0
    %4805 = vmatprep.subr.mxu0 0.0
    %4806 = vmatpush1.msra.mxu0 0.0
    %4807 = vmatprep.subr.mxu0 0.0
    %4808 = vmatpush1.msra.mxu0 0.0
    %4809 = vmatprep.subr.mxu0 0.0
    %4810 = vmatpush1.msra.mxu0 0.0
    %4811 = vmatprep.subr.mxu0 0.0
    %4812 = vmatpush1.msra.mxu0 0.0
    %4813 = vmatprep.subr.mxu0 0.0
    %4814 = vmatpush1.msra.mxu0 0.0
    %4815 = vmatprep.subr.mxu0 0.0
    %4816 = vmatpush1.msra.mxu0 0.0
    %4817 = vmatprep.subr.mxu0 0.0
    %4818 = vmatpush1.msra.mxu0 0.0
    %4819 = vmatprep.subr.mxu0 0.0
    %4820 = vmatpush1.msra.mxu0 0.0
    %4821 = vmatprep.subr.mxu0 0.0
    %4822 = vmatpush1.msra.mxu0 0.0
    %4823 = vmatprep.subr.mxu0 0.0
    %4824 = vmatpush1.msra.mxu0 %v4141
    %4825 = vmatprep.subr.mxu0 0.0
    %4826 = vmatpush1.msra.mxu0 %v4140
    %4827 = vmatprep.subr.mxu0 0.0
    %4828 = vmatpush1.msra.mxu0 %v4139
    %4829 = vmatprep.subr.mxu0 0.0
    %4830 = vmatpush1.msra.mxu0 %v4138
    %4831 = vmatprep.subr.mxu0 0.0
    %4832 = vmatpush2.msra.mxu0 0.0
    %4833 = vmatprep.subr.mxu0 0.0
    %4834 = vmatpush2.msra.mxu0 0.0
    %4835 = vmatprep.subr.mxu0 0.0
    %4836 = vmatpush2.msra.mxu0 0.0
    %4837 = vmatprep.subr.mxu0 0.0
    %4838 = vmatpush2.msra.mxu0 0.0
    %4839 = vmatprep.subr.mxu0 0.0
    %4840 = vmatpush2.msra.mxu0 0.0
    %4841 = vmatprep.subr.mxu0 0.0
    %4842 = vmatpush2.msra.mxu0 0.0
    %4843 = vmatprep.subr.mxu0 0.0
    %4844 = vmatpush2.msra.mxu0 0.0
    %4845 = vmatprep.subr.mxu0 0.0
    %4846 = vmatpush2.msra.mxu0 0.0
    %4847 = vmatprep.subr.mxu0 0.0
    %4848 = vmatpush2.msra.mxu0 0.0
    %4849 = vmatprep.subr.mxu0 0.0
    %4850 = vmatpush2.msra.mxu0 0.0
    %4851 = vmatprep.subr.mxu0 0.0
    %4852 = vmatpush2.msra.mxu0 0.0
    %4853 = vmatprep.subr.mxu0 0.0
    %4854 = vmatpush2.msra.mxu0 0.0
    %4855 = vmatprep.subr.mxu0 0.0
    %4856 = vmatpush2.msra.mxu0 0.0
    %4857 = vmatprep.subr.mxu0 0.0
    %4858 = vmatpush2.msra.mxu0 0.0
    %4859 = vmatprep.subr.mxu0 0.0
    %4860 = vmatpush2.msra.mxu0 0.0
    %4861 = vmatprep.subr.mxu0 0.0
    %4862 = vmatpush2.msra.mxu0 0.0
    %4863 = vmatprep.mubr.f32.mxu0 0.0
    %4864 = vmatmul.mubr.f32.gmra.mxu0 %v4797
    %v4865 = vpop.f32.mrf.mxu0
    %v4866 = vadd.f32 %v4157, %v4865
    %v4867 = vpop.f32.mrf.mxu0
    %4868 = vdwg.mxu0
    %v4869 = vmax.f32 %v4866, 0.0
    %v4871 = vsel %vm845, %v4869, 0
    %4873 = vmatprep.subr.mxu0 0.0
    %4874 = vmatpush1.msra.mxu0 0.0
    %4875 = vmatprep.subr.mxu0 0.0
    %4876 = vmatpush1.msra.mxu0 0.0
    %4877 = vmatprep.subr.mxu0 0.0
    %4878 = vmatpush1.msra.mxu0 0.0
    %4879 = vmatprep.subr.mxu0 0.0
    %4880 = vmatpush1.msra.mxu0 0.0
    %4881 = vmatprep.subr.mxu0 0.0
    %4882 = vmatpush1.msra.mxu0 0.0
    %4883 = vmatprep.subr.mxu0 0.0
    %4884 = vmatpush1.msra.mxu0 0.0
    %4885 = vmatprep.subr.mxu0 0.0
    %4886 = vmatpush1.msra.mxu0 0.0
    %4887 = vmatprep.subr.mxu0 0.0
    %4888 = vmatpush1.msra.mxu0 0.0
    %4889 = vmatprep.subr.mxu0 0.0
    %4890 = vmatpush1.msra.mxu0 %v4149
    %4891 = vmatprep.subr.mxu0 0.0
    %4892 = vmatpush1.msra.mxu0 %v4148
    %4893 = vmatprep.subr.mxu0 0.0
    %4894 = vmatpush1.msra.mxu0 %v4147
    %4895 = vmatprep.subr.mxu0 0.0
    %4896 = vmatpush1.msra.mxu0 %v4146
    %4897 = vmatprep.subr.mxu0 0.0
    %4898 = vmatpush1.msra.mxu0 %v4145
    %4899 = vmatprep.subr.mxu0 0.0
    %4900 = vmatpush1.msra.mxu0 %v4144
    %4901 = vmatprep.subr.mxu0 0.0
    %4902 = vmatpush1.msra.mxu0 %v4143
    %4903 = vmatprep.subr.mxu0 0.0
    %4904 = vmatpush1.msra.mxu0 %v4142
    %4905 = vmatprep.subr.mxu0 0.0
    %4906 = vmatpush2.msra.mxu0 0.0
    %4907 = vmatprep.subr.mxu0 0.0
    %4908 = vmatpush2.msra.mxu0 0.0
    %4909 = vmatprep.subr.mxu0 0.0
    %4910 = vmatpush2.msra.mxu0 0.0
    %4911 = vmatprep.subr.mxu0 0.0
    %4912 = vmatpush2.msra.mxu0 0.0
    %4913 = vmatprep.subr.mxu0 0.0
    %4914 = vmatpush2.msra.mxu0 0.0
    %4915 = vmatprep.subr.mxu0 0.0
    %4916 = vmatpush2.msra.mxu0 0.0
    %4917 = vmatprep.subr.mxu0 0.0
    %4918 = vmatpush2.msra.mxu0 0.0
    %4919 = vmatprep.subr.mxu0 0.0
    %4920 = vmatpush2.msra.mxu0 0.0
    %4921 = vmatprep.subr.mxu0 0.0
    %4922 = vmatpush2.msra.mxu0 0.0
    %4923 = vmatprep.subr.mxu0 0.0
    %4924 = vmatpush2.msra.mxu0 0.0
    %4925 = vmatprep.subr.mxu0 0.0
    %4926 = vmatpush2.msra.mxu0 0.0
    %4927 = vmatprep.subr.mxu0 0.0
    %4928 = vmatpush2.msra.mxu0 0.0
    %4929 = vmatprep.subr.mxu0 0.0
    %4930 = vmatpush2.msra.mxu0 0.0
    %4931 = vmatprep.subr.mxu0 0.0
    %4932 = vmatpush2.msra.mxu0 0.0
    %4933 = vmatprep.subr.mxu0 0.0
    %4934 = vmatpush2.msra.mxu0 0.0
    %4935 = vmatprep.subr.mxu0 0.0
    %4936 = vmatpush2.msra.mxu0 0.0
    %4937 = vmatprep.mubr.f32.mxu0 0.0
    %4938 = vmatmul.mubr.f32.gmra.mxu0 %v4871
    %v4939 = vpop.f32.mrf.mxu0
    %v4940 = vadd.f32 %v4158, %v4939
    %v4941 = vpop.f32.mrf.mxu0
    %4942 = vdwg.mxu0
    %v4943 = vmul.f32 %v4940, %v95
    %v4944 = vsel %vm926, %v4943, -1e+30
    %v4945 = vsel %vm126, %v4944, -inf
    %4946 = vmax.xlane.f32.xlu0 %v4945
    %v4947 = vpop.xlane.xlu0 %4946
    %v4948 = vsel %vm937, %v4943, -1e+30
    %v4949 = vsel %vm126, %v4948, -inf
    %4950 = vmax.xlane.f32.xlu0 %v4949
    %v4951 = vpop.xlane.xlu0 %4950
    %v4952 = vsel %vm948, %v4943, -1e+30
    %v4953 = vsel %vm126, %v4952, -inf
    %4954 = vmax.xlane.f32.xlu0 %v4953
    %v4955 = vpop.xlane.xlu0 %4954
    %v4956 = vmul.f32 %v4947, %v956
    %v4957 = vmul.f32 %v4951, %v961
    %v4958 = vadd.f32 %v4956, %v4957
    %v4959 = vmul.f32 %v4955, %v967
    %v4960 = vadd.f32 %v4958, %v4959
    %v4961 = vsub.f32 %v4943, %v4960
    %v4962 = vmul.f32 %v4961, %v974
    %v4963 = vmul.f32 %v4962, 1.442695
    %v4964 = vpow.pop %v4963
    %v4965 = vmul.f32 %v4964, %v974
    %v4967 = vsel %vm126, %v4965, 0
    %4969 = vmatprep.subr.mxu0 0.0
    %4970 = vmatpush1.xpose.msra.mxu0 0.0
    %4971 = vmatprep.subr.mxu0 0.0
    %4972 = vmatpush1.xpose.msra.mxu0 0.0
    %4973 = vmatprep.subr.mxu0 0.0
    %4974 = vmatpush1.xpose.msra.mxu0 0.0
    %4975 = vmatprep.subr.mxu0 0.0
    %4976 = vmatpush1.xpose.msra.mxu0 0.0
    %4977 = vmatprep.subr.mxu0 0.0
    %4978 = vmatpush1.xpose.msra.mxu0 0.0
    %4979 = vmatprep.subr.mxu0 0.0
    %4980 = vmatpush1.xpose.msra.mxu0 0.0
    %4981 = vmatprep.subr.mxu0 0.0
    %4982 = vmatpush1.xpose.msra.mxu0 0.0
    %4983 = vmatprep.subr.mxu0 0.0
    %4984 = vmatpush1.xpose.msra.mxu0 0.0
    %4985 = vmatprep.subr.mxu0 0.0
    %4986 = vmatpush1.xpose.msra.mxu0 0.0
    %4987 = vmatprep.subr.mxu0 0.0
    %4988 = vmatpush1.xpose.msra.mxu0 0.0
    %4989 = vmatprep.subr.mxu0 0.0
    %4990 = vmatpush1.xpose.msra.mxu0 0.0
    %4991 = vmatprep.subr.mxu0 0.0
    %4992 = vmatpush1.xpose.msra.mxu0 0.0
    %4993 = vmatprep.subr.mxu0 0.0
    %4994 = vmatpush1.xpose.msra.mxu0 0.0
    %4995 = vmatprep.subr.mxu0 0.0
    %4996 = vmatpush1.xpose.msra.mxu0 0.0
    %4997 = vmatprep.subr.mxu0 0.0
    %4998 = vmatpush1.xpose.msra.mxu0 0.0
    %4999 = vmatprep.subr.mxu0 0.0
    %5000 = vmatpush1.xpose.msra.mxu0 %v983
    %5001 = vmatprep.subr.mxu0 0.0
    %5002 = vmatpush2.xpose.msra.mxu0 0.0
    %5003 = vmatprep.subr.mxu0 0.0
    %5004 = vmatpush2.xpose.msra.mxu0 0.0
    %5005 = vmatprep.subr.mxu0 0.0
    %5006 = vmatpush2.xpose.msra.mxu0 0.0
    %5007 = vmatprep.subr.mxu0 0.0
    %5008 = vmatpush2.xpose.msra.mxu0 0.0
    %5009 = vmatprep.subr.mxu0 0.0
    %5010 = vmatpush2.xpose.msra.mxu0 0.0
    %5011 = vmatprep.subr.mxu0 0.0
    %5012 = vmatpush2.xpose.msra.mxu0 0.0
    %5013 = vmatprep.subr.mxu0 0.0
    %5014 = vmatpush2.xpose.msra.mxu0 0.0
    %5015 = vmatprep.subr.mxu0 0.0
    %5016 = vmatpush2.xpose.msra.mxu0 0.0
    %5017 = vmatprep.subr.mxu0 0.0
    %5018 = vmatpush2.xpose.msra.mxu0 0.0
    %5019 = vmatprep.subr.mxu0 0.0
    %5020 = vmatpush2.xpose.msra.mxu0 0.0
    %5021 = vmatprep.subr.mxu0 0.0
    %5022 = vmatpush2.xpose.msra.mxu0 0.0
    %5023 = vmatprep.subr.mxu0 0.0
    %5024 = vmatpush2.xpose.msra.mxu0 0.0
    %5025 = vmatprep.subr.mxu0 0.0
    %5026 = vmatpush2.xpose.msra.mxu0 0.0
    %5027 = vmatprep.subr.mxu0 0.0
    %5028 = vmatpush2.xpose.msra.mxu0 0.0
    %5029 = vmatprep.subr.mxu0 0.0
    %5030 = vmatpush2.xpose.msra.mxu0 0.0
    %5031 = vmatprep.subr.mxu0 0.0
    %5032 = vmatpush2.xpose.msra.mxu0 0.0
    %5033 = vmatprep.mubr.f32.mxu0 0.0
    %5034 = vmatmul.mubr.f32.gmra.mxu0 %v4967
    %v5035 = vpop.f32.mrf.mxu0
    %v5036 = vadd.f32 0.0, %v5035
    %v5037 = vpop.f32.mrf.mxu0
    %5038 = vdwg.mxu0
    %v5040 = vsel %vm290, %v5036, 0
    %5042 = vmatprep.subr.mxu0 0.0
    %5043 = vmatpush1.msra.mxu0 0.0
    %5044 = vmatprep.subr.mxu0 0.0
    %5045 = vmatpush1.msra.mxu0 0.0
    %5046 = vmatprep.subr.mxu0 0.0
    %5047 = vmatpush1.msra.mxu0 0.0
    %5048 = vmatprep.subr.mxu0 0.0
    %5049 = vmatpush1.msra.mxu0 0.0
    %5050 = vmatprep.subr.mxu0 0.0
    %5051 = vmatpush1.msra.mxu0 0.0
    %5052 = vmatprep.subr.mxu0 0.0
    %5053 = vmatpush1.msra.mxu0 0.0
    %5054 = vmatprep.subr.mxu0 0.0
    %5055 = vmatpush1.msra.mxu0 0.0
    %5056 = vmatprep.subr.mxu0 0.0
    %5057 = vmatpush1.msra.mxu0 0.0
    %5058 = vmatprep.subr.mxu0 0.0
    %5059 = vmatpush1.msra.mxu0 0.0
    %5060 = vmatprep.subr.mxu0 0.0
    %5061 = vmatpush1.msra.mxu0 0.0
    %5062 = vmatprep.subr.mxu0 0.0
    %5063 = vmatpush1.msra.mxu0 0.0
    %5064 = vmatprep.subr.mxu0 0.0
    %5065 = vmatpush1.msra.mxu0 0.0
    %5066 = vmatprep.subr.mxu0 0.0
    %5067 = vmatpush1.msra.mxu0 0.0
    %5068 = vmatprep.subr.mxu0 0.0
    %5069 = vmatpush1.msra.mxu0 0.0
    %5070 = vmatprep.subr.mxu0 0.0
    %5071 = vmatpush1.msra.mxu0 0.0
    %5072 = vmatprep.subr.mxu0 0.0
    %5073 = vmatpush1.msra.mxu0 %v77
    %5074 = vmatprep.subr.mxu0 0.0
    %5075 = vmatpush2.msra.mxu0 0.0
    %5076 = vmatprep.subr.mxu0 0.0
    %5077 = vmatpush2.msra.mxu0 0.0
    %5078 = vmatprep.subr.mxu0 0.0
    %5079 = vmatpush2.msra.mxu0 0.0
    %5080 = vmatprep.subr.mxu0 0.0
    %5081 = vmatpush2.msra.mxu0 0.0
    %5082 = vmatprep.subr.mxu0 0.0
    %5083 = vmatpush2.msra.mxu0 0.0
    %5084 = vmatprep.subr.mxu0 0.0
    %5085 = vmatpush2.msra.mxu0 0.0
    %5086 = vmatprep.subr.mxu0 0.0
    %5087 = vmatpush2.msra.mxu0 0.0
    %5088 = vmatprep.subr.mxu0 0.0
    %5089 = vmatpush2.msra.mxu0 0.0
    %5090 = vmatprep.subr.mxu0 0.0
    %5091 = vmatpush2.msra.mxu0 0.0
    %5092 = vmatprep.subr.mxu0 0.0
    %5093 = vmatpush2.msra.mxu0 0.0
    %5094 = vmatprep.subr.mxu0 0.0
    %5095 = vmatpush2.msra.mxu0 0.0
    %5096 = vmatprep.subr.mxu0 0.0
    %5097 = vmatpush2.msra.mxu0 0.0
    %5098 = vmatprep.subr.mxu0 0.0
    %5099 = vmatpush2.msra.mxu0 0.0
    %5100 = vmatprep.subr.mxu0 0.0
    %5101 = vmatpush2.msra.mxu0 0.0
    %5102 = vmatprep.subr.mxu0 0.0
    %5103 = vmatpush2.msra.mxu0 0.0
    %5104 = vmatprep.subr.mxu0 0.0
    %5105 = vmatpush2.msra.mxu0 0.0
    %5106 = vmatprep.mubr.f32.mxu0 0.0
    %5107 = vmatmul.mubr.f32.gmra.mxu0 %v5040
    %v5108 = vpop.f32.mrf.mxu0
    %v5109 = vadd.f32 %v1058, %v5108
    %v5110 = vpop.f32.mrf.mxu0
    %5111 = vdwg.mxu0
    %v5112 = vrcp.pop %v5109
    %v5113 = vmul.f32 %v4965, %v5112
    %v5114 = vmul.f32 %v4943, %v1058
    %v5115 = vsub.f32 0.0, %v5114
    %v5116 = vmul.f32 %v5115, 1.442695
    %v5117 = vpow.pop %v5116
    %v5118 = vadd.f32 %v5117, 1.0
    %v5119 = vrcp.pop %v5118
    %v5120 = vmul.f32 %v5119, %v1058
    %v5121 = vadd.f32 %v5113, %v5120
    %s5122 = scalar_lea.vmem [#allocation4], 1440
    %v5123 = vld [vmem:[%s5122] sm:$0xff]
    %v5124 = vld [vmem:[%s5122 + $0x10] sm:$0xff]
    %v5125 = vld [vmem:[%s5122 + $0x20] sm:$0xff]
    %v5126 = vld [vmem:[%s5122 + $0x28] sm:$0xff]
    %v5127 = vld [vmem:[%s5122 + $0x30] sm:$0xff]
    %v5128 = vld [vmem:[%s5122 + $0x38] sm:$0xff]
    %v5129 = vld [vmem:[%s5122 + $0x40] sm:$0xff]
    %v5130 = vld [vmem:[%s5122 + $0x48] sm:$0xff]
    %v5131 = vld [vmem:[%s5122 + $0x50] sm:$0xff]
    %v5132 = vld [vmem:[%s5122 + $0x58] sm:$0xff]
    %v5133 = vld [vmem:[%s5122 + $0x60] sm:$0xff]
    %v5134 = vld [vmem:[%s5122 + $0x70] sm:$0xff]
    %v5135 = vld [vmem:[%s5122 + $0x80] sm:$0xff]
    %v5136 = vld [vmem:[%s5122 + $0x90] sm:$0xff]
    %v5137 = vld [vmem:[%s5122 + $0xa0] sm:$0xff]
    %v5138 = vld [vmem:[%s5122 + $0xb0] sm:$0xff]
    %v5139 = vld [vmem:[%s5122 + $0xc0] sm:$0xff]
    %v5140 = vld [vmem:[%s5122 + $0xd0] sm:$0xff]
    %v5141 = vld [vmem:[%s5122 + $0xe0] sm:$0xff]
    %v5142 = vld [vmem:[%s5122 + $0xf0] sm:$0xff]
    %v5143 = vld [vmem:[%s5122 + $0x100] sm:$0xff]
    %v5144 = vld [vmem:[%s5122 + $0x110] sm:$0xff]
    %s5145 = scalar_lea.vmem [#allocation6], 80
    %v5146 = vld [vmem:[%s5145] ss:$0 sm:$0xff]
    %s5147 = scalar_lea.vmem %s5145, 1 [#allocation6]
    %v5148 = vld [vmem:[%s5147] ss:$8 sm:$0x3]
    %v5149 = vld [vmem:[%s5145 + $0x2] ss:$0 sm:$0xff]
    %v5150 = vld [vmem:[%s5145 + $0x3] ss:$0 sm:$0xff]
    %v5151 = vld [vmem:[%s5145 + $0x4] ss:$0 sm:$0xff]
    %v5152 = vld [vmem:[%s5145 + $0x5] ss:$0 sm:$0xff]
    %v5153 = vld [vmem:[%s5145 + $0x6] ss:$0 sm:$0xff]
    %5154 = vmatprep.subr.mxu0 0.0
    %5155 = vmatpush1.msra.mxu0 0.0
    %5156 = vmatprep.subr.mxu0 0.0
    %5157 = vmatpush1.msra.mxu0 0.0
    %5158 = vmatprep.subr.mxu0 0.0
    %5159 = vmatpush1.msra.mxu0 0.0
    %5160 = vmatprep.subr.mxu0 0.0
    %5161 = vmatpush1.msra.mxu0 0.0
    %5162 = vmatprep.subr.mxu0 0.0
    %5163 = vmatpush1.msra.mxu0 0.0
    %5164 = vmatprep.subr.mxu0 0.0
    %5165 = vmatpush1.msra.mxu0 0.0
    %5166 = vmatprep.subr.mxu0 0.0
    %5167 = vmatpush1.msra.mxu0 0.0
    %5168 = vmatprep.subr.mxu0 0.0
    %5169 = vmatpush1.msra.mxu0 0.0
    %5170 = vmatprep.subr.mxu0 0.0
    %5171 = vmatpush1.msra.mxu0 0.0
    %5172 = vmatprep.subr.mxu0 0.0
    %5173 = vmatpush1.msra.mxu0 0.0
    %5174 = vmatprep.subr.mxu0 0.0
    %5175 = vmatpush1.msra.mxu0 0.0
    %5176 = vmatprep.subr.mxu0 0.0
    %5177 = vmatpush1.msra.mxu0 0.0
    %5178 = vmatprep.subr.mxu0 0.0
    %5179 = vmatpush1.msra.mxu0 0.0
    %5180 = vmatprep.subr.mxu0 0.0
    %5181 = vmatpush1.msra.mxu0 0.0
    %5182 = vmatprep.subr.mxu0 0.0
    %5183 = vmatpush1.msra.mxu0 %v5124
    %5184 = vmatprep.subr.mxu0 0.0
    %5185 = vmatpush1.msra.mxu0 %v5123
    %5186 = vmatprep.subr.mxu0 0.0
    %5187 = vmatpush2.msra.mxu0 0.0
    %5188 = vmatprep.subr.mxu0 0.0
    %5189 = vmatpush2.msra.mxu0 0.0
    %5190 = vmatprep.subr.mxu0 0.0
    %5191 = vmatpush2.msra.mxu0 0.0
    %5192 = vmatprep.subr.mxu0 0.0
    %5193 = vmatpush2.msra.mxu0 0.0
    %5194 = vmatprep.subr.mxu0 0.0
    %5195 = vmatpush2.msra.mxu0 0.0
    %5196 = vmatprep.subr.mxu0 0.0
    %5197 = vmatpush2.msra.mxu0 0.0
    %5198 = vmatprep.subr.mxu0 0.0
    %5199 = vmatpush2.msra.mxu0 0.0
    %5200 = vmatprep.subr.mxu0 0.0
    %5201 = vmatpush2.msra.mxu0 0.0
    %5202 = vmatprep.subr.mxu0 0.0
    %5203 = vmatpush2.msra.mxu0 0.0
    %5204 = vmatprep.subr.mxu0 0.0
    %5205 = vmatpush2.msra.mxu0 0.0
    %5206 = vmatprep.subr.mxu0 0.0
    %5207 = vmatpush2.msra.mxu0 0.0
    %5208 = vmatprep.subr.mxu0 0.0
    %5209 = vmatpush2.msra.mxu0 0.0
    %5210 = vmatprep.subr.mxu0 0.0
    %5211 = vmatpush2.msra.mxu0 0.0
    %5212 = vmatprep.subr.mxu0 0.0
    %5213 = vmatpush2.msra.mxu0 0.0
    %5214 = vmatprep.subr.mxu0 0.0
    %5215 = vmatpush2.msra.mxu0 0.0
    %5216 = vmatprep.subr.mxu0 0.0
    %5217 = vmatpush2.msra.mxu0 0.0
    %5218 = vmatprep.mubr.f32.mxu0 0.0
    %5219 = vmatmul.mubr.f32.gmra.mxu0 %v128
    %v5220 = vpop.f32.mrf.mxu0
    %v5221 = vadd.f32 %v5146, %v5220
    %v5222 = vpop.f32.mrf.mxu0
    %5223 = vdwg.mxu0
    %v5224 = vmax.f32 %v5221, 0.0
    %v5226 = vlaneseq
    %v5227 = vshrl.u32 %v5226, 7
    %v5228 = vsub.s32 0, %v5227
    %v5229 = vrot.slane %v5148, %v5228
    %v5230 = vlaneseq
    %v5231 = vshrl.u32 %v5230, 7
    %v5232 = vsub.s32 1, %v5231
    %v5233 = vrot.slane %v5148, %v5232
    %v5237 = vsel %vm212, %v5224, 0
    %5239 = vmatprep.subr.mxu0 0.0
    %5240 = vmatpush1.msra.mxu0 0.0
    %5241 = vmatprep.subr.mxu0 0.0
    %5242 = vmatpush1.msra.mxu0 0.0
    %5243 = vmatprep.subr.mxu0 0.0
    %5244 = vmatpush1.msra.mxu0 0.0
    %5245 = vmatprep.subr.mxu0 0.0
    %5246 = vmatpush1.msra.mxu0 0.0
    %5247 = vmatprep.subr.mxu0 0.0
    %5248 = vmatpush1.msra.mxu0 0.0
    %5249 = vmatprep.subr.mxu0 0.0
    %5250 = vmatpush1.msra.mxu0 0.0
    %5251 = vmatprep.subr.mxu0 0.0
    %5252 = vmatpush1.msra.mxu0 0.0
    %5253 = vmatprep.subr.mxu0 0.0
    %5254 = vmatpush1.msra.mxu0 0.0
    %5255 = vmatprep.subr.mxu0 0.0
    %5256 = vmatpush1.msra.mxu0 0.0
    %5257 = vmatprep.subr.mxu0 0.0
    %5258 = vmatpush1.msra.mxu0 0.0
    %5259 = vmatprep.subr.mxu0 0.0
    %5260 = vmatpush1.msra.mxu0 0.0
    %5261 = vmatprep.subr.mxu0 0.0
    %5262 = vmatpush1.msra.mxu0 0.0
    %5263 = vmatprep.subr.mxu0 %v5132
    %5264 = vmatpush1.msra.mxu0 %v5131
    %5265 = vmatprep.subr.mxu0 %v5130
    %5266 = vmatpush1.msra.mxu0 %v5129
    %5267 = vmatprep.subr.mxu0 %v5128
    %5268 = vmatpush1.msra.mxu0 %v5127
    %5269 = vmatprep.subr.mxu0 %v5126
    %5270 = vmatpush1.msra.mxu0 %v5125
    %5271 = vmatprep.subr.mxu0 0.0
    %5272 = vmatpush2.msra.mxu0 0.0
    %5273 = vmatprep.subr.mxu0 0.0
    %5274 = vmatpush2.msra.mxu0 0.0
    %5275 = vmatprep.subr.mxu0 0.0
    %5276 = vmatpush2.msra.mxu0 0.0
    %5277 = vmatprep.subr.mxu0 0.0
    %5278 = vmatpush2.msra.mxu0 0.0
    %5279 = vmatprep.subr.mxu0 0.0
    %5280 = vmatpush2.msra.mxu0 0.0
    %5281 = vmatprep.subr.mxu0 0.0
    %5282 = vmatpush2.msra.mxu0 0.0
    %5283 = vmatprep.subr.mxu0 0.0
    %5284 = vmatpush2.msra.mxu0 0.0
    %5285 = vmatprep.subr.mxu0 0.0
    %5286 = vmatpush2.msra.mxu0 0.0
    %5287 = vmatprep.subr.mxu0 0.0
    %5288 = vmatpush2.msra.mxu0 0.0
    %5289 = vmatprep.subr.mxu0 0.0
    %5290 = vmatpush2.msra.mxu0 0.0
    %5291 = vmatprep.subr.mxu0 0.0
    %5292 = vmatpush2.msra.mxu0 0.0
    %5293 = vmatprep.subr.mxu0 0.0
    %5294 = vmatpush2.msra.mxu0 0.0
    %5295 = vmatprep.subr.mxu0 0.0
    %5296 = vmatpush2.msra.mxu0 0.0
    %5297 = vmatprep.subr.mxu0 0.0
    %5298 = vmatpush2.msra.mxu0 0.0
    %5299 = vmatprep.subr.mxu0 0.0
    %5300 = vmatpush2.msra.mxu0 0.0
    %5301 = vmatprep.subr.mxu0 0.0
    %5302 = vmatpush2.msra.mxu0 0.0
    %5303 = vmatprep.mubr.f32.mxu0 0.0
    %5304 = vmatmul.mubr.f32.gmra.mxu0 %v5237
    %v5305 = vpop.f32.mrf.mxu0
    %v5306 = vadd.f32 %v5229, %v5305
    %v5307 = vpop.f32.mrf.mxu0
    %v5308 = vadd.f32 %v5233, %v5307
    %5309 = vdwg.mxu0
    %5311 = vrot.lane.b32.xlu0 %v5306, 96
    %v5312 = vpop.permute.xlu0 %5311
    %v5313 = vsel %vm290, %v5306, 0
    %v5315 = vsel %vm290, %v5312, 0
    %5317 = vmatprep.subr.mxu0 0.0
    %5318 = vmatpush1.xpose.msra.mxu0 0.0
    %5319 = vmatprep.subr.mxu0 0.0
    %5320 = vmatpush1.xpose.msra.mxu0 0.0
    %5321 = vmatprep.subr.mxu0 0.0
    %5322 = vmatpush1.xpose.msra.mxu0 0.0
    %5323 = vmatprep.subr.mxu0 0.0
    %5324 = vmatpush1.xpose.msra.mxu0 0.0
    %5325 = vmatprep.subr.mxu0 0.0
    %5326 = vmatpush1.xpose.msra.mxu0 0.0
    %5327 = vmatprep.subr.mxu0 0.0
    %5328 = vmatpush1.xpose.msra.mxu0 0.0
    %5329 = vmatprep.subr.mxu0 0.0
    %5330 = vmatpush1.xpose.msra.mxu0 0.0
    %5331 = vmatprep.subr.mxu0 0.0
    %5332 = vmatpush1.xpose.msra.mxu0 0.0
    %5333 = vmatprep.subr.mxu0 0.0
    %5334 = vmatpush1.xpose.msra.mxu0 0.0
    %5335 = vmatprep.subr.mxu0 0.0
    %5336 = vmatpush1.xpose.msra.mxu0 0.0
    %5337 = vmatprep.subr.mxu0 0.0
    %5338 = vmatpush1.xpose.msra.mxu0 0.0
    %5339 = vmatprep.subr.mxu0 0.0
    %5340 = vmatpush1.xpose.msra.mxu0 0.0
    %5341 = vmatprep.subr.mxu0 0.0
    %5342 = vmatpush1.xpose.msra.mxu0 0.0
    %5343 = vmatprep.subr.mxu0 0.0
    %5344 = vmatpush1.xpose.msra.mxu0 0.0
    %5345 = vmatprep.subr.mxu0 0.0
    %5346 = vmatpush1.xpose.msra.mxu0 0.0
    %5347 = vmatprep.subr.mxu0 0.0
    %5348 = vmatpush1.xpose.msra.mxu0 %v5315
    %5349 = vmatprep.subr.mxu0 0.0
    %5350 = vmatpush2.xpose.msra.mxu0 0.0
    %5351 = vmatprep.subr.mxu0 0.0
    %5352 = vmatpush2.xpose.msra.mxu0 0.0
    %5353 = vmatprep.subr.mxu0 0.0
    %5354 = vmatpush2.xpose.msra.mxu0 0.0
    %5355 = vmatprep.subr.mxu0 0.0
    %5356 = vmatpush2.xpose.msra.mxu0 0.0
    %5357 = vmatprep.subr.mxu0 0.0
    %5358 = vmatpush2.xpose.msra.mxu0 0.0
    %5359 = vmatprep.subr.mxu0 0.0
    %5360 = vmatpush2.xpose.msra.mxu0 0.0
    %5361 = vmatprep.subr.mxu0 0.0
    %5362 = vmatpush2.xpose.msra.mxu0 0.0
    %5363 = vmatprep.subr.mxu0 0.0
    %5364 = vmatpush2.xpose.msra.mxu0 0.0
    %5365 = vmatprep.subr.mxu0 0.0
    %5366 = vmatpush2.xpose.msra.mxu0 0.0
    %5367 = vmatprep.subr.mxu0 0.0
    %5368 = vmatpush2.xpose.msra.mxu0 0.0
    %5369 = vmatprep.subr.mxu0 0.0
    %5370 = vmatpush2.xpose.msra.mxu0 0.0
    %5371 = vmatprep.subr.mxu0 0.0
    %5372 = vmatpush2.xpose.msra.mxu0 0.0
    %5373 = vmatprep.subr.mxu0 0.0
    %5374 = vmatpush2.xpose.msra.mxu0 0.0
    %5375 = vmatprep.subr.mxu0 0.0
    %5376 = vmatpush2.xpose.msra.mxu0 0.0
    %5377 = vmatprep.subr.mxu0 0.0
    %5378 = vmatpush2.xpose.msra.mxu0 0.0
    %5379 = vmatprep.subr.mxu0 0.0
    %5380 = vmatpush2.xpose.msra.mxu0 0.0
    %5381 = vmatprep.mubr.f32.mxu0 0.0
    %5382 = vmatmul.mubr.f32.gmra.mxu0 %v5313
    %v5383 = vpop.f32.mrf.mxu0
    %v5384 = vadd.f32 0.0, %v5383
    %v5385 = vpop.f32.mrf.mxu0
    %5386 = vdwg.mxu0
    %v5387 = vmul.f32 %v5384, 0.35355338
    %v5388 = vsel %vm290, %v5387, -inf
    %5389 = vmax.xlane.f32.xlu0 %v5388
    %v5390 = vpop.xlane.xlu0 %5389
    %v5391 = vsub.f32 %v5387, %v5390
    %v5392 = vmul.f32 %v5391, 1.442695
    %v5393 = vpow.pop %v5392
    %v5394 = vsel %vm290, %v5393, 0.0
    %5395 = vadd.xlane.f32.xlu0 %v5394
    %v5396 = vpop.xlane.xlu0 %5395
    %v5397 = vrcp.pop %v5396
    %v5398 = vmul.f32 %v5393, %v5397
    %5399 = vrot.lane.b32.xlu0 %v5306, 120
    %v5400 = vpop.permute.xlu0 %5399
    %5401 = vrot.lane.b32.xlu0 %v5306, 88
    %v5402 = vpop.permute.xlu0 %5401
    %v5403 = vsel %vm290, %v5400, 0
    %v5405 = vsel %vm290, %v5402, 0
    %5407 = vmatprep.subr.mxu0 0.0
    %5408 = vmatpush1.xpose.msra.mxu0 0.0
    %5409 = vmatprep.subr.mxu0 0.0
    %5410 = vmatpush1.xpose.msra.mxu0 0.0
    %5411 = vmatprep.subr.mxu0 0.0
    %5412 = vmatpush1.xpose.msra.mxu0 0.0
    %5413 = vmatprep.subr.mxu0 0.0
    %5414 = vmatpush1.xpose.msra.mxu0 0.0
    %5415 = vmatprep.subr.mxu0 0.0
    %5416 = vmatpush1.xpose.msra.mxu0 0.0
    %5417 = vmatprep.subr.mxu0 0.0
    %5418 = vmatpush1.xpose.msra.mxu0 0.0
    %5419 = vmatprep.subr.mxu0 0.0
    %5420 = vmatpush1.xpose.msra.mxu0 0.0
    %5421 = vmatprep.subr.mxu0 0.0
    %5422 = vmatpush1.xpose.msra.mxu0 0.0
    %5423 = vmatprep.subr.mxu0 0.0
    %5424 = vmatpush1.xpose.msra.mxu0 0.0
    %5425 = vmatprep.subr.mxu0 0.0
    %5426 = vmatpush1.xpose.msra.mxu0 0.0
    %5427 = vmatprep.subr.mxu0 0.0
    %5428 = vmatpush1.xpose.msra.mxu0 0.0
    %5429 = vmatprep.subr.mxu0 0.0
    %5430 = vmatpush1.xpose.msra.mxu0 0.0
    %5431 = vmatprep.subr.mxu0 0.0
    %5432 = vmatpush1.xpose.msra.mxu0 0.0
    %5433 = vmatprep.subr.mxu0 0.0
    %5434 = vmatpush1.xpose.msra.mxu0 0.0
    %5435 = vmatprep.subr.mxu0 0.0
    %5436 = vmatpush1.xpose.msra.mxu0 0.0
    %5437 = vmatprep.subr.mxu0 0.0
    %5438 = vmatpush1.xpose.msra.mxu0 %v5405
    %5439 = vmatprep.subr.mxu0 0.0
    %5440 = vmatpush2.xpose.msra.mxu0 0.0
    %5441 = vmatprep.subr.mxu0 0.0
    %5442 = vmatpush2.xpose.msra.mxu0 0.0
    %5443 = vmatprep.subr.mxu0 0.0
    %5444 = vmatpush2.xpose.msra.mxu0 0.0
    %5445 = vmatprep.subr.mxu0 0.0
    %5446 = vmatpush2.xpose.msra.mxu0 0.0
    %5447 = vmatprep.subr.mxu0 0.0
    %5448 = vmatpush2.xpose.msra.mxu0 0.0
    %5449 = vmatprep.subr.mxu0 0.0
    %5450 = vmatpush2.xpose.msra.mxu0 0.0
    %5451 = vmatprep.subr.mxu0 0.0
    %5452 = vmatpush2.xpose.msra.mxu0 0.0
    %5453 = vmatprep.subr.mxu0 0.0
    %5454 = vmatpush2.xpose.msra.mxu0 0.0
    %5455 = vmatprep.subr.mxu0 0.0
    %5456 = vmatpush2.xpose.msra.mxu0 0.0
    %5457 = vmatprep.subr.mxu0 0.0
    %5458 = vmatpush2.xpose.msra.mxu0 0.0
    %5459 = vmatprep.subr.mxu0 0.0
    %5460 = vmatpush2.xpose.msra.mxu0 0.0
    %5461 = vmatprep.subr.mxu0 0.0
    %5462 = vmatpush2.xpose.msra.mxu0 0.0
    %5463 = vmatprep.subr.mxu0 0.0
    %5464 = vmatpush2.xpose.msra.mxu0 0.0
    %5465 = vmatprep.subr.mxu0 0.0
    %5466 = vmatpush2.xpose.msra.mxu0 0.0
    %5467 = vmatprep.subr.mxu0 0.0
    %5468 = vmatpush2.xpose.msra.mxu0 0.0
    %5469 = vmatprep.subr.mxu0 0.0
    %5470 = vmatpush2.xpose.msra.mxu0 0.0
    %5471 = vmatprep.mubr.f32.mxu0 0.0
    %5472 = vmatmul.mubr.f32.gmra.mxu0 %v5403
    %v5473 = vpop.f32.mrf.mxu0
    %v5474 = vadd.f32 0.0, %v5473
    %v5475 = vpop.f32.mrf.mxu0
    %5476 = vdwg.mxu0
    %v5477 = vmul.f32 %v5474, 0.35355338
    %v5478 = vsel %vm290, %v5477, -inf
    %5479 = vmax.xlane.f32.xlu0 %v5478
    %v5480 = vpop.xlane.xlu0 %5479
    %v5481 = vsub.f32 %v5477, %v5480
    %v5482 = vmul.f32 %v5481, 1.442695
    %v5483 = vpow.pop %v5482
    %v5484 = vsel %vm290, %v5483, 0.0
    %5485 = vadd.xlane.f32.xlu0 %v5484
    %v5486 = vpop.xlane.xlu0 %5485
    %v5487 = vrcp.pop %v5486
    %v5488 = vmul.f32 %v5483, %v5487
    %5489 = vrot.lane.b32.xlu0 %v5306, 112
    %v5490 = vpop.permute.xlu0 %5489
    %5491 = vrot.lane.b32.xlu0 %v5306, 80
    %v5492 = vpop.permute.xlu0 %5491
    %v5493 = vsel %vm290, %v5490, 0
    %v5495 = vsel %vm290, %v5492, 0
    %5497 = vmatprep.subr.mxu0 0.0
    %5498 = vmatpush1.xpose.msra.mxu0 0.0
    %5499 = vmatprep.subr.mxu0 0.0
    %5500 = vmatpush1.xpose.msra.mxu0 0.0
    %5501 = vmatprep.subr.mxu0 0.0
    %5502 = vmatpush1.xpose.msra.mxu0 0.0
    %5503 = vmatprep.subr.mxu0 0.0
    %5504 = vmatpush1.xpose.msra.mxu0 0.0
    %5505 = vmatprep.subr.mxu0 0.0
    %5506 = vmatpush1.xpose.msra.mxu0 0.0
    %5507 = vmatprep.subr.mxu0 0.0
    %5508 = vmatpush1.xpose.msra.mxu0 0.0
    %5509 = vmatprep.subr.mxu0 0.0
    %5510 = vmatpush1.xpose.msra.mxu0 0.0
    %5511 = vmatprep.subr.mxu0 0.0
    %5512 = vmatpush1.xpose.msra.mxu0 0.0
    %5513 = vmatprep.subr.mxu0 0.0
    %5514 = vmatpush1.xpose.msra.mxu0 0.0
    %5515 = vmatprep.subr.mxu0 0.0
    %5516 = vmatpush1.xpose.msra.mxu0 0.0
    %5517 = vmatprep.subr.mxu0 0.0
    %5518 = vmatpush1.xpose.msra.mxu0 0.0
    %5519 = vmatprep.subr.mxu0 0.0
    %5520 = vmatpush1.xpose.msra.mxu0 0.0
    %5521 = vmatprep.subr.mxu0 0.0
    %5522 = vmatpush1.xpose.msra.mxu0 0.0
    %5523 = vmatprep.subr.mxu0 0.0
    %5524 = vmatpush1.xpose.msra.mxu0 0.0
    %5525 = vmatprep.subr.mxu0 0.0
    %5526 = vmatpush1.xpose.msra.mxu0 0.0
    %5527 = vmatprep.subr.mxu0 0.0
    %5528 = vmatpush1.xpose.msra.mxu0 %v5495
    %5529 = vmatprep.subr.mxu0 0.0
    %5530 = vmatpush2.xpose.msra.mxu0 0.0
    %5531 = vmatprep.subr.mxu0 0.0
    %5532 = vmatpush2.xpose.msra.mxu0 0.0
    %5533 = vmatprep.subr.mxu0 0.0
    %5534 = vmatpush2.xpose.msra.mxu0 0.0
    %5535 = vmatprep.subr.mxu0 0.0
    %5536 = vmatpush2.xpose.msra.mxu0 0.0
    %5537 = vmatprep.subr.mxu0 0.0
    %5538 = vmatpush2.xpose.msra.mxu0 0.0
    %5539 = vmatprep.subr.mxu0 0.0
    %5540 = vmatpush2.xpose.msra.mxu0 0.0
    %5541 = vmatprep.subr.mxu0 0.0
    %5542 = vmatpush2.xpose.msra.mxu0 0.0
    %5543 = vmatprep.subr.mxu0 0.0
    %5544 = vmatpush2.xpose.msra.mxu0 0.0
    %5545 = vmatprep.subr.mxu0 0.0
    %5546 = vmatpush2.xpose.msra.mxu0 0.0
    %5547 = vmatprep.subr.mxu0 0.0
    %5548 = vmatpush2.xpose.msra.mxu0 0.0
    %5549 = vmatprep.subr.mxu0 0.0
    %5550 = vmatpush2.xpose.msra.mxu0 0.0
    %5551 = vmatprep.subr.mxu0 0.0
    %5552 = vmatpush2.xpose.msra.mxu0 0.0
    %5553 = vmatprep.subr.mxu0 0.0
    %5554 = vmatpush2.xpose.msra.mxu0 0.0
    %5555 = vmatprep.subr.mxu0 0.0
    %5556 = vmatpush2.xpose.msra.mxu0 0.0
    %5557 = vmatprep.subr.mxu0 0.0
    %5558 = vmatpush2.xpose.msra.mxu0 0.0
    %5559 = vmatprep.subr.mxu0 0.0
    %5560 = vmatpush2.xpose.msra.mxu0 0.0
    %5561 = vmatprep.mubr.f32.mxu0 0.0
    %5562 = vmatmul.mubr.f32.gmra.mxu0 %v5493
    %v5563 = vpop.f32.mrf.mxu0
    %v5564 = vadd.f32 0.0, %v5563
    %v5565 = vpop.f32.mrf.mxu0
    %5566 = vdwg.mxu0
    %v5567 = vmul.f32 %v5564, 0.35355338
    %v5568 = vsel %vm290, %v5567, -inf
    %5569 = vmax.xlane.f32.xlu0 %v5568
    %v5570 = vpop.xlane.xlu0 %5569
    %v5571 = vsub.f32 %v5567, %v5570
    %v5572 = vmul.f32 %v5571, 1.442695
    %v5573 = vpow.pop %v5572
    %v5574 = vsel %vm290, %v5573, 0.0
    %5575 = vadd.xlane.f32.xlu0 %v5574
    %v5576 = vpop.xlane.xlu0 %5575
    %v5577 = vrcp.pop %v5576
    %v5578 = vmul.f32 %v5573, %v5577
    %5579 = vrot.lane.b32.xlu0 %v5306, 104
    %v5580 = vpop.permute.xlu0 %5579
    %5581 = vrot.lane.b32.xlu0 %v5306, 72
    %v5582 = vpop.permute.xlu0 %5581
    %v5583 = vsel %vm290, %v5580, 0
    %v5585 = vsel %vm290, %v5582, 0
    %5587 = vmatprep.subr.mxu0 0.0
    %5588 = vmatpush1.xpose.msra.mxu0 0.0
    %5589 = vmatprep.subr.mxu0 0.0
    %5590 = vmatpush1.xpose.msra.mxu0 0.0
    %5591 = vmatprep.subr.mxu0 0.0
    %5592 = vmatpush1.xpose.msra.mxu0 0.0
    %5593 = vmatprep.subr.mxu0 0.0
    %5594 = vmatpush1.xpose.msra.mxu0 0.0
    %5595 = vmatprep.subr.mxu0 0.0
    %5596 = vmatpush1.xpose.msra.mxu0 0.0
    %5597 = vmatprep.subr.mxu0 0.0
    %5598 = vmatpush1.xpose.msra.mxu0 0.0
    %5599 = vmatprep.subr.mxu0 0.0
    %5600 = vmatpush1.xpose.msra.mxu0 0.0
    %5601 = vmatprep.subr.mxu0 0.0
    %5602 = vmatpush1.xpose.msra.mxu0 0.0
    %5603 = vmatprep.subr.mxu0 0.0
    %5604 = vmatpush1.xpose.msra.mxu0 0.0
    %5605 = vmatprep.subr.mxu0 0.0
    %5606 = vmatpush1.xpose.msra.mxu0 0.0
    %5607 = vmatprep.subr.mxu0 0.0
    %5608 = vmatpush1.xpose.msra.mxu0 0.0
    %5609 = vmatprep.subr.mxu0 0.0
    %5610 = vmatpush1.xpose.msra.mxu0 0.0
    %5611 = vmatprep.subr.mxu0 0.0
    %5612 = vmatpush1.xpose.msra.mxu0 0.0
    %5613 = vmatprep.subr.mxu0 0.0
    %5614 = vmatpush1.xpose.msra.mxu0 0.0
    %5615 = vmatprep.subr.mxu0 0.0
    %5616 = vmatpush1.xpose.msra.mxu0 0.0
    %5617 = vmatprep.subr.mxu0 0.0
    %5618 = vmatpush1.xpose.msra.mxu0 %v5585
    %5619 = vmatprep.subr.mxu0 0.0
    %5620 = vmatpush2.xpose.msra.mxu0 0.0
    %5621 = vmatprep.subr.mxu0 0.0
    %5622 = vmatpush2.xpose.msra.mxu0 0.0
    %5623 = vmatprep.subr.mxu0 0.0
    %5624 = vmatpush2.xpose.msra.mxu0 0.0
    %5625 = vmatprep.subr.mxu0 0.0
    %5626 = vmatpush2.xpose.msra.mxu0 0.0
    %5627 = vmatprep.subr.mxu0 0.0
    %5628 = vmatpush2.xpose.msra.mxu0 0.0
    %5629 = vmatprep.subr.mxu0 0.0
    %5630 = vmatpush2.xpose.msra.mxu0 0.0
    %5631 = vmatprep.subr.mxu0 0.0
    %5632 = vmatpush2.xpose.msra.mxu0 0.0
    %5633 = vmatprep.subr.mxu0 0.0
    %5634 = vmatpush2.xpose.msra.mxu0 0.0
    %5635 = vmatprep.subr.mxu0 0.0
    %5636 = vmatpush2.xpose.msra.mxu0 0.0
    %5637 = vmatprep.subr.mxu0 0.0
    %5638 = vmatpush2.xpose.msra.mxu0 0.0
    %5639 = vmatprep.subr.mxu0 0.0
    %5640 = vmatpush2.xpose.msra.mxu0 0.0
    %5641 = vmatprep.subr.mxu0 0.0
    %5642 = vmatpush2.xpose.msra.mxu0 0.0
    %5643 = vmatprep.subr.mxu0 0.0
    %5644 = vmatpush2.xpose.msra.mxu0 0.0
    %5645 = vmatprep.subr.mxu0 0.0
    %5646 = vmatpush2.xpose.msra.mxu0 0.0
    %5647 = vmatprep.subr.mxu0 0.0
    %5648 = vmatpush2.xpose.msra.mxu0 0.0
    %5649 = vmatprep.subr.mxu0 0.0
    %5650 = vmatpush2.xpose.msra.mxu0 0.0
    %5651 = vmatprep.mubr.f32.mxu0 0.0
    %5652 = vmatmul.mubr.f32.gmra.mxu0 %v5583
    %v5653 = vpop.f32.mrf.mxu0
    %v5654 = vadd.f32 0.0, %v5653
    %v5655 = vpop.f32.mrf.mxu0
    %5656 = vdwg.mxu0
    %v5657 = vmul.f32 %v5654, 0.35355338
    %v5658 = vsel %vm290, %v5657, -inf
    %5659 = vmax.xlane.f32.xlu0 %v5658
    %v5660 = vpop.xlane.xlu0 %5659
    %v5661 = vsub.f32 %v5657, %v5660
    %v5662 = vmul.f32 %v5661, 1.442695
    %v5663 = vpow.pop %v5662
    %v5664 = vsel %vm290, %v5663, 0.0
    %5665 = vadd.xlane.f32.xlu0 %v5664
    %v5666 = vpop.xlane.xlu0 %5665
    %v5667 = vrcp.pop %v5666
    %v5668 = vmul.f32 %v5663, %v5667
    %5670 = vrot.lane.b32.xlu0 %v5488, 8
    %v5671 = vpop.permute.xlu0 %5670
    %5674 = vrot.lane.b32.xlu0 %v5578, 16
    %v5675 = vpop.permute.xlu0 %5674
    %5678 = vrot.lane.b32.xlu0 %v5668, 24
    %v5679 = vpop.permute.xlu0 %5678
    %v5681 = vsel %vm290, %v5398, %v5671
    %v5682 = vsel %vm126, %v5681, %v5675
    %v5683 = vsel %vm661, %v5682, %v5679
    %5685 = vrot.lane.b32.xlu0 %v5308, 64
    %v5686 = vpop.permute.xlu0 %5685
    %5687 = vrot.lane.b32.xlu0 %v5308, 32
    %v5688 = vpop.permute.xlu0 %5687
    %5689 = vrot.lane.b32.xlu0 %v5306, 64
    %v5690 = vpop.permute.xlu0 %5689
    %5691 = vrot.lane.b32.xlu0 %v5312, 64
    %v5692 = vpop.permute.xlu0 %5691
    %5693 = vrot.lane.b32.xlu0 %v5686, 64
    %v5694 = vpop.permute.xlu0 %5693
    %5695 = vrot.lane.b32.xlu0 %v5688, 64
    %v5696 = vpop.permute.xlu0 %5695
    %v5702 = vsel %vm212, %v5683, 0
    %5704 = vmatprep.subr.mxu0 0.0
    %5705 = vmatpush1.msra.mxu0 0.0
    %5706 = vmatprep.subr.mxu0 0.0
    %5707 = vmatpush1.msra.mxu0 0.0
    %5708 = vmatprep.subr.mxu0 0.0
    %5709 = vmatpush1.msra.mxu0 0.0
    %5710 = vmatprep.subr.mxu0 0.0
    %5711 = vmatpush1.msra.mxu0 0.0
    %5712 = vmatprep.subr.mxu0 0.0
    %5713 = vmatpush1.msra.mxu0 0.0
    %5714 = vmatprep.subr.mxu0 0.0
    %5715 = vmatpush1.msra.mxu0 0.0
    %5716 = vmatprep.subr.mxu0 0.0
    %5717 = vmatpush1.msra.mxu0 0.0
    %5718 = vmatprep.subr.mxu0 0.0
    %5719 = vmatpush1.msra.mxu0 0.0
    %5720 = vmatprep.subr.mxu0 0.0
    %5721 = vmatpush1.msra.mxu0 0.0
    %5722 = vmatprep.subr.mxu0 0.0
    %5723 = vmatpush1.msra.mxu0 0.0
    %5724 = vmatprep.subr.mxu0 0.0
    %5725 = vmatpush1.msra.mxu0 0.0
    %5726 = vmatprep.subr.mxu0 0.0
    %5727 = vmatpush1.msra.mxu0 0.0
    %5728 = vmatprep.subr.mxu0 0.0
    %5729 = vmatpush1.msra.mxu0 %v5696
    %5730 = vmatprep.subr.mxu0 0.0
    %5731 = vmatpush1.msra.mxu0 %v5694
    %5732 = vmatprep.subr.mxu0 0.0
    %5733 = vmatpush1.msra.mxu0 %v5692
    %5734 = vmatprep.subr.mxu0 0.0
    %5735 = vmatpush1.msra.mxu0 %v5690
    %5736 = vmatprep.subr.mxu0 0.0
    %5737 = vmatpush2.msra.mxu0 0.0
    %5738 = vmatprep.subr.mxu0 0.0
    %5739 = vmatpush2.msra.mxu0 0.0
    %5740 = vmatprep.subr.mxu0 0.0
    %5741 = vmatpush2.msra.mxu0 0.0
    %5742 = vmatprep.subr.mxu0 0.0
    %5743 = vmatpush2.msra.mxu0 0.0
    %5744 = vmatprep.subr.mxu0 0.0
    %5745 = vmatpush2.msra.mxu0 0.0
    %5746 = vmatprep.subr.mxu0 0.0
    %5747 = vmatpush2.msra.mxu0 0.0
    %5748 = vmatprep.subr.mxu0 0.0
    %5749 = vmatpush2.msra.mxu0 0.0
    %5750 = vmatprep.subr.mxu0 0.0
    %5751 = vmatpush2.msra.mxu0 0.0
    %5752 = vmatprep.subr.mxu0 0.0
    %5753 = vmatpush2.msra.mxu0 0.0
    %5754 = vmatprep.subr.mxu0 0.0
    %5755 = vmatpush2.msra.mxu0 0.0
    %5756 = vmatprep.subr.mxu0 0.0
    %5757 = vmatpush2.msra.mxu0 0.0
    %5758 = vmatprep.subr.mxu0 0.0
    %5759 = vmatpush2.msra.mxu0 0.0
    %5760 = vmatprep.subr.mxu0 0.0
    %5761 = vmatpush2.msra.mxu0 0.0
    %5762 = vmatprep.subr.mxu0 0.0
    %5763 = vmatpush2.msra.mxu0 0.0
    %5764 = vmatprep.subr.mxu0 0.0
    %5765 = vmatpush2.msra.mxu0 0.0
    %5766 = vmatprep.subr.mxu0 0.0
    %5767 = vmatpush2.msra.mxu0 0.0
    %5768 = vmatprep.mubr.f32.mxu0 0.0
    %5769 = vmatmul.mubr.f32.gmra.mxu0 %v5702
    %v5770 = vpop.f32.mrf.mxu0
    %v5771 = vadd.f32 %v5149, %v5770
    %v5772 = vpop.f32.mrf.mxu0
    %5773 = vdwg.mxu0
    %v5774 = vadd.f32 %v5771, %v5224
    %v5775 = vsel %vm212, %v5774, 0.0
    %5776 = vadd.xlane.f32.xlu0 %v5775
    %v5777 = vpop.xlane.xlu0 %5776
    %v5778 = vmul.f32 %v5777, %v757
    %v5779 = vsub.f32 %v5774, %v5778
    %v5780 = vmul.f32 %v5779, %v5779
    %v5781 = vsel %vm212, %v5780, 0.0
    %5782 = vadd.xlane.f32.xlu0 %v5781
    %v5783 = vpop.xlane.xlu0 %5782
    %v5784 = vmul.f32 %v5783, %v757
    %v5785 = vadd.f32 %v5784, 1e-05
    %v5786 = vrsqrt.pop %v5785
    %v5787 = vmul.f32 %v5779, %v5786
    %v5788 = vmul.f32 %v5787, %v5150
    %v5789 = vadd.f32 %v5788, %v5151
    %v5790 = vmax.f32 %v5789, 0.0
    %v5792 = vsel %vm212, %v5790, 0
    %5794 = vmatprep.subr.mxu0 0.0
    %5795 = vmatpush1.msra.mxu0 0.0
    %5796 = vmatprep.subr.mxu0 0.0
    %5797 = vmatpush1.msra.mxu0 0.0
    %5798 = vmatprep.subr.mxu0 0.0
    %5799 = vmatpush1.msra.mxu0 0.0
    %5800 = vmatprep.subr.mxu0 0.0
    %5801 = vmatpush1.msra.mxu0 0.0
    %5802 = vmatprep.subr.mxu0 0.0
    %5803 = vmatpush1.msra.mxu0 0.0
    %5804 = vmatprep.subr.mxu0 0.0
    %5805 = vmatpush1.msra.mxu0 0.0
    %5806 = vmatprep.subr.mxu0 0.0
    %5807 = vmatpush1.msra.mxu0 0.0
    %5808 = vmatprep.subr.mxu0 0.0
    %5809 = vmatpush1.msra.mxu0 0.0
    %5810 = vmatprep.subr.mxu0 0.0
    %5811 = vmatpush1.msra.mxu0 0.0
    %5812 = vmatprep.subr.mxu0 0.0
    %5813 = vmatpush1.msra.mxu0 0.0
    %5814 = vmatprep.subr.mxu0 0.0
    %5815 = vmatpush1.msra.mxu0 0.0
    %5816 = vmatprep.subr.mxu0 0.0
    %5817 = vmatpush1.msra.mxu0 0.0
    %5818 = vmatprep.subr.mxu0 0.0
    %5819 = vmatpush1.msra.mxu0 %v5136
    %5820 = vmatprep.subr.mxu0 0.0
    %5821 = vmatpush1.msra.mxu0 %v5135
    %5822 = vmatprep.subr.mxu0 0.0
    %5823 = vmatpush1.msra.mxu0 %v5134
    %5824 = vmatprep.subr.mxu0 0.0
    %5825 = vmatpush1.msra.mxu0 %v5133
    %5826 = vmatprep.subr.mxu0 0.0
    %5827 = vmatpush2.msra.mxu0 0.0
    %5828 = vmatprep.subr.mxu0 0.0
    %5829 = vmatpush2.msra.mxu0 0.0
    %5830 = vmatprep.subr.mxu0 0.0
    %5831 = vmatpush2.msra.mxu0 0.0
    %5832 = vmatprep.subr.mxu0 0.0
    %5833 = vmatpush2.msra.mxu0 0.0
    %5834 = vmatprep.subr.mxu0 0.0
    %5835 = vmatpush2.msra.mxu0 0.0
    %5836 = vmatprep.subr.mxu0 0.0
    %5837 = vmatpush2.msra.mxu0 0.0
    %5838 = vmatprep.subr.mxu0 0.0
    %5839 = vmatpush2.msra.mxu0 0.0
    %5840 = vmatprep.subr.mxu0 0.0
    %5841 = vmatpush2.msra.mxu0 0.0
    %5842 = vmatprep.subr.mxu0 0.0
    %5843 = vmatpush2.msra.mxu0 0.0
    %5844 = vmatprep.subr.mxu0 0.0
    %5845 = vmatpush2.msra.mxu0 0.0
    %5846 = vmatprep.subr.mxu0 0.0
    %5847 = vmatpush2.msra.mxu0 0.0
    %5848 = vmatprep.subr.mxu0 0.0
    %5849 = vmatpush2.msra.mxu0 0.0
    %5850 = vmatprep.subr.mxu0 0.0
    %5851 = vmatpush2.msra.mxu0 0.0
    %5852 = vmatprep.subr.mxu0 0.0
    %5853 = vmatpush2.msra.mxu0 0.0
    %5854 = vmatprep.subr.mxu0 0.0
    %5855 = vmatpush2.msra.mxu0 0.0
    %5856 = vmatprep.subr.mxu0 0.0
    %5857 = vmatpush2.msra.mxu0 0.0
    %5858 = vmatprep.mubr.f32.mxu0 0.0
    %5859 = vmatmul.mubr.f32.gmra.mxu0 %v5792
    %v5860 = vpop.f32.mrf.mxu0
    %v5861 = vadd.f32 %v5152, %v5860
    %v5862 = vpop.f32.mrf.mxu0
    %5863 = vdwg.mxu0
    %v5864 = vmax.f32 %v5861, 0.0
    %v5866 = vsel %vm845, %v5864, 0
    %5868 = vmatprep.subr.mxu0 0.0
    %5869 = vmatpush1.msra.mxu0 0.0
    %5870 = vmatprep.subr.mxu0 0.0
    %5871 = vmatpush1.msra.mxu0 0.0
    %5872 = vmatprep.subr.mxu0 0.0
    %5873 = vmatpush1.msra.mxu0 0.0
    %5874 = vmatprep.subr.mxu0 0.0
    %5875 = vmatpush1.msra.mxu0 0.0
    %5876 = vmatprep.subr.mxu0 0.0
    %5877 = vmatpush1.msra.mxu0 0.0
    %5878 = vmatprep.subr.mxu0 0.0
    %5879 = vmatpush1.msra.mxu0 0.0
    %5880 = vmatprep.subr.mxu0 0.0
    %5881 = vmatpush1.msra.mxu0 0.0
    %5882 = vmatprep.subr.mxu0 0.0
    %5883 = vmatpush1.msra.mxu0 0.0
    %5884 = vmatprep.subr.mxu0 0.0
    %5885 = vmatpush1.msra.mxu0 %v5144
    %5886 = vmatprep.subr.mxu0 0.0
    %5887 = vmatpush1.msra.mxu0 %v5143
    %5888 = vmatprep.subr.mxu0 0.0
    %5889 = vmatpush1.msra.mxu0 %v5142
    %5890 = vmatprep.subr.mxu0 0.0
    %5891 = vmatpush1.msra.mxu0 %v5141
    %5892 = vmatprep.subr.mxu0 0.0
    %5893 = vmatpush1.msra.mxu0 %v5140
    %5894 = vmatprep.subr.mxu0 0.0
    %5895 = vmatpush1.msra.mxu0 %v5139
    %5896 = vmatprep.subr.mxu0 0.0
    %5897 = vmatpush1.msra.mxu0 %v5138
    %5898 = vmatprep.subr.mxu0 0.0
    %5899 = vmatpush1.msra.mxu0 %v5137
    %5900 = vmatprep.subr.mxu0 0.0
    %5901 = vmatpush2.msra.mxu0 0.0
    %5902 = vmatprep.subr.mxu0 0.0
    %5903 = vmatpush2.msra.mxu0 0.0
    %5904 = vmatprep.subr.mxu0 0.0
    %5905 = vmatpush2.msra.mxu0 0.0
    %5906 = vmatprep.subr.mxu0 0.0
    %5907 = vmatpush2.msra.mxu0 0.0
    %5908 = vmatprep.subr.mxu0 0.0
    %5909 = vmatpush2.msra.mxu0 0.0
    %5910 = vmatprep.subr.mxu0 0.0
    %5911 = vmatpush2.msra.mxu0 0.0
    %5912 = vmatprep.subr.mxu0 0.0
    %5913 = vmatpush2.msra.mxu0 0.0
    %5914 = vmatprep.subr.mxu0 0.0
    %5915 = vmatpush2.msra.mxu0 0.0
    %5916 = vmatprep.subr.mxu0 0.0
    %5917 = vmatpush2.msra.mxu0 0.0
    %5918 = vmatprep.subr.mxu0 0.0
    %5919 = vmatpush2.msra.mxu0 0.0
    %5920 = vmatprep.subr.mxu0 0.0
    %5921 = vmatpush2.msra.mxu0 0.0
    %5922 = vmatprep.subr.mxu0 0.0
    %5923 = vmatpush2.msra.mxu0 0.0
    %5924 = vmatprep.subr.mxu0 0.0
    %5925 = vmatpush2.msra.mxu0 0.0
    %5926 = vmatprep.subr.mxu0 0.0
    %5927 = vmatpush2.msra.mxu0 0.0
    %5928 = vmatprep.subr.mxu0 0.0
    %5929 = vmatpush2.msra.mxu0 0.0
    %5930 = vmatprep.subr.mxu0 0.0
    %5931 = vmatpush2.msra.mxu0 0.0
    %5932 = vmatprep.mubr.f32.mxu0 0.0
    %5933 = vmatmul.mubr.f32.gmra.mxu0 %v5866
    %v5934 = vpop.f32.mrf.mxu0
    %v5935 = vadd.f32 %v5153, %v5934
    %v5936 = vpop.f32.mrf.mxu0
    %5937 = vdwg.mxu0
    %v5938 = vmul.f32 %v5935, %v95
    %v5939 = vsel %vm926, %v5938, -1e+30
    %v5940 = vsel %vm126, %v5939, -inf
    %5941 = vmax.xlane.f32.xlu0 %v5940
    %v5942 = vpop.xlane.xlu0 %5941
    %v5943 = vsel %vm937, %v5938, -1e+30
    %v5944 = vsel %vm126, %v5943, -inf
    %5945 = vmax.xlane.f32.xlu0 %v5944
    %v5946 = vpop.xlane.xlu0 %5945
    %v5947 = vsel %vm948, %v5938, -1e+30
    %v5948 = vsel %vm126, %v5947, -inf
    %5949 = vmax.xlane.f32.xlu0 %v5948
    %v5950 = vpop.xlane.xlu0 %5949
    %v5951 = vmul.f32 %v5942, %v956
    %v5952 = vmul.f32 %v5946, %v961
    %v5953 = vadd.f32 %v5951, %v5952
    %v5954 = vmul.f32 %v5950, %v967
    %v5955 = vadd.f32 %v5953, %v5954
    %v5956 = vsub.f32 %v5938, %v5955
    %v5957 = vmul.f32 %v5956, %v974
    %v5958 = vmul.f32 %v5957, 1.442695
    %v5959 = vpow.pop %v5958
    %v5960 = vmul.f32 %v5959, %v974
    %v5962 = vsel %vm126, %v5960, 0
    %5964 = vmatprep.subr.mxu0 0.0
    %5965 = vmatpush1.xpose.msra.mxu0 0.0
    %5966 = vmatprep.subr.mxu0 0.0
    %5967 = vmatpush1.xpose.msra.mxu0 0.0
    %5968 = vmatprep.subr.mxu0 0.0
    %5969 = vmatpush1.xpose.msra.mxu0 0.0
    %5970 = vmatprep.subr.mxu0 0.0
    %5971 = vmatpush1.xpose.msra.mxu0 0.0
    %5972 = vmatprep.subr.mxu0 0.0
    %5973 = vmatpush1.xpose.msra.mxu0 0.0
    %5974 = vmatprep.subr.mxu0 0.0
    %5975 = vmatpush1.xpose.msra.mxu0 0.0
    %5976 = vmatprep.subr.mxu0 0.0
    %5977 = vmatpush1.xpose.msra.mxu0 0.0
    %5978 = vmatprep.subr.mxu0 0.0
    %5979 = vmatpush1.xpose.msra.mxu0 0.0
    %5980 = vmatprep.subr.mxu0 0.0
    %5981 = vmatpush1.xpose.msra.mxu0 0.0
    %5982 = vmatprep.subr.mxu0 0.0
    %5983 = vmatpush1.xpose.msra.mxu0 0.0
    %5984 = vmatprep.subr.mxu0 0.0
    %5985 = vmatpush1.xpose.msra.mxu0 0.0
    %5986 = vmatprep.subr.mxu0 0.0
    %5987 = vmatpush1.xpose.msra.mxu0 0.0
    %5988 = vmatprep.subr.mxu0 0.0
    %5989 = vmatpush1.xpose.msra.mxu0 0.0
    %5990 = vmatprep.subr.mxu0 0.0
    %5991 = vmatpush1.xpose.msra.mxu0 0.0
    %5992 = vmatprep.subr.mxu0 0.0
    %5993 = vmatpush1.xpose.msra.mxu0 0.0
    %5994 = vmatprep.subr.mxu0 0.0
    %5995 = vmatpush1.xpose.msra.mxu0 %v983
    %5996 = vmatprep.subr.mxu0 0.0
    %5997 = vmatpush2.xpose.msra.mxu0 0.0
    %5998 = vmatprep.subr.mxu0 0.0
    %5999 = vmatpush2.xpose.msra.mxu0 0.0
    %6000 = vmatprep.subr.mxu0 0.0
    %6001 = vmatpush2.xpose.msra.mxu0 0.0
    %6002 = vmatprep.subr.mxu0 0.0
    %6003 = vmatpush2.xpose.msra.mxu0 0.0
    %6004 = vmatprep.subr.mxu0 0.0
    %6005 = vmatpush2.xpose.msra.mxu0 0.0
    %6006 = vmatprep.subr.mxu0 0.0
    %6007 = vmatpush2.xpose.msra.mxu0 0.0
    %6008 = vmatprep.subr.mxu0 0.0
    %6009 = vmatpush2.xpose.msra.mxu0 0.0
    %6010 = vmatprep.subr.mxu0 0.0
    %6011 = vmatpush2.xpose.msra.mxu0 0.0
    %6012 = vmatprep.subr.mxu0 0.0
    %6013 = vmatpush2.xpose.msra.mxu0 0.0
    %6014 = vmatprep.subr.mxu0 0.0
    %6015 = vmatpush2.xpose.msra.mxu0 0.0
    %6016 = vmatprep.subr.mxu0 0.0
    %6017 = vmatpush2.xpose.msra.mxu0 0.0
    %6018 = vmatprep.subr.mxu0 0.0
    %6019 = vmatpush2.xpose.msra.mxu0 0.0
    %6020 = vmatprep.subr.mxu0 0.0
    %6021 = vmatpush2.xpose.msra.mxu0 0.0
    %6022 = vmatprep.subr.mxu0 0.0
    %6023 = vmatpush2.xpose.msra.mxu0 0.0
    %6024 = vmatprep.subr.mxu0 0.0
    %6025 = vmatpush2.xpose.msra.mxu0 0.0
    %6026 = vmatprep.subr.mxu0 0.0
    %6027 = vmatpush2.xpose.msra.mxu0 0.0
    %6028 = vmatprep.mubr.f32.mxu0 0.0
    %6029 = vmatmul.mubr.f32.gmra.mxu0 %v5962
    %v6030 = vpop.f32.mrf.mxu0
    %v6031 = vadd.f32 0.0, %v6030
    %v6032 = vpop.f32.mrf.mxu0
    %6033 = vdwg.mxu0
    %v6035 = vsel %vm290, %v6031, 0
    %6037 = vmatprep.subr.mxu0 0.0
    %6038 = vmatpush1.msra.mxu0 0.0
    %6039 = vmatprep.subr.mxu0 0.0
    %6040 = vmatpush1.msra.mxu0 0.0
    %6041 = vmatprep.subr.mxu0 0.0
    %6042 = vmatpush1.msra.mxu0 0.0
    %6043 = vmatprep.subr.mxu0 0.0
    %6044 = vmatpush1.msra.mxu0 0.0
    %6045 = vmatprep.subr.mxu0 0.0
    %6046 = vmatpush1.msra.mxu0 0.0
    %6047 = vmatprep.subr.mxu0 0.0
    %6048 = vmatpush1.msra.mxu0 0.0
    %6049 = vmatprep.subr.mxu0 0.0
    %6050 = vmatpush1.msra.mxu0 0.0
    %6051 = vmatprep.subr.mxu0 0.0
    %6052 = vmatpush1.msra.mxu0 0.0
    %6053 = vmatprep.subr.mxu0 0.0
    %6054 = vmatpush1.msra.mxu0 0.0
    %6055 = vmatprep.subr.mxu0 0.0
    %6056 = vmatpush1.msra.mxu0 0.0
    %6057 = vmatprep.subr.mxu0 0.0
    %6058 = vmatpush1.msra.mxu0 0.0
    %6059 = vmatprep.subr.mxu0 0.0
    %6060 = vmatpush1.msra.mxu0 0.0
    %6061 = vmatprep.subr.mxu0 0.0
    %6062 = vmatpush1.msra.mxu0 0.0
    %6063 = vmatprep.subr.mxu0 0.0
    %6064 = vmatpush1.msra.mxu0 0.0
    %6065 = vmatprep.subr.mxu0 0.0
    %6066 = vmatpush1.msra.mxu0 0.0
    %6067 = vmatprep.subr.mxu0 0.0
    %6068 = vmatpush1.msra.mxu0 %v77
    %6069 = vmatprep.subr.mxu0 0.0
    %6070 = vmatpush2.msra.mxu0 0.0
    %6071 = vmatprep.subr.mxu0 0.0
    %6072 = vmatpush2.msra.mxu0 0.0
    %6073 = vmatprep.subr.mxu0 0.0
    %6074 = vmatpush2.msra.mxu0 0.0
    %6075 = vmatprep.subr.mxu0 0.0
    %6076 = vmatpush2.msra.mxu0 0.0
    %6077 = vmatprep.subr.mxu0 0.0
    %6078 = vmatpush2.msra.mxu0 0.0
    %6079 = vmatprep.subr.mxu0 0.0
    %6080 = vmatpush2.msra.mxu0 0.0
    %6081 = vmatprep.subr.mxu0 0.0
    %6082 = vmatpush2.msra.mxu0 0.0
    %6083 = vmatprep.subr.mxu0 0.0
    %6084 = vmatpush2.msra.mxu0 0.0
    %6085 = vmatprep.subr.mxu0 0.0
    %6086 = vmatpush2.msra.mxu0 0.0
    %6087 = vmatprep.subr.mxu0 0.0
    %6088 = vmatpush2.msra.mxu0 0.0
    %6089 = vmatprep.subr.mxu0 0.0
    %6090 = vmatpush2.msra.mxu0 0.0
    %6091 = vmatprep.subr.mxu0 0.0
    %6092 = vmatpush2.msra.mxu0 0.0
    %6093 = vmatprep.subr.mxu0 0.0
    %6094 = vmatpush2.msra.mxu0 0.0
    %6095 = vmatprep.subr.mxu0 0.0
    %6096 = vmatpush2.msra.mxu0 0.0
    %6097 = vmatprep.subr.mxu0 0.0
    %6098 = vmatpush2.msra.mxu0 0.0
    %6099 = vmatprep.subr.mxu0 0.0
    %6100 = vmatpush2.msra.mxu0 0.0
    %6101 = vmatprep.mubr.f32.mxu0 0.0
    %6102 = vmatmul.mubr.f32.gmra.mxu0 %v6035
    %v6103 = vpop.f32.mrf.mxu0
    %v6104 = vadd.f32 %v1058, %v6103
    %v6105 = vpop.f32.mrf.mxu0
    %6106 = vdwg.mxu0
    %v6107 = vrcp.pop %v6104
    %v6108 = vmul.f32 %v5960, %v6107
    %v6109 = vmul.f32 %v5938, %v1058
    %v6110 = vsub.f32 0.0, %v6109
    %v6111 = vmul.f32 %v6110, 1.442695
    %v6112 = vpow.pop %v6111
    %v6113 = vadd.f32 %v6112, 1.0
    %v6114 = vrcp.pop %v6113
    %v6115 = vmul.f32 %v6114, %v1058
    %v6116 = vadd.f32 %v6108, %v6115
    %v6117 = vadd.f32 %v1141, %v2136
    %v6118 = vadd.f32 %v6117, %v3131
    %v6119 = vadd.f32 %v6118, %v4126
    %v6120 = vmul.f32 %v6119, 0.25
    %v6121 = vmin.f32 %v1141, %v2136
    %v6122 = vmax.f32 %v1141, %v2136
    %v6123 = vmin.f32 %v6122, %v3131
    %v6124 = vmax.f32 %v6122, %v3131
    %v6125 = vmin.f32 %v6124, %v4126
    %v6126 = vmax.f32 %v6124, %v4126
    %v6127 = vmin.f32 %v6126, %v5121
    %v6128 = vmax.f32 %v6126, %v5121
    %v6129 = vmin.f32 %v6128, %v6116
    %v6130 = vmax.f32 %v6128, %v6116
    %v6131 = vmin.f32 %v6121, %v6123
    %v6132 = vmax.f32 %v6121, %v6123
    %v6133 = vmin.f32 %v6132, %v6125
    %v6134 = vmax.f32 %v6132, %v6125
    %v6135 = vmin.f32 %v6134, %v6127
    %v6136 = vmax.f32 %v6134, %v6127
    %v6137 = vmin.f32 %v6136, %v6129
    %v6138 = vmax.f32 %v6136, %v6129
    %v6139 = vmin.f32 %v6131, %v6133
    %v6140 = vmax.f32 %v6131, %v6133
    %v6141 = vmin.f32 %v6140, %v6135
    %v6142 = vmax.f32 %v6140, %v6135
    %v6143 = vmin.f32 %v6142, %v6137
    %v6144 = vmin.f32 %v6139, %v6141
    %v6145 = vmax.f32 %v6139, %v6141
    %v6146 = vmin.f32 %v6145, %v6143
    %v6147 = vmin.f32 %v6144, %v6146
    %v6148 = vmax.f32 %v6144, %v6146
    %v6149 = vsub.f32 %v6148, %v6147
    %v6150 = vmul.f32 %v6149, 0.5
    %v6151 = vadd.f32 %v6147, %v6150
    %v6152 = vsub.f32 %v6130, %v6138
    %v6153 = vmul.f32 %v6152, 0.5
    %v6154 = vadd.f32 %v6138, %v6153
    %6156 = vrot.lane.b32.xlu0 %v6151, 16
    %v6157 = vpop.permute.xlu0 %6156
    %6160 = vrot.lane.b32.xlu0 %v6154, 32
    %v6161 = vpop.permute.xlu0 %6160
    %v6163 = vsel %vm126, %v6120, %v6157
    %v6164 = vsel %vm212, %v6163, %v6161
    %vm6165 = vcmask 392192
    %6166 = vst.msk [vmem:[%s4] sm:$0xff] %vm6165, %v6164
    // Predicated region
    $region34: #{endpoint_ensemble_forward.1} parent=1 // pred_check
      _
    $region35: #{endpoint_ensemble_forward.1} parent=1 // pred_check_branch
      %6168 = sbr.rel (0) target = $region37
    $region36: #{endpoint_ensemble_forward.1} parent=1 // pred_region
      _
    $region37: #{endpoint_ensemble_forward.1} parent=1 // pred_fallthru
      _
    // Predicated region
    $region38: #{endpoint_ensemble_forward.1} parent=1 // pred_check
      _
    $region39: #{endpoint_ensemble_forward.1} parent=1 // pred_check_branch
      %6170 = sbr.rel (0) target = $region41
    $region40: #{endpoint_ensemble_forward.1} parent=1 // pred_region
      _
    $region41: #{endpoint_ensemble_forward.1} parent=1 // pred_fallthru
      _
    %6171 = vsyncpa [#allocation3], 1
    %6172 = vsyncpa [#allocation5], 1
    %6173 = vsyncpa [#allocation8], 1

</llo_original>
